<compile_context>
chip_gen: v5e
topology: v5e:2x2
jax: 0.10.0
libtpu: 0.0.40
codegen_flags: <defaults>
</compile_context>

<pallas_src>
import functools

import jax
import jax.numpy as jnp
from jax import lax
from jax.experimental import pallas as pl
from jax.experimental.pallas import tpu as pltpu

# ---------------- model / test configuration ----------------
IN_CHANNEL = 3
N_HIDS = 32
TIME_STEPS = 4
K = 4
NUM_CLASSES = 10
N_POINTS = 128
BATCH = 2
BN_EPS = 1e-5


# ---------------- fused kernel: kNN + EdgeConv + max pool + MLP head ----------------
def _edge_rnn_kernel(x_nc_ref, x_cn_ref, wa_ref, wd_ref, be_ref,
                     w1_ref, b1_ref, sc1_ref, sh1_ref,
                     w2_ref, b2_ref, sc2_ref, sh2_ref,
                     w3_ref, b3_ref, o_ref, sel_ref, *, k):
    """One batch sample per grid step.

    x_nc_ref : (1, T, N, C) point-major coords (matmul-LHS operands)
    x_cn_ref : (1, T, C, N) coordinate-major coords (lane-dense |x|^2 / matmul-RHS)
    wa_ref   : (C, H) folded neighbour weight (W_tgt - W_diff);  wd_ref: (C, H) W_diff
    be_ref   : (1, H) EdgeConv bias
    w*/b*/sc*/sh* : MLP head weights / biases / folded BatchNorm(eval) affine
    o_ref    : (1, 1, NUM_CLASSES) log-probs
    sel_ref  : VMEM scratch (k*N, N) stacked one-hot gather matrices
    """
    T = x_nc_ref.shape[1]
    N = x_nc_ref.shape[2]
    H = wa_ref.shape[1]

    wa = wa_ref[...]
    wd = wd_ref[...]
    be = be_ref[...]
    col_ids = lax.broadcasted_iota(jnp.int32, (N, N), 1)

    pooled_feats = []
    for t in range(1, T):
        xq_nc = x_nc_ref[0, t]        # (N, C) frame t   (queries / edge sources)
        xn_nc = x_nc_ref[0, t - 1]    # (N, C) frame t-1 (neighbours / edge targets)
        xn_cn = x_cn_ref[0, t - 1]    # (C, N) frame t-1, coordinate-major

        # Squared-distance surrogate |x_j|^2 - 2 x_i.x_j (the per-query |x_i|^2 term is
        # constant per row and does not change the kNN ordering).
        cross = jnp.dot(xq_nc, xn_cn, preferred_element_type=jnp.float32)      # (N, N)
        sq_n = jnp.sum(xn_cn * xn_cn, axis=0, keepdims=True)                   # (1, N)
        d = sq_n - 2.0 * cross                                                 # (N, N)

        # Folded EdgeConv linear: raw_msg(i<-j) = a_feat[j] + p_feat[i]
        a_feat = jnp.dot(xn_nc, wa, preferred_element_type=jnp.float32)        # (N, H)
        p_feat = jnp.dot(xq_nc, wd, preferred_element_type=jnp.float32) + be   # (N, H)

        # k selection rounds (VPU/XLU only): stack one-hot gather matrices in VMEM.
        for r in range(k):
            minval = jnp.min(d, axis=1, keepdims=True)                               # (N, 1)
            is_min = d <= minval
            idx = jnp.min(jnp.where(is_min, col_ids, N), axis=1, keepdims=True)      # (N, 1)
            sel = col_ids == idx                                                     # one-hot
            sel_ref[pl.ds(r * N, N), :] = sel.astype(jnp.float32)
            d = jnp.where(sel, 1e30, d)                                              # drop for next round

        # One MXU matmul gathers neighbour features for all k rounds: (k*N, N) @ (N, H).
        gathered = jnp.dot(sel_ref[...], a_feat, preferred_element_type=jnp.float32)

        # max over rounds, then over queries; ReLU commutes with max and the final
        # clamp to 0 reproduces the zero fill for frame-t nodes with no incoming edge.
        g = gathered[0:N, :]
        for r in range(1, k):
            g = jnp.maximum(g, gathered[r * N:(r + 1) * N, :])                       # (N, H)
        pooled = jnp.maximum(jnp.max(g + p_feat, axis=0, keepdims=True), 0.0)        # (1, H)
        pooled_feats.append(pooled)

    # ---- fused MLP head (eval mode); s = concat_t pooled_t never leaves registers ----
    # s @ W1 is accumulated per time-step slice of W1 (avoids a 32-lane concat).
    h = b1_ref[...]
    for ti, pooled in enumerate(pooled_feats):
        h = h + jnp.dot(pooled, w1_ref[pl.ds(ti * H, H), :],
                        preferred_element_type=jnp.float32)
    h = jnp.maximum(h, 0.0) * sc1_ref[...] + sh1_ref[...]      # ReLU -> BN(512), eval
    # Dropout(0.5) -> identity in eval mode.
    h = jnp.maximum(jnp.dot(h, w2_ref[...], preferred_element_type=jnp.float32)
                    + b2_ref[...], 0.0)
    h = h * sc2_ref[...] + sh2_ref[...]                        # ReLU -> BN(256), eval
    logits = jnp.dot(h, w3_ref[...], preferred_element_type=jnp.float32) + b3_ref[...]
    z = logits - jnp.max(logits, axis=1, keepdims=True)
    lse = jnp.log(jnp.sum(jnp.exp(z), axis=1, keepdims=True))
    o_ref[0] = z - lse                                         # log_softmax(dim=1)


# ---------------- wrapper ----------------
def edge_rnn_cell_forward(x, params):
    B, T, N, C = x.shape
    H = params["we"].shape[1]
    w_tgt = params["we"][:C]                 # multiplies x_tgt (frame t-1 neighbour)
    w_diff = params["we"][C:]                # multiplies x_src - x_tgt
    w_fold = w_tgt - w_diff                  # neighbour features: A = x_tgt @ w_fold
    x_cn = jnp.transpose(x, (0, 1, 3, 2))    # (B, T, C, N) coordinate-major copy

    out = pl.pallas_call(
        functools.partial(_edge_rnn_kernel, k=K),
        out_shape=jax.ShapeDtypeStruct((B, 1, NUM_CLASSES), jnp.float32),
        grid=(B,),
        in_specs=[
            pl.BlockSpec((1, T, N, C), lambda b: (b, 0, 0, 0)),
            pl.BlockSpec((1, T, C, N), lambda b: (b, 0, 0, 0)),
            pl.BlockSpec((C, H), lambda b: (0, 0)),
            pl.BlockSpec((C, H), lambda b: (0, 0)),
            pl.BlockSpec((1, H), lambda b: (0, 0)),
            pl.BlockSpec(((T - 1) * H, 512), lambda b: (0, 0)),
            pl.BlockSpec((1, 512), lambda b: (0, 0)),
            pl.BlockSpec((1, 512), lambda b: (0, 0)),
            pl.BlockSpec((1, 512), lambda b: (0, 0)),
            pl.BlockSpec((512, 256), lambda b: (0, 0)),
            pl.BlockSpec((1, 256), lambda b: (0, 0)),
            pl.BlockSpec((1, 256), lambda b: (0, 0)),
            pl.BlockSpec((1, 256), lambda b: (0, 0)),
            pl.BlockSpec((256, NUM_CLASSES), lambda b: (0, 0)),
            pl.BlockSpec((1, NUM_CLASSES), lambda b: (0, 0)),
        ],
        out_specs=pl.BlockSpec((1, 1, NUM_CLASSES), lambda b: (b, 0, 0)),
        scratch_shapes=[pltpu.VMEM((K * N, N), jnp.float32)],
        compiler_params=pltpu.CompilerParams(dimension_semantics=("parallel",)),
    )(x, x_cn, w_fold, w_diff, params["be"],
      params["w1"], params["b1"], params["sc1"], params["sh1"],
      params["w2"], params["b2"], params["sc2"], params["sh2"],
      params["w3"], params["b3"])
    return out.reshape(B, NUM_CLASSES)


# ---------------- deterministic parameter init ----------------
def init_params(key):
    keys = jax.random.split(key, 4)

    def lin(k, fan_in, fan_out):
        bound = 1.0 / jnp.sqrt(jnp.float32(fan_in))
        kw, kb = jax.random.split(k)
        w = jax.random.uniform(kw, (fan_in, fan_out), jnp.float32, -bound, bound)
        b = jax.random.uniform(kb, (1, fan_out), jnp.float32, -bound, bound)
        return w, b

    we, be = lin(keys[0], 2 * IN_CHANNEL, N_HIDS)            # EdgeConv Linear(2*in, n_hids)
    feat = (TIME_STEPS - 1) * N_HIDS
    w1, b1 = lin(keys[1], feat, 512)
    w2, b2 = lin(keys[2], 512, 256)
    w3, b3 = lin(keys[3], 256, NUM_CLASSES)
    # BatchNorm1d eval mode with default stats: gamma=1, beta=0, mean=0, var=1.
    bn_scale = 1.0 / jnp.sqrt(1.0 + BN_EPS)
    sc1 = jnp.full((1, 512), bn_scale, jnp.float32)
    sh1 = jnp.zeros((1, 512), jnp.float32)
    sc2 = jnp.full((1, 256), bn_scale, jnp.float32)
    sh2 = jnp.zeros((1, 256), jnp.float32)
    return dict(we=we, be=be, w1=w1, b1=b1, sc1=sc1, sh1=sh1,
                w2=w2, b2=b2, sc2=sc2, sh2=sh2, w3=w3, b3=b3)


# ---------------- pure-JAX reference for validation ----------------
def reference_forward(x, params):
    B, T, N, C = x.shape
    we, be = params["we"], params["be"]
    feats = []
    for t in range(1, T):
        xyz1, xyz2 = x[:, t], x[:, t - 1]
        d = jnp.sum((xyz1[:, :, None, :] - xyz2[:, None, :, :]) ** 2, axis=-1)   # (B,N,N)
        _, idx = lax.top_k(-d, K)                                                # (B,N,K)
        nbr = jax.vmap(lambda pts, ii: pts[ii])(xyz2, idx)                       # (B,N,K,3)
        ef = jnp.concatenate([nbr, xyz1[:, :, None, :] - nbr], axis=-1)          # (B,N,K,6)
        msg = jnp.maximum(ef @ we + be[0], 0.0)                                  # (B,N,K,H)
        feats.append(jnp.maximum(jnp.max(msg, axis=(1, 2)), 0.0))                # (B,H)
    s = jnp.concatenate(feats, axis=1)
    h = jnp.maximum(s @ params["w1"] + params["b1"], 0.0) * params["sc1"] + params["sh1"]
    h = jnp.maximum(h @ params["w2"] + params["b2"], 0.0) * params["sc2"] + params["sh2"]
    logits = h @ params["w3"] + params["b3"]
    return jax.nn.log_softmax(logits, axis=1)


if __name__ == "__main__":
    key = jax.random.PRNGKey(0)
    kx, kp = jax.random.split(key)
    x = jax.random.normal(kx, (BATCH, TIME_STEPS, N_POINTS, IN_CHANNEL), jnp.float32)
    params = init_params(kp)

    out = jax.block_until_ready(edge_rnn_cell_forward(x, params))
    ref = reference_forward(x, params)

    assert out.shape == (BATCH, NUM_CLASSES), out.shape
    assert bool(jnp.all(jnp.isfinite(out)))
    assert bool(jnp.allclose(out, ref, atol=2e-3, rtol=2e-3)), (out, ref)
    print("KERNEL_OK")
</pallas_src>

<mosaic_0001>
module attributes {stable_mosaic.version = 11 : i64} {
  func.func @_edge_rnn_kernel(%arg0: i32, %arg1: memref<1x4x128x3xf32, #tpu.memory_space<vmem>>, %arg2: memref<1x4x3x128xf32, #tpu.memory_space<vmem>>, %arg3: memref<3x32xf32, #tpu.memory_space<vmem>>, %arg4: memref<3x32xf32, #tpu.memory_space<vmem>>, %arg5: memref<1x32xf32, #tpu.memory_space<vmem>>, %arg6: memref<96x512xf32, #tpu.memory_space<vmem>>, %arg7: memref<1x512xf32, #tpu.memory_space<vmem>>, %arg8: memref<1x512xf32, #tpu.memory_space<vmem>>, %arg9: memref<1x512xf32, #tpu.memory_space<vmem>>, %arg10: memref<512x256xf32, #tpu.memory_space<vmem>>, %arg11: memref<1x256xf32, #tpu.memory_space<vmem>>, %arg12: memref<1x256xf32, #tpu.memory_space<vmem>>, %arg13: memref<1x256xf32, #tpu.memory_space<vmem>>, %arg14: memref<256x10xf32, #tpu.memory_space<vmem>>, %arg15: memref<1x10xf32, #tpu.memory_space<vmem>>, %arg16: memref<1x1x10xf32, #tpu.memory_space<vmem>>, %arg17: memref<512x128xf32, #tpu.memory_space<vmem>>) attributes {dimension_semantics = [#tpu.dimension_semantics<parallel>], iteration_bounds = array<i64: 2>, scalar_prefetch = 0 : i64, scratch_operands = 1 : i64, tpu.core_type = #tpu.core_type<tc>, window_params = [{transform_indices = @transform_0, window_bounds = array<i64: 1, 4, 128, 3>}, {transform_indices = @transform_1, window_bounds = array<i64: 1, 4, 3, 128>}, {pipeline_mode = #tpu.pipeline_mode<synchronous>, transform_indices = @transform_2, window_bounds = array<i64: 3, 32>}, {pipeline_mode = #tpu.pipeline_mode<synchronous>, transform_indices = @transform_3, window_bounds = array<i64: 3, 32>}, {pipeline_mode = #tpu.pipeline_mode<synchronous>, transform_indices = @transform_4, window_bounds = array<i64: 1, 32>}, {pipeline_mode = #tpu.pipeline_mode<synchronous>, transform_indices = @transform_5, window_bounds = array<i64: 96, 512>}, {pipeline_mode = #tpu.pipeline_mode<synchronous>, transform_indices = @transform_6, window_bounds = array<i64: 1, 512>}, {pipeline_mode = #tpu.pipeline_mode<synchronous>, transform_indices = @transform_7, window_bounds = array<i64: 1, 512>}, {pipeline_mode = #tpu.pipeline_mode<synchronous>, transform_indices = @transform_8, window_bounds = array<i64: 1, 512>}, {pipeline_mode = #tpu.pipeline_mode<synchronous>, transform_indices = @transform_9, window_bounds = array<i64: 512, 256>}, {pipeline_mode = #tpu.pipeline_mode<synchronous>, transform_indices = @transform_10, window_bounds = array<i64: 1, 256>}, {pipeline_mode = #tpu.pipeline_mode<synchronous>, transform_indices = @transform_11, window_bounds = array<i64: 1, 256>}, {pipeline_mode = #tpu.pipeline_mode<synchronous>, transform_indices = @transform_12, window_bounds = array<i64: 1, 256>}, {pipeline_mode = #tpu.pipeline_mode<synchronous>, transform_indices = @transform_13, window_bounds = array<i64: 256, 10>}, {pipeline_mode = #tpu.pipeline_mode<synchronous>, transform_indices = @transform_14, window_bounds = array<i64: 1, 10>}, {transform_indices = @transform_15, window_bounds = array<i64: 1, 1, 10>}]} {
    %c0 = arith.constant 0 : index
    %c0_0 = arith.constant 0 : index
    %0 = vector.load %arg3[%c0, %c0_0] : memref<3x32xf32, #tpu.memory_space<vmem>>, vector<3x32xf32>
    %c0_1 = arith.constant 0 : index
    %c0_2 = arith.constant 0 : index
    %1 = vector.load %arg4[%c0_1, %c0_2] : memref<3x32xf32, #tpu.memory_space<vmem>>, vector<3x32xf32>
    %c0_3 = arith.constant 0 : index
    %c0_4 = arith.constant 0 : index
    %2 = vector.load %arg5[%c0_3, %c0_4] : memref<1x32xf32, #tpu.memory_space<vmem>>, vector<1x32xf32>
    %3 = tpu.iota {dimensions = array<i32: 1>} : vector<128x128xi32>
    %c0_5 = arith.constant 0 : index
    %c1 = arith.constant 1 : index
    %c0_6 = arith.constant 0 : index
    %c0_7 = arith.constant 0 : index
    %4 = vector.load %arg1[%c0_5, %c1, %c0_6, %c0_7] : memref<1x4x128x3xf32, #tpu.memory_space<vmem>>, vector<1x1x128x3xf32>
    %5 = vector.shape_cast %4 : vector<1x1x128x3xf32> to vector<128x3xf32>
    %c0_8 = arith.constant 0 : index
    %c0_9 = arith.constant 0 : index
    %c0_10 = arith.constant 0 : index
    %c0_11 = arith.constant 0 : index
    %6 = vector.load %arg1[%c0_8, %c0_9, %c0_10, %c0_11] : memref<1x4x128x3xf32, #tpu.memory_space<vmem>>, vector<1x1x128x3xf32>
    %7 = vector.shape_cast %6 : vector<1x1x128x3xf32> to vector<128x3xf32>
    %c0_12 = arith.constant 0 : index
    %c0_13 = arith.constant 0 : index
    %c0_14 = arith.constant 0 : index
    %c0_15 = arith.constant 0 : index
    %8 = vector.load %arg2[%c0_12, %c0_13, %c0_14, %c0_15] : memref<1x4x3x128xf32, #tpu.memory_space<vmem>>, vector<1x1x3x128xf32>
    %9 = vector.shape_cast %8 : vector<1x1x3x128xf32> to vector<3x128xf32>
    %cst = arith.constant dense<0.000000e+00> : vector<128x128xf32>
    %10 = tpu.matmul %5, %9, %cst {dimension_numbers = #tpu.dot_dimension_numbers<[1], [0], [0], [1], [0, 0, 1, 1], [], []>} : vector<128x3xf32>, vector<3x128xf32>, vector<128x128xf32> -> vector<128x128xf32>
    %11 = arith.mulf %9, %9 : vector<3x128xf32>
    %cst_16 = arith.constant dense<0.000000e+00> : vector<128xf32>
    %12 = vector.multi_reduction <add>, %11, %cst_16 [0] : vector<3x128xf32> to vector<128xf32>
    %13 = vector.shape_cast %12 : vector<128xf32> to vector<1x128xf32>
    %cst_17 = arith.constant 2.000000e+00 : f32
    %14 = vector.broadcast %cst_17 : f32 to vector<128x128xf32>
    %15 = arith.mulf %14, %10 : vector<128x128xf32>
    %16 = vector.broadcast %13 : vector<1x128xf32> to vector<128x128xf32>
    %17 = arith.subf %16, %15 : vector<128x128xf32>
    %cst_18 = arith.constant dense<0.000000e+00> : vector<128x32xf32>
    %18 = tpu.matmul %7, %0, %cst_18 {dimension_numbers = #tpu.dot_dimension_numbers<[1], [0], [0], [1], [0, 0, 1, 1], [], []>} : vector<128x3xf32>, vector<3x32xf32>, vector<128x32xf32> -> vector<128x32xf32>
    %cst_19 = arith.constant dense<0.000000e+00> : vector<128x32xf32>
    %19 = tpu.matmul %5, %1, %cst_19 {dimension_numbers = #tpu.dot_dimension_numbers<[1], [0], [0], [1], [0, 0, 1, 1], [], []>} : vector<128x3xf32>, vector<3x32xf32>, vector<128x32xf32> -> vector<128x32xf32>
    %20 = vector.broadcast %2 : vector<1x32xf32> to vector<128x32xf32>
    %21 = arith.addf %19, %20 : vector<128x32xf32>
    %cst_20 = arith.constant dense<0x7F800000> : vector<128xf32>
    %22 = vector.multi_reduction <minimumf>, %17, %cst_20 [1] : vector<128x128xf32> to vector<128xf32>
    %23 = vector.shape_cast %22 : vector<128xf32> to vector<128x1xf32>
    %24 = vector.broadcast %23 : vector<128x1xf32> to vector<128x128xf32>
    %25 = arith.cmpf ole, %17, %24 : vector<128x128xf32>
    %c128_i32 = arith.constant 128 : i32
    %26 = vector.broadcast %c128_i32 : i32 to vector<128x128xi32>
    %27 = arith.select %25, %3, %26 : vector<128x128xi1>, vector<128x128xi32>
    %cst_21 = arith.constant dense<2147483647> : vector<128xi32>
    %28 = vector.multi_reduction <minsi>, %27, %cst_21 [1] : vector<128x128xi32> to vector<128xi32>
    %29 = vector.shape_cast %28 : vector<128xi32> to vector<128x1xi32>
    %30 = vector.broadcast %29 : vector<128x1xi32> to vector<128x128xi32>
    %31 = arith.cmpi eq, %3, %30 : vector<128x128xi32>
    %32 = arith.extui %31 : vector<128x128xi1> to vector<128x128xi32>
    %33 = arith.sitofp %32 : vector<128x128xi32> to vector<128x128xf32>
    %c0_22 = arith.constant 0 : index
    %c0_23 = arith.constant 0 : index
    %34 = vector.load %arg17[%c0_22, %c0_23] : memref<512x128xf32, #tpu.memory_space<vmem>>, vector<128x128xf32>
    tpu.vector_store %arg17[%c0_22, %c0_23], %33 {strides = array<i32>} : memref<512x128xf32, #tpu.memory_space<vmem>>, vector<128x128xf32>,
    %cst_24 = arith.constant 1.000000e+30 : f32
    %35 = vector.broadcast %cst_24 : f32 to vector<128x128xf32>
    %36 = arith.select %31, %35, %17 : vector<128x128xi1>, vector<128x128xf32>
    %cst_25 = arith.constant dense<0x7F800000> : vector<128xf32>
    %37 = vector.multi_reduction <minimumf>, %36, %cst_25 [1] : vector<128x128xf32> to vector<128xf32>
    %38 = vector.shape_cast %37 : vector<128xf32> to vector<128x1xf32>
    %39 = vector.broadcast %38 : vector<128x1xf32> to vector<128x128xf32>
    %40 = arith.cmpf ole, %36, %39 : vector<128x128xf32>
    %c128_i32_26 = arith.constant 128 : i32
    %41 = vector.broadcast %c128_i32_26 : i32 to vector<128x128xi32>
    %42 = arith.select %40, %3, %41 : vector<128x128xi1>, vector<128x128xi32>
    %cst_27 = arith.constant dense<2147483647> : vector<128xi32>
    %43 = vector.multi_reduction <minsi>, %42, %cst_27 [1] : vector<128x128xi32> to vector<128xi32>
    %44 = vector.shape_cast %43 : vector<128xi32> to vector<128x1xi32>
    %45 = vector.broadcast %44 : vector<128x1xi32> to vector<128x128xi32>
    %46 = arith.cmpi eq, %3, %45 : vector<128x128xi32>
    %47 = arith.extui %46 : vector<128x128xi1> to vector<128x128xi32>
    %48 = arith.sitofp %47 : vector<128x128xi32> to vector<128x128xf32>
    %c128 = arith.constant 128 : index
    %c0_28 = arith.constant 0 : index
    %49 = vector.load %arg17[%c128, %c0_28] : memref<512x128xf32, #tpu.memory_space<vmem>>, vector<128x128xf32>
    tpu.vector_store %arg17[%c128, %c0_28], %48 {strides = array<i32>} : memref<512x128xf32, #tpu.memory_space<vmem>>, vector<128x128xf32>,
    %cst_29 = arith.constant 1.000000e+30 : f32
    %50 = vector.broadcast %cst_29 : f32 to vector<128x128xf32>
    %51 = arith.select %46, %50, %36 : vector<128x128xi1>, vector<128x128xf32>
    %cst_30 = arith.constant dense<0x7F800000> : vector<128xf32>
    %52 = vector.multi_reduction <minimumf>, %51, %cst_30 [1] : vector<128x128xf32> to vector<128xf32>
    %53 = vector.shape_cast %52 : vector<128xf32> to vector<128x1xf32>
    %54 = vector.broadcast %53 : vector<128x1xf32> to vector<128x128xf32>
    %55 = arith.cmpf ole, %51, %54 : vector<128x128xf32>
    %c128_i32_31 = arith.constant 128 : i32
    %56 = vector.broadcast %c128_i32_31 : i32 to vector<128x128xi32>
    %57 = arith.select %55, %3, %56 : vector<128x128xi1>, vector<128x128xi32>
    %cst_32 = arith.constant dense<2147483647> : vector<128xi32>
    %58 = vector.multi_reduction <minsi>, %57, %cst_32 [1] : vector<128x128xi32> to vector<128xi32>
    %59 = vector.shape_cast %58 : vector<128xi32> to vector<128x1xi32>
    %60 = vector.broadcast %59 : vector<128x1xi32> to vector<128x128xi32>
    %61 = arith.cmpi eq, %3, %60 : vector<128x128xi32>
    %62 = arith.extui %61 : vector<128x128xi1> to vector<128x128xi32>
    %63 = arith.sitofp %62 : vector<128x128xi32> to vector<128x128xf32>
    %c256 = arith.constant 256 : index
    %c0_33 = arith.constant 0 : index
    %64 = vector.load %arg17[%c256, %c0_33] : memref<512x128xf32, #tpu.memory_space<vmem>>, vector<128x128xf32>
    tpu.vector_store %arg17[%c256, %c0_33], %63 {strides = array<i32>} : memref<512x128xf32, #tpu.memory_space<vmem>>, vector<128x128xf32>,
    %cst_34 = arith.constant 1.000000e+30 : f32
    %65 = vector.broadcast %cst_34 : f32 to vector<128x128xf32>
    %66 = arith.select %61, %65, %51 : vector<128x128xi1>, vector<128x128xf32>
    %cst_35 = arith.constant dense<0x7F800000> : vector<128xf32>
    %67 = vector.multi_reduction <minimumf>, %66, %cst_35 [1] : vector<128x128xf32> to vector<128xf32>
    %68 = vector.shape_cast %67 : vector<128xf32> to vector<128x1xf32>
    %69 = vector.broadcast %68 : vector<128x1xf32> to vector<128x128xf32>
    %70 = arith.cmpf ole, %66, %69 : vector<128x128xf32>
    %c128_i32_36 = arith.constant 128 : i32
    %71 = vector.broadcast %c128_i32_36 : i32 to vector<128x128xi32>
    %72 = arith.select %70, %3, %71 : vector<128x128xi1>, vector<128x128xi32>
    %cst_37 = arith.constant dense<2147483647> : vector<128xi32>
    %73 = vector.multi_reduction <minsi>, %72, %cst_37 [1] : vector<128x128xi32> to vector<128xi32>
    %74 = vector.shape_cast %73 : vector<128xi32> to vector<128x1xi32>
    %75 = vector.broadcast %74 : vector<128x1xi32> to vector<128x128xi32>
    %76 = arith.cmpi eq, %3, %75 : vector<128x128xi32>
    %77 = arith.extui %76 : vector<128x128xi1> to vector<128x128xi32>
    %78 = arith.sitofp %77 : vector<128x128xi32> to vector<128x128xf32>
    %c384 = arith.constant 384 : index
    %c0_38 = arith.constant 0 : index
    %79 = vector.load %arg17[%c384, %c0_38] : memref<512x128xf32, #tpu.memory_space<vmem>>, vector<128x128xf32>
    tpu.vector_store %arg17[%c384, %c0_38], %78 {strides = array<i32>} : memref<512x128xf32, #tpu.memory_space<vmem>>, vector<128x128xf32>,
    %c0_39 = arith.constant 0 : index
    %c0_40 = arith.constant 0 : index
    %80 = vector.load %arg17[%c0_39, %c0_40] : memref<512x128xf32, #tpu.memory_space<vmem>>, vector<512x128xf32>
    %cst_41 = arith.constant dense<0.000000e+00> : vector<512x32xf32>
    %81 = tpu.matmul %80, %18, %cst_41 {dimension_numbers = #tpu.dot_dimension_numbers<[1], [0], [0], [1], [0, 0, 1, 1], [], []>} : vector<512x128xf32>, vector<128x32xf32>, vector<512x32xf32> -> vector<512x32xf32>
    %82 = vector.extract_strided_slice %81 {offsets = [0, 0], sizes = [128, 32], strides = [1, 1]} : vector<512x32xf32> to vector<128x32xf32>
    %83 = vector.extract_strided_slice %81 {offsets = [128, 0], sizes = [128, 32], strides = [1, 1]} : vector<512x32xf32> to vector<128x32xf32>
    %84 = arith.maximumf %82, %83 : vector<128x32xf32>
    %85 = vector.extract_strided_slice %81 {offsets = [256, 0], sizes = [128, 32], strides = [1, 1]} : vector<512x32xf32> to vector<128x32xf32>
    %86 = arith.maximumf %84, %85 : vector<128x32xf32>
    %87 = vector.extract_strided_slice %81 {offsets = [384, 0], sizes = [128, 32], strides = [1, 1]} : vector<512x32xf32> to vector<128x32xf32>
    %88 = arith.maximumf %86, %87 : vector<128x32xf32>
    %89 = arith.addf %88, %21 : vector<128x32xf32>
    %cst_42 = arith.constant dense<0xFF800000> : vector<32xf32>
    %90 = vector.multi_reduction <maximumf>, %89, %cst_42 [0] : vector<128x32xf32> to vector<32xf32>
    %91 = vector.shape_cast %90 : vector<32xf32> to vector<1x32xf32>
    %cst_43 = arith.constant 0.000000e+00 : f32
    %92 = vector.broadcast %cst_43 : f32 to vector<1x32xf32>
    %93 = arith.maximumf %91, %92 : vector<1x32xf32>
    %c0_44 = arith.constant 0 : index
    %c2 = arith.constant 2 : index
    %c0_45 = arith.constant 0 : index
    %c0_46 = arith.constant 0 : index
    %94 = vector.load %arg1[%c0_44, %c2, %c0_45, %c0_46] : memref<1x4x128x3xf32, #tpu.memory_space<vmem>>, vector<1x1x128x3xf32>
    %95 = vector.shape_cast %94 : vector<1x1x128x3xf32> to vector<128x3xf32>
    %c0_47 = arith.constant 0 : index
    %c1_48 = arith.constant 1 : index
    %c0_49 = arith.constant 0 : index
    %c0_50 = arith.constant 0 : index
    %96 = vector.load %arg1[%c0_47, %c1_48, %c0_49, %c0_50] : memref<1x4x128x3xf32, #tpu.memory_space<vmem>>, vector<1x1x128x3xf32>
    %97 = vector.shape_cast %96 : vector<1x1x128x3xf32> to vector<128x3xf32>
    %c0_51 = arith.constant 0 : index
    %c1_52 = arith.constant 1 : index
    %c0_53 = arith.constant 0 : index
    %c0_54 = arith.constant 0 : index
    %98 = vector.load %arg2[%c0_51, %c1_52, %c0_53, %c0_54] : memref<1x4x3x128xf32, #tpu.memory_space<vmem>>, vector<1x1x3x128xf32>
    %99 = vector.shape_cast %98 : vector<1x1x3x128xf32> to vector<3x128xf32>
    %cst_55 = arith.constant dense<0.000000e+00> : vector<128x128xf32>
    %100 = tpu.matmul %95, %99, %cst_55 {dimension_numbers = #tpu.dot_dimension_numbers<[1], [0], [0], [1], [0, 0, 1, 1], [], []>} : vector<128x3xf32>, vector<3x128xf32>, vector<128x128xf32> -> vector<128x128xf32>
    %101 = arith.mulf %99, %99 : vector<3x128xf32>
    %cst_56 = arith.constant dense<0.000000e+00> : vector<128xf32>
    %102 = vector.multi_reduction <add>, %101, %cst_56 [0] : vector<3x128xf32> to vector<128xf32>
    %103 = vector.shape_cast %102 : vector<128xf32> to vector<1x128xf32>
    %cst_57 = arith.constant 2.000000e+00 : f32
    %104 = vector.broadcast %cst_57 : f32 to vector<128x128xf32>
    %105 = arith.mulf %104, %100 : vector<128x128xf32>
    %106 = vector.broadcast %103 : vector<1x128xf32> to vector<128x128xf32>
    %107 = arith.subf %106, %105 : vector<128x128xf32>
    %cst_58 = arith.constant dense<0.000000e+00> : vector<128x32xf32>
    %108 = tpu.matmul %97, %0, %cst_58 {dimension_numbers = #tpu.dot_dimension_numbers<[1], [0], [0], [1], [0, 0, 1, 1], [], []>} : vector<128x3xf32>, vector<3x32xf32>, vector<128x32xf32> -> vector<128x32xf32>
    %cst_59 = arith.constant dense<0.000000e+00> : vector<128x32xf32>
    %109 = tpu.matmul %95, %1, %cst_59 {dimension_numbers = #tpu.dot_dimension_numbers<[1], [0], [0], [1], [0, 0, 1, 1], [], []>} : vector<128x3xf32>, vector<3x32xf32>, vector<128x32xf32> -> vector<128x32xf32>
    %110 = vector.broadcast %2 : vector<1x32xf32> to vector<128x32xf32>
    %111 = arith.addf %109, %110 : vector<128x32xf32>
    %cst_60 = arith.constant dense<0x7F800000> : vector<128xf32>
    %112 = vector.multi_reduction <minimumf>, %107, %cst_60 [1] : vector<128x128xf32> to vector<128xf32>
    %113 = vector.shape_cast %112 : vector<128xf32> to vector<128x1xf32>
    %114 = vector.broadcast %113 : vector<128x1xf32> to vector<128x128xf32>
    %115 = arith.cmpf ole, %107, %114 : vector<128x128xf32>
    %c128_i32_61 = arith.constant 128 : i32
    %116 = vector.broadcast %c128_i32_61 : i32 to vector<128x128xi32>
    %117 = arith.select %115, %3, %116 : vector<128x128xi1>, vector<128x128xi32>
    %cst_62 = arith.constant dense<2147483647> : vector<128xi32>
    %118 = vector.multi_reduction <minsi>, %117, %cst_62 [1] : vector<128x128xi32> to vector<128xi32>
    %119 = vector.shape_cast %118 : vector<128xi32> to vector<128x1xi32>
    %120 = vector.broadcast %119 : vector<128x1xi32> to vector<128x128xi32>
    %121 = arith.cmpi eq, %3, %120 : vector<128x128xi32>
    %122 = arith.extui %121 : vector<128x128xi1> to vector<128x128xi32>
    %123 = arith.sitofp %122 : vector<128x128xi32> to vector<128x128xf32>
    %c0_63 = arith.constant 0 : index
    %c0_64 = arith.constant 0 : index
    %124 = vector.load %arg17[%c0_63, %c0_64] : memref<512x128xf32, #tpu.memory_space<vmem>>, vector<128x128xf32>
    tpu.vector_store %arg17[%c0_63, %c0_64], %123 {strides = array<i32>} : memref<512x128xf32, #tpu.memory_space<vmem>>, vector<128x128xf32>,
    %cst_65 = arith.constant 1.000000e+30 : f32
    %125 = vector.broadcast %cst_65 : f32 to vector<128x128xf32>
    %126 = arith.select %121, %125, %107 : vector<128x128xi1>, vector<128x128xf32>
    %cst_66 = arith.constant dense<0x7F800000> : vector<128xf32>
    %127 = vector.multi_reduction <minimumf>, %126, %cst_66 [1] : vector<128x128xf32> to vector<128xf32>
    %128 = vector.shape_cast %127 : vector<128xf32> to vector<128x1xf32>
    %129 = vector.broadcast %128 : vector<128x1xf32> to vector<128x128xf32>
    %130 = arith.cmpf ole, %126, %129 : vector<128x128xf32>
    %c128_i32_67 = arith.constant 128 : i32
    %131 = vector.broadcast %c128_i32_67 : i32 to vector<128x128xi32>
    %132 = arith.select %130, %3, %131 : vector<128x128xi1>, vector<128x128xi32>
    %cst_68 = arith.constant dense<2147483647> : vector<128xi32>
    %133 = vector.multi_reduction <minsi>, %132, %cst_68 [1] : vector<128x128xi32> to vector<128xi32>
    %134 = vector.shape_cast %133 : vector<128xi32> to vector<128x1xi32>
    %135 = vector.broadcast %134 : vector<128x1xi32> to vector<128x128xi32>
    %136 = arith.cmpi eq, %3, %135 : vector<128x128xi32>
    %137 = arith.extui %136 : vector<128x128xi1> to vector<128x128xi32>
    %138 = arith.sitofp %137 : vector<128x128xi32> to vector<128x128xf32>
    %c128_69 = arith.constant 128 : index
    %c0_70 = arith.constant 0 : index
    %139 = vector.load %arg17[%c128_69, %c0_70] : memref<512x128xf32, #tpu.memory_space<vmem>>, vector<128x128xf32>
    tpu.vector_store %arg17[%c128_69, %c0_70], %138 {strides = array<i32>} : memref<512x128xf32, #tpu.memory_space<vmem>>, vector<128x128xf32>,
    %cst_71 = arith.constant 1.000000e+30 : f32
    %140 = vector.broadcast %cst_71 : f32 to vector<128x128xf32>
    %141 = arith.select %136, %140, %126 : vector<128x128xi1>, vector<128x128xf32>
    %cst_72 = arith.constant dense<0x7F800000> : vector<128xf32>
    %142 = vector.multi_reduction <minimumf>, %141, %cst_72 [1] : vector<128x128xf32> to vector<128xf32>
    %143 = vector.shape_cast %142 : vector<128xf32> to vector<128x1xf32>
    %144 = vector.broadcast %143 : vector<128x1xf32> to vector<128x128xf32>
    %145 = arith.cmpf ole, %141, %144 : vector<128x128xf32>
    %c128_i32_73 = arith.constant 128 : i32
    %146 = vector.broadcast %c128_i32_73 : i32 to vector<128x128xi32>
    %147 = arith.select %145, %3, %146 : vector<128x128xi1>, vector<128x128xi32>
    %cst_74 = arith.constant dense<2147483647> : vector<128xi32>
    %148 = vector.multi_reduction <minsi>, %147, %cst_74 [1] : vector<128x128xi32> to vector<128xi32>
    %149 = vector.shape_cast %148 : vector<128xi32> to vector<128x1xi32>
    %150 = vector.broadcast %149 : vector<128x1xi32> to vector<128x128xi32>
    %151 = arith.cmpi eq, %3, %150 : vector<128x128xi32>
    %152 = arith.extui %151 : vector<128x128xi1> to vector<128x128xi32>
    %153 = arith.sitofp %152 : vector<128x128xi32> to vector<128x128xf32>
    %c256_75 = arith.constant 256 : index
    %c0_76 = arith.constant 0 : index
    %154 = vector.load %arg17[%c256_75, %c0_76] : memref<512x128xf32, #tpu.memory_space<vmem>>, vector<128x128xf32>
    tpu.vector_store %arg17[%c256_75, %c0_76], %153 {strides = array<i32>} : memref<512x128xf32, #tpu.memory_space<vmem>>, vector<128x128xf32>,
    %cst_77 = arith.constant 1.000000e+30 : f32
    %155 = vector.broadcast %cst_77 : f32 to vector<128x128xf32>
    %156 = arith.select %151, %155, %141 : vector<128x128xi1>, vector<128x128xf32>
    %cst_78 = arith.constant dense<0x7F800000> : vector<128xf32>
    %157 = vector.multi_reduction <minimumf>, %156, %cst_78 [1] : vector<128x128xf32> to vector<128xf32>
    %158 = vector.shape_cast %157 : vector<128xf32> to vector<128x1xf32>
    %159 = vector.broadcast %158 : vector<128x1xf32> to vector<128x128xf32>
    %160 = arith.cmpf ole, %156, %159 : vector<128x128xf32>
    %c128_i32_79 = arith.constant 128 : i32
    %161 = vector.broadcast %c128_i32_79 : i32 to vector<128x128xi32>
    %162 = arith.select %160, %3, %161 : vector<128x128xi1>, vector<128x128xi32>
    %cst_80 = arith.constant dense<2147483647> : vector<128xi32>
    %163 = vector.multi_reduction <minsi>, %162, %cst_80 [1] : vector<128x128xi32> to vector<128xi32>
    %164 = vector.shape_cast %163 : vector<128xi32> to vector<128x1xi32>
    %165 = vector.broadcast %164 : vector<128x1xi32> to vector<128x128xi32>
    %166 = arith.cmpi eq, %3, %165 : vector<128x128xi32>
    %167 = arith.extui %166 : vector<128x128xi1> to vector<128x128xi32>
    %168 = arith.sitofp %167 : vector<128x128xi32> to vector<128x128xf32>
    %c384_81 = arith.constant 384 : index
    %c0_82 = arith.constant 0 : index
    %169 = vector.load %arg17[%c384_81, %c0_82] : memref<512x128xf32, #tpu.memory_space<vmem>>, vector<128x128xf32>
    tpu.vector_store %arg17[%c384_81, %c0_82], %168 {strides = array<i32>} : memref<512x128xf32, #tpu.memory_space<vmem>>, vector<128x128xf32>,
    %c0_83 = arith.constant 0 : index
    %c0_84 = arith.constant 0 : index
    %170 = vector.load %arg17[%c0_83, %c0_84] : memref<512x128xf32, #tpu.memory_space<vmem>>, vector<512x128xf32>
    %cst_85 = arith.constant dense<0.000000e+00> : vector<512x32xf32>
    %171 = tpu.matmul %170, %108, %cst_85 {dimension_numbers = #tpu.dot_dimension_numbers<[1], [0], [0], [1], [0, 0, 1, 1], [], []>} : vector<512x128xf32>, vector<128x32xf32>, vector<512x32xf32> -> vector<512x32xf32>
    %172 = vector.extract_strided_slice %171 {offsets = [0, 0], sizes = [128, 32], strides = [1, 1]} : vector<512x32xf32> to vector<128x32xf32>
    %173 = vector.extract_strided_slice %171 {offsets = [128, 0], sizes = [128, 32], strides = [1, 1]} : vector<512x32xf32> to vector<128x32xf32>
    %174 = arith.maximumf %172, %173 : vector<128x32xf32>
    %175 = vector.extract_strided_slice %171 {offsets = [256, 0], sizes = [128, 32], strides = [1, 1]} : vector<512x32xf32> to vector<128x32xf32>
    %176 = arith.maximumf %174, %175 : vector<128x32xf32>
    %177 = vector.extract_strided_slice %171 {offsets = [384, 0], sizes = [128, 32], strides = [1, 1]} : vector<512x32xf32> to vector<128x32xf32>
    %178 = arith.maximumf %176, %177 : vector<128x32xf32>
    %179 = arith.addf %178, %111 : vector<128x32xf32>
    %cst_86 = arith.constant dense<0xFF800000> : vector<32xf32>
    %180 = vector.multi_reduction <maximumf>, %179, %cst_86 [0] : vector<128x32xf32> to vector<32xf32>
    %181 = vector.shape_cast %180 : vector<32xf32> to vector<1x32xf32>
    %cst_87 = arith.constant 0.000000e+00 : f32
    %182 = vector.broadcast %cst_87 : f32 to vector<1x32xf32>
    %183 = arith.maximumf %181, %182 : vector<1x32xf32>
    %c0_88 = arith.constant 0 : index
    %c3 = arith.constant 3 : index
    %c0_89 = arith.constant 0 : index
    %c0_90 = arith.constant 0 : index
    %184 = vector.load %arg1[%c0_88, %c3, %c0_89, %c0_90] : memref<1x4x128x3xf32, #tpu.memory_space<vmem>>, vector<1x1x128x3xf32>
    %185 = vector.shape_cast %184 : vector<1x1x128x3xf32> to vector<128x3xf32>
    %c0_91 = arith.constant 0 : index
    %c2_92 = arith.constant 2 : index
    %c0_93 = arith.constant 0 : index
    %c0_94 = arith.constant 0 : index
    %186 = vector.load %arg1[%c0_91, %c2_92, %c0_93, %c0_94] : memref<1x4x128x3xf32, #tpu.memory_space<vmem>>, vector<1x1x128x3xf32>
    %187 = vector.shape_cast %186 : vector<1x1x128x3xf32> to vector<128x3xf32>
    %c0_95 = arith.constant 0 : index
    %c2_96 = arith.constant 2 : index
    %c0_97 = arith.constant 0 : index
    %c0_98 = arith.constant 0 : index
    %188 = vector.load %arg2[%c0_95, %c2_96, %c0_97, %c0_98] : memref<1x4x3x128xf32, #tpu.memory_space<vmem>>, vector<1x1x3x128xf32>
    %189 = vector.shape_cast %188 : vector<1x1x3x128xf32> to vector<3x128xf32>
    %cst_99 = arith.constant dense<0.000000e+00> : vector<128x128xf32>
    %190 = tpu.matmul %185, %189, %cst_99 {dimension_numbers = #tpu.dot_dimension_numbers<[1], [0], [0], [1], [0, 0, 1, 1], [], []>} : vector<128x3xf32>, vector<3x128xf32>, vector<128x128xf32> -> vector<128x128xf32>
    %191 = arith.mulf %189, %189 : vector<3x128xf32>
    %cst_100 = arith.constant dense<0.000000e+00> : vector<128xf32>
    %192 = vector.multi_reduction <add>, %191, %cst_100 [0] : vector<3x128xf32> to vector<128xf32>
    %193 = vector.shape_cast %192 : vector<128xf32> to vector<1x128xf32>
    %cst_101 = arith.constant 2.000000e+00 : f32
    %194 = vector.broadcast %cst_101 : f32 to vector<128x128xf32>
    %195 = arith.mulf %194, %190 : vector<128x128xf32>
    %196 = vector.broadcast %193 : vector<1x128xf32> to vector<128x128xf32>
    %197 = arith.subf %196, %195 : vector<128x128xf32>
    %cst_102 = arith.constant dense<0.000000e+00> : vector<128x32xf32>
    %198 = tpu.matmul %187, %0, %cst_102 {dimension_numbers = #tpu.dot_dimension_numbers<[1], [0], [0], [1], [0, 0, 1, 1], [], []>} : vector<128x3xf32>, vector<3x32xf32>, vector<128x32xf32> -> vector<128x32xf32>
    %cst_103 = arith.constant dense<0.000000e+00> : vector<128x32xf32>
    %199 = tpu.matmul %185, %1, %cst_103 {dimension_numbers = #tpu.dot_dimension_numbers<[1], [0], [0], [1], [0, 0, 1, 1], [], []>} : vector<128x3xf32>, vector<3x32xf32>, vector<128x32xf32> -> vector<128x32xf32>
    %200 = vector.broadcast %2 : vector<1x32xf32> to vector<128x32xf32>
    %201 = arith.addf %199, %200 : vector<128x32xf32>
    %cst_104 = arith.constant dense<0x7F800000> : vector<128xf32>
    %202 = vector.multi_reduction <minimumf>, %197, %cst_104 [1] : vector<128x128xf32> to vector<128xf32>
    %203 = vector.shape_cast %202 : vector<128xf32> to vector<128x1xf32>
    %204 = vector.broadcast %203 : vector<128x1xf32> to vector<128x128xf32>
    %205 = arith.cmpf ole, %197, %204 : vector<128x128xf32>
    %c128_i32_105 = arith.constant 128 : i32
    %206 = vector.broadcast %c128_i32_105 : i32 to vector<128x128xi32>
    %207 = arith.select %205, %3, %206 : vector<128x128xi1>, vector<128x128xi32>
    %cst_106 = arith.constant dense<2147483647> : vector<128xi32>
    %208 = vector.multi_reduction <minsi>, %207, %cst_106 [1] : vector<128x128xi32> to vector<128xi32>
    %209 = vector.shape_cast %208 : vector<128xi32> to vector<128x1xi32>
    %210 = vector.broadcast %209 : vector<128x1xi32> to vector<128x128xi32>
    %211 = arith.cmpi eq, %3, %210 : vector<128x128xi32>
    %212 = arith.extui %211 : vector<128x128xi1> to vector<128x128xi32>
    %213 = arith.sitofp %212 : vector<128x128xi32> to vector<128x128xf32>
    %c0_107 = arith.constant 0 : index
    %c0_108 = arith.constant 0 : index
    %214 = vector.load %arg17[%c0_107, %c0_108] : memref<512x128xf32, #tpu.memory_space<vmem>>, vector<128x128xf32>
    tpu.vector_store %arg17[%c0_107, %c0_108], %213 {strides = array<i32>} : memref<512x128xf32, #tpu.memory_space<vmem>>, vector<128x128xf32>,
    %cst_109 = arith.constant 1.000000e+30 : f32
    %215 = vector.broadcast %cst_109 : f32 to vector<128x128xf32>
    %216 = arith.select %211, %215, %197 : vector<128x128xi1>, vector<128x128xf32>
    %cst_110 = arith.constant dense<0x7F800000> : vector<128xf32>
    %217 = vector.multi_reduction <minimumf>, %216, %cst_110 [1] : vector<128x128xf32> to vector<128xf32>
    %218 = vector.shape_cast %217 : vector<128xf32> to vector<128x1xf32>
    %219 = vector.broadcast %218 : vector<128x1xf32> to vector<128x128xf32>
    %220 = arith.cmpf ole, %216, %219 : vector<128x128xf32>
    %c128_i32_111 = arith.constant 128 : i32
    %221 = vector.broadcast %c128_i32_111 : i32 to vector<128x128xi32>
    %222 = arith.select %220, %3, %221 : vector<128x128xi1>, vector<128x128xi32>
    %cst_112 = arith.constant dense<2147483647> : vector<128xi32>
    %223 = vector.multi_reduction <minsi>, %222, %cst_112 [1] : vector<128x128xi32> to vector<128xi32>
    %224 = vector.shape_cast %223 : vector<128xi32> to vector<128x1xi32>
    %225 = vector.broadcast %224 : vector<128x1xi32> to vector<128x128xi32>
    %226 = arith.cmpi eq, %3, %225 : vector<128x128xi32>
    %227 = arith.extui %226 : vector<128x128xi1> to vector<128x128xi32>
    %228 = arith.sitofp %227 : vector<128x128xi32> to vector<128x128xf32>
    %c128_113 = arith.constant 128 : index
    %c0_114 = arith.constant 0 : index
    %229 = vector.load %arg17[%c128_113, %c0_114] : memref<512x128xf32, #tpu.memory_space<vmem>>, vector<128x128xf32>
    tpu.vector_store %arg17[%c128_113, %c0_114], %228 {strides = array<i32>} : memref<512x128xf32, #tpu.memory_space<vmem>>, vector<128x128xf32>,
    %cst_115 = arith.constant 1.000000e+30 : f32
    %230 = vector.broadcast %cst_115 : f32 to vector<128x128xf32>
    %231 = arith.select %226, %230, %216 : vector<128x128xi1>, vector<128x128xf32>
    %cst_116 = arith.constant dense<0x7F800000> : vector<128xf32>
    %232 = vector.multi_reduction <minimumf>, %231, %cst_116 [1] : vector<128x128xf32> to vector<128xf32>
    %233 = vector.shape_cast %232 : vector<128xf32> to vector<128x1xf32>
    %234 = vector.broadcast %233 : vector<128x1xf32> to vector<128x128xf32>
    %235 = arith.cmpf ole, %231, %234 : vector<128x128xf32>
    %c128_i32_117 = arith.constant 128 : i32
    %236 = vector.broadcast %c128_i32_117 : i32 to vector<128x128xi32>
    %237 = arith.select %235, %3, %236 : vector<128x128xi1>, vector<128x128xi32>
    %cst_118 = arith.constant dense<2147483647> : vector<128xi32>
    %238 = vector.multi_reduction <minsi>, %237, %cst_118 [1] : vector<128x128xi32> to vector<128xi32>
    %239 = vector.shape_cast %238 : vector<128xi32> to vector<128x1xi32>
    %240 = vector.broadcast %239 : vector<128x1xi32> to vector<128x128xi32>
    %241 = arith.cmpi eq, %3, %240 : vector<128x128xi32>
    %242 = arith.extui %241 : vector<128x128xi1> to vector<128x128xi32>
    %243 = arith.sitofp %242 : vector<128x128xi32> to vector<128x128xf32>
    %c256_119 = arith.constant 256 : index
    %c0_120 = arith.constant 0 : index
    %244 = vector.load %arg17[%c256_119, %c0_120] : memref<512x128xf32, #tpu.memory_space<vmem>>, vector<128x128xf32>
    tpu.vector_store %arg17[%c256_119, %c0_120], %243 {strides = array<i32>} : memref<512x128xf32, #tpu.memory_space<vmem>>, vector<128x128xf32>,
    %cst_121 = arith.constant 1.000000e+30 : f32
    %245 = vector.broadcast %cst_121 : f32 to vector<128x128xf32>
    %246 = arith.select %241, %245, %231 : vector<128x128xi1>, vector<128x128xf32>
    %cst_122 = arith.constant dense<0x7F800000> : vector<128xf32>
    %247 = vector.multi_reduction <minimumf>, %246, %cst_122 [1] : vector<128x128xf32> to vector<128xf32>
    %248 = vector.shape_cast %247 : vector<128xf32> to vector<128x1xf32>
    %249 = vector.broadcast %248 : vector<128x1xf32> to vector<128x128xf32>
    %250 = arith.cmpf ole, %246, %249 : vector<128x128xf32>
    %c128_i32_123 = arith.constant 128 : i32
    %251 = vector.broadcast %c128_i32_123 : i32 to vector<128x128xi32>
    %252 = arith.select %250, %3, %251 : vector<128x128xi1>, vector<128x128xi32>
    %cst_124 = arith.constant dense<2147483647> : vector<128xi32>
    %253 = vector.multi_reduction <minsi>, %252, %cst_124 [1] : vector<128x128xi32> to vector<128xi32>
    %254 = vector.shape_cast %253 : vector<128xi32> to vector<128x1xi32>
    %255 = vector.broadcast %254 : vector<128x1xi32> to vector<128x128xi32>
    %256 = arith.cmpi eq, %3, %255 : vector<128x128xi32>
    %257 = arith.extui %256 : vector<128x128xi1> to vector<128x128xi32>
    %258 = arith.sitofp %257 : vector<128x128xi32> to vector<128x128xf32>
    %c384_125 = arith.constant 384 : index
    %c0_126 = arith.constant 0 : index
    %259 = vector.load %arg17[%c384_125, %c0_126] : memref<512x128xf32, #tpu.memory_space<vmem>>, vector<128x128xf32>
    tpu.vector_store %arg17[%c384_125, %c0_126], %258 {strides = array<i32>} : memref<512x128xf32, #tpu.memory_space<vmem>>, vector<128x128xf32>,
    %c0_127 = arith.constant 0 : index
    %c0_128 = arith.constant 0 : index
    %260 = vector.load %arg17[%c0_127, %c0_128] : memref<512x128xf32, #tpu.memory_space<vmem>>, vector<512x128xf32>
    %cst_129 = arith.constant dense<0.000000e+00> : vector<512x32xf32>
    %261 = tpu.matmul %260, %198, %cst_129 {dimension_numbers = #tpu.dot_dimension_numbers<[1], [0], [0], [1], [0, 0, 1, 1], [], []>} : vector<512x128xf32>, vector<128x32xf32>, vector<512x32xf32> -> vector<512x32xf32>
    %262 = vector.extract_strided_slice %261 {offsets = [0, 0], sizes = [128, 32], strides = [1, 1]} : vector<512x32xf32> to vector<128x32xf32>
    %263 = vector.extract_strided_slice %261 {offsets = [128, 0], sizes = [128, 32], strides = [1, 1]} : vector<512x32xf32> to vector<128x32xf32>
    %264 = arith.maximumf %262, %263 : vector<128x32xf32>
    %265 = vector.extract_strided_slice %261 {offsets = [256, 0], sizes = [128, 32], strides = [1, 1]} : vector<512x32xf32> to vector<128x32xf32>
    %266 = arith.maximumf %264, %265 : vector<128x32xf32>
    %267 = vector.extract_strided_slice %261 {offsets = [384, 0], sizes = [128, 32], strides = [1, 1]} : vector<512x32xf32> to vector<128x32xf32>
    %268 = arith.maximumf %266, %267 : vector<128x32xf32>
    %269 = arith.addf %268, %201 : vector<128x32xf32>
    %cst_130 = arith.constant dense<0xFF800000> : vector<32xf32>
    %270 = vector.multi_reduction <maximumf>, %269, %cst_130 [0] : vector<128x32xf32> to vector<32xf32>
    %271 = vector.shape_cast %270 : vector<32xf32> to vector<1x32xf32>
    %cst_131 = arith.constant 0.000000e+00 : f32
    %272 = vector.broadcast %cst_131 : f32 to vector<1x32xf32>
    %273 = arith.maximumf %271, %272 : vector<1x32xf32>
    %c0_132 = arith.constant 0 : index
    %c0_133 = arith.constant 0 : index
    %274 = vector.load %arg7[%c0_132, %c0_133] : memref<1x512xf32, #tpu.memory_space<vmem>>, vector<1x512xf32>
    %c0_134 = arith.constant 0 : index
    %c0_135 = arith.constant 0 : index
    %275 = vector.load %arg6[%c0_134, %c0_135] : memref<96x512xf32, #tpu.memory_space<vmem>>, vector<32x512xf32>
    %cst_136 = arith.constant dense<0.000000e+00> : vector<1x512xf32>
    %276 = tpu.matmul %93, %275, %cst_136 {dimension_numbers = #tpu.dot_dimension_numbers<[1], [0], [0], [1], [0, 0, 1, 1], [], []>} : vector<1x32xf32>, vector<32x512xf32>, vector<1x512xf32> -> vector<1x512xf32>
    %277 = arith.addf %274, %276 : vector<1x512xf32>
    %c32 = arith.constant 32 : index
    %c0_137 = arith.constant 0 : index
    %278 = vector.load %arg6[%c32, %c0_137] : memref<96x512xf32, #tpu.memory_space<vmem>>, vector<32x512xf32>
    %cst_138 = arith.constant dense<0.000000e+00> : vector<1x512xf32>
    %279 = tpu.matmul %183, %278, %cst_138 {dimension_numbers = #tpu.dot_dimension_numbers<[1], [0], [0], [1], [0, 0, 1, 1], [], []>} : vector<1x32xf32>, vector<32x512xf32>, vector<1x512xf32> -> vector<1x512xf32>
    %280 = arith.addf %277, %279 : vector<1x512xf32>
    %c64 = arith.constant 64 : index
    %c0_139 = arith.constant 0 : index
    %281 = vector.load %arg6[%c64, %c0_139] : memref<96x512xf32, #tpu.memory_space<vmem>>, vector<32x512xf32>
    %cst_140 = arith.constant dense<0.000000e+00> : vector<1x512xf32>
    %282 = tpu.matmul %273, %281, %cst_140 {dimension_numbers = #tpu.dot_dimension_numbers<[1], [0], [0], [1], [0, 0, 1, 1], [], []>} : vector<1x32xf32>, vector<32x512xf32>, vector<1x512xf32> -> vector<1x512xf32>
    %283 = arith.addf %280, %282 : vector<1x512xf32>
    %cst_141 = arith.constant 0.000000e+00 : f32
    %284 = vector.broadcast %cst_141 : f32 to vector<1x512xf32>
    %285 = arith.maximumf %283, %284 : vector<1x512xf32>
    %c0_142 = arith.constant 0 : index
    %c0_143 = arith.constant 0 : index
    %286 = vector.load %arg8[%c0_142, %c0_143] : memref<1x512xf32, #tpu.memory_space<vmem>>, vector<1x512xf32>
    %287 = arith.mulf %285, %286 : vector<1x512xf32>
    %c0_144 = arith.constant 0 : index
    %c0_145 = arith.constant 0 : index
    %288 = vector.load %arg9[%c0_144, %c0_145] : memref<1x512xf32, #tpu.memory_space<vmem>>, vector<1x512xf32>
    %289 = arith.addf %287, %288 : vector<1x512xf32>
    %c0_146 = arith.constant 0 : index
    %c0_147 = arith.constant 0 : index
    %290 = vector.load %arg10[%c0_146, %c0_147] : memref<512x256xf32, #tpu.memory_space<vmem>>, vector<512x256xf32>
    %cst_148 = arith.constant dense<0.000000e+00> : vector<1x256xf32>
    %291 = tpu.matmul %289, %290, %cst_148 {dimension_numbers = #tpu.dot_dimension_numbers<[1], [0], [0], [1], [0, 0, 1, 1], [], []>} : vector<1x512xf32>, vector<512x256xf32>, vector<1x256xf32> -> vector<1x256xf32>
    %c0_149 = arith.constant 0 : index
    %c0_150 = arith.constant 0 : index
    %292 = vector.load %arg11[%c0_149, %c0_150] : memref<1x256xf32, #tpu.memory_space<vmem>>, vector<1x256xf32>
    %293 = arith.addf %291, %292 : vector<1x256xf32>
    %cst_151 = arith.constant 0.000000e+00 : f32
    %294 = vector.broadcast %cst_151 : f32 to vector<1x256xf32>
    %295 = arith.maximumf %293, %294 : vector<1x256xf32>
    %c0_152 = arith.constant 0 : index
    %c0_153 = arith.constant 0 : index
    %296 = vector.load %arg12[%c0_152, %c0_153] : memref<1x256xf32, #tpu.memory_space<vmem>>, vector<1x256xf32>
    %297 = arith.mulf %295, %296 : vector<1x256xf32>
    %c0_154 = arith.constant 0 : index
    %c0_155 = arith.constant 0 : index
    %298 = vector.load %arg13[%c0_154, %c0_155] : memref<1x256xf32, #tpu.memory_space<vmem>>, vector<1x256xf32>
    %299 = arith.addf %297, %298 : vector<1x256xf32>
    %c0_156 = arith.constant 0 : index
    %c0_157 = arith.constant 0 : index
    %300 = vector.load %arg14[%c0_156, %c0_157] : memref<256x10xf32, #tpu.memory_space<vmem>>, vector<256x10xf32>
    %cst_158 = arith.constant dense<0.000000e+00> : vector<1x10xf32>
    %301 = tpu.matmul %299, %300, %cst_158 {dimension_numbers = #tpu.dot_dimension_numbers<[1], [0], [0], [1], [0, 0, 1, 1], [], []>} : vector<1x256xf32>, vector<256x10xf32>, vector<1x10xf32> -> vector<1x10xf32>
    %c0_159 = arith.constant 0 : index
    %c0_160 = arith.constant 0 : index
    %302 = vector.load %arg15[%c0_159, %c0_160] : memref<1x10xf32, #tpu.memory_space<vmem>>, vector<1x10xf32>
    %303 = arith.addf %301, %302 : vector<1x10xf32>
    %cst_161 = arith.constant dense<0xFF800000> : vector<1xf32>
    %304 = vector.multi_reduction <maximumf>, %303, %cst_161 [1] : vector<1x10xf32> to vector<1xf32>
    %305 = vector.shape_cast %304 : vector<1xf32> to vector<1x1xf32>
    %306 = vector.broadcast %305 : vector<1x1xf32> to vector<1x10xf32>
    %307 = arith.subf %303, %306 : vector<1x10xf32>
    %308 = math.exp %307 : vector<1x10xf32>
    %cst_162 = arith.constant dense<0.000000e+00> : vector<1xf32>
    %309 = vector.multi_reduction <add>, %308, %cst_162 [1] : vector<1x10xf32> to vector<1xf32>
    %310 = vector.shape_cast %309 : vector<1xf32> to vector<1x1xf32>
    %311 = math.log %310 : vector<1x1xf32>
    %312 = vector.broadcast %311 : vector<1x1xf32> to vector<1x10xf32>
    %313 = arith.subf %307, %312 : vector<1x10xf32>
    %c0_163 = arith.constant 0 : index
    %c0_164 = arith.constant 0 : index
    %c0_165 = arith.constant 0 : index
    %314 = vector.load %arg16[%c0_163, %c0_164, %c0_165] : memref<1x1x10xf32, #tpu.memory_space<vmem>>, vector<1x1x10xf32>
    %315 = vector.shape_cast %314 : vector<1x1x10xf32> to vector<1x10xf32>
    %316 = vector.shape_cast %313 : vector<1x10xf32> to vector<1x1x10xf32>
    tpu.vector_store %arg16[%c0_163, %c0_164, %c0_165], %316 {strides = array<i32>} : memref<1x1x10xf32, #tpu.memory_space<vmem>>, vector<1x1x10xf32>,
    return
  }
  func.func @transform_0(%arg0: i32) -> (i32, i32, i32, i32) {
    %c0_i32 = arith.constant 0 : i32
    %c0_i32_0 = arith.constant 0 : i32
    %c0_i32_1 = arith.constant 0 : i32
    %c0_i32_2 = arith.constant 0 : i32
    return %arg0, %c0_i32, %c0_i32_0, %c0_i32_1 : i32, i32, i32, i32
  }
  func.func @transform_1(%arg0: i32) -> (i32, i32, i32, i32) {
    %c0_i32 = arith.constant 0 : i32
    %c0_i32_0 = arith.constant 0 : i32
    %c0_i32_1 = arith.constant 0 : i32
    %c0_i32_2 = arith.constant 0 : i32
    return %arg0, %c0_i32, %c0_i32_0, %c0_i32_1 : i32, i32, i32, i32
  }
  func.func @transform_2(%arg0: i32) -> (i32, i32) {
    %c0_i32 = arith.constant 0 : i32
    %c0_i32_0 = arith.constant 0 : i32
    %c0_i32_1 = arith.constant 0 : i32
    return %c0_i32, %c0_i32_0 : i32, i32
  }
  func.func @transform_3(%arg0: i32) -> (i32, i32) {
    %c0_i32 = arith.constant 0 : i32
    %c0_i32_0 = arith.constant 0 : i32
    %c0_i32_1 = arith.constant 0 : i32
    return %c0_i32, %c0_i32_0 : i32, i32
  }
  func.func @transform_4(%arg0: i32) -> (i32, i32) {
    %c0_i32 = arith.constant 0 : i32
    %c0_i32_0 = arith.constant 0 : i32
    %c0_i32_1 = arith.constant 0 : i32
    return %c0_i32, %c0_i32_0 : i32, i32
  }
  func.func @transform_5(%arg0: i32) -> (i32, i32) {
    %c0_i32 = arith.constant 0 : i32
    %c0_i32_0 = arith.constant 0 : i32
    %c0_i32_1 = arith.constant 0 : i32
    return %c0_i32, %c0_i32_0 : i32, i32
  }
  func.func @transform_6(%arg0: i32) -> (i32, i32) {
    %c0_i32 = arith.constant 0 : i32
    %c0_i32_0 = arith.constant 0 : i32
    %c0_i32_1 = arith.constant 0 : i32
    return %c0_i32, %c0_i32_0 : i32, i32
  }
  func.func @transform_7(%arg0: i32) -> (i32, i32) {
    %c0_i32 = arith.constant 0 : i32
    %c0_i32_0 = arith.constant 0 : i32
    %c0_i32_1 = arith.constant 0 : i32
    return %c0_i32, %c0_i32_0 : i32, i32
  }
  func.func @transform_8(%arg0: i32) -> (i32, i32) {
    %c0_i32 = arith.constant 0 : i32
    %c0_i32_0 = arith.constant 0 : i32
    %c0_i32_1 = arith.constant 0 : i32
    return %c0_i32, %c0_i32_0 : i32, i32
  }
  func.func @transform_9(%arg0: i32) -> (i32, i32) {
    %c0_i32 = arith.constant 0 : i32
    %c0_i32_0 = arith.constant 0 : i32
    %c0_i32_1 = arith.constant 0 : i32
    return %c0_i32, %c0_i32_0 : i32, i32
  }
  func.func @transform_10(%arg0: i32) -> (i32, i32) {
    %c0_i32 = arith.constant 0 : i32
    %c0_i32_0 = arith.constant 0 : i32
    %c0_i32_1 = arith.constant 0 : i32
    return %c0_i32, %c0_i32_0 : i32, i32
  }
  func.func @transform_11(%arg0: i32) -> (i32, i32) {
    %c0_i32 = arith.constant 0 : i32
    %c0_i32_0 = arith.constant 0 : i32
    %c0_i32_1 = arith.constant 0 : i32
    return %c0_i32, %c0_i32_0 : i32, i32
  }
  func.func @transform_12(%arg0: i32) -> (i32, i32) {
    %c0_i32 = arith.constant 0 : i32
    %c0_i32_0 = arith.constant 0 : i32
    %c0_i32_1 = arith.constant 0 : i32
    return %c0_i32, %c0_i32_0 : i32, i32
  }
  func.func @transform_13(%arg0: i32) -> (i32, i32) {
    %c0_i32 = arith.constant 0 : i32
    %c0_i32_0 = arith.constant 0 : i32
    %c0_i32_1 = arith.constant 0 : i32
    return %c0_i32, %c0_i32_0 : i32, i32
  }
  func.func @transform_14(%arg0: i32) -> (i32, i32) {
    %c0_i32 = arith.constant 0 : i32
    %c0_i32_0 = arith.constant 0 : i32
    %c0_i32_1 = arith.constant 0 : i32
    return %c0_i32, %c0_i32_0 : i32, i32
  }
  func.func @transform_15(%arg0: i32) -> (i32, i32, i32) {
    %c0_i32 = arith.constant 0 : i32
    %c0_i32_0 = arith.constant 0 : i32
    %c0_i32_1 = arith.constant 0 : i32
    return %arg0, %c0_i32, %c0_i32_0 : i32, i32, i32
  }
}

</mosaic_0001>

<llo_original>
// kernel: tpu_custom_call.1
$region0: #{tpu_custom_call.1}
  #allocation0 [shape = 'u32[]', space=smem, size = 0x4, offset = 0x4, fixed_abs, tag = 'smem constant byte address 0x4 - core index']
  #allocation1 [shape = 'u32[72,128]{1,0:T(1,128)}', space=vmem, size = 0x9000, scoped, tag = 'internal scratch']
  #allocation2 [shape = 'f32[512,128]{1,0:T(8,128)}', space=vmem, size = 0x40000, scoped, tag = 'scratch operand']
  %s0 = inlined_call_operand.vmem [shape: f32[2,4,128,3], index: 0, kind: input, shape index: {}]
  %s1 = inlined_call_operand.vmem [shape: f32[2,4,3,128], index: 1, kind: input, shape index: {}]
  %s2 = inlined_call_operand.vmem [shape: f32[3,32], index: 2, kind: input, shape index: {}]
  %s3 = inlined_call_operand.vmem [shape: f32[3,32], index: 3, kind: input, shape index: {}]
  %s4 = inlined_call_operand.vmem [shape: f32[1,32], index: 4, kind: input, shape index: {}]
  %s5 = inlined_call_operand.hbm [shape: f32[96,512], index: 5, kind: input, shape index: {}]
  %s6 = inlined_call_operand.vmem [shape: f32[1,512], index: 6, kind: input, shape index: {}]
  %s7 = inlined_call_operand.vmem [shape: f32[1,512], index: 7, kind: input, shape index: {}]
  %s8 = inlined_call_operand.vmem [shape: f32[1,512], index: 8, kind: input, shape index: {}]
  %s9 = inlined_call_operand.vmem [shape: f32[512,256], index: 9, kind: input, shape index: {}]
  %s10 = inlined_call_operand.vmem [shape: f32[1,256], index: 10, kind: input, shape index: {}]
  %s11 = inlined_call_operand.vmem [shape: f32[1,256], index: 11, kind: input, shape index: {}]
  %s12 = inlined_call_operand.vmem [shape: f32[1,256], index: 12, kind: input, shape index: {}]
  %s13 = inlined_call_operand.vmem [shape: f32[256,10], index: 13, kind: input, shape index: {}]
  %s14 = inlined_call_operand.vmem [shape: f32[1,10], index: 14, kind: input, shape index: {}]
  %s15 = inlined_call_operand.hbm [shape: f32[2,1,10], index: 15, kind: output, shape index: {}]
  %s16 = sld [smem:[#allocation0]]
  $region97: #{tpu_custom_call.1} parent=0
    _
  %s18 = ssub.s32 1, %s16
  %s19 = scalar_select 0, %s18, %s16
  $region1: #{tpu_custom_call.1} parent=0
    #allocation3 [shape = 'u8[196608]{0}', space=vmem, size = 0x30000, scoped, tag = 'input window, operand 5, single buffered']
    #allocation4 [shape = 's32[2]{0}', space=sflag, size = 0x8, scoped, tag = 'scoped memory for tpu_custom_call.1']
    #allocation5 [shape = 's32[2]{0}', space=sflag, size = 0x8, scoped, tag = 'scoped memory for tpu_custom_call.1']
    #allocation6 [shape = 'u8[1024]{0}', space=vmem, size = 0x400, scoped, tag = 'output window, operand 0']
    %20 = vsyncpa [#allocation4], 0
    %21 = vsyncpa [#allocation5], 0
    %s22 = scalar_lea.sflag [#allocation5], 1
    %23 = vsyncpa %s22, 0
    loop: start=0, step=1, limit=4
    $region2: #{tpu_custom_call.1} parent=1 // loop_pre_header
      _
    $region3: #{tpu_custom_call.1} parent=1 // loop_header
      %s25 = sphi 0, %s29
      %p26 = scmp.ge.s32.totalorder %s25, 4
      %s35 = sphi 0, %s37
      %s38 = sphi 0, %s35
      %s39 = sphi 0, %s38
      %s55 = sphi 0, %s39
      %s61 = sphi 0, %s63
      %s64 = sphi 0, %s61
      %s65 = sphi 0, %s64
      %s81 = sphi 0, %s65
      %s85 = sphi 0, %s85
      %s87 = sphi 0, %s85
      %s88 = sphi 0, %s87
      %s102 = sphi 0, %s88
      %s106 = sphi 0, %s106
      %s108 = sphi 0, %s106
      %s109 = sphi 0, %s108
      %s123 = sphi 0, %s109
      %s127 = sphi 0, %s127
      %s129 = sphi 0, %s127
      %s130 = sphi 0, %s129
      %s144 = sphi 0, %s130
      %s148 = sphi 0, %s148
      %s150 = sphi 0, %s148
      %s151 = sphi 0, %s150
      %s165 = sphi 0, %s151
      %s169 = sphi 0, %s169
      %s171 = sphi 0, %s169
      %s172 = sphi 0, %s171
      %s186 = sphi 0, %s172
      %s190 = sphi 0, %s190
      %s192 = sphi 0, %s190
      %s193 = sphi 0, %s192
      %s207 = sphi 0, %s193
      %s211 = sphi 0, %s211
      %s213 = sphi 0, %s211
      %s214 = sphi 0, %s213
      %s228 = sphi 0, %s214
      %s232 = sphi 0, %s232
      %s234 = sphi 0, %s232
      %s235 = sphi 0, %s234
      %s249 = sphi 0, %s235
      %s253 = sphi 0, %s253
      %s255 = sphi 0, %s253
      %s256 = sphi 0, %s255
      %s270 = sphi 0, %s256
      %s274 = sphi 0, %s274
      %s276 = sphi 0, %s274
      %s277 = sphi 0, %s276
      %s291 = sphi 0, %s277
      %s295 = sphi 0, %s295
      %s297 = sphi 0, %s295
      %s298 = sphi 0, %s297
      %s312 = sphi 0, %s298
      %s316 = sphi 0, %s316
      %s318 = sphi 0, %s316
      %s319 = sphi 0, %s318
      %s333 = sphi 0, %s319
      %s337 = sphi 0, %s337
      %s339 = sphi 0, %s337
      %s340 = sphi 0, %s339
      %s354 = sphi 0, %s340
      %s360 = sphi 0, %s362
      %s363 = sphi 0, %s360
      %s364 = sphi 0, %s363
      %s380 = sphi 0, %s364
    $region4: #{tpu_custom_call.1} parent=1 // loop_header_branch
      %28 = sbr.rel (%p26) target = $region8
    $region5: #{tpu_custom_call.1} parent=1 // loop_body
      %s30 = ssub.s32 %s25, 1
      %s31 = ssub.s32 %s25, 2
      %s32 = sadd.s32 %s25, 1
      %s33 = ssub.s32 %s25, %s32
      %p34 = scmp.eq.s32.totalorder %s33, 0
      %s36 = sadd.s32 %s35, 1
      %s37 = scalar_select %p34, %s35, %s36
      %p40 = pneg %p34
      %p41 = scmp.eq.s32.totalorder %s25, 1
      %p42 = por %p40, %p41
      %p43 = scmp.ne.s32.totalorder %s35, %s38
      %p44 = scmp.eq.s32.totalorder %s25, 0
      %p45 = por %p43, %p44
      %p46 = scmp.ne.s32.totalorder %s35, %s38
      %p47 = scmp.eq.s32.totalorder %s30, 1
      %p48 = por %p46, %p47
      %p49 = scmp.ne.s32.totalorder %s38, %s39
      %p50 = scmp.eq.s32.totalorder %s30, 0
      %p51 = por %p49, %p50
      %p52 = scmp.ne.s32.totalorder %s38, %s39
      %p53 = scmp.eq.s32.totalorder %s31, 1
      %p54 = por %p52, %p53
      %p56 = scmp.ne.s32.totalorder %s39, %s55
      %p57 = scmp.eq.s32.totalorder %s31, 0
      %p58 = por %p56, %p57
      %s59 = ssub.s32 %s25, %s32
      %p60 = scmp.eq.s32.totalorder %s59, 0
      %s62 = sadd.s32 %s61, 1
      %s63 = scalar_select %p60, %s61, %s62
      %p66 = pneg %p60
      %p67 = scmp.eq.s32.totalorder %s25, 1
      %p68 = por %p66, %p67
      %p69 = scmp.ne.s32.totalorder %s61, %s64
      %p70 = scmp.eq.s32.totalorder %s25, 0
      %p71 = por %p69, %p70
      %p72 = scmp.ne.s32.totalorder %s61, %s64
      %p73 = scmp.eq.s32.totalorder %s30, 1
      %p74 = por %p72, %p73
      %p75 = scmp.ne.s32.totalorder %s64, %s65
      %p76 = scmp.eq.s32.totalorder %s30, 0
      %p77 = por %p75, %p76
      %p78 = scmp.ne.s32.totalorder %s64, %s65
      %p79 = scmp.eq.s32.totalorder %s31, 1
      %p80 = por %p78, %p79
      %p82 = scmp.ne.s32.totalorder %s65, %s81
      %p83 = scmp.eq.s32.totalorder %s31, 0
      %p84 = por %p82, %p83
      %s86 = sadd.s32 %s85, 1
      %p89 = scmp.eq.s32.totalorder %s25, 1
      %p90 = scmp.ne.s32.totalorder %s85, %s87
      %p91 = scmp.eq.s32.totalorder %s25, 0
      %p92 = por %p90, %p91
      %p93 = scmp.ne.s32.totalorder %s85, %s87
      %p94 = scmp.eq.s32.totalorder %s30, 1
      %p95 = por %p93, %p94
      %p96 = scmp.ne.s32.totalorder %s87, %s88
      %p97 = scmp.eq.s32.totalorder %s30, 0
      %p98 = por %p96, %p97
      %p99 = scmp.ne.s32.totalorder %s87, %s88
      %p100 = scmp.eq.s32.totalorder %s31, 1
      %p101 = por %p99, %p100
      %p103 = scmp.ne.s32.totalorder %s88, %s102
      %p104 = scmp.eq.s32.totalorder %s31, 0
      %p105 = por %p103, %p104
      %s107 = sadd.s32 %s106, 1
      %p110 = scmp.eq.s32.totalorder %s25, 1
      %p111 = scmp.ne.s32.totalorder %s106, %s108
      %p112 = scmp.eq.s32.totalorder %s25, 0
      %p113 = por %p111, %p112
      %p114 = scmp.ne.s32.totalorder %s106, %s108
      %p115 = scmp.eq.s32.totalorder %s30, 1
      %p116 = por %p114, %p115
      %p117 = scmp.ne.s32.totalorder %s108, %s109
      %p118 = scmp.eq.s32.totalorder %s30, 0
      %p119 = por %p117, %p118
      %p120 = scmp.ne.s32.totalorder %s108, %s109
      %p121 = scmp.eq.s32.totalorder %s31, 1
      %p122 = por %p120, %p121
      %p124 = scmp.ne.s32.totalorder %s109, %s123
      %p125 = scmp.eq.s32.totalorder %s31, 0
      %p126 = por %p124, %p125
      %s128 = sadd.s32 %s127, 1
      %p131 = scmp.eq.s32.totalorder %s25, 1
      %p132 = scmp.ne.s32.totalorder %s127, %s129
      %p133 = scmp.eq.s32.totalorder %s25, 0
      %p134 = por %p132, %p133
      %p135 = scmp.ne.s32.totalorder %s127, %s129
      %p136 = scmp.eq.s32.totalorder %s30, 1
      %p137 = por %p135, %p136
      %p138 = scmp.ne.s32.totalorder %s129, %s130
      %p139 = scmp.eq.s32.totalorder %s30, 0
      %p140 = por %p138, %p139
      %p141 = scmp.ne.s32.totalorder %s129, %s130
      %p142 = scmp.eq.s32.totalorder %s31, 1
      %p143 = por %p141, %p142
      %p145 = scmp.ne.s32.totalorder %s130, %s144
      %p146 = scmp.eq.s32.totalorder %s31, 0
      %p147 = por %p145, %p146
      %s149 = sadd.s32 %s148, 1
      %p152 = scmp.eq.s32.totalorder %s25, 1
      %p153 = scmp.ne.s32.totalorder %s148, %s150
      %p154 = scmp.eq.s32.totalorder %s25, 0
      %p155 = por %p153, %p154
      %p156 = scmp.ne.s32.totalorder %s148, %s150
      %p157 = scmp.eq.s32.totalorder %s30, 1
      %p158 = por %p156, %p157
      %p159 = scmp.ne.s32.totalorder %s150, %s151
      %p160 = scmp.eq.s32.totalorder %s30, 0
      %p161 = por %p159, %p160
      %p162 = scmp.ne.s32.totalorder %s150, %s151
      %p163 = scmp.eq.s32.totalorder %s31, 1
      %p164 = por %p162, %p163
      %p166 = scmp.ne.s32.totalorder %s151, %s165
      %p167 = scmp.eq.s32.totalorder %s31, 0
      %p168 = por %p166, %p167
      %s170 = sadd.s32 %s169, 1
      %p173 = scmp.eq.s32.totalorder %s25, 1
      %p174 = scmp.ne.s32.totalorder %s169, %s171
      %p175 = scmp.eq.s32.totalorder %s25, 0
      %p176 = por %p174, %p175
      %p177 = scmp.ne.s32.totalorder %s169, %s171
      %p178 = scmp.eq.s32.totalorder %s30, 1
      %p179 = por %p177, %p178
      %p180 = scmp.ne.s32.totalorder %s171, %s172
      %p181 = scmp.eq.s32.totalorder %s30, 0
      %p182 = por %p180, %p181
      %p183 = scmp.ne.s32.totalorder %s171, %s172
      %p184 = scmp.eq.s32.totalorder %s31, 1
      %p185 = por %p183, %p184
      %p187 = scmp.ne.s32.totalorder %s172, %s186
      %p188 = scmp.eq.s32.totalorder %s31, 0
      %p189 = por %p187, %p188
      %s191 = sadd.s32 %s190, 1
      %p194 = scmp.eq.s32.totalorder %s25, 1
      %p195 = scmp.ne.s32.totalorder %s190, %s192
      %p196 = scmp.eq.s32.totalorder %s25, 0
      %p197 = por %p195, %p196
      %p198 = scmp.ne.s32.totalorder %s190, %s192
      %p199 = scmp.eq.s32.totalorder %s30, 1
      %p200 = por %p198, %p199
      %p201 = scmp.ne.s32.totalorder %s192, %s193
      %p202 = scmp.eq.s32.totalorder %s30, 0
      %p203 = por %p201, %p202
      %p204 = scmp.ne.s32.totalorder %s192, %s193
      %p205 = scmp.eq.s32.totalorder %s31, 1
      %p206 = por %p204, %p205
      %p208 = scmp.ne.s32.totalorder %s193, %s207
      %p209 = scmp.eq.s32.totalorder %s31, 0
      %p210 = por %p208, %p209
      %s212 = sadd.s32 %s211, 1
      %p215 = scmp.eq.s32.totalorder %s25, 1
      %p216 = scmp.ne.s32.totalorder %s211, %s213
      %p217 = scmp.eq.s32.totalorder %s25, 0
      %p218 = por %p216, %p217
      %p219 = scmp.ne.s32.totalorder %s211, %s213
      %p220 = scmp.eq.s32.totalorder %s30, 1
      %p221 = por %p219, %p220
      %p222 = scmp.ne.s32.totalorder %s213, %s214
      %p223 = scmp.eq.s32.totalorder %s30, 0
      %p224 = por %p222, %p223
      %p225 = scmp.ne.s32.totalorder %s213, %s214
      %p226 = scmp.eq.s32.totalorder %s31, 1
      %p227 = por %p225, %p226
      %p229 = scmp.ne.s32.totalorder %s214, %s228
      %p230 = scmp.eq.s32.totalorder %s31, 0
      %p231 = por %p229, %p230
      %s233 = sadd.s32 %s232, 1
      %p236 = scmp.eq.s32.totalorder %s25, 1
      %p237 = scmp.ne.s32.totalorder %s232, %s234
      %p238 = scmp.eq.s32.totalorder %s25, 0
      %p239 = por %p237, %p238
      %p240 = scmp.ne.s32.totalorder %s232, %s234
      %p241 = scmp.eq.s32.totalorder %s30, 1
      %p242 = por %p240, %p241
      %p243 = scmp.ne.s32.totalorder %s234, %s235
      %p244 = scmp.eq.s32.totalorder %s30, 0
      %p245 = por %p243, %p244
      %p246 = scmp.ne.s32.totalorder %s234, %s235
      %p247 = scmp.eq.s32.totalorder %s31, 1
      %p248 = por %p246, %p247
      %p250 = scmp.ne.s32.totalorder %s235, %s249
      %p251 = scmp.eq.s32.totalorder %s31, 0
      %p252 = por %p250, %p251
      %s254 = sadd.s32 %s253, 1
      %p257 = scmp.eq.s32.totalorder %s25, 1
      %p258 = scmp.ne.s32.totalorder %s253, %s255
      %p259 = scmp.eq.s32.totalorder %s25, 0
      %p260 = por %p258, %p259
      %p261 = scmp.ne.s32.totalorder %s253, %s255
      %p262 = scmp.eq.s32.totalorder %s30, 1
      %p263 = por %p261, %p262
      %p264 = scmp.ne.s32.totalorder %s255, %s256
      %p265 = scmp.eq.s32.totalorder %s30, 0
      %p266 = por %p264, %p265
      %p267 = scmp.ne.s32.totalorder %s255, %s256
      %p268 = scmp.eq.s32.totalorder %s31, 1
      %p269 = por %p267, %p268
      %p271 = scmp.ne.s32.totalorder %s256, %s270
      %p272 = scmp.eq.s32.totalorder %s31, 0
      %p273 = por %p271, %p272
      %s275 = sadd.s32 %s274, 1
      %p278 = scmp.eq.s32.totalorder %s25, 1
      %p279 = scmp.ne.s32.totalorder %s274, %s276
      %p280 = scmp.eq.s32.totalorder %s25, 0
      %p281 = por %p279, %p280
      %p282 = scmp.ne.s32.totalorder %s274, %s276
      %p283 = scmp.eq.s32.totalorder %s30, 1
      %p284 = por %p282, %p283
      %p285 = scmp.ne.s32.totalorder %s276, %s277
      %p286 = scmp.eq.s32.totalorder %s30, 0
      %p287 = por %p285, %p286
      %p288 = scmp.ne.s32.totalorder %s276, %s277
      %p289 = scmp.eq.s32.totalorder %s31, 1
      %p290 = por %p288, %p289
      %p292 = scmp.ne.s32.totalorder %s277, %s291
      %p293 = scmp.eq.s32.totalorder %s31, 0
      %p294 = por %p292, %p293
      %s296 = sadd.s32 %s295, 1
      %p299 = scmp.eq.s32.totalorder %s25, 1
      %p300 = scmp.ne.s32.totalorder %s295, %s297
      %p301 = scmp.eq.s32.totalorder %s25, 0
      %p302 = por %p300, %p301
      %p303 = scmp.ne.s32.totalorder %s295, %s297
      %p304 = scmp.eq.s32.totalorder %s30, 1
      %p305 = por %p303, %p304
      %p306 = scmp.ne.s32.totalorder %s297, %s298
      %p307 = scmp.eq.s32.totalorder %s30, 0
      %p308 = por %p306, %p307
      %p309 = scmp.ne.s32.totalorder %s297, %s298
      %p310 = scmp.eq.s32.totalorder %s31, 1
      %p311 = por %p309, %p310
      %p313 = scmp.ne.s32.totalorder %s298, %s312
      %p314 = scmp.eq.s32.totalorder %s31, 0
      %p315 = por %p313, %p314
      %s317 = sadd.s32 %s316, 1
      %p320 = scmp.eq.s32.totalorder %s25, 1
      %p321 = scmp.ne.s32.totalorder %s316, %s318
      %p322 = scmp.eq.s32.totalorder %s25, 0
      %p323 = por %p321, %p322
      %p324 = scmp.ne.s32.totalorder %s316, %s318
      %p325 = scmp.eq.s32.totalorder %s30, 1
      %p326 = por %p324, %p325
      %p327 = scmp.ne.s32.totalorder %s318, %s319
      %p328 = scmp.eq.s32.totalorder %s30, 0
      %p329 = por %p327, %p328
      %p330 = scmp.ne.s32.totalorder %s318, %s319
      %p331 = scmp.eq.s32.totalorder %s31, 1
      %p332 = por %p330, %p331
      %p334 = scmp.ne.s32.totalorder %s319, %s333
      %p335 = scmp.eq.s32.totalorder %s31, 0
      %p336 = por %p334, %p335
      %s338 = sadd.s32 %s337, 1
      %p341 = scmp.eq.s32.totalorder %s25, 1
      %p342 = scmp.ne.s32.totalorder %s337, %s339
      %p343 = scmp.eq.s32.totalorder %s25, 0
      %p344 = por %p342, %p343
      %p345 = scmp.ne.s32.totalorder %s337, %s339
      %p346 = scmp.eq.s32.totalorder %s30, 1
      %p347 = por %p345, %p346
      %p348 = scmp.ne.s32.totalorder %s339, %s340
      %p349 = scmp.eq.s32.totalorder %s30, 0
      %p350 = por %p348, %p349
      %p351 = scmp.ne.s32.totalorder %s339, %s340
      %p352 = scmp.eq.s32.totalorder %s31, 1
      %p353 = por %p351, %p352
      %p355 = scmp.ne.s32.totalorder %s340, %s354
      %p356 = scmp.eq.s32.totalorder %s31, 0
      %p357 = por %p355, %p356
      %s358 = ssub.s32 %s25, %s32
      %p359 = scmp.eq.s32.totalorder %s358, 0
      %s361 = sadd.s32 %s360, 1
      %s362 = scalar_select %p359, %s360, %s361
      %p365 = pneg %p359
      %p366 = scmp.eq.s32.totalorder %s25, 1
      %p367 = por %p365, %p366
      %p368 = scmp.ne.s32.totalorder %s360, %s363
      %p369 = scmp.eq.s32.totalorder %s25, 0
      %p370 = por %p368, %p369
      %p371 = scmp.ne.s32.totalorder %s360, %s363
      %p372 = scmp.eq.s32.totalorder %s30, 1
      %p373 = por %p371, %p372
      %p374 = scmp.ne.s32.totalorder %s363, %s364
      %p375 = scmp.eq.s32.totalorder %s30, 0
      %p376 = por %p374, %p375
      %p377 = scmp.ne.s32.totalorder %s363, %s364
      %p378 = scmp.eq.s32.totalorder %s31, 1
      %p379 = por %p377, %p378
      %p381 = scmp.ne.s32.totalorder %s364, %s380
      %p382 = scmp.eq.s32.totalorder %s31, 0
      %p383 = por %p381, %p382
      %p384 = scmp.le.s32.totalorder 1, %s25
      %p385 = scmp.lt.s32.totalorder %s25, 3
      %p386 = pnand %p384, %p385
      %p387 = pneg %p386
      // Predicated region
      $region9: #{tpu_custom_call.1} parent=5 // pred_check
        _
      $region10: #{tpu_custom_call.1} parent=5 // pred_check_branch
        %389 = sbr.rel (%p386) target = $region12
      $region11: #{tpu_custom_call.1} parent=5 // pred_region
        %s390 = ssub.s32 %s25, 1
        // Predicated region
        $region13: #{tpu_custom_call.1} parent=11 // pred_check
          %p391 = pneg %p98
        $region14: #{tpu_custom_call.1} parent=11 // pred_check_branch
          %393 = sbr.rel (%p391) target = $region16
        $region15: #{tpu_custom_call.1} parent=11 // pred_region
          _
        $region16: #{tpu_custom_call.1} parent=11 // pred_fallthru
          _
        // Predicated region
        $region17: #{tpu_custom_call.1} parent=11 // pred_check
          %p394 = pneg %p119
        $region18: #{tpu_custom_call.1} parent=11 // pred_check_branch
          %396 = sbr.rel (%p394) target = $region20
        $region19: #{tpu_custom_call.1} parent=11 // pred_region
          _
        $region20: #{tpu_custom_call.1} parent=11 // pred_fallthru
          _
        // Predicated region
        $region21: #{tpu_custom_call.1} parent=11 // pred_check
          %p397 = pneg %p140
        $region22: #{tpu_custom_call.1} parent=11 // pred_check_branch
          %399 = sbr.rel (%p397) target = $region24
        $region23: #{tpu_custom_call.1} parent=11 // pred_region
          _
        $region24: #{tpu_custom_call.1} parent=11 // pred_fallthru
          _
        // Predicated region
        $region25: #{tpu_custom_call.1} parent=11 // pred_check
          %p400 = pneg %p161
        $region26: #{tpu_custom_call.1} parent=11 // pred_check_branch
          %402 = sbr.rel (%p400) target = $region28
        $region27: #{tpu_custom_call.1} parent=11 // pred_region
          %404 = vsyncadd [#allocation4], 0
          %s405 = sshll.u32 %s5, 4
          %s406 = int_to_ptr.hbm [resolvable:$true] %s405
          %s407 = sshll.u32 [#allocation3], 4
          %s408 = int_to_ptr.vmem [resolvable:$true] %s407
          %413 = dma.hbm_to_vmem [thread:$0]  %s406, 6144, %s408, [#allocation4], 512, 512, 32
        $region28: #{tpu_custom_call.1} parent=11 // pred_fallthru
          _
        // Predicated region
        $region29: #{tpu_custom_call.1} parent=11 // pred_check
          %p414 = pneg %p182
        $region30: #{tpu_custom_call.1} parent=11 // pred_check_branch
          %416 = sbr.rel (%p414) target = $region32
        $region31: #{tpu_custom_call.1} parent=11 // pred_region
          _
        $region32: #{tpu_custom_call.1} parent=11 // pred_fallthru
          _
        // Predicated region
        $region33: #{tpu_custom_call.1} parent=11 // pred_check
          %p417 = pneg %p203
        $region34: #{tpu_custom_call.1} parent=11 // pred_check_branch
          %419 = sbr.rel (%p417) target = $region36
        $region35: #{tpu_custom_call.1} parent=11 // pred_region
          _
        $region36: #{tpu_custom_call.1} parent=11 // pred_fallthru
          _
        // Predicated region
        $region37: #{tpu_custom_call.1} parent=11 // pred_check
          %p420 = pneg %p224
        $region38: #{tpu_custom_call.1} parent=11 // pred_check_branch
          %422 = sbr.rel (%p420) target = $region40
        $region39: #{tpu_custom_call.1} parent=11 // pred_region
          _
        $region40: #{tpu_custom_call.1} parent=11 // pred_fallthru
          _
        // Predicated region
        $region41: #{tpu_custom_call.1} parent=11 // pred_check
          %p423 = pneg %p245
        $region42: #{tpu_custom_call.1} parent=11 // pred_check_branch
          %425 = sbr.rel (%p423) target = $region44
        $region43: #{tpu_custom_call.1} parent=11 // pred_region
          _
        $region44: #{tpu_custom_call.1} parent=11 // pred_fallthru
          _
        // Predicated region
        $region45: #{tpu_custom_call.1} parent=11 // pred_check
          %p426 = pneg %p266
        $region46: #{tpu_custom_call.1} parent=11 // pred_check_branch
          %428 = sbr.rel (%p426) target = $region48
        $region47: #{tpu_custom_call.1} parent=11 // pred_region
          _
        $region48: #{tpu_custom_call.1} parent=11 // pred_fallthru
          _
        // Predicated region
        $region49: #{tpu_custom_call.1} parent=11 // pred_check
          %p429 = pneg %p287
        $region50: #{tpu_custom_call.1} parent=11 // pred_check_branch
          %431 = sbr.rel (%p429) target = $region52
        $region51: #{tpu_custom_call.1} parent=11 // pred_region
          _
        $region52: #{tpu_custom_call.1} parent=11 // pred_fallthru
          _
        // Predicated region
        $region53: #{tpu_custom_call.1} parent=11 // pred_check
          %p432 = pneg %p308
        $region54: #{tpu_custom_call.1} parent=11 // pred_check_branch
          %434 = sbr.rel (%p432) target = $region56
        $region55: #{tpu_custom_call.1} parent=11 // pred_region
          _
        $region56: #{tpu_custom_call.1} parent=11 // pred_fallthru
          _
        // Predicated region
        $region57: #{tpu_custom_call.1} parent=11 // pred_check
          %p435 = pneg %p329
        $region58: #{tpu_custom_call.1} parent=11 // pred_check_branch
          %437 = sbr.rel (%p435) target = $region60
        $region59: #{tpu_custom_call.1} parent=11 // pred_region
          _
        $region60: #{tpu_custom_call.1} parent=11 // pred_fallthru
          _
        // Predicated region
        $region61: #{tpu_custom_call.1} parent=11 // pred_check
          %p438 = pneg %p350
        $region62: #{tpu_custom_call.1} parent=11 // pred_check_branch
          %440 = sbr.rel (%p438) target = $region64
        $region63: #{tpu_custom_call.1} parent=11 // pred_region
          _
        $region64: #{tpu_custom_call.1} parent=11 // pred_fallthru
          _
      $region12: #{tpu_custom_call.1} parent=5 // pred_fallthru
        _
      %p441 = scmp.lt.s32.totalorder %s25, 2
      // Predicated region
      $region65: #{tpu_custom_call.1} parent=5 // pred_check
        %p442 = pneg %p441
      $region66: #{tpu_custom_call.1} parent=5 // pred_check_branch
        %444 = sbr.rel (%p442) target = $region68
      $region67: #{tpu_custom_call.1} parent=5 // pred_region
        // Predicated region
        $region69: #{tpu_custom_call.1} parent=67 // pred_check
          %p445 = pneg %p45
        $region70: #{tpu_custom_call.1} parent=67 // pred_check_branch
          %447 = sbr.rel (%p445) target = $region72
        $region71: #{tpu_custom_call.1} parent=67 // pred_region
          %p448 = scmp.lt.s32.totalorder %s25, 1
          %s449 = scalar_select %p448, %s25, 1
          %s450 = smul.addr %s449, 64
          %s451 = smul.addr %s450, 8
          %s452 = scalar_lea.vmem %s0, %s451
        $region72: #{tpu_custom_call.1} parent=67 // pred_fallthru
          _
        // Predicated region
        $region73: #{tpu_custom_call.1} parent=67 // pred_check
          %p453 = pneg %p71
        $region74: #{tpu_custom_call.1} parent=67 // pred_check_branch
          %455 = sbr.rel (%p453) target = $region76
        $region75: #{tpu_custom_call.1} parent=67 // pred_region
          %p456 = scmp.lt.s32.totalorder %s25, 1
          %s457 = scalar_select %p456, %s25, 1
          %s458 = smul.addr %s457, 4
          %s459 = smul.addr %s458, 4
          %s460 = scalar_lea.vmem %s1, %s459
        $region76: #{tpu_custom_call.1} parent=67 // pred_fallthru
          _
      $region68: #{tpu_custom_call.1} parent=5 // pred_fallthru
        _
      %p461 = scmp.le.s32.totalorder 1, %s25
      %p462 = scmp.lt.s32.totalorder %s25, 3
      %p463 = pnand %p461, %p462
      %p464 = pneg %p463
      // Predicated region
      $region77: #{tpu_custom_call.1} parent=5 // pred_check
        _
      $region78: #{tpu_custom_call.1} parent=5 // pred_check_branch
        %466 = sbr.rel (%p463) target = $region80
      $region79: #{tpu_custom_call.1} parent=5 // pred_region
        %s467 = ssub.s32 %s25, 1
        // Predicated region
        $region81: #{tpu_custom_call.1} parent=79 // pred_check
          %p468 = pneg %p161
        $region82: #{tpu_custom_call.1} parent=79 // pred_check_branch
          %470 = sbr.rel (%p468) target = $region84
        $region83: #{tpu_custom_call.1} parent=79 // pred_region
          %472 = dma.done [#allocation4], 6144
        $region84: #{tpu_custom_call.1} parent=79 // pred_fallthru
          _
        %p473 = scmp.lt.s32.totalorder %s30, 1
        %s474 = scalar_select %p473, %s30, 1
        %s475 = smul.addr %s474, 64
        %s476 = smul.addr %s475, 8
        %s477 = scalar_lea.vmem %s0, %s476
        %p478 = pneg %p51
        %p479 = pneg %p48
        %p480 = scmp.lt.s32.totalorder %s30, 1
        %s481 = scalar_select %p480, %s30, 1
        %s482 = smul.addr %s481, 4
        %s483 = smul.addr %s482, 4
        %s484 = scalar_lea.vmem %s1, %s483
        %p485 = pneg %p77
        %p486 = pneg %p74
        %p487 = pneg %p98
        %p488 = pneg %p95
        %p489 = pneg %p119
        %p490 = pneg %p116
        %p491 = pneg %p140
        %p492 = pneg %p137
        %p493 = pneg %p161
        %p494 = pneg %p158
        %p495 = pneg %p182
        %p496 = pneg %p179
        %p497 = pneg %p203
        %p498 = pneg %p200
        %p499 = pneg %p224
        %p500 = pneg %p221
        %p501 = pneg %p245
        %p502 = pneg %p242
        %p503 = pneg %p266
        %p504 = pneg %p263
        %p505 = pneg %p287
        %p506 = pneg %p284
        %p507 = pneg %p308
        %p508 = pneg %p305
        %p509 = pneg %p329
        %p510 = pneg %p326
        %p511 = pneg %p350
        %p512 = pneg %p347
        %p513 = pneg %p376
        %p514 = pneg %p373
        %s515 = sand.u32 %s363, 1
        %s516 = scalar_lea.sflag [#allocation5], %s515
        %s517 = sand.u32 %s363, 1
        %s518 = scalar_lea.vmem [#allocation6], %s517
        %p519 = scmp.lt.s32.totalorder %s30, 1
        %s520 = scalar_select %p519, %s30, 1
        %s521 = smul.addr %s520, 64
        %s522 = smul.addr %s521, 8
        %s523 = scalar_lea.vmem %s0, %s522
        %p524 = scmp.lt.s32.totalorder %s30, 1
        %s525 = scalar_select %p524, %s30, 1
        %s526 = smul.addr %s525, 4
        %s527 = smul.addr %s526, 4
        %s528 = scalar_lea.vmem %s1, %s527
        %v529 = vld [vmem:[%s2] sm:$0x7]
        %v530 = vld [vmem:[%s3] sm:$0x7]
        %v531 = vld [vmem:[%s4] sm:$0x1]
        %v532 = vlaneseq
        %v533 = vand.u32 %v532, 127
        %s534 = scalar_lea.vmem %s523, 128
        %v535 = vld [vmem:[%s534] sm:$0xff]
        %v536 = vld [vmem:[%s534 + $0x8] sm:$0xff]
        %v537 = vld [vmem:[%s534 + $0x10] sm:$0xff]
        %v538 = vld [vmem:[%s534 + $0x18] sm:$0xff]
        %v539 = vld [vmem:[%s534 + $0x20] sm:$0xff]
        %v540 = vld [vmem:[%s534 + $0x28] sm:$0xff]
        %v541 = vld [vmem:[%s534 + $0x30] sm:$0xff]
        %v542 = vld [vmem:[%s534 + $0x38] sm:$0xff]
        %v543 = vld [vmem:[%s534 + $0x40] sm:$0xff]
        %v544 = vld [vmem:[%s534 + $0x48] sm:$0xff]
        %v545 = vld [vmem:[%s534 + $0x50] sm:$0xff]
        %v546 = vld [vmem:[%s534 + $0x58] sm:$0xff]
        %v547 = vld [vmem:[%s534 + $0x60] sm:$0xff]
        %v548 = vld [vmem:[%s534 + $0x68] sm:$0xff]
        %v549 = vld [vmem:[%s534 + $0x70] sm:$0xff]
        %v550 = vld [vmem:[%s534 + $0x78] sm:$0xff]
        %v551 = vld [vmem:[%s523] sm:$0xff]
        %v552 = vld [vmem:[%s523 + $0x8] sm:$0xff]
        %v553 = vld [vmem:[%s523 + $0x10] sm:$0xff]
        %v554 = vld [vmem:[%s523 + $0x18] sm:$0xff]
        %v555 = vld [vmem:[%s523 + $0x20] sm:$0xff]
        %v556 = vld [vmem:[%s523 + $0x28] sm:$0xff]
        %v557 = vld [vmem:[%s523 + $0x30] sm:$0xff]
        %v558 = vld [vmem:[%s523 + $0x38] sm:$0xff]
        %v559 = vld [vmem:[%s523 + $0x40] sm:$0xff]
        %v560 = vld [vmem:[%s523 + $0x48] sm:$0xff]
        %v561 = vld [vmem:[%s523 + $0x50] sm:$0xff]
        %v562 = vld [vmem:[%s523 + $0x58] sm:$0xff]
        %v563 = vld [vmem:[%s523 + $0x60] sm:$0xff]
        %v564 = vld [vmem:[%s523 + $0x68] sm:$0xff]
        %v565 = vld [vmem:[%s523 + $0x70] sm:$0xff]
        %v566 = vld [vmem:[%s523 + $0x78] sm:$0xff]
        %v567 = vld [vmem:[%s528] sm:$0x7]
        %vm568 = vcmask 23552
        %v570 = vsel %vm568, %v535, 0
        %v573 = vsel %vm568, %v536, 0
        %v576 = vsel %vm568, %v537, 0
        %v579 = vsel %vm568, %v538, 0
        %v582 = vsel %vm568, %v539, 0
        %v585 = vsel %vm568, %v540, 0
        %v588 = vsel %vm568, %v541, 0
        %v591 = vsel %vm568, %v542, 0
        %v594 = vsel %vm568, %v543, 0
        %v597 = vsel %vm568, %v544, 0
        %v600 = vsel %vm568, %v545, 0
        %v603 = vsel %vm568, %v546, 0
        %v606 = vsel %vm568, %v547, 0
        %v609 = vsel %vm568, %v548, 0
        %v612 = vsel %vm568, %v549, 0
        %v615 = vsel %vm568, %v550, 0
        %vm617 = vcmask 1042432
        %v619 = vsel %vm617, %v567, 0
        %621 = vmatpush.msra.mxu0 0.0
        %622 = vmatpush.msra.mxu0 0.0
        %623 = vmatpush.msra.mxu0 0.0
        %624 = vmatpush.msra.mxu0 0.0
        %625 = vmatpush.msra.mxu0 0.0
        %626 = vmatpush.msra.mxu0 0.0
        %627 = vmatpush.msra.mxu0 0.0
        %628 = vmatpush.msra.mxu0 0.0
        %629 = vmatpush.msra.mxu0 0.0
        %630 = vmatpush.msra.mxu0 0.0
        %631 = vmatpush.msra.mxu0 0.0
        %632 = vmatpush.msra.mxu0 0.0
        %633 = vmatpush.msra.mxu0 0.0
        %634 = vmatpush.msra.mxu0 0.0
        %635 = vmatpush.msra.mxu0 0.0
        %636 = vmatpush.msra.mxu0 %v619
        %637 = vmatmul.f32.gmra.mxu0 %v570
        %v638 = vpop.f32.mrf.mxu0
        %v639 = vadd.f32 0.0, %v638
        %640 = vmatmul.f32.gmra.mxu0 %v573
        %v641 = vpop.f32.mrf.mxu0
        %v642 = vadd.f32 0.0, %v641
        %643 = vmatmul.f32.gmra.mxu0 %v576
        %v644 = vpop.f32.mrf.mxu0
        %v645 = vadd.f32 0.0, %v644
        %646 = vmatmul.f32.gmra.mxu0 %v579
        %v647 = vpop.f32.mrf.mxu0
        %v648 = vadd.f32 0.0, %v647
        %649 = vmatmul.f32.gmra.mxu0 %v582
        %v650 = vpop.f32.mrf.mxu0
        %v651 = vadd.f32 0.0, %v650
        %652 = vmatmul.f32.gmra.mxu0 %v585
        %v653 = vpop.f32.mrf.mxu0
        %v654 = vadd.f32 0.0, %v653
        %655 = vmatmul.f32.gmra.mxu0 %v588
        %v656 = vpop.f32.mrf.mxu0
        %v657 = vadd.f32 0.0, %v656
        %658 = vmatmul.f32.gmra.mxu0 %v591
        %v659 = vpop.f32.mrf.mxu0
        %v660 = vadd.f32 0.0, %v659
        %661 = vmatmul.f32.gmra.mxu0 %v594
        %v662 = vpop.f32.mrf.mxu0
        %v663 = vadd.f32 0.0, %v662
        %664 = vmatmul.f32.gmra.mxu0 %v597
        %v665 = vpop.f32.mrf.mxu0
        %v666 = vadd.f32 0.0, %v665
        %667 = vmatmul.f32.gmra.mxu0 %v600
        %v668 = vpop.f32.mrf.mxu0
        %v669 = vadd.f32 0.0, %v668
        %670 = vmatmul.f32.gmra.mxu0 %v603
        %v671 = vpop.f32.mrf.mxu0
        %v672 = vadd.f32 0.0, %v671
        %673 = vmatmul.f32.gmra.mxu0 %v606
        %v674 = vpop.f32.mrf.mxu0
        %v675 = vadd.f32 0.0, %v674
        %676 = vmatmul.f32.gmra.mxu0 %v609
        %v677 = vpop.f32.mrf.mxu0
        %v678 = vadd.f32 0.0, %v677
        %679 = vmatmul.f32.gmra.mxu0 %v612
        %v680 = vpop.f32.mrf.mxu0
        %v681 = vadd.f32 0.0, %v680
        %682 = vmatmul.f32.gmra.mxu0 %v615
        %v683 = vpop.f32.mrf.mxu0
        %v684 = vadd.f32 0.0, %v683
        %685 = vdwg.mxu0
        %v686 = vmul.f32 %v567, %v567
        %v687 = vsel %vm617, %v686, 0.0
        %v688 = vrot.slane %v687, 4
        %v689 = vadd.f32 %v687, %v688
        %v690 = vrot.slane %v689, 2
        %v691 = vadd.f32 %v689, %v690
        %v692 = vrot.slane %v691, 1
        %v693 = vadd.f32 %v691, %v692
        %v694 = vmul.f32 %v639, 2.0
        %v695 = vmul.f32 %v642, 2.0
        %v696 = vmul.f32 %v645, 2.0
        %v697 = vmul.f32 %v648, 2.0
        %v698 = vmul.f32 %v651, 2.0
        %v699 = vmul.f32 %v654, 2.0
        %v700 = vmul.f32 %v657, 2.0
        %v701 = vmul.f32 %v660, 2.0
        %v702 = vmul.f32 %v663, 2.0
        %v703 = vmul.f32 %v666, 2.0
        %v704 = vmul.f32 %v669, 2.0
        %v705 = vmul.f32 %v672, 2.0
        %v706 = vmul.f32 %v675, 2.0
        %v707 = vmul.f32 %v678, 2.0
        %v708 = vmul.f32 %v681, 2.0
        %v709 = vmul.f32 %v684, 2.0
        %v710 = vsub.f32 %v693, %v694
        %v711 = vsub.f32 %v693, %v695
        %v712 = vsub.f32 %v693, %v696
        %v713 = vsub.f32 %v693, %v697
        %v714 = vsub.f32 %v693, %v698
        %v715 = vsub.f32 %v693, %v699
        %v716 = vsub.f32 %v693, %v700
        %v717 = vsub.f32 %v693, %v701
        %v718 = vsub.f32 %v693, %v702
        %v719 = vsub.f32 %v693, %v703
        %v720 = vsub.f32 %v693, %v704
        %v721 = vsub.f32 %v693, %v705
        %v722 = vsub.f32 %v693, %v706
        %v723 = vsub.f32 %v693, %v707
        %v724 = vsub.f32 %v693, %v708
        %v725 = vsub.f32 %v693, %v709
        %v727 = vsel %vm568, %v551, 0
        %v730 = vsel %vm568, %v552, 0
        %v733 = vsel %vm568, %v553, 0
        %v736 = vsel %vm568, %v554, 0
        %v739 = vsel %vm568, %v555, 0
        %v742 = vsel %vm568, %v556, 0
        %v745 = vsel %vm568, %v557, 0
        %v748 = vsel %vm568, %v558, 0
        %v751 = vsel %vm568, %v559, 0
        %v754 = vsel %vm568, %v560, 0
        %v757 = vsel %vm568, %v561, 0
        %v760 = vsel %vm568, %v562, 0
        %v763 = vsel %vm568, %v563, 0
        %v766 = vsel %vm568, %v564, 0
        %v769 = vsel %vm568, %v565, 0
        %v772 = vsel %vm568, %v566, 0
        %v775 = vsel %vm617, %v529, 0
        %777 = vmatpush.msra.mxu0 0.0
        %778 = vmatpush.msra.mxu0 0.0
        %779 = vmatpush.msra.mxu0 0.0
        %780 = vmatpush.msra.mxu0 0.0
        %781 = vmatpush.msra.mxu0 0.0
        %782 = vmatpush.msra.mxu0 0.0
        %783 = vmatpush.msra.mxu0 0.0
        %784 = vmatpush.msra.mxu0 0.0
        %785 = vmatpush.msra.mxu0 0.0
        %786 = vmatpush.msra.mxu0 0.0
        %787 = vmatpush.msra.mxu0 0.0
        %788 = vmatpush.msra.mxu0 0.0
        %789 = vmatpush.msra.mxu0 0.0
        %790 = vmatpush.msra.mxu0 0.0
        %791 = vmatpush.msra.mxu0 0.0
        %792 = vmatpush.msra.mxu0 %v775
        %793 = vmatmul.f32.gmra.mxu0 %v727
        %v794 = vpop.f32.mrf.mxu0
        %v795 = vadd.f32 0.0, %v794
        %796 = vmatmul.f32.gmra.mxu0 %v730
        %v797 = vpop.f32.mrf.mxu0
        %v798 = vadd.f32 0.0, %v797
        %799 = vmatmul.f32.gmra.mxu0 %v733
        %v800 = vpop.f32.mrf.mxu0
        %v801 = vadd.f32 0.0, %v800
        %802 = vmatmul.f32.gmra.mxu0 %v736
        %v803 = vpop.f32.mrf.mxu0
        %v804 = vadd.f32 0.0, %v803
        %805 = vmatmul.f32.gmra.mxu0 %v739
        %v806 = vpop.f32.mrf.mxu0
        %v807 = vadd.f32 0.0, %v806
        %808 = vmatmul.f32.gmra.mxu0 %v742
        %v809 = vpop.f32.mrf.mxu0
        %v810 = vadd.f32 0.0, %v809
        %811 = vmatmul.f32.gmra.mxu0 %v745
        %v812 = vpop.f32.mrf.mxu0
        %v813 = vadd.f32 0.0, %v812
        %814 = vmatmul.f32.gmra.mxu0 %v748
        %v815 = vpop.f32.mrf.mxu0
        %v816 = vadd.f32 0.0, %v815
        %817 = vmatmul.f32.gmra.mxu0 %v751
        %v818 = vpop.f32.mrf.mxu0
        %v819 = vadd.f32 0.0, %v818
        %820 = vmatmul.f32.gmra.mxu0 %v754
        %v821 = vpop.f32.mrf.mxu0
        %v822 = vadd.f32 0.0, %v821
        %823 = vmatmul.f32.gmra.mxu0 %v757
        %v824 = vpop.f32.mrf.mxu0
        %v825 = vadd.f32 0.0, %v824
        %826 = vmatmul.f32.gmra.mxu0 %v760
        %v827 = vpop.f32.mrf.mxu0
        %v828 = vadd.f32 0.0, %v827
        %829 = vmatmul.f32.gmra.mxu0 %v763
        %v830 = vpop.f32.mrf.mxu0
        %v831 = vadd.f32 0.0, %v830
        %832 = vmatmul.f32.gmra.mxu0 %v766
        %v833 = vpop.f32.mrf.mxu0
        %v834 = vadd.f32 0.0, %v833
        %835 = vmatmul.f32.gmra.mxu0 %v769
        %v836 = vpop.f32.mrf.mxu0
        %v837 = vadd.f32 0.0, %v836
        %838 = vmatmul.f32.gmra.mxu0 %v772
        %v839 = vpop.f32.mrf.mxu0
        %v840 = vadd.f32 0.0, %v839
        %841 = vdwg.mxu0
        %v843 = vperm.slane %v531, 0
        %v846 = vsel %vm617, %v530, 0
        %848 = vmatpush.msra.mxu0 0.0
        %849 = vmatpush.msra.mxu0 0.0
        %850 = vmatpush.msra.mxu0 0.0
        %851 = vmatpush.msra.mxu0 0.0
        %852 = vmatpush.msra.mxu0 0.0
        %853 = vmatpush.msra.mxu0 0.0
        %854 = vmatpush.msra.mxu0 0.0
        %855 = vmatpush.msra.mxu0 0.0
        %856 = vmatpush.msra.mxu0 0.0
        %857 = vmatpush.msra.mxu0 0.0
        %858 = vmatpush.msra.mxu0 0.0
        %859 = vmatpush.msra.mxu0 0.0
        %860 = vmatpush.msra.mxu0 0.0
        %861 = vmatpush.msra.mxu0 0.0
        %862 = vmatpush.msra.mxu0 0.0
        %863 = vmatpush.msra.mxu0 %v846
        %864 = vmatmul.f32.gmra.mxu0 %v570
        %v865 = vpop.f32.mrf.mxu0
        %v866 = vadd.f32 %v843, %v865
        %867 = vmatmul.f32.gmra.mxu0 %v573
        %v868 = vpop.f32.mrf.mxu0
        %v869 = vadd.f32 %v843, %v868
        %870 = vmatmul.f32.gmra.mxu0 %v576
        %v871 = vpop.f32.mrf.mxu0
        %v872 = vadd.f32 %v843, %v871
        %873 = vmatmul.f32.gmra.mxu0 %v579
        %v874 = vpop.f32.mrf.mxu0
        %v875 = vadd.f32 %v843, %v874
        %876 = vmatmul.f32.gmra.mxu0 %v582
        %v877 = vpop.f32.mrf.mxu0
        %v878 = vadd.f32 %v843, %v877
        %879 = vmatmul.f32.gmra.mxu0 %v585
        %v880 = vpop.f32.mrf.mxu0
        %v881 = vadd.f32 %v843, %v880
        %882 = vmatmul.f32.gmra.mxu0 %v588
        %v883 = vpop.f32.mrf.mxu0
        %v884 = vadd.f32 %v843, %v883
        %885 = vmatmul.f32.gmra.mxu0 %v591
        %v886 = vpop.f32.mrf.mxu0
        %v887 = vadd.f32 %v843, %v886
        %888 = vmatmul.f32.gmra.mxu0 %v594
        %v889 = vpop.f32.mrf.mxu0
        %v890 = vadd.f32 %v843, %v889
        %891 = vmatmul.f32.gmra.mxu0 %v597
        %v892 = vpop.f32.mrf.mxu0
        %v893 = vadd.f32 %v843, %v892
        %894 = vmatmul.f32.gmra.mxu0 %v600
        %v895 = vpop.f32.mrf.mxu0
        %v896 = vadd.f32 %v843, %v895
        %897 = vmatmul.f32.gmra.mxu0 %v603
        %v898 = vpop.f32.mrf.mxu0
        %v899 = vadd.f32 %v843, %v898
        %900 = vmatmul.f32.gmra.mxu0 %v606
        %v901 = vpop.f32.mrf.mxu0
        %v902 = vadd.f32 %v843, %v901
        %903 = vmatmul.f32.gmra.mxu0 %v609
        %v904 = vpop.f32.mrf.mxu0
        %v905 = vadd.f32 %v843, %v904
        %906 = vmatmul.f32.gmra.mxu0 %v612
        %v907 = vpop.f32.mrf.mxu0
        %v908 = vadd.f32 %v843, %v907
        %909 = vmatmul.f32.gmra.mxu0 %v615
        %v910 = vpop.f32.mrf.mxu0
        %v911 = vadd.f32 %v843, %v910
        %912 = vdwg.mxu0
        %913 = vmin.xlane.f32.xlu0 %v710
        %v914 = vpop.xlane.xlu0 %913
        %915 = vmin.xlane.f32.xlu0 %v711
        %v916 = vpop.xlane.xlu0 %915
        %917 = vmin.xlane.f32.xlu0 %v712
        %v918 = vpop.xlane.xlu0 %917
        %919 = vmin.xlane.f32.xlu0 %v713
        %v920 = vpop.xlane.xlu0 %919
        %921 = vmin.xlane.f32.xlu0 %v714
        %v922 = vpop.xlane.xlu0 %921
        %923 = vmin.xlane.f32.xlu0 %v715
        %v924 = vpop.xlane.xlu0 %923
        %925 = vmin.xlane.f32.xlu0 %v716
        %v926 = vpop.xlane.xlu0 %925
        %927 = vmin.xlane.f32.xlu0 %v717
        %v928 = vpop.xlane.xlu0 %927
        %929 = vmin.xlane.f32.xlu0 %v718
        %v930 = vpop.xlane.xlu0 %929
        %931 = vmin.xlane.f32.xlu0 %v719
        %v932 = vpop.xlane.xlu0 %931
        %933 = vmin.xlane.f32.xlu0 %v720
        %v934 = vpop.xlane.xlu0 %933
        %935 = vmin.xlane.f32.xlu0 %v721
        %v936 = vpop.xlane.xlu0 %935
        %937 = vmin.xlane.f32.xlu0 %v722
        %v938 = vpop.xlane.xlu0 %937
        %939 = vmin.xlane.f32.xlu0 %v723
        %v940 = vpop.xlane.xlu0 %939
        %941 = vmin.xlane.f32.xlu0 %v724
        %v942 = vpop.xlane.xlu0 %941
        %943 = vmin.xlane.f32.xlu0 %v725
        %v944 = vpop.xlane.xlu0 %943
        %vm945 = vcmp.le.f32.partialorder %v710, %v914
        %vm946 = vcmp.le.f32.partialorder %v711, %v916
        %vm947 = vcmp.le.f32.partialorder %v712, %v918
        %vm948 = vcmp.le.f32.partialorder %v713, %v920
        %vm949 = vcmp.le.f32.partialorder %v714, %v922
        %vm950 = vcmp.le.f32.partialorder %v715, %v924
        %vm951 = vcmp.le.f32.partialorder %v716, %v926
        %vm952 = vcmp.le.f32.partialorder %v717, %v928
        %vm953 = vcmp.le.f32.partialorder %v718, %v930
        %vm954 = vcmp.le.f32.partialorder %v719, %v932
        %vm955 = vcmp.le.f32.partialorder %v720, %v934
        %vm956 = vcmp.le.f32.partialorder %v721, %v936
        %vm957 = vcmp.le.f32.partialorder %v722, %v938
        %vm958 = vcmp.le.f32.partialorder %v723, %v940
        %vm959 = vcmp.le.f32.partialorder %v724, %v942
        %vm960 = vcmp.le.f32.partialorder %v725, %v944
        %v961 = vsel %vm945, %v533, 128
        %v962 = vsel %vm946, %v533, 128
        %v963 = vsel %vm947, %v533, 128
        %v964 = vsel %vm948, %v533, 128
        %v965 = vsel %vm949, %v533, 128
        %v966 = vsel %vm950, %v533, 128
        %v967 = vsel %vm951, %v533, 128
        %v968 = vsel %vm952, %v533, 128
        %v969 = vsel %vm953, %v533, 128
        %v970 = vsel %vm954, %v533, 128
        %v971 = vsel %vm955, %v533, 128
        %v972 = vsel %vm956, %v533, 128
        %v973 = vsel %vm957, %v533, 128
        %v974 = vsel %vm958, %v533, 128
        %v975 = vsel %vm959, %v533, 128
        %v976 = vsel %vm960, %v533, 128
        %v977 = vand.u32 %v961, 65535
        %v978 = vshra.s32 %v961, 16
        %v979 = vcvt.s32.f32 %v977
        %v980 = vcvt.s32.f32 %v978
        %981 = vmin.xlane.f32.xlu0 %v980
        %v982 = vpop.xlane.xlu0 %981
        %vm983 = vcmp.eq.f32.partialorder %v980, %v982
        %v984 = vsel %vm983, %v979, inf
        %985 = vmin.xlane.f32.xlu0 %v984
        %v986 = vpop.xlane.xlu0 %985
        %v987 = vcvt.f32.s32 %v986
        %v988 = vcvt.f32.s32 %v982
        %v989 = vshll.u32 %v988, 16
        %v990 = vadd.s32 %v989, %v987
        %v991 = vand.u32 %v962, 65535
        %v992 = vshra.s32 %v962, 16
        %v993 = vcvt.s32.f32 %v991
        %v994 = vcvt.s32.f32 %v992
        %995 = vmin.xlane.f32.xlu0 %v994
        %v996 = vpop.xlane.xlu0 %995
        %vm997 = vcmp.eq.f32.partialorder %v994, %v996
        %v998 = vsel %vm997, %v993, inf
        %999 = vmin.xlane.f32.xlu0 %v998
        %v1000 = vpop.xlane.xlu0 %999
        %v1001 = vcvt.f32.s32 %v1000
        %v1002 = vcvt.f32.s32 %v996
        %v1003 = vshll.u32 %v1002, 16
        %v1004 = vadd.s32 %v1003, %v1001
        %v1005 = vand.u32 %v963, 65535
        %v1006 = vshra.s32 %v963, 16
        %v1007 = vcvt.s32.f32 %v1005
        %v1008 = vcvt.s32.f32 %v1006
        %1009 = vmin.xlane.f32.xlu0 %v1008
        %v1010 = vpop.xlane.xlu0 %1009
        %vm1011 = vcmp.eq.f32.partialorder %v1008, %v1010
        %v1012 = vsel %vm1011, %v1007, inf
        %1013 = vmin.xlane.f32.xlu0 %v1012
        %v1014 = vpop.xlane.xlu0 %1013
        %v1015 = vcvt.f32.s32 %v1014
        %v1016 = vcvt.f32.s32 %v1010
        %v1017 = vshll.u32 %v1016, 16
        %v1018 = vadd.s32 %v1017, %v1015
        %v1019 = vand.u32 %v964, 65535
        %v1020 = vshra.s32 %v964, 16
        %v1021 = vcvt.s32.f32 %v1019
        %v1022 = vcvt.s32.f32 %v1020
        %1023 = vmin.xlane.f32.xlu0 %v1022
        %v1024 = vpop.xlane.xlu0 %1023
        %vm1025 = vcmp.eq.f32.partialorder %v1022, %v1024
        %v1026 = vsel %vm1025, %v1021, inf
        %1027 = vmin.xlane.f32.xlu0 %v1026
        %v1028 = vpop.xlane.xlu0 %1027
        %v1029 = vcvt.f32.s32 %v1028
        %v1030 = vcvt.f32.s32 %v1024
        %v1031 = vshll.u32 %v1030, 16
        %v1032 = vadd.s32 %v1031, %v1029
        %v1033 = vand.u32 %v965, 65535
        %v1034 = vshra.s32 %v965, 16
        %v1035 = vcvt.s32.f32 %v1033
        %v1036 = vcvt.s32.f32 %v1034
        %1037 = vmin.xlane.f32.xlu0 %v1036
        %v1038 = vpop.xlane.xlu0 %1037
        %vm1039 = vcmp.eq.f32.partialorder %v1036, %v1038
        %v1040 = vsel %vm1039, %v1035, inf
        %1041 = vmin.xlane.f32.xlu0 %v1040
        %v1042 = vpop.xlane.xlu0 %1041
        %v1043 = vcvt.f32.s32 %v1042
        %v1044 = vcvt.f32.s32 %v1038
        %v1045 = vshll.u32 %v1044, 16
        %v1046 = vadd.s32 %v1045, %v1043
        %v1047 = vand.u32 %v966, 65535
        %v1048 = vshra.s32 %v966, 16
        %v1049 = vcvt.s32.f32 %v1047
        %v1050 = vcvt.s32.f32 %v1048
        %1051 = vmin.xlane.f32.xlu0 %v1050
        %v1052 = vpop.xlane.xlu0 %1051
        %vm1053 = vcmp.eq.f32.partialorder %v1050, %v1052
        %v1054 = vsel %vm1053, %v1049, inf
        %1055 = vmin.xlane.f32.xlu0 %v1054
        %v1056 = vpop.xlane.xlu0 %1055
        %v1057 = vcvt.f32.s32 %v1056
        %v1058 = vcvt.f32.s32 %v1052
        %v1059 = vshll.u32 %v1058, 16
        %v1060 = vadd.s32 %v1059, %v1057
        %v1061 = vand.u32 %v967, 65535
        %v1062 = vshra.s32 %v967, 16
        %v1063 = vcvt.s32.f32 %v1061
        %v1064 = vcvt.s32.f32 %v1062
        %1065 = vmin.xlane.f32.xlu0 %v1064
        %v1066 = vpop.xlane.xlu0 %1065
        %vm1067 = vcmp.eq.f32.partialorder %v1064, %v1066
        %v1068 = vsel %vm1067, %v1063, inf
        %1069 = vmin.xlane.f32.xlu0 %v1068
        %v1070 = vpop.xlane.xlu0 %1069
        %v1071 = vcvt.f32.s32 %v1070
        %v1072 = vcvt.f32.s32 %v1066
        %v1073 = vshll.u32 %v1072, 16
        %v1074 = vadd.s32 %v1073, %v1071
        %v1075 = vand.u32 %v968, 65535
        %v1076 = vshra.s32 %v968, 16
        %v1077 = vcvt.s32.f32 %v1075
        %v1078 = vcvt.s32.f32 %v1076
        %1079 = vmin.xlane.f32.xlu0 %v1078
        %v1080 = vpop.xlane.xlu0 %1079
        %vm1081 = vcmp.eq.f32.partialorder %v1078, %v1080
        %v1082 = vsel %vm1081, %v1077, inf
        %1083 = vmin.xlane.f32.xlu0 %v1082
        %v1084 = vpop.xlane.xlu0 %1083
        %v1085 = vcvt.f32.s32 %v1084
        %v1086 = vcvt.f32.s32 %v1080
        %v1087 = vshll.u32 %v1086, 16
        %v1088 = vadd.s32 %v1087, %v1085
        %v1089 = vand.u32 %v969, 65535
        %v1090 = vshra.s32 %v969, 16
        %v1091 = vcvt.s32.f32 %v1089
        %v1092 = vcvt.s32.f32 %v1090
        %1093 = vmin.xlane.f32.xlu0 %v1092
        %v1094 = vpop.xlane.xlu0 %1093
        %vm1095 = vcmp.eq.f32.partialorder %v1092, %v1094
        %v1096 = vsel %vm1095, %v1091, inf
        %1097 = vmin.xlane.f32.xlu0 %v1096
        %v1098 = vpop.xlane.xlu0 %1097
        %v1099 = vcvt.f32.s32 %v1098
        %v1100 = vcvt.f32.s32 %v1094
        %v1101 = vshll.u32 %v1100, 16
        %v1102 = vadd.s32 %v1101, %v1099
        %v1103 = vand.u32 %v970, 65535
        %v1104 = vshra.s32 %v970, 16
        %v1105 = vcvt.s32.f32 %v1103
        %v1106 = vcvt.s32.f32 %v1104
        %1107 = vmin.xlane.f32.xlu0 %v1106
        %v1108 = vpop.xlane.xlu0 %1107
        %vm1109 = vcmp.eq.f32.partialorder %v1106, %v1108
        %v1110 = vsel %vm1109, %v1105, inf
        %1111 = vmin.xlane.f32.xlu0 %v1110
        %v1112 = vpop.xlane.xlu0 %1111
        %v1113 = vcvt.f32.s32 %v1112
        %v1114 = vcvt.f32.s32 %v1108
        %v1115 = vshll.u32 %v1114, 16
        %v1116 = vadd.s32 %v1115, %v1113
        %v1117 = vand.u32 %v971, 65535
        %v1118 = vshra.s32 %v971, 16
        %v1119 = vcvt.s32.f32 %v1117
        %v1120 = vcvt.s32.f32 %v1118
        %1121 = vmin.xlane.f32.xlu0 %v1120
        %v1122 = vpop.xlane.xlu0 %1121
        %vm1123 = vcmp.eq.f32.partialorder %v1120, %v1122
        %v1124 = vsel %vm1123, %v1119, inf
        %1125 = vmin.xlane.f32.xlu0 %v1124
        %v1126 = vpop.xlane.xlu0 %1125
        %v1127 = vcvt.f32.s32 %v1126
        %v1128 = vcvt.f32.s32 %v1122
        %v1129 = vshll.u32 %v1128, 16
        %v1130 = vadd.s32 %v1129, %v1127
        %v1131 = vand.u32 %v972, 65535
        %v1132 = vshra.s32 %v972, 16
        %v1133 = vcvt.s32.f32 %v1131
        %v1134 = vcvt.s32.f32 %v1132
        %1135 = vmin.xlane.f32.xlu0 %v1134
        %v1136 = vpop.xlane.xlu0 %1135
        %vm1137 = vcmp.eq.f32.partialorder %v1134, %v1136
        %v1138 = vsel %vm1137, %v1133, inf
        %1139 = vmin.xlane.f32.xlu0 %v1138
        %v1140 = vpop.xlane.xlu0 %1139
        %v1141 = vcvt.f32.s32 %v1140
        %v1142 = vcvt.f32.s32 %v1136
        %v1143 = vshll.u32 %v1142, 16
        %v1144 = vadd.s32 %v1143, %v1141
        %v1145 = vand.u32 %v973, 65535
        %v1146 = vshra.s32 %v973, 16
        %v1147 = vcvt.s32.f32 %v1145
        %v1148 = vcvt.s32.f32 %v1146
        %1149 = vmin.xlane.f32.xlu0 %v1148
        %v1150 = vpop.xlane.xlu0 %1149
        %vm1151 = vcmp.eq.f32.partialorder %v1148, %v1150
        %v1152 = vsel %vm1151, %v1147, inf
        %1153 = vmin.xlane.f32.xlu0 %v1152
        %v1154 = vpop.xlane.xlu0 %1153
        %v1155 = vcvt.f32.s32 %v1154
        %v1156 = vcvt.f32.s32 %v1150
        %v1157 = vshll.u32 %v1156, 16
        %v1158 = vadd.s32 %v1157, %v1155
        %v1159 = vand.u32 %v974, 65535
        %v1160 = vshra.s32 %v974, 16
        %v1161 = vcvt.s32.f32 %v1159
        %v1162 = vcvt.s32.f32 %v1160
        %1163 = vmin.xlane.f32.xlu0 %v1162
        %v1164 = vpop.xlane.xlu0 %1163
        %vm1165 = vcmp.eq.f32.partialorder %v1162, %v1164
        %v1166 = vsel %vm1165, %v1161, inf
        %1167 = vmin.xlane.f32.xlu0 %v1166
        %v1168 = vpop.xlane.xlu0 %1167
        %v1169 = vcvt.f32.s32 %v1168
        %v1170 = vcvt.f32.s32 %v1164
        %v1171 = vshll.u32 %v1170, 16
        %v1172 = vadd.s32 %v1171, %v1169
        %v1173 = vand.u32 %v975, 65535
        %v1174 = vshra.s32 %v975, 16
        %v1175 = vcvt.s32.f32 %v1173
        %v1176 = vcvt.s32.f32 %v1174
        %1177 = vmin.xlane.f32.xlu0 %v1176
        %v1178 = vpop.xlane.xlu0 %1177
        %vm1179 = vcmp.eq.f32.partialorder %v1176, %v1178
        %v1180 = vsel %vm1179, %v1175, inf
        %1181 = vmin.xlane.f32.xlu0 %v1180
        %v1182 = vpop.xlane.xlu0 %1181
        %v1183 = vcvt.f32.s32 %v1182
        %v1184 = vcvt.f32.s32 %v1178
        %v1185 = vshll.u32 %v1184, 16
        %v1186 = vadd.s32 %v1185, %v1183
        %v1187 = vand.u32 %v976, 65535
        %v1188 = vshra.s32 %v976, 16
        %v1189 = vcvt.s32.f32 %v1187
        %v1190 = vcvt.s32.f32 %v1188
        %1191 = vmin.xlane.f32.xlu0 %v1190
        %v1192 = vpop.xlane.xlu0 %1191
        %vm1193 = vcmp.eq.f32.partialorder %v1190, %v1192
        %v1194 = vsel %vm1193, %v1189, inf
        %1195 = vmin.xlane.f32.xlu0 %v1194
        %v1196 = vpop.xlane.xlu0 %1195
        %v1197 = vcvt.f32.s32 %v1196
        %v1198 = vcvt.f32.s32 %v1192
        %v1199 = vshll.u32 %v1198, 16
        %v1200 = vadd.s32 %v1199, %v1197
        %vm1201 = vcmp.eq.s32.totalorder %v533, %v990
        %vm1202 = vcmp.eq.s32.totalorder %v533, %v1004
        %vm1203 = vcmp.eq.s32.totalorder %v533, %v1018
        %vm1204 = vcmp.eq.s32.totalorder %v533, %v1032
        %vm1205 = vcmp.eq.s32.totalorder %v533, %v1046
        %vm1206 = vcmp.eq.s32.totalorder %v533, %v1060
        %vm1207 = vcmp.eq.s32.totalorder %v533, %v1074
        %vm1208 = vcmp.eq.s32.totalorder %v533, %v1088
        %vm1209 = vcmp.eq.s32.totalorder %v533, %v1102
        %vm1210 = vcmp.eq.s32.totalorder %v533, %v1116
        %vm1211 = vcmp.eq.s32.totalorder %v533, %v1130
        %vm1212 = vcmp.eq.s32.totalorder %v533, %v1144
        %vm1213 = vcmp.eq.s32.totalorder %v533, %v1158
        %vm1214 = vcmp.eq.s32.totalorder %v533, %v1172
        %vm1215 = vcmp.eq.s32.totalorder %v533, %v1186
        %vm1216 = vcmp.eq.s32.totalorder %v533, %v1200
        %v1217 = vsel %vm1201, 1, 0
        %v1218 = vsel %vm1202, 1, 0
        %v1219 = vsel %vm1203, 1, 0
        %v1220 = vsel %vm1204, 1, 0
        %v1221 = vsel %vm1205, 1, 0
        %v1222 = vsel %vm1206, 1, 0
        %v1223 = vsel %vm1207, 1, 0
        %v1224 = vsel %vm1208, 1, 0
        %v1225 = vsel %vm1209, 1, 0
        %v1226 = vsel %vm1210, 1, 0
        %v1227 = vsel %vm1211, 1, 0
        %v1228 = vsel %vm1212, 1, 0
        %v1229 = vsel %vm1213, 1, 0
        %v1230 = vsel %vm1214, 1, 0
        %v1231 = vsel %vm1215, 1, 0
        %v1232 = vsel %vm1216, 1, 0
        %v1233 = vcvt.s32.f32 %v1217
        %v1234 = vcvt.s32.f32 %v1218
        %v1235 = vcvt.s32.f32 %v1219
        %v1236 = vcvt.s32.f32 %v1220
        %v1237 = vcvt.s32.f32 %v1221
        %v1238 = vcvt.s32.f32 %v1222
        %v1239 = vcvt.s32.f32 %v1223
        %v1240 = vcvt.s32.f32 %v1224
        %v1241 = vcvt.s32.f32 %v1225
        %v1242 = vcvt.s32.f32 %v1226
        %v1243 = vcvt.s32.f32 %v1227
        %v1244 = vcvt.s32.f32 %v1228
        %v1245 = vcvt.s32.f32 %v1229
        %v1246 = vcvt.s32.f32 %v1230
        %v1247 = vcvt.s32.f32 %v1231
        %v1248 = vcvt.s32.f32 %v1232
        %1249 = vst [vmem:[#allocation2] sm:$0xff] %v1233
        %1250 = vst [vmem:[#allocation2 + $0x8] sm:$0xff] %v1234
        %1251 = vst [vmem:[#allocation2 + $0x10] sm:$0xff] %v1235
        %1252 = vst [vmem:[#allocation2 + $0x18] sm:$0xff] %v1236
        %1253 = vst [vmem:[#allocation2 + $0x20] sm:$0xff] %v1237
        %1254 = vst [vmem:[#allocation2 + $0x28] sm:$0xff] %v1238
        %1255 = vst [vmem:[#allocation2 + $0x30] sm:$0xff] %v1239
        %1256 = vst [vmem:[#allocation2 + $0x38] sm:$0xff] %v1240
        %1257 = vst [vmem:[#allocation2 + $0x40] sm:$0xff] %v1241
        %1258 = vst [vmem:[#allocation2 + $0x48] sm:$0xff] %v1242
        %1259 = vst [vmem:[#allocation2 + $0x50] sm:$0xff] %v1243
        %1260 = vst [vmem:[#allocation2 + $0x58] sm:$0xff] %v1244
        %1261 = vst [vmem:[#allocation2 + $0x60] sm:$0xff] %v1245
        %1262 = vst [vmem:[#allocation2 + $0x68] sm:$0xff] %v1246
        %1263 = vst [vmem:[#allocation2 + $0x70] sm:$0xff] %v1247
        %1264 = vst [vmem:[#allocation2 + $0x78] sm:$0xff] %v1248
        %v1265 = vsel %vm1201, 1e+30, %v710
        %v1266 = vsel %vm1202, 1e+30, %v711
        %v1267 = vsel %vm1203, 1e+30, %v712
        %v1268 = vsel %vm1204, 1e+30, %v713
        %v1269 = vsel %vm1205, 1e+30, %v714
        %v1270 = vsel %vm1206, 1e+30, %v715
        %v1271 = vsel %vm1207, 1e+30, %v716
        %v1272 = vsel %vm1208, 1e+30, %v717
        %v1273 = vsel %vm1209, 1e+30, %v718
        %v1274 = vsel %vm1210, 1e+30, %v719
        %v1275 = vsel %vm1211, 1e+30, %v720
        %v1276 = vsel %vm1212, 1e+30, %v721
        %v1277 = vsel %vm1213, 1e+30, %v722
        %v1278 = vsel %vm1214, 1e+30, %v723
        %v1279 = vsel %vm1215, 1e+30, %v724
        %v1280 = vsel %vm1216, 1e+30, %v725
        %1281 = vmin.xlane.f32.xlu0 %v1265
        %v1282 = vpop.xlane.xlu0 %1281
        %1283 = vmin.xlane.f32.xlu0 %v1266
        %v1284 = vpop.xlane.xlu0 %1283
        %1285 = vmin.xlane.f32.xlu0 %v1267
        %v1286 = vpop.xlane.xlu0 %1285
        %1287 = vmin.xlane.f32.xlu0 %v1268
        %v1288 = vpop.xlane.xlu0 %1287
        %1289 = vmin.xlane.f32.xlu0 %v1269
        %v1290 = vpop.xlane.xlu0 %1289
        %1291 = vmin.xlane.f32.xlu0 %v1270
        %v1292 = vpop.xlane.xlu0 %1291
        %1293 = vmin.xlane.f32.xlu0 %v1271
        %v1294 = vpop.xlane.xlu0 %1293
        %1295 = vmin.xlane.f32.xlu0 %v1272
        %v1296 = vpop.xlane.xlu0 %1295
        %1297 = vmin.xlane.f32.xlu0 %v1273
        %v1298 = vpop.xlane.xlu0 %1297
        %1299 = vmin.xlane.f32.xlu0 %v1274
        %v1300 = vpop.xlane.xlu0 %1299
        %1301 = vmin.xlane.f32.xlu0 %v1275
        %v1302 = vpop.xlane.xlu0 %1301
        %1303 = vmin.xlane.f32.xlu0 %v1276
        %v1304 = vpop.xlane.xlu0 %1303
        %1305 = vmin.xlane.f32.xlu0 %v1277
        %v1306 = vpop.xlane.xlu0 %1305
        %1307 = vmin.xlane.f32.xlu0 %v1278
        %v1308 = vpop.xlane.xlu0 %1307
        %1309 = vmin.xlane.f32.xlu0 %v1279
        %v1310 = vpop.xlane.xlu0 %1309
        %1311 = vmin.xlane.f32.xlu0 %v1280
        %v1312 = vpop.xlane.xlu0 %1311
        %vm1313 = vcmp.le.f32.partialorder %v1265, %v1282
        %vm1314 = vcmp.le.f32.partialorder %v1266, %v1284
        %vm1315 = vcmp.le.f32.partialorder %v1267, %v1286
        %vm1316 = vcmp.le.f32.partialorder %v1268, %v1288
        %vm1317 = vcmp.le.f32.partialorder %v1269, %v1290
        %vm1318 = vcmp.le.f32.partialorder %v1270, %v1292
        %vm1319 = vcmp.le.f32.partialorder %v1271, %v1294
        %vm1320 = vcmp.le.f32.partialorder %v1272, %v1296
        %vm1321 = vcmp.le.f32.partialorder %v1273, %v1298
        %vm1322 = vcmp.le.f32.partialorder %v1274, %v1300
        %vm1323 = vcmp.le.f32.partialorder %v1275, %v1302
        %vm1324 = vcmp.le.f32.partialorder %v1276, %v1304
        %vm1325 = vcmp.le.f32.partialorder %v1277, %v1306
        %vm1326 = vcmp.le.f32.partialorder %v1278, %v1308
        %vm1327 = vcmp.le.f32.partialorder %v1279, %v1310
        %vm1328 = vcmp.le.f32.partialorder %v1280, %v1312
        %v1329 = vsel %vm1313, %v533, 128
        %v1330 = vsel %vm1314, %v533, 128
        %v1331 = vsel %vm1315, %v533, 128
        %v1332 = vsel %vm1316, %v533, 128
        %v1333 = vsel %vm1317, %v533, 128
        %v1334 = vsel %vm1318, %v533, 128
        %v1335 = vsel %vm1319, %v533, 128
        %v1336 = vsel %vm1320, %v533, 128
        %v1337 = vsel %vm1321, %v533, 128
        %v1338 = vsel %vm1322, %v533, 128
        %v1339 = vsel %vm1323, %v533, 128
        %v1340 = vsel %vm1324, %v533, 128
        %v1341 = vsel %vm1325, %v533, 128
        %v1342 = vsel %vm1326, %v533, 128
        %v1343 = vsel %vm1327, %v533, 128
        %v1344 = vsel %vm1328, %v533, 128
        %v1345 = vand.u32 %v1329, 65535
        %v1346 = vshra.s32 %v1329, 16
        %v1347 = vcvt.s32.f32 %v1345
        %v1348 = vcvt.s32.f32 %v1346
        %1349 = vmin.xlane.f32.xlu0 %v1348
        %v1350 = vpop.xlane.xlu0 %1349
        %vm1351 = vcmp.eq.f32.partialorder %v1348, %v1350
        %v1352 = vsel %vm1351, %v1347, inf
        %1353 = vmin.xlane.f32.xlu0 %v1352
        %v1354 = vpop.xlane.xlu0 %1353
        %v1355 = vcvt.f32.s32 %v1354
        %v1356 = vcvt.f32.s32 %v1350
        %v1357 = vshll.u32 %v1356, 16
        %v1358 = vadd.s32 %v1357, %v1355
        %v1359 = vand.u32 %v1330, 65535
        %v1360 = vshra.s32 %v1330, 16
        %v1361 = vcvt.s32.f32 %v1359
        %v1362 = vcvt.s32.f32 %v1360
        %1363 = vmin.xlane.f32.xlu0 %v1362
        %v1364 = vpop.xlane.xlu0 %1363
        %vm1365 = vcmp.eq.f32.partialorder %v1362, %v1364
        %v1366 = vsel %vm1365, %v1361, inf
        %1367 = vmin.xlane.f32.xlu0 %v1366
        %v1368 = vpop.xlane.xlu0 %1367
        %v1369 = vcvt.f32.s32 %v1368
        %v1370 = vcvt.f32.s32 %v1364
        %v1371 = vshll.u32 %v1370, 16
        %v1372 = vadd.s32 %v1371, %v1369
        %v1373 = vand.u32 %v1331, 65535
        %v1374 = vshra.s32 %v1331, 16
        %v1375 = vcvt.s32.f32 %v1373
        %v1376 = vcvt.s32.f32 %v1374
        %1377 = vmin.xlane.f32.xlu0 %v1376
        %v1378 = vpop.xlane.xlu0 %1377
        %vm1379 = vcmp.eq.f32.partialorder %v1376, %v1378
        %v1380 = vsel %vm1379, %v1375, inf
        %1381 = vmin.xlane.f32.xlu0 %v1380
        %v1382 = vpop.xlane.xlu0 %1381
        %v1383 = vcvt.f32.s32 %v1382
        %v1384 = vcvt.f32.s32 %v1378
        %v1385 = vshll.u32 %v1384, 16
        %v1386 = vadd.s32 %v1385, %v1383
        %v1387 = vand.u32 %v1332, 65535
        %v1388 = vshra.s32 %v1332, 16
        %v1389 = vcvt.s32.f32 %v1387
        %v1390 = vcvt.s32.f32 %v1388
        %1391 = vmin.xlane.f32.xlu0 %v1390
        %v1392 = vpop.xlane.xlu0 %1391
        %vm1393 = vcmp.eq.f32.partialorder %v1390, %v1392
        %v1394 = vsel %vm1393, %v1389, inf
        %1395 = vmin.xlane.f32.xlu0 %v1394
        %v1396 = vpop.xlane.xlu0 %1395
        %v1397 = vcvt.f32.s32 %v1396
        %v1398 = vcvt.f32.s32 %v1392
        %v1399 = vshll.u32 %v1398, 16
        %v1400 = vadd.s32 %v1399, %v1397
        %v1401 = vand.u32 %v1333, 65535
        %v1402 = vshra.s32 %v1333, 16
        %v1403 = vcvt.s32.f32 %v1401
        %v1404 = vcvt.s32.f32 %v1402
        %1405 = vmin.xlane.f32.xlu0 %v1404
        %v1406 = vpop.xlane.xlu0 %1405
        %vm1407 = vcmp.eq.f32.partialorder %v1404, %v1406
        %v1408 = vsel %vm1407, %v1403, inf
        %1409 = vmin.xlane.f32.xlu0 %v1408
        %v1410 = vpop.xlane.xlu0 %1409
        %v1411 = vcvt.f32.s32 %v1410
        %v1412 = vcvt.f32.s32 %v1406
        %v1413 = vshll.u32 %v1412, 16
        %v1414 = vadd.s32 %v1413, %v1411
        %v1415 = vand.u32 %v1334, 65535
        %v1416 = vshra.s32 %v1334, 16
        %v1417 = vcvt.s32.f32 %v1415
        %v1418 = vcvt.s32.f32 %v1416
        %1419 = vmin.xlane.f32.xlu0 %v1418
        %v1420 = vpop.xlane.xlu0 %1419
        %vm1421 = vcmp.eq.f32.partialorder %v1418, %v1420
        %v1422 = vsel %vm1421, %v1417, inf
        %1423 = vmin.xlane.f32.xlu0 %v1422
        %v1424 = vpop.xlane.xlu0 %1423
        %v1425 = vcvt.f32.s32 %v1424
        %v1426 = vcvt.f32.s32 %v1420
        %v1427 = vshll.u32 %v1426, 16
        %v1428 = vadd.s32 %v1427, %v1425
        %v1429 = vand.u32 %v1335, 65535
        %v1430 = vshra.s32 %v1335, 16
        %v1431 = vcvt.s32.f32 %v1429
        %v1432 = vcvt.s32.f32 %v1430
        %1433 = vmin.xlane.f32.xlu0 %v1432
        %v1434 = vpop.xlane.xlu0 %1433
        %vm1435 = vcmp.eq.f32.partialorder %v1432, %v1434
        %v1436 = vsel %vm1435, %v1431, inf
        %1437 = vmin.xlane.f32.xlu0 %v1436
        %v1438 = vpop.xlane.xlu0 %1437
        %v1439 = vcvt.f32.s32 %v1438
        %v1440 = vcvt.f32.s32 %v1434
        %v1441 = vshll.u32 %v1440, 16
        %v1442 = vadd.s32 %v1441, %v1439
        %v1443 = vand.u32 %v1336, 65535
        %v1444 = vshra.s32 %v1336, 16
        %v1445 = vcvt.s32.f32 %v1443
        %v1446 = vcvt.s32.f32 %v1444
        %1447 = vmin.xlane.f32.xlu0 %v1446
        %v1448 = vpop.xlane.xlu0 %1447
        %vm1449 = vcmp.eq.f32.partialorder %v1446, %v1448
        %v1450 = vsel %vm1449, %v1445, inf
        %1451 = vmin.xlane.f32.xlu0 %v1450
        %v1452 = vpop.xlane.xlu0 %1451
        %v1453 = vcvt.f32.s32 %v1452
        %v1454 = vcvt.f32.s32 %v1448
        %v1455 = vshll.u32 %v1454, 16
        %v1456 = vadd.s32 %v1455, %v1453
        %v1457 = vand.u32 %v1337, 65535
        %v1458 = vshra.s32 %v1337, 16
        %v1459 = vcvt.s32.f32 %v1457
        %v1460 = vcvt.s32.f32 %v1458
        %1461 = vmin.xlane.f32.xlu0 %v1460
        %v1462 = vpop.xlane.xlu0 %1461
        %vm1463 = vcmp.eq.f32.partialorder %v1460, %v1462
        %v1464 = vsel %vm1463, %v1459, inf
        %1465 = vmin.xlane.f32.xlu0 %v1464
        %v1466 = vpop.xlane.xlu0 %1465
        %v1467 = vcvt.f32.s32 %v1466
        %v1468 = vcvt.f32.s32 %v1462
        %v1469 = vshll.u32 %v1468, 16
        %v1470 = vadd.s32 %v1469, %v1467
        %v1471 = vand.u32 %v1338, 65535
        %v1472 = vshra.s32 %v1338, 16
        %v1473 = vcvt.s32.f32 %v1471
        %v1474 = vcvt.s32.f32 %v1472
        %1475 = vmin.xlane.f32.xlu0 %v1474
        %v1476 = vpop.xlane.xlu0 %1475
        %vm1477 = vcmp.eq.f32.partialorder %v1474, %v1476
        %v1478 = vsel %vm1477, %v1473, inf
        %1479 = vmin.xlane.f32.xlu0 %v1478
        %v1480 = vpop.xlane.xlu0 %1479
        %v1481 = vcvt.f32.s32 %v1480
        %v1482 = vcvt.f32.s32 %v1476
        %v1483 = vshll.u32 %v1482, 16
        %v1484 = vadd.s32 %v1483, %v1481
        %v1485 = vand.u32 %v1339, 65535
        %v1486 = vshra.s32 %v1339, 16
        %v1487 = vcvt.s32.f32 %v1485
        %v1488 = vcvt.s32.f32 %v1486
        %1489 = vmin.xlane.f32.xlu0 %v1488
        %v1490 = vpop.xlane.xlu0 %1489
        %vm1491 = vcmp.eq.f32.partialorder %v1488, %v1490
        %v1492 = vsel %vm1491, %v1487, inf
        %1493 = vmin.xlane.f32.xlu0 %v1492
        %v1494 = vpop.xlane.xlu0 %1493
        %v1495 = vcvt.f32.s32 %v1494
        %v1496 = vcvt.f32.s32 %v1490
        %v1497 = vshll.u32 %v1496, 16
        %v1498 = vadd.s32 %v1497, %v1495
        %v1499 = vand.u32 %v1340, 65535
        %v1500 = vshra.s32 %v1340, 16
        %v1501 = vcvt.s32.f32 %v1499
        %v1502 = vcvt.s32.f32 %v1500
        %1503 = vmin.xlane.f32.xlu0 %v1502
        %v1504 = vpop.xlane.xlu0 %1503
        %vm1505 = vcmp.eq.f32.partialorder %v1502, %v1504
        %v1506 = vsel %vm1505, %v1501, inf
        %1507 = vmin.xlane.f32.xlu0 %v1506
        %v1508 = vpop.xlane.xlu0 %1507
        %v1509 = vcvt.f32.s32 %v1508
        %v1510 = vcvt.f32.s32 %v1504
        %v1511 = vshll.u32 %v1510, 16
        %v1512 = vadd.s32 %v1511, %v1509
        %v1513 = vand.u32 %v1341, 65535
        %v1514 = vshra.s32 %v1341, 16
        %v1515 = vcvt.s32.f32 %v1513
        %v1516 = vcvt.s32.f32 %v1514
        %1517 = vmin.xlane.f32.xlu0 %v1516
        %v1518 = vpop.xlane.xlu0 %1517
        %vm1519 = vcmp.eq.f32.partialorder %v1516, %v1518
        %v1520 = vsel %vm1519, %v1515, inf
        %1521 = vmin.xlane.f32.xlu0 %v1520
        %v1522 = vpop.xlane.xlu0 %1521
        %v1523 = vcvt.f32.s32 %v1522
        %v1524 = vcvt.f32.s32 %v1518
        %v1525 = vshll.u32 %v1524, 16
        %v1526 = vadd.s32 %v1525, %v1523
        %v1527 = vand.u32 %v1342, 65535
        %v1528 = vshra.s32 %v1342, 16
        %v1529 = vcvt.s32.f32 %v1527
        %v1530 = vcvt.s32.f32 %v1528
        %1531 = vmin.xlane.f32.xlu0 %v1530
        %v1532 = vpop.xlane.xlu0 %1531
        %vm1533 = vcmp.eq.f32.partialorder %v1530, %v1532
        %v1534 = vsel %vm1533, %v1529, inf
        %1535 = vmin.xlane.f32.xlu0 %v1534
        %v1536 = vpop.xlane.xlu0 %1535
        %v1537 = vcvt.f32.s32 %v1536
        %v1538 = vcvt.f32.s32 %v1532
        %v1539 = vshll.u32 %v1538, 16
        %v1540 = vadd.s32 %v1539, %v1537
        %v1541 = vand.u32 %v1343, 65535
        %v1542 = vshra.s32 %v1343, 16
        %v1543 = vcvt.s32.f32 %v1541
        %v1544 = vcvt.s32.f32 %v1542
        %1545 = vmin.xlane.f32.xlu0 %v1544
        %v1546 = vpop.xlane.xlu0 %1545
        %vm1547 = vcmp.eq.f32.partialorder %v1544, %v1546
        %v1548 = vsel %vm1547, %v1543, inf
        %1549 = vmin.xlane.f32.xlu0 %v1548
        %v1550 = vpop.xlane.xlu0 %1549
        %v1551 = vcvt.f32.s32 %v1550
        %v1552 = vcvt.f32.s32 %v1546
        %v1553 = vshll.u32 %v1552, 16
        %v1554 = vadd.s32 %v1553, %v1551
        %v1555 = vand.u32 %v1344, 65535
        %v1556 = vshra.s32 %v1344, 16
        %v1557 = vcvt.s32.f32 %v1555
        %v1558 = vcvt.s32.f32 %v1556
        %1559 = vmin.xlane.f32.xlu0 %v1558
        %v1560 = vpop.xlane.xlu0 %1559
        %vm1561 = vcmp.eq.f32.partialorder %v1558, %v1560
        %v1562 = vsel %vm1561, %v1557, inf
        %1563 = vmin.xlane.f32.xlu0 %v1562
        %v1564 = vpop.xlane.xlu0 %1563
        %v1565 = vcvt.f32.s32 %v1564
        %v1566 = vcvt.f32.s32 %v1560
        %v1567 = vshll.u32 %v1566, 16
        %v1568 = vadd.s32 %v1567, %v1565
        %vm1569 = vcmp.eq.s32.totalorder %v533, %v1358
        %vm1570 = vcmp.eq.s32.totalorder %v533, %v1372
        %vm1571 = vcmp.eq.s32.totalorder %v533, %v1386
        %vm1572 = vcmp.eq.s32.totalorder %v533, %v1400
        %vm1573 = vcmp.eq.s32.totalorder %v533, %v1414
        %vm1574 = vcmp.eq.s32.totalorder %v533, %v1428
        %vm1575 = vcmp.eq.s32.totalorder %v533, %v1442
        %vm1576 = vcmp.eq.s32.totalorder %v533, %v1456
        %vm1577 = vcmp.eq.s32.totalorder %v533, %v1470
        %vm1578 = vcmp.eq.s32.totalorder %v533, %v1484
        %vm1579 = vcmp.eq.s32.totalorder %v533, %v1498
        %vm1580 = vcmp.eq.s32.totalorder %v533, %v1512
        %vm1581 = vcmp.eq.s32.totalorder %v533, %v1526
        %vm1582 = vcmp.eq.s32.totalorder %v533, %v1540
        %vm1583 = vcmp.eq.s32.totalorder %v533, %v1554
        %vm1584 = vcmp.eq.s32.totalorder %v533, %v1568
        %v1585 = vsel %vm1569, 1, 0
        %v1586 = vsel %vm1570, 1, 0
        %v1587 = vsel %vm1571, 1, 0
        %v1588 = vsel %vm1572, 1, 0
        %v1589 = vsel %vm1573, 1, 0
        %v1590 = vsel %vm1574, 1, 0
        %v1591 = vsel %vm1575, 1, 0
        %v1592 = vsel %vm1576, 1, 0
        %v1593 = vsel %vm1577, 1, 0
        %v1594 = vsel %vm1578, 1, 0
        %v1595 = vsel %vm1579, 1, 0
        %v1596 = vsel %vm1580, 1, 0
        %v1597 = vsel %vm1581, 1, 0
        %v1598 = vsel %vm1582, 1, 0
        %v1599 = vsel %vm1583, 1, 0
        %v1600 = vsel %vm1584, 1, 0
        %v1601 = vcvt.s32.f32 %v1585
        %v1602 = vcvt.s32.f32 %v1586
        %v1603 = vcvt.s32.f32 %v1587
        %v1604 = vcvt.s32.f32 %v1588
        %v1605 = vcvt.s32.f32 %v1589
        %v1606 = vcvt.s32.f32 %v1590
        %v1607 = vcvt.s32.f32 %v1591
        %v1608 = vcvt.s32.f32 %v1592
        %v1609 = vcvt.s32.f32 %v1593
        %v1610 = vcvt.s32.f32 %v1594
        %v1611 = vcvt.s32.f32 %v1595
        %v1612 = vcvt.s32.f32 %v1596
        %v1613 = vcvt.s32.f32 %v1597
        %v1614 = vcvt.s32.f32 %v1598
        %v1615 = vcvt.s32.f32 %v1599
        %v1616 = vcvt.s32.f32 %v1600
        %1617 = vst [vmem:[#allocation2 + $0x80] sm:$0xff] %v1601
        %1618 = vst [vmem:[#allocation2 + $0x88] sm:$0xff] %v1602
        %1619 = vst [vmem:[#allocation2 + $0x90] sm:$0xff] %v1603
        %1620 = vst [vmem:[#allocation2 + $0x98] sm:$0xff] %v1604
        %1621 = vst [vmem:[#allocation2 + $0xa0] sm:$0xff] %v1605
        %1622 = vst [vmem:[#allocation2 + $0xa8] sm:$0xff] %v1606
        %1623 = vst [vmem:[#allocation2 + $0xb0] sm:$0xff] %v1607
        %1624 = vst [vmem:[#allocation2 + $0xb8] sm:$0xff] %v1608
        %1625 = vst [vmem:[#allocation2 + $0xc0] sm:$0xff] %v1609
        %1626 = vst [vmem:[#allocation2 + $0xc8] sm:$0xff] %v1610
        %1627 = vst [vmem:[#allocation2 + $0xd0] sm:$0xff] %v1611
        %1628 = vst [vmem:[#allocation2 + $0xd8] sm:$0xff] %v1612
        %1629 = vst [vmem:[#allocation2 + $0xe0] sm:$0xff] %v1613
        %1630 = vst [vmem:[#allocation2 + $0xe8] sm:$0xff] %v1614
        %1631 = vst [vmem:[#allocation2 + $0xf0] sm:$0xff] %v1615
        %1632 = vst [vmem:[#allocation2 + $0xf8] sm:$0xff] %v1616
        %v1633 = vsel %vm1569, 1e+30, %v1265
        %v1634 = vsel %vm1570, 1e+30, %v1266
        %v1635 = vsel %vm1571, 1e+30, %v1267
        %v1636 = vsel %vm1572, 1e+30, %v1268
        %v1637 = vsel %vm1573, 1e+30, %v1269
        %v1638 = vsel %vm1574, 1e+30, %v1270
        %v1639 = vsel %vm1575, 1e+30, %v1271
        %v1640 = vsel %vm1576, 1e+30, %v1272
        %v1641 = vsel %vm1577, 1e+30, %v1273
        %v1642 = vsel %vm1578, 1e+30, %v1274
        %v1643 = vsel %vm1579, 1e+30, %v1275
        %v1644 = vsel %vm1580, 1e+30, %v1276
        %v1645 = vsel %vm1581, 1e+30, %v1277
        %v1646 = vsel %vm1582, 1e+30, %v1278
        %v1647 = vsel %vm1583, 1e+30, %v1279
        %v1648 = vsel %vm1584, 1e+30, %v1280
        %1649 = vmin.xlane.f32.xlu0 %v1633
        %v1650 = vpop.xlane.xlu0 %1649
        %1651 = vmin.xlane.f32.xlu0 %v1634
        %v1652 = vpop.xlane.xlu0 %1651
        %1653 = vmin.xlane.f32.xlu0 %v1635
        %v1654 = vpop.xlane.xlu0 %1653
        %1655 = vmin.xlane.f32.xlu0 %v1636
        %v1656 = vpop.xlane.xlu0 %1655
        %1657 = vmin.xlane.f32.xlu0 %v1637
        %v1658 = vpop.xlane.xlu0 %1657
        %1659 = vmin.xlane.f32.xlu0 %v1638
        %v1660 = vpop.xlane.xlu0 %1659
        %1661 = vmin.xlane.f32.xlu0 %v1639
        %v1662 = vpop.xlane.xlu0 %1661
        %1663 = vmin.xlane.f32.xlu0 %v1640
        %v1664 = vpop.xlane.xlu0 %1663
        %1665 = vmin.xlane.f32.xlu0 %v1641
        %v1666 = vpop.xlane.xlu0 %1665
        %1667 = vmin.xlane.f32.xlu0 %v1642
        %v1668 = vpop.xlane.xlu0 %1667
        %1669 = vmin.xlane.f32.xlu0 %v1643
        %v1670 = vpop.xlane.xlu0 %1669
        %1671 = vmin.xlane.f32.xlu0 %v1644
        %v1672 = vpop.xlane.xlu0 %1671
        %1673 = vmin.xlane.f32.xlu0 %v1645
        %v1674 = vpop.xlane.xlu0 %1673
        %1675 = vmin.xlane.f32.xlu0 %v1646
        %v1676 = vpop.xlane.xlu0 %1675
        %1677 = vmin.xlane.f32.xlu0 %v1647
        %v1678 = vpop.xlane.xlu0 %1677
        %1679 = vmin.xlane.f32.xlu0 %v1648
        %v1680 = vpop.xlane.xlu0 %1679
        %vm1681 = vcmp.le.f32.partialorder %v1633, %v1650
        %vm1682 = vcmp.le.f32.partialorder %v1634, %v1652
        %vm1683 = vcmp.le.f32.partialorder %v1635, %v1654
        %vm1684 = vcmp.le.f32.partialorder %v1636, %v1656
        %vm1685 = vcmp.le.f32.partialorder %v1637, %v1658
        %vm1686 = vcmp.le.f32.partialorder %v1638, %v1660
        %vm1687 = vcmp.le.f32.partialorder %v1639, %v1662
        %vm1688 = vcmp.le.f32.partialorder %v1640, %v1664
        %vm1689 = vcmp.le.f32.partialorder %v1641, %v1666
        %vm1690 = vcmp.le.f32.partialorder %v1642, %v1668
        %vm1691 = vcmp.le.f32.partialorder %v1643, %v1670
        %vm1692 = vcmp.le.f32.partialorder %v1644, %v1672
        %vm1693 = vcmp.le.f32.partialorder %v1645, %v1674
        %vm1694 = vcmp.le.f32.partialorder %v1646, %v1676
        %vm1695 = vcmp.le.f32.partialorder %v1647, %v1678
        %vm1696 = vcmp.le.f32.partialorder %v1648, %v1680
        %v1697 = vsel %vm1681, %v533, 128
        %v1698 = vsel %vm1682, %v533, 128
        %v1699 = vsel %vm1683, %v533, 128
        %v1700 = vsel %vm1684, %v533, 128
        %v1701 = vsel %vm1685, %v533, 128
        %v1702 = vsel %vm1686, %v533, 128
        %v1703 = vsel %vm1687, %v533, 128
        %v1704 = vsel %vm1688, %v533, 128
        %v1705 = vsel %vm1689, %v533, 128
        %v1706 = vsel %vm1690, %v533, 128
        %v1707 = vsel %vm1691, %v533, 128
        %v1708 = vsel %vm1692, %v533, 128
        %v1709 = vsel %vm1693, %v533, 128
        %v1710 = vsel %vm1694, %v533, 128
        %v1711 = vsel %vm1695, %v533, 128
        %v1712 = vsel %vm1696, %v533, 128
        %v1713 = vand.u32 %v1697, 65535
        %v1714 = vshra.s32 %v1697, 16
        %v1715 = vcvt.s32.f32 %v1713
        %v1716 = vcvt.s32.f32 %v1714
        %1717 = vmin.xlane.f32.xlu0 %v1716
        %v1718 = vpop.xlane.xlu0 %1717
        %vm1719 = vcmp.eq.f32.partialorder %v1716, %v1718
        %v1720 = vsel %vm1719, %v1715, inf
        %1721 = vmin.xlane.f32.xlu0 %v1720
        %v1722 = vpop.xlane.xlu0 %1721
        %v1723 = vcvt.f32.s32 %v1722
        %v1724 = vcvt.f32.s32 %v1718
        %v1725 = vshll.u32 %v1724, 16
        %v1726 = vadd.s32 %v1725, %v1723
        %v1727 = vand.u32 %v1698, 65535
        %v1728 = vshra.s32 %v1698, 16
        %v1729 = vcvt.s32.f32 %v1727
        %v1730 = vcvt.s32.f32 %v1728
        %1731 = vmin.xlane.f32.xlu0 %v1730
        %v1732 = vpop.xlane.xlu0 %1731
        %vm1733 = vcmp.eq.f32.partialorder %v1730, %v1732
        %v1734 = vsel %vm1733, %v1729, inf
        %1735 = vmin.xlane.f32.xlu0 %v1734
        %v1736 = vpop.xlane.xlu0 %1735
        %v1737 = vcvt.f32.s32 %v1736
        %v1738 = vcvt.f32.s32 %v1732
        %v1739 = vshll.u32 %v1738, 16
        %v1740 = vadd.s32 %v1739, %v1737
        %v1741 = vand.u32 %v1699, 65535
        %v1742 = vshra.s32 %v1699, 16
        %v1743 = vcvt.s32.f32 %v1741
        %v1744 = vcvt.s32.f32 %v1742
        %1745 = vmin.xlane.f32.xlu0 %v1744
        %v1746 = vpop.xlane.xlu0 %1745
        %vm1747 = vcmp.eq.f32.partialorder %v1744, %v1746
        %v1748 = vsel %vm1747, %v1743, inf
        %1749 = vmin.xlane.f32.xlu0 %v1748
        %v1750 = vpop.xlane.xlu0 %1749
        %v1751 = vcvt.f32.s32 %v1750
        %v1752 = vcvt.f32.s32 %v1746
        %v1753 = vshll.u32 %v1752, 16
        %v1754 = vadd.s32 %v1753, %v1751
        %v1755 = vand.u32 %v1700, 65535
        %v1756 = vshra.s32 %v1700, 16
        %v1757 = vcvt.s32.f32 %v1755
        %v1758 = vcvt.s32.f32 %v1756
        %1759 = vmin.xlane.f32.xlu0 %v1758
        %v1760 = vpop.xlane.xlu0 %1759
        %vm1761 = vcmp.eq.f32.partialorder %v1758, %v1760
        %v1762 = vsel %vm1761, %v1757, inf
        %1763 = vmin.xlane.f32.xlu0 %v1762
        %v1764 = vpop.xlane.xlu0 %1763
        %v1765 = vcvt.f32.s32 %v1764
        %v1766 = vcvt.f32.s32 %v1760
        %v1767 = vshll.u32 %v1766, 16
        %v1768 = vadd.s32 %v1767, %v1765
        %v1769 = vand.u32 %v1701, 65535
        %v1770 = vshra.s32 %v1701, 16
        %v1771 = vcvt.s32.f32 %v1769
        %v1772 = vcvt.s32.f32 %v1770
        %1773 = vmin.xlane.f32.xlu0 %v1772
        %v1774 = vpop.xlane.xlu0 %1773
        %vm1775 = vcmp.eq.f32.partialorder %v1772, %v1774
        %v1776 = vsel %vm1775, %v1771, inf
        %1777 = vmin.xlane.f32.xlu0 %v1776
        %v1778 = vpop.xlane.xlu0 %1777
        %v1779 = vcvt.f32.s32 %v1778
        %v1780 = vcvt.f32.s32 %v1774
        %v1781 = vshll.u32 %v1780, 16
        %v1782 = vadd.s32 %v1781, %v1779
        %v1783 = vand.u32 %v1702, 65535
        %v1784 = vshra.s32 %v1702, 16
        %v1785 = vcvt.s32.f32 %v1783
        %v1786 = vcvt.s32.f32 %v1784
        %1787 = vmin.xlane.f32.xlu0 %v1786
        %v1788 = vpop.xlane.xlu0 %1787
        %vm1789 = vcmp.eq.f32.partialorder %v1786, %v1788
        %v1790 = vsel %vm1789, %v1785, inf
        %1791 = vmin.xlane.f32.xlu0 %v1790
        %v1792 = vpop.xlane.xlu0 %1791
        %v1793 = vcvt.f32.s32 %v1792
        %v1794 = vcvt.f32.s32 %v1788
        %v1795 = vshll.u32 %v1794, 16
        %v1796 = vadd.s32 %v1795, %v1793
        %v1797 = vand.u32 %v1703, 65535
        %v1798 = vshra.s32 %v1703, 16
        %v1799 = vcvt.s32.f32 %v1797
        %v1800 = vcvt.s32.f32 %v1798
        %1801 = vmin.xlane.f32.xlu0 %v1800
        %v1802 = vpop.xlane.xlu0 %1801
        %vm1803 = vcmp.eq.f32.partialorder %v1800, %v1802
        %v1804 = vsel %vm1803, %v1799, inf
        %1805 = vmin.xlane.f32.xlu0 %v1804
        %v1806 = vpop.xlane.xlu0 %1805
        %v1807 = vcvt.f32.s32 %v1806
        %v1808 = vcvt.f32.s32 %v1802
        %v1809 = vshll.u32 %v1808, 16
        %v1810 = vadd.s32 %v1809, %v1807
        %v1811 = vand.u32 %v1704, 65535
        %v1812 = vshra.s32 %v1704, 16
        %v1813 = vcvt.s32.f32 %v1811
        %v1814 = vcvt.s32.f32 %v1812
        %1815 = vmin.xlane.f32.xlu0 %v1814
        %v1816 = vpop.xlane.xlu0 %1815
        %vm1817 = vcmp.eq.f32.partialorder %v1814, %v1816
        %v1818 = vsel %vm1817, %v1813, inf
        %1819 = vmin.xlane.f32.xlu0 %v1818
        %v1820 = vpop.xlane.xlu0 %1819
        %v1821 = vcvt.f32.s32 %v1820
        %v1822 = vcvt.f32.s32 %v1816
        %v1823 = vshll.u32 %v1822, 16
        %v1824 = vadd.s32 %v1823, %v1821
        %v1825 = vand.u32 %v1705, 65535
        %v1826 = vshra.s32 %v1705, 16
        %v1827 = vcvt.s32.f32 %v1825
        %v1828 = vcvt.s32.f32 %v1826
        %1829 = vmin.xlane.f32.xlu0 %v1828
        %v1830 = vpop.xlane.xlu0 %1829
        %vm1831 = vcmp.eq.f32.partialorder %v1828, %v1830
        %v1832 = vsel %vm1831, %v1827, inf
        %1833 = vmin.xlane.f32.xlu0 %v1832
        %v1834 = vpop.xlane.xlu0 %1833
        %v1835 = vcvt.f32.s32 %v1834
        %v1836 = vcvt.f32.s32 %v1830
        %v1837 = vshll.u32 %v1836, 16
        %v1838 = vadd.s32 %v1837, %v1835
        %v1839 = vand.u32 %v1706, 65535
        %v1840 = vshra.s32 %v1706, 16
        %v1841 = vcvt.s32.f32 %v1839
        %v1842 = vcvt.s32.f32 %v1840
        %1843 = vmin.xlane.f32.xlu0 %v1842
        %v1844 = vpop.xlane.xlu0 %1843
        %vm1845 = vcmp.eq.f32.partialorder %v1842, %v1844
        %v1846 = vsel %vm1845, %v1841, inf
        %1847 = vmin.xlane.f32.xlu0 %v1846
        %v1848 = vpop.xlane.xlu0 %1847
        %v1849 = vcvt.f32.s32 %v1848
        %v1850 = vcvt.f32.s32 %v1844
        %v1851 = vshll.u32 %v1850, 16
        %v1852 = vadd.s32 %v1851, %v1849
        %v1853 = vand.u32 %v1707, 65535
        %v1854 = vshra.s32 %v1707, 16
        %v1855 = vcvt.s32.f32 %v1853
        %v1856 = vcvt.s32.f32 %v1854
        %1857 = vmin.xlane.f32.xlu0 %v1856
        %v1858 = vpop.xlane.xlu0 %1857
        %vm1859 = vcmp.eq.f32.partialorder %v1856, %v1858
        %v1860 = vsel %vm1859, %v1855, inf
        %1861 = vmin.xlane.f32.xlu0 %v1860
        %v1862 = vpop.xlane.xlu0 %1861
        %v1863 = vcvt.f32.s32 %v1862
        %v1864 = vcvt.f32.s32 %v1858
        %v1865 = vshll.u32 %v1864, 16
        %v1866 = vadd.s32 %v1865, %v1863
        %v1867 = vand.u32 %v1708, 65535
        %v1868 = vshra.s32 %v1708, 16
        %v1869 = vcvt.s32.f32 %v1867
        %v1870 = vcvt.s32.f32 %v1868
        %1871 = vmin.xlane.f32.xlu0 %v1870
        %v1872 = vpop.xlane.xlu0 %1871
        %vm1873 = vcmp.eq.f32.partialorder %v1870, %v1872
        %v1874 = vsel %vm1873, %v1869, inf
        %1875 = vmin.xlane.f32.xlu0 %v1874
        %v1876 = vpop.xlane.xlu0 %1875
        %v1877 = vcvt.f32.s32 %v1876
        %v1878 = vcvt.f32.s32 %v1872
        %v1879 = vshll.u32 %v1878, 16
        %v1880 = vadd.s32 %v1879, %v1877
        %v1881 = vand.u32 %v1709, 65535
        %v1882 = vshra.s32 %v1709, 16
        %v1883 = vcvt.s32.f32 %v1881
        %v1884 = vcvt.s32.f32 %v1882
        %1885 = vmin.xlane.f32.xlu0 %v1884
        %v1886 = vpop.xlane.xlu0 %1885
        %vm1887 = vcmp.eq.f32.partialorder %v1884, %v1886
        %v1888 = vsel %vm1887, %v1883, inf
        %1889 = vmin.xlane.f32.xlu0 %v1888
        %v1890 = vpop.xlane.xlu0 %1889
        %v1891 = vcvt.f32.s32 %v1890
        %v1892 = vcvt.f32.s32 %v1886
        %v1893 = vshll.u32 %v1892, 16
        %v1894 = vadd.s32 %v1893, %v1891
        %v1895 = vand.u32 %v1710, 65535
        %v1896 = vshra.s32 %v1710, 16
        %v1897 = vcvt.s32.f32 %v1895
        %v1898 = vcvt.s32.f32 %v1896
        %1899 = vmin.xlane.f32.xlu0 %v1898
        %v1900 = vpop.xlane.xlu0 %1899
        %vm1901 = vcmp.eq.f32.partialorder %v1898, %v1900
        %v1902 = vsel %vm1901, %v1897, inf
        %1903 = vmin.xlane.f32.xlu0 %v1902
        %v1904 = vpop.xlane.xlu0 %1903
        %v1905 = vcvt.f32.s32 %v1904
        %v1906 = vcvt.f32.s32 %v1900
        %v1907 = vshll.u32 %v1906, 16
        %v1908 = vadd.s32 %v1907, %v1905
        %v1909 = vand.u32 %v1711, 65535
        %v1910 = vshra.s32 %v1711, 16
        %v1911 = vcvt.s32.f32 %v1909
        %v1912 = vcvt.s32.f32 %v1910
        %1913 = vmin.xlane.f32.xlu0 %v1912
        %v1914 = vpop.xlane.xlu0 %1913
        %vm1915 = vcmp.eq.f32.partialorder %v1912, %v1914
        %v1916 = vsel %vm1915, %v1911, inf
        %1917 = vmin.xlane.f32.xlu0 %v1916
        %v1918 = vpop.xlane.xlu0 %1917
        %v1919 = vcvt.f32.s32 %v1918
        %v1920 = vcvt.f32.s32 %v1914
        %v1921 = vshll.u32 %v1920, 16
        %v1922 = vadd.s32 %v1921, %v1919
        %v1923 = vand.u32 %v1712, 65535
        %v1924 = vshra.s32 %v1712, 16
        %v1925 = vcvt.s32.f32 %v1923
        %v1926 = vcvt.s32.f32 %v1924
        %1927 = vmin.xlane.f32.xlu0 %v1926
        %v1928 = vpop.xlane.xlu0 %1927
        %vm1929 = vcmp.eq.f32.partialorder %v1926, %v1928
        %v1930 = vsel %vm1929, %v1925, inf
        %1931 = vmin.xlane.f32.xlu0 %v1930
        %v1932 = vpop.xlane.xlu0 %1931
        %v1933 = vcvt.f32.s32 %v1932
        %v1934 = vcvt.f32.s32 %v1928
        %v1935 = vshll.u32 %v1934, 16
        %v1936 = vadd.s32 %v1935, %v1933
        %vm1937 = vcmp.eq.s32.totalorder %v533, %v1726
        %vm1938 = vcmp.eq.s32.totalorder %v533, %v1740
        %vm1939 = vcmp.eq.s32.totalorder %v533, %v1754
        %vm1940 = vcmp.eq.s32.totalorder %v533, %v1768
        %vm1941 = vcmp.eq.s32.totalorder %v533, %v1782
        %vm1942 = vcmp.eq.s32.totalorder %v533, %v1796
        %vm1943 = vcmp.eq.s32.totalorder %v533, %v1810
        %vm1944 = vcmp.eq.s32.totalorder %v533, %v1824
        %vm1945 = vcmp.eq.s32.totalorder %v533, %v1838
        %vm1946 = vcmp.eq.s32.totalorder %v533, %v1852
        %vm1947 = vcmp.eq.s32.totalorder %v533, %v1866
        %vm1948 = vcmp.eq.s32.totalorder %v533, %v1880
        %vm1949 = vcmp.eq.s32.totalorder %v533, %v1894
        %vm1950 = vcmp.eq.s32.totalorder %v533, %v1908
        %vm1951 = vcmp.eq.s32.totalorder %v533, %v1922
        %vm1952 = vcmp.eq.s32.totalorder %v533, %v1936
        %v1953 = vsel %vm1937, 1, 0
        %v1954 = vsel %vm1938, 1, 0
        %v1955 = vsel %vm1939, 1, 0
        %v1956 = vsel %vm1940, 1, 0
        %v1957 = vsel %vm1941, 1, 0
        %v1958 = vsel %vm1942, 1, 0
        %v1959 = vsel %vm1943, 1, 0
        %v1960 = vsel %vm1944, 1, 0
        %v1961 = vsel %vm1945, 1, 0
        %v1962 = vsel %vm1946, 1, 0
        %v1963 = vsel %vm1947, 1, 0
        %v1964 = vsel %vm1948, 1, 0
        %v1965 = vsel %vm1949, 1, 0
        %v1966 = vsel %vm1950, 1, 0
        %v1967 = vsel %vm1951, 1, 0
        %v1968 = vsel %vm1952, 1, 0
        %v1969 = vcvt.s32.f32 %v1953
        %v1970 = vcvt.s32.f32 %v1954
        %v1971 = vcvt.s32.f32 %v1955
        %v1972 = vcvt.s32.f32 %v1956
        %v1973 = vcvt.s32.f32 %v1957
        %v1974 = vcvt.s32.f32 %v1958
        %v1975 = vcvt.s32.f32 %v1959
        %v1976 = vcvt.s32.f32 %v1960
        %v1977 = vcvt.s32.f32 %v1961
        %v1978 = vcvt.s32.f32 %v1962
        %v1979 = vcvt.s32.f32 %v1963
        %v1980 = vcvt.s32.f32 %v1964
        %v1981 = vcvt.s32.f32 %v1965
        %v1982 = vcvt.s32.f32 %v1966
        %v1983 = vcvt.s32.f32 %v1967
        %v1984 = vcvt.s32.f32 %v1968
        %1985 = vst [vmem:[#allocation2 + $0x100] sm:$0xff] %v1969
        %1986 = vst [vmem:[#allocation2 + $0x108] sm:$0xff] %v1970
        %1987 = vst [vmem:[#allocation2 + $0x110] sm:$0xff] %v1971
        %1988 = vst [vmem:[#allocation2 + $0x118] sm:$0xff] %v1972
        %1989 = vst [vmem:[#allocation2 + $0x120] sm:$0xff] %v1973
        %1990 = vst [vmem:[#allocation2 + $0x128] sm:$0xff] %v1974
        %1991 = vst [vmem:[#allocation2 + $0x130] sm:$0xff] %v1975
        %1992 = vst [vmem:[#allocation2 + $0x138] sm:$0xff] %v1976
        %1993 = vst [vmem:[#allocation2 + $0x140] sm:$0xff] %v1977
        %1994 = vst [vmem:[#allocation2 + $0x148] sm:$0xff] %v1978
        %1995 = vst [vmem:[#allocation2 + $0x150] sm:$0xff] %v1979
        %1996 = vst [vmem:[#allocation2 + $0x158] sm:$0xff] %v1980
        %1997 = vst [vmem:[#allocation2 + $0x160] sm:$0xff] %v1981
        %1998 = vst [vmem:[#allocation2 + $0x168] sm:$0xff] %v1982
        %1999 = vst [vmem:[#allocation2 + $0x170] sm:$0xff] %v1983
        %2000 = vst [vmem:[#allocation2 + $0x178] sm:$0xff] %v1984
        %v2001 = vsel %vm1937, 1e+30, %v1633
        %v2002 = vsel %vm1938, 1e+30, %v1634
        %v2003 = vsel %vm1939, 1e+30, %v1635
        %v2004 = vsel %vm1940, 1e+30, %v1636
        %v2005 = vsel %vm1941, 1e+30, %v1637
        %v2006 = vsel %vm1942, 1e+30, %v1638
        %v2007 = vsel %vm1943, 1e+30, %v1639
        %v2008 = vsel %vm1944, 1e+30, %v1640
        %v2009 = vsel %vm1945, 1e+30, %v1641
        %v2010 = vsel %vm1946, 1e+30, %v1642
        %v2011 = vsel %vm1947, 1e+30, %v1643
        %v2012 = vsel %vm1948, 1e+30, %v1644
        %v2013 = vsel %vm1949, 1e+30, %v1645
        %v2014 = vsel %vm1950, 1e+30, %v1646
        %v2015 = vsel %vm1951, 1e+30, %v1647
        %v2016 = vsel %vm1952, 1e+30, %v1648
        %2017 = vmin.xlane.f32.xlu0 %v2001
        %v2018 = vpop.xlane.xlu0 %2017
        %2019 = vmin.xlane.f32.xlu0 %v2002
        %v2020 = vpop.xlane.xlu0 %2019
        %2021 = vmin.xlane.f32.xlu0 %v2003
        %v2022 = vpop.xlane.xlu0 %2021
        %2023 = vmin.xlane.f32.xlu0 %v2004
        %v2024 = vpop.xlane.xlu0 %2023
        %2025 = vmin.xlane.f32.xlu0 %v2005
        %v2026 = vpop.xlane.xlu0 %2025
        %2027 = vmin.xlane.f32.xlu0 %v2006
        %v2028 = vpop.xlane.xlu0 %2027
        %2029 = vmin.xlane.f32.xlu0 %v2007
        %v2030 = vpop.xlane.xlu0 %2029
        %2031 = vmin.xlane.f32.xlu0 %v2008
        %v2032 = vpop.xlane.xlu0 %2031
        %2033 = vmin.xlane.f32.xlu0 %v2009
        %v2034 = vpop.xlane.xlu0 %2033
        %2035 = vmin.xlane.f32.xlu0 %v2010
        %v2036 = vpop.xlane.xlu0 %2035
        %2037 = vmin.xlane.f32.xlu0 %v2011
        %v2038 = vpop.xlane.xlu0 %2037
        %2039 = vmin.xlane.f32.xlu0 %v2012
        %v2040 = vpop.xlane.xlu0 %2039
        %2041 = vmin.xlane.f32.xlu0 %v2013
        %v2042 = vpop.xlane.xlu0 %2041
        %2043 = vmin.xlane.f32.xlu0 %v2014
        %v2044 = vpop.xlane.xlu0 %2043
        %2045 = vmin.xlane.f32.xlu0 %v2015
        %v2046 = vpop.xlane.xlu0 %2045
        %2047 = vmin.xlane.f32.xlu0 %v2016
        %v2048 = vpop.xlane.xlu0 %2047
        %vm2049 = vcmp.le.f32.partialorder %v2001, %v2018
        %vm2050 = vcmp.le.f32.partialorder %v2002, %v2020
        %vm2051 = vcmp.le.f32.partialorder %v2003, %v2022
        %vm2052 = vcmp.le.f32.partialorder %v2004, %v2024
        %vm2053 = vcmp.le.f32.partialorder %v2005, %v2026
        %vm2054 = vcmp.le.f32.partialorder %v2006, %v2028
        %vm2055 = vcmp.le.f32.partialorder %v2007, %v2030
        %vm2056 = vcmp.le.f32.partialorder %v2008, %v2032
        %vm2057 = vcmp.le.f32.partialorder %v2009, %v2034
        %vm2058 = vcmp.le.f32.partialorder %v2010, %v2036
        %vm2059 = vcmp.le.f32.partialorder %v2011, %v2038
        %vm2060 = vcmp.le.f32.partialorder %v2012, %v2040
        %vm2061 = vcmp.le.f32.partialorder %v2013, %v2042
        %vm2062 = vcmp.le.f32.partialorder %v2014, %v2044
        %vm2063 = vcmp.le.f32.partialorder %v2015, %v2046
        %vm2064 = vcmp.le.f32.partialorder %v2016, %v2048
        %v2065 = vsel %vm2049, %v533, 128
        %v2066 = vsel %vm2050, %v533, 128
        %v2067 = vsel %vm2051, %v533, 128
        %v2068 = vsel %vm2052, %v533, 128
        %v2069 = vsel %vm2053, %v533, 128
        %v2070 = vsel %vm2054, %v533, 128
        %v2071 = vsel %vm2055, %v533, 128
        %v2072 = vsel %vm2056, %v533, 128
        %v2073 = vsel %vm2057, %v533, 128
        %v2074 = vsel %vm2058, %v533, 128
        %v2075 = vsel %vm2059, %v533, 128
        %v2076 = vsel %vm2060, %v533, 128
        %v2077 = vsel %vm2061, %v533, 128
        %v2078 = vsel %vm2062, %v533, 128
        %v2079 = vsel %vm2063, %v533, 128
        %v2080 = vsel %vm2064, %v533, 128
        %v2081 = vand.u32 %v2065, 65535
        %v2082 = vshra.s32 %v2065, 16
        %v2083 = vcvt.s32.f32 %v2081
        %v2084 = vcvt.s32.f32 %v2082
        %2085 = vmin.xlane.f32.xlu0 %v2084
        %v2086 = vpop.xlane.xlu0 %2085
        %vm2087 = vcmp.eq.f32.partialorder %v2084, %v2086
        %v2088 = vsel %vm2087, %v2083, inf
        %2089 = vmin.xlane.f32.xlu0 %v2088
        %v2090 = vpop.xlane.xlu0 %2089
        %v2091 = vcvt.f32.s32 %v2090
        %v2092 = vcvt.f32.s32 %v2086
        %v2093 = vshll.u32 %v2092, 16
        %v2094 = vadd.s32 %v2093, %v2091
        %v2095 = vand.u32 %v2066, 65535
        %v2096 = vshra.s32 %v2066, 16
        %v2097 = vcvt.s32.f32 %v2095
        %v2098 = vcvt.s32.f32 %v2096
        %2099 = vmin.xlane.f32.xlu0 %v2098
        %v2100 = vpop.xlane.xlu0 %2099
        %vm2101 = vcmp.eq.f32.partialorder %v2098, %v2100
        %v2102 = vsel %vm2101, %v2097, inf
        %2103 = vmin.xlane.f32.xlu0 %v2102
        %v2104 = vpop.xlane.xlu0 %2103
        %v2105 = vcvt.f32.s32 %v2104
        %v2106 = vcvt.f32.s32 %v2100
        %v2107 = vshll.u32 %v2106, 16
        %v2108 = vadd.s32 %v2107, %v2105
        %v2109 = vand.u32 %v2067, 65535
        %v2110 = vshra.s32 %v2067, 16
        %v2111 = vcvt.s32.f32 %v2109
        %v2112 = vcvt.s32.f32 %v2110
        %2113 = vmin.xlane.f32.xlu0 %v2112
        %v2114 = vpop.xlane.xlu0 %2113
        %vm2115 = vcmp.eq.f32.partialorder %v2112, %v2114
        %v2116 = vsel %vm2115, %v2111, inf
        %2117 = vmin.xlane.f32.xlu0 %v2116
        %v2118 = vpop.xlane.xlu0 %2117
        %v2119 = vcvt.f32.s32 %v2118
        %v2120 = vcvt.f32.s32 %v2114
        %v2121 = vshll.u32 %v2120, 16
        %v2122 = vadd.s32 %v2121, %v2119
        %v2123 = vand.u32 %v2068, 65535
        %v2124 = vshra.s32 %v2068, 16
        %v2125 = vcvt.s32.f32 %v2123
        %v2126 = vcvt.s32.f32 %v2124
        %2127 = vmin.xlane.f32.xlu0 %v2126
        %v2128 = vpop.xlane.xlu0 %2127
        %vm2129 = vcmp.eq.f32.partialorder %v2126, %v2128
        %v2130 = vsel %vm2129, %v2125, inf
        %2131 = vmin.xlane.f32.xlu0 %v2130
        %v2132 = vpop.xlane.xlu0 %2131
        %v2133 = vcvt.f32.s32 %v2132
        %v2134 = vcvt.f32.s32 %v2128
        %v2135 = vshll.u32 %v2134, 16
        %v2136 = vadd.s32 %v2135, %v2133
        %v2137 = vand.u32 %v2069, 65535
        %v2138 = vshra.s32 %v2069, 16
        %v2139 = vcvt.s32.f32 %v2137
        %v2140 = vcvt.s32.f32 %v2138
        %2141 = vmin.xlane.f32.xlu0 %v2140
        %v2142 = vpop.xlane.xlu0 %2141
        %vm2143 = vcmp.eq.f32.partialorder %v2140, %v2142
        %v2144 = vsel %vm2143, %v2139, inf
        %2145 = vmin.xlane.f32.xlu0 %v2144
        %v2146 = vpop.xlane.xlu0 %2145
        %v2147 = vcvt.f32.s32 %v2146
        %v2148 = vcvt.f32.s32 %v2142
        %v2149 = vshll.u32 %v2148, 16
        %v2150 = vadd.s32 %v2149, %v2147
        %v2151 = vand.u32 %v2070, 65535
        %v2152 = vshra.s32 %v2070, 16
        %v2153 = vcvt.s32.f32 %v2151
        %v2154 = vcvt.s32.f32 %v2152
        %2155 = vmin.xlane.f32.xlu0 %v2154
        %v2156 = vpop.xlane.xlu0 %2155
        %vm2157 = vcmp.eq.f32.partialorder %v2154, %v2156
        %v2158 = vsel %vm2157, %v2153, inf
        %2159 = vmin.xlane.f32.xlu0 %v2158
        %v2160 = vpop.xlane.xlu0 %2159
        %v2161 = vcvt.f32.s32 %v2160
        %v2162 = vcvt.f32.s32 %v2156
        %v2163 = vshll.u32 %v2162, 16
        %v2164 = vadd.s32 %v2163, %v2161
        %v2165 = vand.u32 %v2071, 65535
        %v2166 = vshra.s32 %v2071, 16
        %v2167 = vcvt.s32.f32 %v2165
        %v2168 = vcvt.s32.f32 %v2166
        %2169 = vmin.xlane.f32.xlu0 %v2168
        %v2170 = vpop.xlane.xlu0 %2169
        %vm2171 = vcmp.eq.f32.partialorder %v2168, %v2170
        %v2172 = vsel %vm2171, %v2167, inf
        %2173 = vmin.xlane.f32.xlu0 %v2172
        %v2174 = vpop.xlane.xlu0 %2173
        %v2175 = vcvt.f32.s32 %v2174
        %v2176 = vcvt.f32.s32 %v2170
        %v2177 = vshll.u32 %v2176, 16
        %v2178 = vadd.s32 %v2177, %v2175
        %v2179 = vand.u32 %v2072, 65535
        %v2180 = vshra.s32 %v2072, 16
        %v2181 = vcvt.s32.f32 %v2179
        %v2182 = vcvt.s32.f32 %v2180
        %2183 = vmin.xlane.f32.xlu0 %v2182
        %v2184 = vpop.xlane.xlu0 %2183
        %vm2185 = vcmp.eq.f32.partialorder %v2182, %v2184
        %v2186 = vsel %vm2185, %v2181, inf
        %2187 = vmin.xlane.f32.xlu0 %v2186
        %v2188 = vpop.xlane.xlu0 %2187
        %v2189 = vcvt.f32.s32 %v2188
        %v2190 = vcvt.f32.s32 %v2184
        %v2191 = vshll.u32 %v2190, 16
        %v2192 = vadd.s32 %v2191, %v2189
        %v2193 = vand.u32 %v2073, 65535
        %v2194 = vshra.s32 %v2073, 16
        %v2195 = vcvt.s32.f32 %v2193
        %v2196 = vcvt.s32.f32 %v2194
        %2197 = vmin.xlane.f32.xlu0 %v2196
        %v2198 = vpop.xlane.xlu0 %2197
        %vm2199 = vcmp.eq.f32.partialorder %v2196, %v2198
        %v2200 = vsel %vm2199, %v2195, inf
        %2201 = vmin.xlane.f32.xlu0 %v2200
        %v2202 = vpop.xlane.xlu0 %2201
        %v2203 = vcvt.f32.s32 %v2202
        %v2204 = vcvt.f32.s32 %v2198
        %v2205 = vshll.u32 %v2204, 16
        %v2206 = vadd.s32 %v2205, %v2203
        %v2207 = vand.u32 %v2074, 65535
        %v2208 = vshra.s32 %v2074, 16
        %v2209 = vcvt.s32.f32 %v2207
        %v2210 = vcvt.s32.f32 %v2208
        %2211 = vmin.xlane.f32.xlu0 %v2210
        %v2212 = vpop.xlane.xlu0 %2211
        %vm2213 = vcmp.eq.f32.partialorder %v2210, %v2212
        %v2214 = vsel %vm2213, %v2209, inf
        %2215 = vmin.xlane.f32.xlu0 %v2214
        %v2216 = vpop.xlane.xlu0 %2215
        %v2217 = vcvt.f32.s32 %v2216
        %v2218 = vcvt.f32.s32 %v2212
        %v2219 = vshll.u32 %v2218, 16
        %v2220 = vadd.s32 %v2219, %v2217
        %v2221 = vand.u32 %v2075, 65535
        %v2222 = vshra.s32 %v2075, 16
        %v2223 = vcvt.s32.f32 %v2221
        %v2224 = vcvt.s32.f32 %v2222
        %2225 = vmin.xlane.f32.xlu0 %v2224
        %v2226 = vpop.xlane.xlu0 %2225
        %vm2227 = vcmp.eq.f32.partialorder %v2224, %v2226
        %v2228 = vsel %vm2227, %v2223, inf
        %2229 = vmin.xlane.f32.xlu0 %v2228
        %v2230 = vpop.xlane.xlu0 %2229
        %v2231 = vcvt.f32.s32 %v2230
        %v2232 = vcvt.f32.s32 %v2226
        %v2233 = vshll.u32 %v2232, 16
        %v2234 = vadd.s32 %v2233, %v2231
        %v2235 = vand.u32 %v2076, 65535
        %v2236 = vshra.s32 %v2076, 16
        %v2237 = vcvt.s32.f32 %v2235
        %v2238 = vcvt.s32.f32 %v2236
        %2239 = vmin.xlane.f32.xlu0 %v2238
        %v2240 = vpop.xlane.xlu0 %2239
        %vm2241 = vcmp.eq.f32.partialorder %v2238, %v2240
        %v2242 = vsel %vm2241, %v2237, inf
        %2243 = vmin.xlane.f32.xlu0 %v2242
        %v2244 = vpop.xlane.xlu0 %2243
        %v2245 = vcvt.f32.s32 %v2244
        %v2246 = vcvt.f32.s32 %v2240
        %v2247 = vshll.u32 %v2246, 16
        %v2248 = vadd.s32 %v2247, %v2245
        %v2249 = vand.u32 %v2077, 65535
        %v2250 = vshra.s32 %v2077, 16
        %v2251 = vcvt.s32.f32 %v2249
        %v2252 = vcvt.s32.f32 %v2250
        %2253 = vmin.xlane.f32.xlu0 %v2252
        %v2254 = vpop.xlane.xlu0 %2253
        %vm2255 = vcmp.eq.f32.partialorder %v2252, %v2254
        %v2256 = vsel %vm2255, %v2251, inf
        %2257 = vmin.xlane.f32.xlu0 %v2256
        %v2258 = vpop.xlane.xlu0 %2257
        %v2259 = vcvt.f32.s32 %v2258
        %v2260 = vcvt.f32.s32 %v2254
        %v2261 = vshll.u32 %v2260, 16
        %v2262 = vadd.s32 %v2261, %v2259
        %v2263 = vand.u32 %v2078, 65535
        %v2264 = vshra.s32 %v2078, 16
        %v2265 = vcvt.s32.f32 %v2263
        %v2266 = vcvt.s32.f32 %v2264
        %2267 = vmin.xlane.f32.xlu0 %v2266
        %v2268 = vpop.xlane.xlu0 %2267
        %vm2269 = vcmp.eq.f32.partialorder %v2266, %v2268
        %v2270 = vsel %vm2269, %v2265, inf
        %2271 = vmin.xlane.f32.xlu0 %v2270
        %v2272 = vpop.xlane.xlu0 %2271
        %v2273 = vcvt.f32.s32 %v2272
        %v2274 = vcvt.f32.s32 %v2268
        %v2275 = vshll.u32 %v2274, 16
        %v2276 = vadd.s32 %v2275, %v2273
        %v2277 = vand.u32 %v2079, 65535
        %v2278 = vshra.s32 %v2079, 16
        %v2279 = vcvt.s32.f32 %v2277
        %v2280 = vcvt.s32.f32 %v2278
        %2281 = vmin.xlane.f32.xlu0 %v2280
        %v2282 = vpop.xlane.xlu0 %2281
        %vm2283 = vcmp.eq.f32.partialorder %v2280, %v2282
        %v2284 = vsel %vm2283, %v2279, inf
        %2285 = vmin.xlane.f32.xlu0 %v2284
        %v2286 = vpop.xlane.xlu0 %2285
        %v2287 = vcvt.f32.s32 %v2286
        %v2288 = vcvt.f32.s32 %v2282
        %v2289 = vshll.u32 %v2288, 16
        %v2290 = vadd.s32 %v2289, %v2287
        %v2291 = vand.u32 %v2080, 65535
        %v2292 = vshra.s32 %v2080, 16
        %v2293 = vcvt.s32.f32 %v2291
        %v2294 = vcvt.s32.f32 %v2292
        %2295 = vmin.xlane.f32.xlu0 %v2294
        %v2296 = vpop.xlane.xlu0 %2295
        %vm2297 = vcmp.eq.f32.partialorder %v2294, %v2296
        %v2298 = vsel %vm2297, %v2293, inf
        %2299 = vmin.xlane.f32.xlu0 %v2298
        %v2300 = vpop.xlane.xlu0 %2299
        %v2301 = vcvt.f32.s32 %v2300
        %v2302 = vcvt.f32.s32 %v2296
        %v2303 = vshll.u32 %v2302, 16
        %v2304 = vadd.s32 %v2303, %v2301
        %vm2305 = vcmp.eq.s32.totalorder %v533, %v2094
        %vm2306 = vcmp.eq.s32.totalorder %v533, %v2108
        %vm2307 = vcmp.eq.s32.totalorder %v533, %v2122
        %vm2308 = vcmp.eq.s32.totalorder %v533, %v2136
        %vm2309 = vcmp.eq.s32.totalorder %v533, %v2150
        %vm2310 = vcmp.eq.s32.totalorder %v533, %v2164
        %vm2311 = vcmp.eq.s32.totalorder %v533, %v2178
        %vm2312 = vcmp.eq.s32.totalorder %v533, %v2192
        %vm2313 = vcmp.eq.s32.totalorder %v533, %v2206
        %vm2314 = vcmp.eq.s32.totalorder %v533, %v2220
        %vm2315 = vcmp.eq.s32.totalorder %v533, %v2234
        %vm2316 = vcmp.eq.s32.totalorder %v533, %v2248
        %vm2317 = vcmp.eq.s32.totalorder %v533, %v2262
        %vm2318 = vcmp.eq.s32.totalorder %v533, %v2276
        %vm2319 = vcmp.eq.s32.totalorder %v533, %v2290
        %vm2320 = vcmp.eq.s32.totalorder %v533, %v2304
        %v2321 = vsel %vm2305, 1, 0
        %v2322 = vsel %vm2306, 1, 0
        %v2323 = vsel %vm2307, 1, 0
        %v2324 = vsel %vm2308, 1, 0
        %v2325 = vsel %vm2309, 1, 0
        %v2326 = vsel %vm2310, 1, 0
        %v2327 = vsel %vm2311, 1, 0
        %v2328 = vsel %vm2312, 1, 0
        %v2329 = vsel %vm2313, 1, 0
        %v2330 = vsel %vm2314, 1, 0
        %v2331 = vsel %vm2315, 1, 0
        %v2332 = vsel %vm2316, 1, 0
        %v2333 = vsel %vm2317, 1, 0
        %v2334 = vsel %vm2318, 1, 0
        %v2335 = vsel %vm2319, 1, 0
        %v2336 = vsel %vm2320, 1, 0
        %v2337 = vcvt.s32.f32 %v2321
        %v2338 = vcvt.s32.f32 %v2322
        %v2339 = vcvt.s32.f32 %v2323
        %v2340 = vcvt.s32.f32 %v2324
        %v2341 = vcvt.s32.f32 %v2325
        %v2342 = vcvt.s32.f32 %v2326
        %v2343 = vcvt.s32.f32 %v2327
        %v2344 = vcvt.s32.f32 %v2328
        %v2345 = vcvt.s32.f32 %v2329
        %v2346 = vcvt.s32.f32 %v2330
        %v2347 = vcvt.s32.f32 %v2331
        %v2348 = vcvt.s32.f32 %v2332
        %v2349 = vcvt.s32.f32 %v2333
        %v2350 = vcvt.s32.f32 %v2334
        %v2351 = vcvt.s32.f32 %v2335
        %v2352 = vcvt.s32.f32 %v2336
        %2353 = vst [vmem:[#allocation2 + $0x180] sm:$0xff] %v2337
        %2354 = vst [vmem:[#allocation2 + $0x188] sm:$0xff] %v2338
        %2355 = vst [vmem:[#allocation2 + $0x190] sm:$0xff] %v2339
        %2356 = vst [vmem:[#allocation2 + $0x198] sm:$0xff] %v2340
        %2357 = vst [vmem:[#allocation2 + $0x1a0] sm:$0xff] %v2341
        %2358 = vst [vmem:[#allocation2 + $0x1a8] sm:$0xff] %v2342
        %2359 = vst [vmem:[#allocation2 + $0x1b0] sm:$0xff] %v2343
        %2360 = vst [vmem:[#allocation2 + $0x1b8] sm:$0xff] %v2344
        %2361 = vst [vmem:[#allocation2 + $0x1c0] sm:$0xff] %v2345
        %2362 = vst [vmem:[#allocation2 + $0x1c8] sm:$0xff] %v2346
        %2363 = vst [vmem:[#allocation2 + $0x1d0] sm:$0xff] %v2347
        %2364 = vst [vmem:[#allocation2 + $0x1d8] sm:$0xff] %v2348
        %2365 = vst [vmem:[#allocation2 + $0x1e0] sm:$0xff] %v2349
        %2366 = vst [vmem:[#allocation2 + $0x1e8] sm:$0xff] %v2350
        %2367 = vst [vmem:[#allocation2 + $0x1f0] sm:$0xff] %v2351
        %2368 = vst [vmem:[#allocation2 + $0x1f8] sm:$0xff] %v2352
        %v2369 = vld [vmem:[#allocation2] sm:$0xff]
        %v2370 = vld [vmem:[#allocation2 + $0x8] sm:$0xff]
        %v2371 = vld [vmem:[#allocation2 + $0x10] sm:$0xff]
        %v2372 = vld [vmem:[#allocation2 + $0x18] sm:$0xff]
        %v2373 = vld [vmem:[#allocation2 + $0x20] sm:$0xff]
        %v2374 = vld [vmem:[#allocation2 + $0x28] sm:$0xff]
        %v2375 = vld [vmem:[#allocation2 + $0x30] sm:$0xff]
        %v2376 = vld [vmem:[#allocation2 + $0x38] sm:$0xff]
        %v2377 = vld [vmem:[#allocation2 + $0x40] sm:$0xff]
        %v2378 = vld [vmem:[#allocation2 + $0x48] sm:$0xff]
        %v2379 = vld [vmem:[#allocation2 + $0x50] sm:$0xff]
        %v2380 = vld [vmem:[#allocation2 + $0x58] sm:$0xff]
        %v2381 = vld [vmem:[#allocation2 + $0x60] sm:$0xff]
        %v2382 = vld [vmem:[#allocation2 + $0x68] sm:$0xff]
        %v2383 = vld [vmem:[#allocation2 + $0x70] sm:$0xff]
        %v2384 = vld [vmem:[#allocation2 + $0x78] sm:$0xff]
        %v2385 = vld [vmem:[#allocation2 + $0x80] sm:$0xff]
        %v2386 = vld [vmem:[#allocation2 + $0x88] sm:$0xff]
        %v2387 = vld [vmem:[#allocation2 + $0x90] sm:$0xff]
        %v2388 = vld [vmem:[#allocation2 + $0x98] sm:$0xff]
        %v2389 = vld [vmem:[#allocation2 + $0xa0] sm:$0xff]
        %v2390 = vld [vmem:[#allocation2 + $0xa8] sm:$0xff]
        %v2391 = vld [vmem:[#allocation2 + $0xb0] sm:$0xff]
        %v2392 = vld [vmem:[#allocation2 + $0xb8] sm:$0xff]
        %v2393 = vld [vmem:[#allocation2 + $0xc0] sm:$0xff]
        %v2394 = vld [vmem:[#allocation2 + $0xc8] sm:$0xff]
        %v2395 = vld [vmem:[#allocation2 + $0xd0] sm:$0xff]
        %v2396 = vld [vmem:[#allocation2 + $0xd8] sm:$0xff]
        %v2397 = vld [vmem:[#allocation2 + $0xe0] sm:$0xff]
        %v2398 = vld [vmem:[#allocation2 + $0xe8] sm:$0xff]
        %v2399 = vld [vmem:[#allocation2 + $0xf0] sm:$0xff]
        %v2400 = vld [vmem:[#allocation2 + $0xf8] sm:$0xff]
        %v2401 = vld [vmem:[#allocation2 + $0x100] sm:$0xff]
        %v2402 = vld [vmem:[#allocation2 + $0x108] sm:$0xff]
        %v2403 = vld [vmem:[#allocation2 + $0x110] sm:$0xff]
        %v2404 = vld [vmem:[#allocation2 + $0x118] sm:$0xff]
        %v2405 = vld [vmem:[#allocation2 + $0x120] sm:$0xff]
        %v2406 = vld [vmem:[#allocation2 + $0x128] sm:$0xff]
        %v2407 = vld [vmem:[#allocation2 + $0x130] sm:$0xff]
        %v2408 = vld [vmem:[#allocation2 + $0x138] sm:$0xff]
        %v2409 = vld [vmem:[#allocation2 + $0x140] sm:$0xff]
        %v2410 = vld [vmem:[#allocation2 + $0x148] sm:$0xff]
        %v2411 = vld [vmem:[#allocation2 + $0x150] sm:$0xff]
        %v2412 = vld [vmem:[#allocation2 + $0x158] sm:$0xff]
        %v2413 = vld [vmem:[#allocation2 + $0x160] sm:$0xff]
        %v2414 = vld [vmem:[#allocation2 + $0x168] sm:$0xff]
        %v2415 = vld [vmem:[#allocation2 + $0x170] sm:$0xff]
        %v2416 = vld [vmem:[#allocation2 + $0x178] sm:$0xff]
        %v2417 = vld [vmem:[#allocation2 + $0x180] sm:$0xff]
        %v2418 = vld [vmem:[#allocation2 + $0x188] sm:$0xff]
        %v2419 = vld [vmem:[#allocation2 + $0x190] sm:$0xff]
        %v2420 = vld [vmem:[#allocation2 + $0x198] sm:$0xff]
        %v2421 = vld [vmem:[#allocation2 + $0x1a0] sm:$0xff]
        %v2422 = vld [vmem:[#allocation2 + $0x1a8] sm:$0xff]
        %v2423 = vld [vmem:[#allocation2 + $0x1b0] sm:$0xff]
        %v2424 = vld [vmem:[#allocation2 + $0x1b8] sm:$0xff]
        %v2425 = vld [vmem:[#allocation2 + $0x1c0] sm:$0xff]
        %v2426 = vld [vmem:[#allocation2 + $0x1c8] sm:$0xff]
        %v2427 = vld [vmem:[#allocation2 + $0x1d0] sm:$0xff]
        %v2428 = vld [vmem:[#allocation2 + $0x1d8] sm:$0xff]
        %v2429 = vld [vmem:[#allocation2 + $0x1e0] sm:$0xff]
        %v2430 = vld [vmem:[#allocation2 + $0x1e8] sm:$0xff]
        %v2431 = vld [vmem:[#allocation2 + $0x1f0] sm:$0xff]
        %v2432 = vld [vmem:[#allocation2 + $0x1f8] sm:$0xff]
        %2433 = vmatpush.msra.mxu0 %v840
        %2434 = vmatpush.msra.mxu0 %v837
        %2435 = vmatpush.msra.mxu0 %v834
        %2436 = vmatpush.msra.mxu0 %v831
        %2437 = vmatpush.msra.mxu0 %v828
        %2438 = vmatpush.msra.mxu0 %v825
        %2439 = vmatpush.msra.mxu0 %v822
        %2440 = vmatpush.msra.mxu0 %v819
        %2441 = vmatpush.msra.mxu0 %v816
        %2442 = vmatpush.msra.mxu0 %v813
        %2443 = vmatpush.msra.mxu0 %v810
        %2444 = vmatpush.msra.mxu0 %v807
        %2445 = vmatpush.msra.mxu0 %v804
        %2446 = vmatpush.msra.mxu0 %v801
        %2447 = vmatpush.msra.mxu0 %v798
        %2448 = vmatpush.msra.mxu0 %v795
        %2449 = vmatmul.f32.gmra.mxu0 %v2369
        %v2450 = vpop.f32.mrf.mxu0
        %v2451 = vadd.f32 0.0, %v2450
        %2452 = vmatmul.f32.gmra.mxu0 %v2370
        %v2453 = vpop.f32.mrf.mxu0
        %v2454 = vadd.f32 0.0, %v2453
        %2455 = vmatmul.f32.gmra.mxu0 %v2371
        %v2456 = vpop.f32.mrf.mxu0
        %v2457 = vadd.f32 0.0, %v2456
        %2458 = vmatmul.f32.gmra.mxu0 %v2372
        %v2459 = vpop.f32.mrf.mxu0
        %v2460 = vadd.f32 0.0, %v2459
        %2461 = vmatmul.f32.gmra.mxu0 %v2373
        %v2462 = vpop.f32.mrf.mxu0
        %v2463 = vadd.f32 0.0, %v2462
        %2464 = vmatmul.f32.gmra.mxu0 %v2374
        %v2465 = vpop.f32.mrf.mxu0
        %v2466 = vadd.f32 0.0, %v2465
        %2467 = vmatmul.f32.gmra.mxu0 %v2375
        %v2468 = vpop.f32.mrf.mxu0
        %v2469 = vadd.f32 0.0, %v2468
        %2470 = vmatmul.f32.gmra.mxu0 %v2376
        %v2471 = vpop.f32.mrf.mxu0
        %v2472 = vadd.f32 0.0, %v2471
        %2473 = vmatmul.f32.gmra.mxu0 %v2377
        %v2474 = vpop.f32.mrf.mxu0
        %v2475 = vadd.f32 0.0, %v2474
        %2476 = vmatmul.f32.gmra.mxu0 %v2378
        %v2477 = vpop.f32.mrf.mxu0
        %v2478 = vadd.f32 0.0, %v2477
        %2479 = vmatmul.f32.gmra.mxu0 %v2379
        %v2480 = vpop.f32.mrf.mxu0
        %v2481 = vadd.f32 0.0, %v2480
        %2482 = vmatmul.f32.gmra.mxu0 %v2380
        %v2483 = vpop.f32.mrf.mxu0
        %v2484 = vadd.f32 0.0, %v2483
        %2485 = vmatmul.f32.gmra.mxu0 %v2381
        %v2486 = vpop.f32.mrf.mxu0
        %v2487 = vadd.f32 0.0, %v2486
        %2488 = vmatmul.f32.gmra.mxu0 %v2382
        %v2489 = vpop.f32.mrf.mxu0
        %v2490 = vadd.f32 0.0, %v2489
        %2491 = vmatmul.f32.gmra.mxu0 %v2383
        %v2492 = vpop.f32.mrf.mxu0
        %v2493 = vadd.f32 0.0, %v2492
        %2494 = vmatmul.f32.gmra.mxu0 %v2384
        %v2495 = vpop.f32.mrf.mxu0
        %v2496 = vadd.f32 0.0, %v2495
        %2497 = vmatmul.f32.gmra.mxu0 %v2385
        %v2498 = vpop.f32.mrf.mxu0
        %v2499 = vadd.f32 0.0, %v2498
        %2500 = vmatmul.f32.gmra.mxu0 %v2386
        %v2501 = vpop.f32.mrf.mxu0
        %v2502 = vadd.f32 0.0, %v2501
        %2503 = vmatmul.f32.gmra.mxu0 %v2387
        %v2504 = vpop.f32.mrf.mxu0
        %v2505 = vadd.f32 0.0, %v2504
        %2506 = vmatmul.f32.gmra.mxu0 %v2388
        %v2507 = vpop.f32.mrf.mxu0
        %v2508 = vadd.f32 0.0, %v2507
        %2509 = vmatmul.f32.gmra.mxu0 %v2389
        %v2510 = vpop.f32.mrf.mxu0
        %v2511 = vadd.f32 0.0, %v2510
        %2512 = vmatmul.f32.gmra.mxu0 %v2390
        %v2513 = vpop.f32.mrf.mxu0
        %v2514 = vadd.f32 0.0, %v2513
        %2515 = vmatmul.f32.gmra.mxu0 %v2391
        %v2516 = vpop.f32.mrf.mxu0
        %v2517 = vadd.f32 0.0, %v2516
        %2518 = vmatmul.f32.gmra.mxu0 %v2392
        %v2519 = vpop.f32.mrf.mxu0
        %v2520 = vadd.f32 0.0, %v2519
        %2521 = vmatmul.f32.gmra.mxu0 %v2393
        %v2522 = vpop.f32.mrf.mxu0
        %v2523 = vadd.f32 0.0, %v2522
        %2524 = vmatmul.f32.gmra.mxu0 %v2394
        %v2525 = vpop.f32.mrf.mxu0
        %v2526 = vadd.f32 0.0, %v2525
        %2527 = vmatmul.f32.gmra.mxu0 %v2395
        %v2528 = vpop.f32.mrf.mxu0
        %v2529 = vadd.f32 0.0, %v2528
        %2530 = vmatmul.f32.gmra.mxu0 %v2396
        %v2531 = vpop.f32.mrf.mxu0
        %v2532 = vadd.f32 0.0, %v2531
        %2533 = vmatmul.f32.gmra.mxu0 %v2397
        %v2534 = vpop.f32.mrf.mxu0
        %v2535 = vadd.f32 0.0, %v2534
        %2536 = vmatmul.f32.gmra.mxu0 %v2398
        %v2537 = vpop.f32.mrf.mxu0
        %v2538 = vadd.f32 0.0, %v2537
        %2539 = vmatmul.f32.gmra.mxu0 %v2399
        %v2540 = vpop.f32.mrf.mxu0
        %v2541 = vadd.f32 0.0, %v2540
        %2542 = vmatmul.f32.gmra.mxu0 %v2400
        %v2543 = vpop.f32.mrf.mxu0
        %v2544 = vadd.f32 0.0, %v2543
        %2545 = vmatmul.f32.gmra.mxu0 %v2401
        %v2546 = vpop.f32.mrf.mxu0
        %v2547 = vadd.f32 0.0, %v2546
        %2548 = vmatmul.f32.gmra.mxu0 %v2402
        %v2549 = vpop.f32.mrf.mxu0
        %v2550 = vadd.f32 0.0, %v2549
        %2551 = vmatmul.f32.gmra.mxu0 %v2403
        %v2552 = vpop.f32.mrf.mxu0
        %v2553 = vadd.f32 0.0, %v2552
        %2554 = vmatmul.f32.gmra.mxu0 %v2404
        %v2555 = vpop.f32.mrf.mxu0
        %v2556 = vadd.f32 0.0, %v2555
        %2557 = vmatmul.f32.gmra.mxu0 %v2405
        %v2558 = vpop.f32.mrf.mxu0
        %v2559 = vadd.f32 0.0, %v2558
        %2560 = vmatmul.f32.gmra.mxu0 %v2406
        %v2561 = vpop.f32.mrf.mxu0
        %v2562 = vadd.f32 0.0, %v2561
        %2563 = vmatmul.f32.gmra.mxu0 %v2407
        %v2564 = vpop.f32.mrf.mxu0
        %v2565 = vadd.f32 0.0, %v2564
        %2566 = vmatmul.f32.gmra.mxu0 %v2408
        %v2567 = vpop.f32.mrf.mxu0
        %v2568 = vadd.f32 0.0, %v2567
        %2569 = vmatmul.f32.gmra.mxu0 %v2409
        %v2570 = vpop.f32.mrf.mxu0
        %v2571 = vadd.f32 0.0, %v2570
        %2572 = vmatmul.f32.gmra.mxu0 %v2410
        %v2573 = vpop.f32.mrf.mxu0
        %v2574 = vadd.f32 0.0, %v2573
        %2575 = vmatmul.f32.gmra.mxu0 %v2411
        %v2576 = vpop.f32.mrf.mxu0
        %v2577 = vadd.f32 0.0, %v2576
        %2578 = vmatmul.f32.gmra.mxu0 %v2412
        %v2579 = vpop.f32.mrf.mxu0
        %v2580 = vadd.f32 0.0, %v2579
        %2581 = vmatmul.f32.gmra.mxu0 %v2413
        %v2582 = vpop.f32.mrf.mxu0
        %v2583 = vadd.f32 0.0, %v2582
        %2584 = vmatmul.f32.gmra.mxu0 %v2414
        %v2585 = vpop.f32.mrf.mxu0
        %v2586 = vadd.f32 0.0, %v2585
        %2587 = vmatmul.f32.gmra.mxu0 %v2415
        %v2588 = vpop.f32.mrf.mxu0
        %v2589 = vadd.f32 0.0, %v2588
        %2590 = vmatmul.f32.gmra.mxu0 %v2416
        %v2591 = vpop.f32.mrf.mxu0
        %v2592 = vadd.f32 0.0, %v2591
        %2593 = vmatmul.f32.gmra.mxu0 %v2417
        %v2594 = vpop.f32.mrf.mxu0
        %v2595 = vadd.f32 0.0, %v2594
        %2596 = vmatmul.f32.gmra.mxu0 %v2418
        %v2597 = vpop.f32.mrf.mxu0
        %v2598 = vadd.f32 0.0, %v2597
        %2599 = vmatmul.f32.gmra.mxu0 %v2419
        %v2600 = vpop.f32.mrf.mxu0
        %v2601 = vadd.f32 0.0, %v2600
        %2602 = vmatmul.f32.gmra.mxu0 %v2420
        %v2603 = vpop.f32.mrf.mxu0
        %v2604 = vadd.f32 0.0, %v2603
        %2605 = vmatmul.f32.gmra.mxu0 %v2421
        %v2606 = vpop.f32.mrf.mxu0
        %v2607 = vadd.f32 0.0, %v2606
        %2608 = vmatmul.f32.gmra.mxu0 %v2422
        %v2609 = vpop.f32.mrf.mxu0
        %v2610 = vadd.f32 0.0, %v2609
        %2611 = vmatmul.f32.gmra.mxu0 %v2423
        %v2612 = vpop.f32.mrf.mxu0
        %v2613 = vadd.f32 0.0, %v2612
        %2614 = vmatmul.f32.gmra.mxu0 %v2424
        %v2615 = vpop.f32.mrf.mxu0
        %v2616 = vadd.f32 0.0, %v2615
        %2617 = vmatmul.f32.gmra.mxu0 %v2425
        %v2618 = vpop.f32.mrf.mxu0
        %v2619 = vadd.f32 0.0, %v2618
        %2620 = vmatmul.f32.gmra.mxu0 %v2426
        %v2621 = vpop.f32.mrf.mxu0
        %v2622 = vadd.f32 0.0, %v2621
        %2623 = vmatmul.f32.gmra.mxu0 %v2427
        %v2624 = vpop.f32.mrf.mxu0
        %v2625 = vadd.f32 0.0, %v2624
        %2626 = vmatmul.f32.gmra.mxu0 %v2428
        %v2627 = vpop.f32.mrf.mxu0
        %v2628 = vadd.f32 0.0, %v2627
        %2629 = vmatmul.f32.gmra.mxu0 %v2429
        %v2630 = vpop.f32.mrf.mxu0
        %v2631 = vadd.f32 0.0, %v2630
        %2632 = vmatmul.f32.gmra.mxu0 %v2430
        %v2633 = vpop.f32.mrf.mxu0
        %v2634 = vadd.f32 0.0, %v2633
        %2635 = vmatmul.f32.gmra.mxu0 %v2431
        %v2636 = vpop.f32.mrf.mxu0
        %v2637 = vadd.f32 0.0, %v2636
        %2638 = vmatmul.f32.gmra.mxu0 %v2432
        %v2639 = vpop.f32.mrf.mxu0
        %v2640 = vadd.f32 0.0, %v2639
        %2641 = vdwg.mxu0
        %v2642 = vmax.f32 %v2451, %v2499
        %v2643 = vmax.f32 %v2454, %v2502
        %v2644 = vmax.f32 %v2457, %v2505
        %v2645 = vmax.f32 %v2460, %v2508
        %v2646 = vmax.f32 %v2463, %v2511
        %v2647 = vmax.f32 %v2466, %v2514
        %v2648 = vmax.f32 %v2469, %v2517
        %v2649 = vmax.f32 %v2472, %v2520
        %v2650 = vmax.f32 %v2475, %v2523
        %v2651 = vmax.f32 %v2478, %v2526
        %v2652 = vmax.f32 %v2481, %v2529
        %v2653 = vmax.f32 %v2484, %v2532
        %v2654 = vmax.f32 %v2487, %v2535
        %v2655 = vmax.f32 %v2490, %v2538
        %v2656 = vmax.f32 %v2493, %v2541
        %v2657 = vmax.f32 %v2496, %v2544
        %v2658 = vmax.f32 %v2642, %v2547
        %v2659 = vmax.f32 %v2643, %v2550
        %v2660 = vmax.f32 %v2644, %v2553
        %v2661 = vmax.f32 %v2645, %v2556
        %v2662 = vmax.f32 %v2646, %v2559
        %v2663 = vmax.f32 %v2647, %v2562
        %v2664 = vmax.f32 %v2648, %v2565
        %v2665 = vmax.f32 %v2649, %v2568
        %v2666 = vmax.f32 %v2650, %v2571
        %v2667 = vmax.f32 %v2651, %v2574
        %v2668 = vmax.f32 %v2652, %v2577
        %v2669 = vmax.f32 %v2653, %v2580
        %v2670 = vmax.f32 %v2654, %v2583
        %v2671 = vmax.f32 %v2655, %v2586
        %v2672 = vmax.f32 %v2656, %v2589
        %v2673 = vmax.f32 %v2657, %v2592
        %v2674 = vmax.f32 %v2658, %v2595
        %v2675 = vmax.f32 %v2659, %v2598
        %v2676 = vmax.f32 %v2660, %v2601
        %v2677 = vmax.f32 %v2661, %v2604
        %v2678 = vmax.f32 %v2662, %v2607
        %v2679 = vmax.f32 %v2663, %v2610
        %v2680 = vmax.f32 %v2664, %v2613
        %v2681 = vmax.f32 %v2665, %v2616
        %v2682 = vmax.f32 %v2666, %v2619
        %v2683 = vmax.f32 %v2667, %v2622
        %v2684 = vmax.f32 %v2668, %v2625
        %v2685 = vmax.f32 %v2669, %v2628
        %v2686 = vmax.f32 %v2670, %v2631
        %v2687 = vmax.f32 %v2671, %v2634
        %v2688 = vmax.f32 %v2672, %v2637
        %v2689 = vmax.f32 %v2673, %v2640
        %v2690 = vadd.f32 %v2674, %v866
        %v2691 = vadd.f32 %v2675, %v869
        %v2692 = vadd.f32 %v2676, %v872
        %v2693 = vadd.f32 %v2677, %v875
        %v2694 = vadd.f32 %v2678, %v878
        %v2695 = vadd.f32 %v2679, %v881
        %v2696 = vadd.f32 %v2680, %v884
        %v2697 = vadd.f32 %v2681, %v887
        %v2698 = vadd.f32 %v2682, %v890
        %v2699 = vadd.f32 %v2683, %v893
        %v2700 = vadd.f32 %v2684, %v896
        %v2701 = vadd.f32 %v2685, %v899
        %v2702 = vadd.f32 %v2686, %v902
        %v2703 = vadd.f32 %v2687, %v905
        %v2704 = vadd.f32 %v2688, %v908
        %v2705 = vadd.f32 %v2689, %v911
        %vm2706 = vcmask 261120
        %v2707 = vsel %vm2706, %v2690, -inf
        %v2708 = vsel %vm2706, %v2691, -inf
        %v2709 = vsel %vm2706, %v2692, -inf
        %v2710 = vsel %vm2706, %v2693, -inf
        %v2711 = vsel %vm2706, %v2694, -inf
        %v2712 = vmax.f32 %v2707, %v2711
        %v2713 = vsel %vm2706, %v2695, -inf
        %v2714 = vmax.f32 %v2708, %v2713
        %v2715 = vsel %vm2706, %v2696, -inf
        %v2716 = vmax.f32 %v2709, %v2715
        %v2717 = vsel %vm2706, %v2697, -inf
        %v2718 = vmax.f32 %v2710, %v2717
        %v2719 = vsel %vm2706, %v2698, -inf
        %v2720 = vmax.f32 %v2712, %v2719
        %v2721 = vsel %vm2706, %v2699, -inf
        %v2722 = vmax.f32 %v2714, %v2721
        %v2723 = vsel %vm2706, %v2700, -inf
        %v2724 = vmax.f32 %v2716, %v2723
        %v2725 = vsel %vm2706, %v2701, -inf
        %v2726 = vmax.f32 %v2718, %v2725
        %v2727 = vsel %vm2706, %v2702, -inf
        %v2728 = vmax.f32 %v2720, %v2727
        %v2729 = vsel %vm2706, %v2703, -inf
        %v2730 = vmax.f32 %v2722, %v2729
        %v2731 = vsel %vm2706, %v2704, -inf
        %v2732 = vmax.f32 %v2724, %v2731
        %v2733 = vsel %vm2706, %v2705, -inf
        %v2734 = vmax.f32 %v2726, %v2733
        %v2735 = vmax.f32 %v2728, %v2730
        %v2736 = vmax.f32 %v2732, %v2734
        %v2737 = vmax.f32 %v2735, %v2736
        %v2738 = vrot.slane %v2737, 4
        %v2739 = vmax.f32 %v2737, %v2738
        %v2740 = vrot.slane %v2739, 2
        %v2741 = vmax.f32 %v2739, %v2740
        %v2742 = vrot.slane %v2741, 1
        %v2743 = vmax.f32 %v2741, %v2742
        %v2744 = vmax.f32 %v2743, 0.0
        %s2745 = scalar_lea.vmem %s523, 256
        %v2746 = vld [vmem:[%s2745] sm:$0xff]
        %v2747 = vld [vmem:[%s2745 + $0x8] sm:$0xff]
        %v2748 = vld [vmem:[%s2745 + $0x10] sm:$0xff]
        %v2749 = vld [vmem:[%s2745 + $0x18] sm:$0xff]
        %v2750 = vld [vmem:[%s2745 + $0x20] sm:$0xff]
        %v2751 = vld [vmem:[%s2745 + $0x28] sm:$0xff]
        %v2752 = vld [vmem:[%s2745 + $0x30] sm:$0xff]
        %v2753 = vld [vmem:[%s2745 + $0x38] sm:$0xff]
        %v2754 = vld [vmem:[%s2745 + $0x40] sm:$0xff]
        %v2755 = vld [vmem:[%s2745 + $0x48] sm:$0xff]
        %v2756 = vld [vmem:[%s2745 + $0x50] sm:$0xff]
        %v2757 = vld [vmem:[%s2745 + $0x58] sm:$0xff]
        %v2758 = vld [vmem:[%s2745 + $0x60] sm:$0xff]
        %v2759 = vld [vmem:[%s2745 + $0x68] sm:$0xff]
        %v2760 = vld [vmem:[%s2745 + $0x70] sm:$0xff]
        %v2761 = vld [vmem:[%s2745 + $0x78] sm:$0xff]
        %v2762 = vld [vmem:[%s534] sm:$0xff]
        %v2763 = vld [vmem:[%s534 + $0x8] sm:$0xff]
        %v2764 = vld [vmem:[%s534 + $0x10] sm:$0xff]
        %v2765 = vld [vmem:[%s534 + $0x18] sm:$0xff]
        %v2766 = vld [vmem:[%s534 + $0x20] sm:$0xff]
        %v2767 = vld [vmem:[%s534 + $0x28] sm:$0xff]
        %v2768 = vld [vmem:[%s534 + $0x30] sm:$0xff]
        %v2769 = vld [vmem:[%s534 + $0x38] sm:$0xff]
        %v2770 = vld [vmem:[%s534 + $0x40] sm:$0xff]
        %v2771 = vld [vmem:[%s534 + $0x48] sm:$0xff]
        %v2772 = vld [vmem:[%s534 + $0x50] sm:$0xff]
        %v2773 = vld [vmem:[%s534 + $0x58] sm:$0xff]
        %v2774 = vld [vmem:[%s534 + $0x60] sm:$0xff]
        %v2775 = vld [vmem:[%s534 + $0x68] sm:$0xff]
        %v2776 = vld [vmem:[%s534 + $0x70] sm:$0xff]
        %v2777 = vld [vmem:[%s534 + $0x78] sm:$0xff]
        %s2778 = scalar_lea.vmem %s528, 4
        %v2779 = vld [vmem:[%s2778] sm:$0x7]
        %v2781 = vsel %vm568, %v2746, 0
        %v2784 = vsel %vm568, %v2747, 0
        %v2787 = vsel %vm568, %v2748, 0
        %v2790 = vsel %vm568, %v2749, 0
        %v2793 = vsel %vm568, %v2750, 0
        %v2796 = vsel %vm568, %v2751, 0
        %v2799 = vsel %vm568, %v2752, 0
        %v2802 = vsel %vm568, %v2753, 0
        %v2805 = vsel %vm568, %v2754, 0
        %v2808 = vsel %vm568, %v2755, 0
        %v2811 = vsel %vm568, %v2756, 0
        %v2814 = vsel %vm568, %v2757, 0
        %v2817 = vsel %vm568, %v2758, 0
        %v2820 = vsel %vm568, %v2759, 0
        %v2823 = vsel %vm568, %v2760, 0
        %v2826 = vsel %vm568, %v2761, 0
        %v2829 = vsel %vm617, %v2779, 0
        %2831 = vmatpush.msra.mxu0 0.0
        %2832 = vmatpush.msra.mxu0 0.0
        %2833 = vmatpush.msra.mxu0 0.0
        %2834 = vmatpush.msra.mxu0 0.0
        %2835 = vmatpush.msra.mxu0 0.0
        %2836 = vmatpush.msra.mxu0 0.0
        %2837 = vmatpush.msra.mxu0 0.0
        %2838 = vmatpush.msra.mxu0 0.0
        %2839 = vmatpush.msra.mxu0 0.0
        %2840 = vmatpush.msra.mxu0 0.0
        %2841 = vmatpush.msra.mxu0 0.0
        %2842 = vmatpush.msra.mxu0 0.0
        %2843 = vmatpush.msra.mxu0 0.0
        %2844 = vmatpush.msra.mxu0 0.0
        %2845 = vmatpush.msra.mxu0 0.0
        %2846 = vmatpush.msra.mxu0 %v2829
        %2847 = vmatmul.f32.gmra.mxu0 %v2781
        %v2848 = vpop.f32.mrf.mxu0
        %v2849 = vadd.f32 0.0, %v2848
        %2850 = vmatmul.f32.gmra.mxu0 %v2784
        %v2851 = vpop.f32.mrf.mxu0
        %v2852 = vadd.f32 0.0, %v2851
        %2853 = vmatmul.f32.gmra.mxu0 %v2787
        %v2854 = vpop.f32.mrf.mxu0
        %v2855 = vadd.f32 0.0, %v2854
        %2856 = vmatmul.f32.gmra.mxu0 %v2790
        %v2857 = vpop.f32.mrf.mxu0
        %v2858 = vadd.f32 0.0, %v2857
        %2859 = vmatmul.f32.gmra.mxu0 %v2793
        %v2860 = vpop.f32.mrf.mxu0
        %v2861 = vadd.f32 0.0, %v2860
        %2862 = vmatmul.f32.gmra.mxu0 %v2796
        %v2863 = vpop.f32.mrf.mxu0
        %v2864 = vadd.f32 0.0, %v2863
        %2865 = vmatmul.f32.gmra.mxu0 %v2799
        %v2866 = vpop.f32.mrf.mxu0
        %v2867 = vadd.f32 0.0, %v2866
        %2868 = vmatmul.f32.gmra.mxu0 %v2802
        %v2869 = vpop.f32.mrf.mxu0
        %v2870 = vadd.f32 0.0, %v2869
        %2871 = vmatmul.f32.gmra.mxu0 %v2805
        %v2872 = vpop.f32.mrf.mxu0
        %v2873 = vadd.f32 0.0, %v2872
        %2874 = vmatmul.f32.gmra.mxu0 %v2808
        %v2875 = vpop.f32.mrf.mxu0
        %v2876 = vadd.f32 0.0, %v2875
        %2877 = vmatmul.f32.gmra.mxu0 %v2811
        %v2878 = vpop.f32.mrf.mxu0
        %v2879 = vadd.f32 0.0, %v2878
        %2880 = vmatmul.f32.gmra.mxu0 %v2814
        %v2881 = vpop.f32.mrf.mxu0
        %v2882 = vadd.f32 0.0, %v2881
        %2883 = vmatmul.f32.gmra.mxu0 %v2817
        %v2884 = vpop.f32.mrf.mxu0
        %v2885 = vadd.f32 0.0, %v2884
        %2886 = vmatmul.f32.gmra.mxu0 %v2820
        %v2887 = vpop.f32.mrf.mxu0
        %v2888 = vadd.f32 0.0, %v2887
        %2889 = vmatmul.f32.gmra.mxu0 %v2823
        %v2890 = vpop.f32.mrf.mxu0
        %v2891 = vadd.f32 0.0, %v2890
        %2892 = vmatmul.f32.gmra.mxu0 %v2826
        %v2893 = vpop.f32.mrf.mxu0
        %v2894 = vadd.f32 0.0, %v2893
        %2895 = vdwg.mxu0
        %v2896 = vmul.f32 %v2779, %v2779
        %v2897 = vsel %vm617, %v2896, 0.0
        %v2898 = vrot.slane %v2897, 4
        %v2899 = vadd.f32 %v2897, %v2898
        %v2900 = vrot.slane %v2899, 2
        %v2901 = vadd.f32 %v2899, %v2900
        %v2902 = vrot.slane %v2901, 1
        %v2903 = vadd.f32 %v2901, %v2902
        %v2904 = vmul.f32 %v2849, 2.0
        %v2905 = vmul.f32 %v2852, 2.0
        %v2906 = vmul.f32 %v2855, 2.0
        %v2907 = vmul.f32 %v2858, 2.0
        %v2908 = vmul.f32 %v2861, 2.0
        %v2909 = vmul.f32 %v2864, 2.0
        %v2910 = vmul.f32 %v2867, 2.0
        %v2911 = vmul.f32 %v2870, 2.0
        %v2912 = vmul.f32 %v2873, 2.0
        %v2913 = vmul.f32 %v2876, 2.0
        %v2914 = vmul.f32 %v2879, 2.0
        %v2915 = vmul.f32 %v2882, 2.0
        %v2916 = vmul.f32 %v2885, 2.0
        %v2917 = vmul.f32 %v2888, 2.0
        %v2918 = vmul.f32 %v2891, 2.0
        %v2919 = vmul.f32 %v2894, 2.0
        %v2920 = vsub.f32 %v2903, %v2904
        %v2921 = vsub.f32 %v2903, %v2905
        %v2922 = vsub.f32 %v2903, %v2906
        %v2923 = vsub.f32 %v2903, %v2907
        %v2924 = vsub.f32 %v2903, %v2908
        %v2925 = vsub.f32 %v2903, %v2909
        %v2926 = vsub.f32 %v2903, %v2910
        %v2927 = vsub.f32 %v2903, %v2911
        %v2928 = vsub.f32 %v2903, %v2912
        %v2929 = vsub.f32 %v2903, %v2913
        %v2930 = vsub.f32 %v2903, %v2914
        %v2931 = vsub.f32 %v2903, %v2915
        %v2932 = vsub.f32 %v2903, %v2916
        %v2933 = vsub.f32 %v2903, %v2917
        %v2934 = vsub.f32 %v2903, %v2918
        %v2935 = vsub.f32 %v2903, %v2919
        %v2937 = vsel %vm568, %v2762, 0
        %v2940 = vsel %vm568, %v2763, 0
        %v2943 = vsel %vm568, %v2764, 0
        %v2946 = vsel %vm568, %v2765, 0
        %v2949 = vsel %vm568, %v2766, 0
        %v2952 = vsel %vm568, %v2767, 0
        %v2955 = vsel %vm568, %v2768, 0
        %v2958 = vsel %vm568, %v2769, 0
        %v2961 = vsel %vm568, %v2770, 0
        %v2964 = vsel %vm568, %v2771, 0
        %v2967 = vsel %vm568, %v2772, 0
        %v2970 = vsel %vm568, %v2773, 0
        %v2973 = vsel %vm568, %v2774, 0
        %v2976 = vsel %vm568, %v2775, 0
        %v2979 = vsel %vm568, %v2776, 0
        %v2982 = vsel %vm568, %v2777, 0
        %2984 = vmatpush.msra.mxu0 0.0
        %2985 = vmatpush.msra.mxu0 0.0
        %2986 = vmatpush.msra.mxu0 0.0
        %2987 = vmatpush.msra.mxu0 0.0
        %2988 = vmatpush.msra.mxu0 0.0
        %2989 = vmatpush.msra.mxu0 0.0
        %2990 = vmatpush.msra.mxu0 0.0
        %2991 = vmatpush.msra.mxu0 0.0
        %2992 = vmatpush.msra.mxu0 0.0
        %2993 = vmatpush.msra.mxu0 0.0
        %2994 = vmatpush.msra.mxu0 0.0
        %2995 = vmatpush.msra.mxu0 0.0
        %2996 = vmatpush.msra.mxu0 0.0
        %2997 = vmatpush.msra.mxu0 0.0
        %2998 = vmatpush.msra.mxu0 0.0
        %2999 = vmatpush.msra.mxu0 %v775
        %3000 = vmatmul.f32.gmra.mxu0 %v2937
        %v3001 = vpop.f32.mrf.mxu0
        %v3002 = vadd.f32 0.0, %v3001
        %3003 = vmatmul.f32.gmra.mxu0 %v2940
        %v3004 = vpop.f32.mrf.mxu0
        %v3005 = vadd.f32 0.0, %v3004
        %3006 = vmatmul.f32.gmra.mxu0 %v2943
        %v3007 = vpop.f32.mrf.mxu0
        %v3008 = vadd.f32 0.0, %v3007
        %3009 = vmatmul.f32.gmra.mxu0 %v2946
        %v3010 = vpop.f32.mrf.mxu0
        %v3011 = vadd.f32 0.0, %v3010
        %3012 = vmatmul.f32.gmra.mxu0 %v2949
        %v3013 = vpop.f32.mrf.mxu0
        %v3014 = vadd.f32 0.0, %v3013
        %3015 = vmatmul.f32.gmra.mxu0 %v2952
        %v3016 = vpop.f32.mrf.mxu0
        %v3017 = vadd.f32 0.0, %v3016
        %3018 = vmatmul.f32.gmra.mxu0 %v2955
        %v3019 = vpop.f32.mrf.mxu0
        %v3020 = vadd.f32 0.0, %v3019
        %3021 = vmatmul.f32.gmra.mxu0 %v2958
        %v3022 = vpop.f32.mrf.mxu0
        %v3023 = vadd.f32 0.0, %v3022
        %3024 = vmatmul.f32.gmra.mxu0 %v2961
        %v3025 = vpop.f32.mrf.mxu0
        %v3026 = vadd.f32 0.0, %v3025
        %3027 = vmatmul.f32.gmra.mxu0 %v2964
        %v3028 = vpop.f32.mrf.mxu0
        %v3029 = vadd.f32 0.0, %v3028
        %3030 = vmatmul.f32.gmra.mxu0 %v2967
        %v3031 = vpop.f32.mrf.mxu0
        %v3032 = vadd.f32 0.0, %v3031
        %3033 = vmatmul.f32.gmra.mxu0 %v2970
        %v3034 = vpop.f32.mrf.mxu0
        %v3035 = vadd.f32 0.0, %v3034
        %3036 = vmatmul.f32.gmra.mxu0 %v2973
        %v3037 = vpop.f32.mrf.mxu0
        %v3038 = vadd.f32 0.0, %v3037
        %3039 = vmatmul.f32.gmra.mxu0 %v2976
        %v3040 = vpop.f32.mrf.mxu0
        %v3041 = vadd.f32 0.0, %v3040
        %3042 = vmatmul.f32.gmra.mxu0 %v2979
        %v3043 = vpop.f32.mrf.mxu0
        %v3044 = vadd.f32 0.0, %v3043
        %3045 = vmatmul.f32.gmra.mxu0 %v2982
        %v3046 = vpop.f32.mrf.mxu0
        %v3047 = vadd.f32 0.0, %v3046
        %3048 = vdwg.mxu0
        %3049 = vmatpush.msra.mxu0 0.0
        %3050 = vmatpush.msra.mxu0 0.0
        %3051 = vmatpush.msra.mxu0 0.0
        %3052 = vmatpush.msra.mxu0 0.0
        %3053 = vmatpush.msra.mxu0 0.0
        %3054 = vmatpush.msra.mxu0 0.0
        %3055 = vmatpush.msra.mxu0 0.0
        %3056 = vmatpush.msra.mxu0 0.0
        %3057 = vmatpush.msra.mxu0 0.0
        %3058 = vmatpush.msra.mxu0 0.0
        %3059 = vmatpush.msra.mxu0 0.0
        %3060 = vmatpush.msra.mxu0 0.0
        %3061 = vmatpush.msra.mxu0 0.0
        %3062 = vmatpush.msra.mxu0 0.0
        %3063 = vmatpush.msra.mxu0 0.0
        %3064 = vmatpush.msra.mxu0 %v846
        %3065 = vmatmul.f32.gmra.mxu0 %v2781
        %v3066 = vpop.f32.mrf.mxu0
        %v3067 = vadd.f32 %v843, %v3066
        %3068 = vmatmul.f32.gmra.mxu0 %v2784
        %v3069 = vpop.f32.mrf.mxu0
        %v3070 = vadd.f32 %v843, %v3069
        %3071 = vmatmul.f32.gmra.mxu0 %v2787
        %v3072 = vpop.f32.mrf.mxu0
        %v3073 = vadd.f32 %v843, %v3072
        %3074 = vmatmul.f32.gmra.mxu0 %v2790
        %v3075 = vpop.f32.mrf.mxu0
        %v3076 = vadd.f32 %v843, %v3075
        %3077 = vmatmul.f32.gmra.mxu0 %v2793
        %v3078 = vpop.f32.mrf.mxu0
        %v3079 = vadd.f32 %v843, %v3078
        %3080 = vmatmul.f32.gmra.mxu0 %v2796
        %v3081 = vpop.f32.mrf.mxu0
        %v3082 = vadd.f32 %v843, %v3081
        %3083 = vmatmul.f32.gmra.mxu0 %v2799
        %v3084 = vpop.f32.mrf.mxu0
        %v3085 = vadd.f32 %v843, %v3084
        %3086 = vmatmul.f32.gmra.mxu0 %v2802
        %v3087 = vpop.f32.mrf.mxu0
        %v3088 = vadd.f32 %v843, %v3087
        %3089 = vmatmul.f32.gmra.mxu0 %v2805
        %v3090 = vpop.f32.mrf.mxu0
        %v3091 = vadd.f32 %v843, %v3090
        %3092 = vmatmul.f32.gmra.mxu0 %v2808
        %v3093 = vpop.f32.mrf.mxu0
        %v3094 = vadd.f32 %v843, %v3093
        %3095 = vmatmul.f32.gmra.mxu0 %v2811
        %v3096 = vpop.f32.mrf.mxu0
        %v3097 = vadd.f32 %v843, %v3096
        %3098 = vmatmul.f32.gmra.mxu0 %v2814
        %v3099 = vpop.f32.mrf.mxu0
        %v3100 = vadd.f32 %v843, %v3099
        %3101 = vmatmul.f32.gmra.mxu0 %v2817
        %v3102 = vpop.f32.mrf.mxu0
        %v3103 = vadd.f32 %v843, %v3102
        %3104 = vmatmul.f32.gmra.mxu0 %v2820
        %v3105 = vpop.f32.mrf.mxu0
        %v3106 = vadd.f32 %v843, %v3105
        %3107 = vmatmul.f32.gmra.mxu0 %v2823
        %v3108 = vpop.f32.mrf.mxu0
        %v3109 = vadd.f32 %v843, %v3108
        %3110 = vmatmul.f32.gmra.mxu0 %v2826
        %v3111 = vpop.f32.mrf.mxu0
        %v3112 = vadd.f32 %v843, %v3111
        %3113 = vdwg.mxu0
        %3114 = vmin.xlane.f32.xlu0 %v2920
        %v3115 = vpop.xlane.xlu0 %3114
        %3116 = vmin.xlane.f32.xlu0 %v2921
        %v3117 = vpop.xlane.xlu0 %3116
        %3118 = vmin.xlane.f32.xlu0 %v2922
        %v3119 = vpop.xlane.xlu0 %3118
        %3120 = vmin.xlane.f32.xlu0 %v2923
        %v3121 = vpop.xlane.xlu0 %3120
        %3122 = vmin.xlane.f32.xlu0 %v2924
        %v3123 = vpop.xlane.xlu0 %3122
        %3124 = vmin.xlane.f32.xlu0 %v2925
        %v3125 = vpop.xlane.xlu0 %3124
        %3126 = vmin.xlane.f32.xlu0 %v2926
        %v3127 = vpop.xlane.xlu0 %3126
        %3128 = vmin.xlane.f32.xlu0 %v2927
        %v3129 = vpop.xlane.xlu0 %3128
        %3130 = vmin.xlane.f32.xlu0 %v2928
        %v3131 = vpop.xlane.xlu0 %3130
        %3132 = vmin.xlane.f32.xlu0 %v2929
        %v3133 = vpop.xlane.xlu0 %3132
        %3134 = vmin.xlane.f32.xlu0 %v2930
        %v3135 = vpop.xlane.xlu0 %3134
        %3136 = vmin.xlane.f32.xlu0 %v2931
        %v3137 = vpop.xlane.xlu0 %3136
        %3138 = vmin.xlane.f32.xlu0 %v2932
        %v3139 = vpop.xlane.xlu0 %3138
        %3140 = vmin.xlane.f32.xlu0 %v2933
        %v3141 = vpop.xlane.xlu0 %3140
        %3142 = vmin.xlane.f32.xlu0 %v2934
        %v3143 = vpop.xlane.xlu0 %3142
        %3144 = vmin.xlane.f32.xlu0 %v2935
        %v3145 = vpop.xlane.xlu0 %3144
        %vm3146 = vcmp.le.f32.partialorder %v2920, %v3115
        %vm3147 = vcmp.le.f32.partialorder %v2921, %v3117
        %vm3148 = vcmp.le.f32.partialorder %v2922, %v3119
        %vm3149 = vcmp.le.f32.partialorder %v2923, %v3121
        %vm3150 = vcmp.le.f32.partialorder %v2924, %v3123
        %vm3151 = vcmp.le.f32.partialorder %v2925, %v3125
        %vm3152 = vcmp.le.f32.partialorder %v2926, %v3127
        %vm3153 = vcmp.le.f32.partialorder %v2927, %v3129
        %vm3154 = vcmp.le.f32.partialorder %v2928, %v3131
        %vm3155 = vcmp.le.f32.partialorder %v2929, %v3133
        %vm3156 = vcmp.le.f32.partialorder %v2930, %v3135
        %vm3157 = vcmp.le.f32.partialorder %v2931, %v3137
        %vm3158 = vcmp.le.f32.partialorder %v2932, %v3139
        %vm3159 = vcmp.le.f32.partialorder %v2933, %v3141
        %vm3160 = vcmp.le.f32.partialorder %v2934, %v3143
        %vm3161 = vcmp.le.f32.partialorder %v2935, %v3145
        %v3162 = vsel %vm3146, %v533, 128
        %v3163 = vsel %vm3147, %v533, 128
        %v3164 = vsel %vm3148, %v533, 128
        %v3165 = vsel %vm3149, %v533, 128
        %v3166 = vsel %vm3150, %v533, 128
        %v3167 = vsel %vm3151, %v533, 128
        %v3168 = vsel %vm3152, %v533, 128
        %v3169 = vsel %vm3153, %v533, 128
        %v3170 = vsel %vm3154, %v533, 128
        %v3171 = vsel %vm3155, %v533, 128
        %v3172 = vsel %vm3156, %v533, 128
        %v3173 = vsel %vm3157, %v533, 128
        %v3174 = vsel %vm3158, %v533, 128
        %v3175 = vsel %vm3159, %v533, 128
        %v3176 = vsel %vm3160, %v533, 128
        %v3177 = vsel %vm3161, %v533, 128
        %v3178 = vand.u32 %v3162, 65535
        %v3179 = vshra.s32 %v3162, 16
        %v3180 = vcvt.s32.f32 %v3178
        %v3181 = vcvt.s32.f32 %v3179
        %3182 = vmin.xlane.f32.xlu0 %v3181
        %v3183 = vpop.xlane.xlu0 %3182
        %vm3184 = vcmp.eq.f32.partialorder %v3181, %v3183
        %v3185 = vsel %vm3184, %v3180, inf
        %3186 = vmin.xlane.f32.xlu0 %v3185
        %v3187 = vpop.xlane.xlu0 %3186
        %v3188 = vcvt.f32.s32 %v3187
        %v3189 = vcvt.f32.s32 %v3183
        %v3190 = vshll.u32 %v3189, 16
        %v3191 = vadd.s32 %v3190, %v3188
        %v3192 = vand.u32 %v3163, 65535
        %v3193 = vshra.s32 %v3163, 16
        %v3194 = vcvt.s32.f32 %v3192
        %v3195 = vcvt.s32.f32 %v3193
        %3196 = vmin.xlane.f32.xlu0 %v3195
        %v3197 = vpop.xlane.xlu0 %3196
        %vm3198 = vcmp.eq.f32.partialorder %v3195, %v3197
        %v3199 = vsel %vm3198, %v3194, inf
        %3200 = vmin.xlane.f32.xlu0 %v3199
        %v3201 = vpop.xlane.xlu0 %3200
        %v3202 = vcvt.f32.s32 %v3201
        %v3203 = vcvt.f32.s32 %v3197
        %v3204 = vshll.u32 %v3203, 16
        %v3205 = vadd.s32 %v3204, %v3202
        %v3206 = vand.u32 %v3164, 65535
        %v3207 = vshra.s32 %v3164, 16
        %v3208 = vcvt.s32.f32 %v3206
        %v3209 = vcvt.s32.f32 %v3207
        %3210 = vmin.xlane.f32.xlu0 %v3209
        %v3211 = vpop.xlane.xlu0 %3210
        %vm3212 = vcmp.eq.f32.partialorder %v3209, %v3211
        %v3213 = vsel %vm3212, %v3208, inf
        %3214 = vmin.xlane.f32.xlu0 %v3213
        %v3215 = vpop.xlane.xlu0 %3214
        %v3216 = vcvt.f32.s32 %v3215
        %v3217 = vcvt.f32.s32 %v3211
        %v3218 = vshll.u32 %v3217, 16
        %v3219 = vadd.s32 %v3218, %v3216
        %v3220 = vand.u32 %v3165, 65535
        %v3221 = vshra.s32 %v3165, 16
        %v3222 = vcvt.s32.f32 %v3220
        %v3223 = vcvt.s32.f32 %v3221
        %3224 = vmin.xlane.f32.xlu0 %v3223
        %v3225 = vpop.xlane.xlu0 %3224
        %vm3226 = vcmp.eq.f32.partialorder %v3223, %v3225
        %v3227 = vsel %vm3226, %v3222, inf
        %3228 = vmin.xlane.f32.xlu0 %v3227
        %v3229 = vpop.xlane.xlu0 %3228
        %v3230 = vcvt.f32.s32 %v3229
        %v3231 = vcvt.f32.s32 %v3225
        %v3232 = vshll.u32 %v3231, 16
        %v3233 = vadd.s32 %v3232, %v3230
        %v3234 = vand.u32 %v3166, 65535
        %v3235 = vshra.s32 %v3166, 16
        %v3236 = vcvt.s32.f32 %v3234
        %v3237 = vcvt.s32.f32 %v3235
        %3238 = vmin.xlane.f32.xlu0 %v3237
        %v3239 = vpop.xlane.xlu0 %3238
        %vm3240 = vcmp.eq.f32.partialorder %v3237, %v3239
        %v3241 = vsel %vm3240, %v3236, inf
        %3242 = vmin.xlane.f32.xlu0 %v3241
        %v3243 = vpop.xlane.xlu0 %3242
        %v3244 = vcvt.f32.s32 %v3243
        %v3245 = vcvt.f32.s32 %v3239
        %v3246 = vshll.u32 %v3245, 16
        %v3247 = vadd.s32 %v3246, %v3244
        %v3248 = vand.u32 %v3167, 65535
        %v3249 = vshra.s32 %v3167, 16
        %v3250 = vcvt.s32.f32 %v3248
        %v3251 = vcvt.s32.f32 %v3249
        %3252 = vmin.xlane.f32.xlu0 %v3251
        %v3253 = vpop.xlane.xlu0 %3252
        %vm3254 = vcmp.eq.f32.partialorder %v3251, %v3253
        %v3255 = vsel %vm3254, %v3250, inf
        %3256 = vmin.xlane.f32.xlu0 %v3255
        %v3257 = vpop.xlane.xlu0 %3256
        %v3258 = vcvt.f32.s32 %v3257
        %v3259 = vcvt.f32.s32 %v3253
        %v3260 = vshll.u32 %v3259, 16
        %v3261 = vadd.s32 %v3260, %v3258
        %v3262 = vand.u32 %v3168, 65535
        %v3263 = vshra.s32 %v3168, 16
        %v3264 = vcvt.s32.f32 %v3262
        %v3265 = vcvt.s32.f32 %v3263
        %3266 = vmin.xlane.f32.xlu0 %v3265
        %v3267 = vpop.xlane.xlu0 %3266
        %vm3268 = vcmp.eq.f32.partialorder %v3265, %v3267
        %v3269 = vsel %vm3268, %v3264, inf
        %3270 = vmin.xlane.f32.xlu0 %v3269
        %v3271 = vpop.xlane.xlu0 %3270
        %v3272 = vcvt.f32.s32 %v3271
        %v3273 = vcvt.f32.s32 %v3267
        %v3274 = vshll.u32 %v3273, 16
        %v3275 = vadd.s32 %v3274, %v3272
        %v3276 = vand.u32 %v3169, 65535
        %v3277 = vshra.s32 %v3169, 16
        %v3278 = vcvt.s32.f32 %v3276
        %v3279 = vcvt.s32.f32 %v3277
        %3280 = vmin.xlane.f32.xlu0 %v3279
        %v3281 = vpop.xlane.xlu0 %3280
        %vm3282 = vcmp.eq.f32.partialorder %v3279, %v3281
        %v3283 = vsel %vm3282, %v3278, inf
        %3284 = vmin.xlane.f32.xlu0 %v3283
        %v3285 = vpop.xlane.xlu0 %3284
        %v3286 = vcvt.f32.s32 %v3285
        %v3287 = vcvt.f32.s32 %v3281
        %v3288 = vshll.u32 %v3287, 16
        %v3289 = vadd.s32 %v3288, %v3286
        %v3290 = vand.u32 %v3170, 65535
        %v3291 = vshra.s32 %v3170, 16
        %v3292 = vcvt.s32.f32 %v3290
        %v3293 = vcvt.s32.f32 %v3291
        %3294 = vmin.xlane.f32.xlu0 %v3293
        %v3295 = vpop.xlane.xlu0 %3294
        %vm3296 = vcmp.eq.f32.partialorder %v3293, %v3295
        %v3297 = vsel %vm3296, %v3292, inf
        %3298 = vmin.xlane.f32.xlu0 %v3297
        %v3299 = vpop.xlane.xlu0 %3298
        %v3300 = vcvt.f32.s32 %v3299
        %v3301 = vcvt.f32.s32 %v3295
        %v3302 = vshll.u32 %v3301, 16
        %v3303 = vadd.s32 %v3302, %v3300
        %v3304 = vand.u32 %v3171, 65535
        %v3305 = vshra.s32 %v3171, 16
        %v3306 = vcvt.s32.f32 %v3304
        %v3307 = vcvt.s32.f32 %v3305
        %3308 = vmin.xlane.f32.xlu0 %v3307
        %v3309 = vpop.xlane.xlu0 %3308
        %vm3310 = vcmp.eq.f32.partialorder %v3307, %v3309
        %v3311 = vsel %vm3310, %v3306, inf
        %3312 = vmin.xlane.f32.xlu0 %v3311
        %v3313 = vpop.xlane.xlu0 %3312
        %v3314 = vcvt.f32.s32 %v3313
        %v3315 = vcvt.f32.s32 %v3309
        %v3316 = vshll.u32 %v3315, 16
        %v3317 = vadd.s32 %v3316, %v3314
        %v3318 = vand.u32 %v3172, 65535
        %v3319 = vshra.s32 %v3172, 16
        %v3320 = vcvt.s32.f32 %v3318
        %v3321 = vcvt.s32.f32 %v3319
        %3322 = vmin.xlane.f32.xlu0 %v3321
        %v3323 = vpop.xlane.xlu0 %3322
        %vm3324 = vcmp.eq.f32.partialorder %v3321, %v3323
        %v3325 = vsel %vm3324, %v3320, inf
        %3326 = vmin.xlane.f32.xlu0 %v3325
        %v3327 = vpop.xlane.xlu0 %3326
        %v3328 = vcvt.f32.s32 %v3327
        %v3329 = vcvt.f32.s32 %v3323
        %v3330 = vshll.u32 %v3329, 16
        %v3331 = vadd.s32 %v3330, %v3328
        %v3332 = vand.u32 %v3173, 65535
        %v3333 = vshra.s32 %v3173, 16
        %v3334 = vcvt.s32.f32 %v3332
        %v3335 = vcvt.s32.f32 %v3333
        %3336 = vmin.xlane.f32.xlu0 %v3335
        %v3337 = vpop.xlane.xlu0 %3336
        %vm3338 = vcmp.eq.f32.partialorder %v3335, %v3337
        %v3339 = vsel %vm3338, %v3334, inf
        %3340 = vmin.xlane.f32.xlu0 %v3339
        %v3341 = vpop.xlane.xlu0 %3340
        %v3342 = vcvt.f32.s32 %v3341
        %v3343 = vcvt.f32.s32 %v3337
        %v3344 = vshll.u32 %v3343, 16
        %v3345 = vadd.s32 %v3344, %v3342
        %v3346 = vand.u32 %v3174, 65535
        %v3347 = vshra.s32 %v3174, 16
        %v3348 = vcvt.s32.f32 %v3346
        %v3349 = vcvt.s32.f32 %v3347
        %3350 = vmin.xlane.f32.xlu0 %v3349
        %v3351 = vpop.xlane.xlu0 %3350
        %vm3352 = vcmp.eq.f32.partialorder %v3349, %v3351
        %v3353 = vsel %vm3352, %v3348, inf
        %3354 = vmin.xlane.f32.xlu0 %v3353
        %v3355 = vpop.xlane.xlu0 %3354
        %v3356 = vcvt.f32.s32 %v3355
        %v3357 = vcvt.f32.s32 %v3351
        %v3358 = vshll.u32 %v3357, 16
        %v3359 = vadd.s32 %v3358, %v3356
        %v3360 = vand.u32 %v3175, 65535
        %v3361 = vshra.s32 %v3175, 16
        %v3362 = vcvt.s32.f32 %v3360
        %v3363 = vcvt.s32.f32 %v3361
        %3364 = vmin.xlane.f32.xlu0 %v3363
        %v3365 = vpop.xlane.xlu0 %3364
        %vm3366 = vcmp.eq.f32.partialorder %v3363, %v3365
        %v3367 = vsel %vm3366, %v3362, inf
        %3368 = vmin.xlane.f32.xlu0 %v3367
        %v3369 = vpop.xlane.xlu0 %3368
        %v3370 = vcvt.f32.s32 %v3369
        %v3371 = vcvt.f32.s32 %v3365
        %v3372 = vshll.u32 %v3371, 16
        %v3373 = vadd.s32 %v3372, %v3370
        %v3374 = vand.u32 %v3176, 65535
        %v3375 = vshra.s32 %v3176, 16
        %v3376 = vcvt.s32.f32 %v3374
        %v3377 = vcvt.s32.f32 %v3375
        %3378 = vmin.xlane.f32.xlu0 %v3377
        %v3379 = vpop.xlane.xlu0 %3378
        %vm3380 = vcmp.eq.f32.partialorder %v3377, %v3379
        %v3381 = vsel %vm3380, %v3376, inf
        %3382 = vmin.xlane.f32.xlu0 %v3381
        %v3383 = vpop.xlane.xlu0 %3382
        %v3384 = vcvt.f32.s32 %v3383
        %v3385 = vcvt.f32.s32 %v3379
        %v3386 = vshll.u32 %v3385, 16
        %v3387 = vadd.s32 %v3386, %v3384
        %v3388 = vand.u32 %v3177, 65535
        %v3389 = vshra.s32 %v3177, 16
        %v3390 = vcvt.s32.f32 %v3388
        %v3391 = vcvt.s32.f32 %v3389
        %3392 = vmin.xlane.f32.xlu0 %v3391
        %v3393 = vpop.xlane.xlu0 %3392
        %vm3394 = vcmp.eq.f32.partialorder %v3391, %v3393
        %v3395 = vsel %vm3394, %v3390, inf
        %3396 = vmin.xlane.f32.xlu0 %v3395
        %v3397 = vpop.xlane.xlu0 %3396
        %v3398 = vcvt.f32.s32 %v3397
        %v3399 = vcvt.f32.s32 %v3393
        %v3400 = vshll.u32 %v3399, 16
        %v3401 = vadd.s32 %v3400, %v3398
        %vm3402 = vcmp.eq.s32.totalorder %v533, %v3191
        %vm3403 = vcmp.eq.s32.totalorder %v533, %v3205
        %vm3404 = vcmp.eq.s32.totalorder %v533, %v3219
        %vm3405 = vcmp.eq.s32.totalorder %v533, %v3233
        %vm3406 = vcmp.eq.s32.totalorder %v533, %v3247
        %vm3407 = vcmp.eq.s32.totalorder %v533, %v3261
        %vm3408 = vcmp.eq.s32.totalorder %v533, %v3275
        %vm3409 = vcmp.eq.s32.totalorder %v533, %v3289
        %vm3410 = vcmp.eq.s32.totalorder %v533, %v3303
        %vm3411 = vcmp.eq.s32.totalorder %v533, %v3317
        %vm3412 = vcmp.eq.s32.totalorder %v533, %v3331
        %vm3413 = vcmp.eq.s32.totalorder %v533, %v3345
        %vm3414 = vcmp.eq.s32.totalorder %v533, %v3359
        %vm3415 = vcmp.eq.s32.totalorder %v533, %v3373
        %vm3416 = vcmp.eq.s32.totalorder %v533, %v3387
        %vm3417 = vcmp.eq.s32.totalorder %v533, %v3401
        %v3418 = vsel %vm3402, 1, 0
        %v3419 = vsel %vm3403, 1, 0
        %v3420 = vsel %vm3404, 1, 0
        %v3421 = vsel %vm3405, 1, 0
        %v3422 = vsel %vm3406, 1, 0
        %v3423 = vsel %vm3407, 1, 0
        %v3424 = vsel %vm3408, 1, 0
        %v3425 = vsel %vm3409, 1, 0
        %v3426 = vsel %vm3410, 1, 0
        %v3427 = vsel %vm3411, 1, 0
        %v3428 = vsel %vm3412, 1, 0
        %v3429 = vsel %vm3413, 1, 0
        %v3430 = vsel %vm3414, 1, 0
        %v3431 = vsel %vm3415, 1, 0
        %v3432 = vsel %vm3416, 1, 0
        %v3433 = vsel %vm3417, 1, 0
        %v3434 = vcvt.s32.f32 %v3418
        %v3435 = vcvt.s32.f32 %v3419
        %v3436 = vcvt.s32.f32 %v3420
        %v3437 = vcvt.s32.f32 %v3421
        %v3438 = vcvt.s32.f32 %v3422
        %v3439 = vcvt.s32.f32 %v3423
        %v3440 = vcvt.s32.f32 %v3424
        %v3441 = vcvt.s32.f32 %v3425
        %v3442 = vcvt.s32.f32 %v3426
        %v3443 = vcvt.s32.f32 %v3427
        %v3444 = vcvt.s32.f32 %v3428
        %v3445 = vcvt.s32.f32 %v3429
        %v3446 = vcvt.s32.f32 %v3430
        %v3447 = vcvt.s32.f32 %v3431
        %v3448 = vcvt.s32.f32 %v3432
        %v3449 = vcvt.s32.f32 %v3433
        %3450 = vst [vmem:[#allocation2] sm:$0xff] %v3434
        %3451 = vst [vmem:[#allocation2 + $0x8] sm:$0xff] %v3435
        %3452 = vst [vmem:[#allocation2 + $0x10] sm:$0xff] %v3436
        %3453 = vst [vmem:[#allocation2 + $0x18] sm:$0xff] %v3437
        %3454 = vst [vmem:[#allocation2 + $0x20] sm:$0xff] %v3438
        %3455 = vst [vmem:[#allocation2 + $0x28] sm:$0xff] %v3439
        %3456 = vst [vmem:[#allocation2 + $0x30] sm:$0xff] %v3440
        %3457 = vst [vmem:[#allocation2 + $0x38] sm:$0xff] %v3441
        %3458 = vst [vmem:[#allocation2 + $0x40] sm:$0xff] %v3442
        %3459 = vst [vmem:[#allocation2 + $0x48] sm:$0xff] %v3443
        %3460 = vst [vmem:[#allocation2 + $0x50] sm:$0xff] %v3444
        %3461 = vst [vmem:[#allocation2 + $0x58] sm:$0xff] %v3445
        %3462 = vst [vmem:[#allocation2 + $0x60] sm:$0xff] %v3446
        %3463 = vst [vmem:[#allocation2 + $0x68] sm:$0xff] %v3447
        %3464 = vst [vmem:[#allocation2 + $0x70] sm:$0xff] %v3448
        %3465 = vst [vmem:[#allocation2 + $0x78] sm:$0xff] %v3449
        %v3466 = vsel %vm3402, 1e+30, %v2920
        %v3467 = vsel %vm3403, 1e+30, %v2921
        %v3468 = vsel %vm3404, 1e+30, %v2922
        %v3469 = vsel %vm3405, 1e+30, %v2923
        %v3470 = vsel %vm3406, 1e+30, %v2924
        %v3471 = vsel %vm3407, 1e+30, %v2925
        %v3472 = vsel %vm3408, 1e+30, %v2926
        %v3473 = vsel %vm3409, 1e+30, %v2927
        %v3474 = vsel %vm3410, 1e+30, %v2928
        %v3475 = vsel %vm3411, 1e+30, %v2929
        %v3476 = vsel %vm3412, 1e+30, %v2930
        %v3477 = vsel %vm3413, 1e+30, %v2931
        %v3478 = vsel %vm3414, 1e+30, %v2932
        %v3479 = vsel %vm3415, 1e+30, %v2933
        %v3480 = vsel %vm3416, 1e+30, %v2934
        %v3481 = vsel %vm3417, 1e+30, %v2935
        %3482 = vmin.xlane.f32.xlu0 %v3466
        %v3483 = vpop.xlane.xlu0 %3482
        %3484 = vmin.xlane.f32.xlu0 %v3467
        %v3485 = vpop.xlane.xlu0 %3484
        %3486 = vmin.xlane.f32.xlu0 %v3468
        %v3487 = vpop.xlane.xlu0 %3486
        %3488 = vmin.xlane.f32.xlu0 %v3469
        %v3489 = vpop.xlane.xlu0 %3488
        %3490 = vmin.xlane.f32.xlu0 %v3470
        %v3491 = vpop.xlane.xlu0 %3490
        %3492 = vmin.xlane.f32.xlu0 %v3471
        %v3493 = vpop.xlane.xlu0 %3492
        %3494 = vmin.xlane.f32.xlu0 %v3472
        %v3495 = vpop.xlane.xlu0 %3494
        %3496 = vmin.xlane.f32.xlu0 %v3473
        %v3497 = vpop.xlane.xlu0 %3496
        %3498 = vmin.xlane.f32.xlu0 %v3474
        %v3499 = vpop.xlane.xlu0 %3498
        %3500 = vmin.xlane.f32.xlu0 %v3475
        %v3501 = vpop.xlane.xlu0 %3500
        %3502 = vmin.xlane.f32.xlu0 %v3476
        %v3503 = vpop.xlane.xlu0 %3502
        %3504 = vmin.xlane.f32.xlu0 %v3477
        %v3505 = vpop.xlane.xlu0 %3504
        %3506 = vmin.xlane.f32.xlu0 %v3478
        %v3507 = vpop.xlane.xlu0 %3506
        %3508 = vmin.xlane.f32.xlu0 %v3479
        %v3509 = vpop.xlane.xlu0 %3508
        %3510 = vmin.xlane.f32.xlu0 %v3480
        %v3511 = vpop.xlane.xlu0 %3510
        %3512 = vmin.xlane.f32.xlu0 %v3481
        %v3513 = vpop.xlane.xlu0 %3512
        %vm3514 = vcmp.le.f32.partialorder %v3466, %v3483
        %vm3515 = vcmp.le.f32.partialorder %v3467, %v3485
        %vm3516 = vcmp.le.f32.partialorder %v3468, %v3487
        %vm3517 = vcmp.le.f32.partialorder %v3469, %v3489
        %vm3518 = vcmp.le.f32.partialorder %v3470, %v3491
        %vm3519 = vcmp.le.f32.partialorder %v3471, %v3493
        %vm3520 = vcmp.le.f32.partialorder %v3472, %v3495
        %vm3521 = vcmp.le.f32.partialorder %v3473, %v3497
        %vm3522 = vcmp.le.f32.partialorder %v3474, %v3499
        %vm3523 = vcmp.le.f32.partialorder %v3475, %v3501
        %vm3524 = vcmp.le.f32.partialorder %v3476, %v3503
        %vm3525 = vcmp.le.f32.partialorder %v3477, %v3505
        %vm3526 = vcmp.le.f32.partialorder %v3478, %v3507
        %vm3527 = vcmp.le.f32.partialorder %v3479, %v3509
        %vm3528 = vcmp.le.f32.partialorder %v3480, %v3511
        %vm3529 = vcmp.le.f32.partialorder %v3481, %v3513
        %v3530 = vsel %vm3514, %v533, 128
        %v3531 = vsel %vm3515, %v533, 128
        %v3532 = vsel %vm3516, %v533, 128
        %v3533 = vsel %vm3517, %v533, 128
        %v3534 = vsel %vm3518, %v533, 128
        %v3535 = vsel %vm3519, %v533, 128
        %v3536 = vsel %vm3520, %v533, 128
        %v3537 = vsel %vm3521, %v533, 128
        %v3538 = vsel %vm3522, %v533, 128
        %v3539 = vsel %vm3523, %v533, 128
        %v3540 = vsel %vm3524, %v533, 128
        %v3541 = vsel %vm3525, %v533, 128
        %v3542 = vsel %vm3526, %v533, 128
        %v3543 = vsel %vm3527, %v533, 128
        %v3544 = vsel %vm3528, %v533, 128
        %v3545 = vsel %vm3529, %v533, 128
        %v3546 = vand.u32 %v3530, 65535
        %v3547 = vshra.s32 %v3530, 16
        %v3548 = vcvt.s32.f32 %v3546
        %v3549 = vcvt.s32.f32 %v3547
        %3550 = vmin.xlane.f32.xlu0 %v3549
        %v3551 = vpop.xlane.xlu0 %3550
        %vm3552 = vcmp.eq.f32.partialorder %v3549, %v3551
        %v3553 = vsel %vm3552, %v3548, inf
        %3554 = vmin.xlane.f32.xlu0 %v3553
        %v3555 = vpop.xlane.xlu0 %3554
        %v3556 = vcvt.f32.s32 %v3555
        %v3557 = vcvt.f32.s32 %v3551
        %v3558 = vshll.u32 %v3557, 16
        %v3559 = vadd.s32 %v3558, %v3556
        %v3560 = vand.u32 %v3531, 65535
        %v3561 = vshra.s32 %v3531, 16
        %v3562 = vcvt.s32.f32 %v3560
        %v3563 = vcvt.s32.f32 %v3561
        %3564 = vmin.xlane.f32.xlu0 %v3563
        %v3565 = vpop.xlane.xlu0 %3564
        %vm3566 = vcmp.eq.f32.partialorder %v3563, %v3565
        %v3567 = vsel %vm3566, %v3562, inf
        %3568 = vmin.xlane.f32.xlu0 %v3567
        %v3569 = vpop.xlane.xlu0 %3568
        %v3570 = vcvt.f32.s32 %v3569
        %v3571 = vcvt.f32.s32 %v3565
        %v3572 = vshll.u32 %v3571, 16
        %v3573 = vadd.s32 %v3572, %v3570
        %v3574 = vand.u32 %v3532, 65535
        %v3575 = vshra.s32 %v3532, 16
        %v3576 = vcvt.s32.f32 %v3574
        %v3577 = vcvt.s32.f32 %v3575
        %3578 = vmin.xlane.f32.xlu0 %v3577
        %v3579 = vpop.xlane.xlu0 %3578
        %vm3580 = vcmp.eq.f32.partialorder %v3577, %v3579
        %v3581 = vsel %vm3580, %v3576, inf
        %3582 = vmin.xlane.f32.xlu0 %v3581
        %v3583 = vpop.xlane.xlu0 %3582
        %v3584 = vcvt.f32.s32 %v3583
        %v3585 = vcvt.f32.s32 %v3579
        %v3586 = vshll.u32 %v3585, 16
        %v3587 = vadd.s32 %v3586, %v3584
        %v3588 = vand.u32 %v3533, 65535
        %v3589 = vshra.s32 %v3533, 16
        %v3590 = vcvt.s32.f32 %v3588
        %v3591 = vcvt.s32.f32 %v3589
        %3592 = vmin.xlane.f32.xlu0 %v3591
        %v3593 = vpop.xlane.xlu0 %3592
        %vm3594 = vcmp.eq.f32.partialorder %v3591, %v3593
        %v3595 = vsel %vm3594, %v3590, inf
        %3596 = vmin.xlane.f32.xlu0 %v3595
        %v3597 = vpop.xlane.xlu0 %3596
        %v3598 = vcvt.f32.s32 %v3597
        %v3599 = vcvt.f32.s32 %v3593
        %v3600 = vshll.u32 %v3599, 16
        %v3601 = vadd.s32 %v3600, %v3598
        %v3602 = vand.u32 %v3534, 65535
        %v3603 = vshra.s32 %v3534, 16
        %v3604 = vcvt.s32.f32 %v3602
        %v3605 = vcvt.s32.f32 %v3603
        %3606 = vmin.xlane.f32.xlu0 %v3605
        %v3607 = vpop.xlane.xlu0 %3606
        %vm3608 = vcmp.eq.f32.partialorder %v3605, %v3607
        %v3609 = vsel %vm3608, %v3604, inf
        %3610 = vmin.xlane.f32.xlu0 %v3609
        %v3611 = vpop.xlane.xlu0 %3610
        %v3612 = vcvt.f32.s32 %v3611
        %v3613 = vcvt.f32.s32 %v3607
        %v3614 = vshll.u32 %v3613, 16
        %v3615 = vadd.s32 %v3614, %v3612
        %v3616 = vand.u32 %v3535, 65535
        %v3617 = vshra.s32 %v3535, 16
        %v3618 = vcvt.s32.f32 %v3616
        %v3619 = vcvt.s32.f32 %v3617
        %3620 = vmin.xlane.f32.xlu0 %v3619
        %v3621 = vpop.xlane.xlu0 %3620
        %vm3622 = vcmp.eq.f32.partialorder %v3619, %v3621
        %v3623 = vsel %vm3622, %v3618, inf
        %3624 = vmin.xlane.f32.xlu0 %v3623
        %v3625 = vpop.xlane.xlu0 %3624
        %v3626 = vcvt.f32.s32 %v3625
        %v3627 = vcvt.f32.s32 %v3621
        %v3628 = vshll.u32 %v3627, 16
        %v3629 = vadd.s32 %v3628, %v3626
        %v3630 = vand.u32 %v3536, 65535
        %v3631 = vshra.s32 %v3536, 16
        %v3632 = vcvt.s32.f32 %v3630
        %v3633 = vcvt.s32.f32 %v3631
        %3634 = vmin.xlane.f32.xlu0 %v3633
        %v3635 = vpop.xlane.xlu0 %3634
        %vm3636 = vcmp.eq.f32.partialorder %v3633, %v3635
        %v3637 = vsel %vm3636, %v3632, inf
        %3638 = vmin.xlane.f32.xlu0 %v3637
        %v3639 = vpop.xlane.xlu0 %3638
        %v3640 = vcvt.f32.s32 %v3639
        %v3641 = vcvt.f32.s32 %v3635
        %v3642 = vshll.u32 %v3641, 16
        %v3643 = vadd.s32 %v3642, %v3640
        %v3644 = vand.u32 %v3537, 65535
        %v3645 = vshra.s32 %v3537, 16
        %v3646 = vcvt.s32.f32 %v3644
        %v3647 = vcvt.s32.f32 %v3645
        %3648 = vmin.xlane.f32.xlu0 %v3647
        %v3649 = vpop.xlane.xlu0 %3648
        %vm3650 = vcmp.eq.f32.partialorder %v3647, %v3649
        %v3651 = vsel %vm3650, %v3646, inf
        %3652 = vmin.xlane.f32.xlu0 %v3651
        %v3653 = vpop.xlane.xlu0 %3652
        %v3654 = vcvt.f32.s32 %v3653
        %v3655 = vcvt.f32.s32 %v3649
        %v3656 = vshll.u32 %v3655, 16
        %v3657 = vadd.s32 %v3656, %v3654
        %v3658 = vand.u32 %v3538, 65535
        %v3659 = vshra.s32 %v3538, 16
        %v3660 = vcvt.s32.f32 %v3658
        %v3661 = vcvt.s32.f32 %v3659
        %3662 = vmin.xlane.f32.xlu0 %v3661
        %v3663 = vpop.xlane.xlu0 %3662
        %vm3664 = vcmp.eq.f32.partialorder %v3661, %v3663
        %v3665 = vsel %vm3664, %v3660, inf
        %3666 = vmin.xlane.f32.xlu0 %v3665
        %v3667 = vpop.xlane.xlu0 %3666
        %v3668 = vcvt.f32.s32 %v3667
        %v3669 = vcvt.f32.s32 %v3663
        %v3670 = vshll.u32 %v3669, 16
        %v3671 = vadd.s32 %v3670, %v3668
        %v3672 = vand.u32 %v3539, 65535
        %v3673 = vshra.s32 %v3539, 16
        %v3674 = vcvt.s32.f32 %v3672
        %v3675 = vcvt.s32.f32 %v3673
        %3676 = vmin.xlane.f32.xlu0 %v3675
        %v3677 = vpop.xlane.xlu0 %3676
        %vm3678 = vcmp.eq.f32.partialorder %v3675, %v3677
        %v3679 = vsel %vm3678, %v3674, inf
        %3680 = vmin.xlane.f32.xlu0 %v3679
        %v3681 = vpop.xlane.xlu0 %3680
        %v3682 = vcvt.f32.s32 %v3681
        %v3683 = vcvt.f32.s32 %v3677
        %v3684 = vshll.u32 %v3683, 16
        %v3685 = vadd.s32 %v3684, %v3682
        %v3686 = vand.u32 %v3540, 65535
        %v3687 = vshra.s32 %v3540, 16
        %v3688 = vcvt.s32.f32 %v3686
        %v3689 = vcvt.s32.f32 %v3687
        %3690 = vmin.xlane.f32.xlu0 %v3689
        %v3691 = vpop.xlane.xlu0 %3690
        %vm3692 = vcmp.eq.f32.partialorder %v3689, %v3691
        %v3693 = vsel %vm3692, %v3688, inf
        %3694 = vmin.xlane.f32.xlu0 %v3693
        %v3695 = vpop.xlane.xlu0 %3694
        %v3696 = vcvt.f32.s32 %v3695
        %v3697 = vcvt.f32.s32 %v3691
        %v3698 = vshll.u32 %v3697, 16
        %v3699 = vadd.s32 %v3698, %v3696
        %v3700 = vand.u32 %v3541, 65535
        %v3701 = vshra.s32 %v3541, 16
        %v3702 = vcvt.s32.f32 %v3700
        %v3703 = vcvt.s32.f32 %v3701
        %3704 = vmin.xlane.f32.xlu0 %v3703
        %v3705 = vpop.xlane.xlu0 %3704
        %vm3706 = vcmp.eq.f32.partialorder %v3703, %v3705
        %v3707 = vsel %vm3706, %v3702, inf
        %3708 = vmin.xlane.f32.xlu0 %v3707
        %v3709 = vpop.xlane.xlu0 %3708
        %v3710 = vcvt.f32.s32 %v3709
        %v3711 = vcvt.f32.s32 %v3705
        %v3712 = vshll.u32 %v3711, 16
        %v3713 = vadd.s32 %v3712, %v3710
        %v3714 = vand.u32 %v3542, 65535
        %v3715 = vshra.s32 %v3542, 16
        %v3716 = vcvt.s32.f32 %v3714
        %v3717 = vcvt.s32.f32 %v3715
        %3718 = vmin.xlane.f32.xlu0 %v3717
        %v3719 = vpop.xlane.xlu0 %3718
        %vm3720 = vcmp.eq.f32.partialorder %v3717, %v3719
        %v3721 = vsel %vm3720, %v3716, inf
        %3722 = vmin.xlane.f32.xlu0 %v3721
        %v3723 = vpop.xlane.xlu0 %3722
        %v3724 = vcvt.f32.s32 %v3723
        %v3725 = vcvt.f32.s32 %v3719
        %v3726 = vshll.u32 %v3725, 16
        %v3727 = vadd.s32 %v3726, %v3724
        %v3728 = vand.u32 %v3543, 65535
        %v3729 = vshra.s32 %v3543, 16
        %v3730 = vcvt.s32.f32 %v3728
        %v3731 = vcvt.s32.f32 %v3729
        %3732 = vmin.xlane.f32.xlu0 %v3731
        %v3733 = vpop.xlane.xlu0 %3732
        %vm3734 = vcmp.eq.f32.partialorder %v3731, %v3733
        %v3735 = vsel %vm3734, %v3730, inf
        %3736 = vmin.xlane.f32.xlu0 %v3735
        %v3737 = vpop.xlane.xlu0 %3736
        %v3738 = vcvt.f32.s32 %v3737
        %v3739 = vcvt.f32.s32 %v3733
        %v3740 = vshll.u32 %v3739, 16
        %v3741 = vadd.s32 %v3740, %v3738
        %v3742 = vand.u32 %v3544, 65535
        %v3743 = vshra.s32 %v3544, 16
        %v3744 = vcvt.s32.f32 %v3742
        %v3745 = vcvt.s32.f32 %v3743
        %3746 = vmin.xlane.f32.xlu0 %v3745
        %v3747 = vpop.xlane.xlu0 %3746
        %vm3748 = vcmp.eq.f32.partialorder %v3745, %v3747
        %v3749 = vsel %vm3748, %v3744, inf
        %3750 = vmin.xlane.f32.xlu0 %v3749
        %v3751 = vpop.xlane.xlu0 %3750
        %v3752 = vcvt.f32.s32 %v3751
        %v3753 = vcvt.f32.s32 %v3747
        %v3754 = vshll.u32 %v3753, 16
        %v3755 = vadd.s32 %v3754, %v3752
        %v3756 = vand.u32 %v3545, 65535
        %v3757 = vshra.s32 %v3545, 16
        %v3758 = vcvt.s32.f32 %v3756
        %v3759 = vcvt.s32.f32 %v3757
        %3760 = vmin.xlane.f32.xlu0 %v3759
        %v3761 = vpop.xlane.xlu0 %3760
        %vm3762 = vcmp.eq.f32.partialorder %v3759, %v3761
        %v3763 = vsel %vm3762, %v3758, inf
        %3764 = vmin.xlane.f32.xlu0 %v3763
        %v3765 = vpop.xlane.xlu0 %3764
        %v3766 = vcvt.f32.s32 %v3765
        %v3767 = vcvt.f32.s32 %v3761
        %v3768 = vshll.u32 %v3767, 16
        %v3769 = vadd.s32 %v3768, %v3766
        %vm3770 = vcmp.eq.s32.totalorder %v533, %v3559
        %vm3771 = vcmp.eq.s32.totalorder %v533, %v3573
        %vm3772 = vcmp.eq.s32.totalorder %v533, %v3587
        %vm3773 = vcmp.eq.s32.totalorder %v533, %v3601
        %vm3774 = vcmp.eq.s32.totalorder %v533, %v3615
        %vm3775 = vcmp.eq.s32.totalorder %v533, %v3629
        %vm3776 = vcmp.eq.s32.totalorder %v533, %v3643
        %vm3777 = vcmp.eq.s32.totalorder %v533, %v3657
        %vm3778 = vcmp.eq.s32.totalorder %v533, %v3671
        %vm3779 = vcmp.eq.s32.totalorder %v533, %v3685
        %vm3780 = vcmp.eq.s32.totalorder %v533, %v3699
        %vm3781 = vcmp.eq.s32.totalorder %v533, %v3713
        %vm3782 = vcmp.eq.s32.totalorder %v533, %v3727
        %vm3783 = vcmp.eq.s32.totalorder %v533, %v3741
        %vm3784 = vcmp.eq.s32.totalorder %v533, %v3755
        %vm3785 = vcmp.eq.s32.totalorder %v533, %v3769
        %v3786 = vsel %vm3770, 1, 0
        %v3787 = vsel %vm3771, 1, 0
        %v3788 = vsel %vm3772, 1, 0
        %v3789 = vsel %vm3773, 1, 0
        %v3790 = vsel %vm3774, 1, 0
        %v3791 = vsel %vm3775, 1, 0
        %v3792 = vsel %vm3776, 1, 0
        %v3793 = vsel %vm3777, 1, 0
        %v3794 = vsel %vm3778, 1, 0
        %v3795 = vsel %vm3779, 1, 0
        %v3796 = vsel %vm3780, 1, 0
        %v3797 = vsel %vm3781, 1, 0
        %v3798 = vsel %vm3782, 1, 0
        %v3799 = vsel %vm3783, 1, 0
        %v3800 = vsel %vm3784, 1, 0
        %v3801 = vsel %vm3785, 1, 0
        %v3802 = vcvt.s32.f32 %v3786
        %v3803 = vcvt.s32.f32 %v3787
        %v3804 = vcvt.s32.f32 %v3788
        %v3805 = vcvt.s32.f32 %v3789
        %v3806 = vcvt.s32.f32 %v3790
        %v3807 = vcvt.s32.f32 %v3791
        %v3808 = vcvt.s32.f32 %v3792
        %v3809 = vcvt.s32.f32 %v3793
        %v3810 = vcvt.s32.f32 %v3794
        %v3811 = vcvt.s32.f32 %v3795
        %v3812 = vcvt.s32.f32 %v3796
        %v3813 = vcvt.s32.f32 %v3797
        %v3814 = vcvt.s32.f32 %v3798
        %v3815 = vcvt.s32.f32 %v3799
        %v3816 = vcvt.s32.f32 %v3800
        %v3817 = vcvt.s32.f32 %v3801
        %3818 = vst [vmem:[#allocation2 + $0x80] sm:$0xff] %v3802
        %3819 = vst [vmem:[#allocation2 + $0x88] sm:$0xff] %v3803
        %3820 = vst [vmem:[#allocation2 + $0x90] sm:$0xff] %v3804
        %3821 = vst [vmem:[#allocation2 + $0x98] sm:$0xff] %v3805
        %3822 = vst [vmem:[#allocation2 + $0xa0] sm:$0xff] %v3806
        %3823 = vst [vmem:[#allocation2 + $0xa8] sm:$0xff] %v3807
        %3824 = vst [vmem:[#allocation2 + $0xb0] sm:$0xff] %v3808
        %3825 = vst [vmem:[#allocation2 + $0xb8] sm:$0xff] %v3809
        %3826 = vst [vmem:[#allocation2 + $0xc0] sm:$0xff] %v3810
        %3827 = vst [vmem:[#allocation2 + $0xc8] sm:$0xff] %v3811
        %3828 = vst [vmem:[#allocation2 + $0xd0] sm:$0xff] %v3812
        %3829 = vst [vmem:[#allocation2 + $0xd8] sm:$0xff] %v3813
        %3830 = vst [vmem:[#allocation2 + $0xe0] sm:$0xff] %v3814
        %3831 = vst [vmem:[#allocation2 + $0xe8] sm:$0xff] %v3815
        %3832 = vst [vmem:[#allocation2 + $0xf0] sm:$0xff] %v3816
        %3833 = vst [vmem:[#allocation2 + $0xf8] sm:$0xff] %v3817
        %v3834 = vsel %vm3770, 1e+30, %v3466
        %v3835 = vsel %vm3771, 1e+30, %v3467
        %v3836 = vsel %vm3772, 1e+30, %v3468
        %v3837 = vsel %vm3773, 1e+30, %v3469
        %v3838 = vsel %vm3774, 1e+30, %v3470
        %v3839 = vsel %vm3775, 1e+30, %v3471
        %v3840 = vsel %vm3776, 1e+30, %v3472
        %v3841 = vsel %vm3777, 1e+30, %v3473
        %v3842 = vsel %vm3778, 1e+30, %v3474
        %v3843 = vsel %vm3779, 1e+30, %v3475
        %v3844 = vsel %vm3780, 1e+30, %v3476
        %v3845 = vsel %vm3781, 1e+30, %v3477
        %v3846 = vsel %vm3782, 1e+30, %v3478
        %v3847 = vsel %vm3783, 1e+30, %v3479
        %v3848 = vsel %vm3784, 1e+30, %v3480
        %v3849 = vsel %vm3785, 1e+30, %v3481
        %3850 = vmin.xlane.f32.xlu0 %v3834
        %v3851 = vpop.xlane.xlu0 %3850
        %3852 = vmin.xlane.f32.xlu0 %v3835
        %v3853 = vpop.xlane.xlu0 %3852
        %3854 = vmin.xlane.f32.xlu0 %v3836
        %v3855 = vpop.xlane.xlu0 %3854
        %3856 = vmin.xlane.f32.xlu0 %v3837
        %v3857 = vpop.xlane.xlu0 %3856
        %3858 = vmin.xlane.f32.xlu0 %v3838
        %v3859 = vpop.xlane.xlu0 %3858
        %3860 = vmin.xlane.f32.xlu0 %v3839
        %v3861 = vpop.xlane.xlu0 %3860
        %3862 = vmin.xlane.f32.xlu0 %v3840
        %v3863 = vpop.xlane.xlu0 %3862
        %3864 = vmin.xlane.f32.xlu0 %v3841
        %v3865 = vpop.xlane.xlu0 %3864
        %3866 = vmin.xlane.f32.xlu0 %v3842
        %v3867 = vpop.xlane.xlu0 %3866
        %3868 = vmin.xlane.f32.xlu0 %v3843
        %v3869 = vpop.xlane.xlu0 %3868
        %3870 = vmin.xlane.f32.xlu0 %v3844
        %v3871 = vpop.xlane.xlu0 %3870
        %3872 = vmin.xlane.f32.xlu0 %v3845
        %v3873 = vpop.xlane.xlu0 %3872
        %3874 = vmin.xlane.f32.xlu0 %v3846
        %v3875 = vpop.xlane.xlu0 %3874
        %3876 = vmin.xlane.f32.xlu0 %v3847
        %v3877 = vpop.xlane.xlu0 %3876
        %3878 = vmin.xlane.f32.xlu0 %v3848
        %v3879 = vpop.xlane.xlu0 %3878
        %3880 = vmin.xlane.f32.xlu0 %v3849
        %v3881 = vpop.xlane.xlu0 %3880
        %vm3882 = vcmp.le.f32.partialorder %v3834, %v3851
        %vm3883 = vcmp.le.f32.partialorder %v3835, %v3853
        %vm3884 = vcmp.le.f32.partialorder %v3836, %v3855
        %vm3885 = vcmp.le.f32.partialorder %v3837, %v3857
        %vm3886 = vcmp.le.f32.partialorder %v3838, %v3859
        %vm3887 = vcmp.le.f32.partialorder %v3839, %v3861
        %vm3888 = vcmp.le.f32.partialorder %v3840, %v3863
        %vm3889 = vcmp.le.f32.partialorder %v3841, %v3865
        %vm3890 = vcmp.le.f32.partialorder %v3842, %v3867
        %vm3891 = vcmp.le.f32.partialorder %v3843, %v3869
        %vm3892 = vcmp.le.f32.partialorder %v3844, %v3871
        %vm3893 = vcmp.le.f32.partialorder %v3845, %v3873
        %vm3894 = vcmp.le.f32.partialorder %v3846, %v3875
        %vm3895 = vcmp.le.f32.partialorder %v3847, %v3877
        %vm3896 = vcmp.le.f32.partialorder %v3848, %v3879
        %vm3897 = vcmp.le.f32.partialorder %v3849, %v3881
        %v3898 = vsel %vm3882, %v533, 128
        %v3899 = vsel %vm3883, %v533, 128
        %v3900 = vsel %vm3884, %v533, 128
        %v3901 = vsel %vm3885, %v533, 128
        %v3902 = vsel %vm3886, %v533, 128
        %v3903 = vsel %vm3887, %v533, 128
        %v3904 = vsel %vm3888, %v533, 128
        %v3905 = vsel %vm3889, %v533, 128
        %v3906 = vsel %vm3890, %v533, 128
        %v3907 = vsel %vm3891, %v533, 128
        %v3908 = vsel %vm3892, %v533, 128
        %v3909 = vsel %vm3893, %v533, 128
        %v3910 = vsel %vm3894, %v533, 128
        %v3911 = vsel %vm3895, %v533, 128
        %v3912 = vsel %vm3896, %v533, 128
        %v3913 = vsel %vm3897, %v533, 128
        %v3914 = vand.u32 %v3898, 65535
        %v3915 = vshra.s32 %v3898, 16
        %v3916 = vcvt.s32.f32 %v3914
        %v3917 = vcvt.s32.f32 %v3915
        %3918 = vmin.xlane.f32.xlu0 %v3917
        %v3919 = vpop.xlane.xlu0 %3918
        %vm3920 = vcmp.eq.f32.partialorder %v3917, %v3919
        %v3921 = vsel %vm3920, %v3916, inf
        %3922 = vmin.xlane.f32.xlu0 %v3921
        %v3923 = vpop.xlane.xlu0 %3922
        %v3924 = vcvt.f32.s32 %v3923
        %v3925 = vcvt.f32.s32 %v3919
        %v3926 = vshll.u32 %v3925, 16
        %v3927 = vadd.s32 %v3926, %v3924
        %v3928 = vand.u32 %v3899, 65535
        %v3929 = vshra.s32 %v3899, 16
        %v3930 = vcvt.s32.f32 %v3928
        %v3931 = vcvt.s32.f32 %v3929
        %3932 = vmin.xlane.f32.xlu0 %v3931
        %v3933 = vpop.xlane.xlu0 %3932
        %vm3934 = vcmp.eq.f32.partialorder %v3931, %v3933
        %v3935 = vsel %vm3934, %v3930, inf
        %3936 = vmin.xlane.f32.xlu0 %v3935
        %v3937 = vpop.xlane.xlu0 %3936
        %v3938 = vcvt.f32.s32 %v3937
        %v3939 = vcvt.f32.s32 %v3933
        %v3940 = vshll.u32 %v3939, 16
        %v3941 = vadd.s32 %v3940, %v3938
        %v3942 = vand.u32 %v3900, 65535
        %v3943 = vshra.s32 %v3900, 16
        %v3944 = vcvt.s32.f32 %v3942
        %v3945 = vcvt.s32.f32 %v3943
        %3946 = vmin.xlane.f32.xlu0 %v3945
        %v3947 = vpop.xlane.xlu0 %3946
        %vm3948 = vcmp.eq.f32.partialorder %v3945, %v3947
        %v3949 = vsel %vm3948, %v3944, inf
        %3950 = vmin.xlane.f32.xlu0 %v3949
        %v3951 = vpop.xlane.xlu0 %3950
        %v3952 = vcvt.f32.s32 %v3951
        %v3953 = vcvt.f32.s32 %v3947
        %v3954 = vshll.u32 %v3953, 16
        %v3955 = vadd.s32 %v3954, %v3952
        %v3956 = vand.u32 %v3901, 65535
        %v3957 = vshra.s32 %v3901, 16
        %v3958 = vcvt.s32.f32 %v3956
        %v3959 = vcvt.s32.f32 %v3957
        %3960 = vmin.xlane.f32.xlu0 %v3959
        %v3961 = vpop.xlane.xlu0 %3960
        %vm3962 = vcmp.eq.f32.partialorder %v3959, %v3961
        %v3963 = vsel %vm3962, %v3958, inf
        %3964 = vmin.xlane.f32.xlu0 %v3963
        %v3965 = vpop.xlane.xlu0 %3964
        %v3966 = vcvt.f32.s32 %v3965
        %v3967 = vcvt.f32.s32 %v3961
        %v3968 = vshll.u32 %v3967, 16
        %v3969 = vadd.s32 %v3968, %v3966
        %v3970 = vand.u32 %v3902, 65535
        %v3971 = vshra.s32 %v3902, 16
        %v3972 = vcvt.s32.f32 %v3970
        %v3973 = vcvt.s32.f32 %v3971
        %3974 = vmin.xlane.f32.xlu0 %v3973
        %v3975 = vpop.xlane.xlu0 %3974
        %vm3976 = vcmp.eq.f32.partialorder %v3973, %v3975
        %v3977 = vsel %vm3976, %v3972, inf
        %3978 = vmin.xlane.f32.xlu0 %v3977
        %v3979 = vpop.xlane.xlu0 %3978
        %v3980 = vcvt.f32.s32 %v3979
        %v3981 = vcvt.f32.s32 %v3975
        %v3982 = vshll.u32 %v3981, 16
        %v3983 = vadd.s32 %v3982, %v3980
        %v3984 = vand.u32 %v3903, 65535
        %v3985 = vshra.s32 %v3903, 16
        %v3986 = vcvt.s32.f32 %v3984
        %v3987 = vcvt.s32.f32 %v3985
        %3988 = vmin.xlane.f32.xlu0 %v3987
        %v3989 = vpop.xlane.xlu0 %3988
        %vm3990 = vcmp.eq.f32.partialorder %v3987, %v3989
        %v3991 = vsel %vm3990, %v3986, inf
        %3992 = vmin.xlane.f32.xlu0 %v3991
        %v3993 = vpop.xlane.xlu0 %3992
        %v3994 = vcvt.f32.s32 %v3993
        %v3995 = vcvt.f32.s32 %v3989
        %v3996 = vshll.u32 %v3995, 16
        %v3997 = vadd.s32 %v3996, %v3994
        %v3998 = vand.u32 %v3904, 65535
        %v3999 = vshra.s32 %v3904, 16
        %v4000 = vcvt.s32.f32 %v3998
        %v4001 = vcvt.s32.f32 %v3999
        %4002 = vmin.xlane.f32.xlu0 %v4001
        %v4003 = vpop.xlane.xlu0 %4002
        %vm4004 = vcmp.eq.f32.partialorder %v4001, %v4003
        %v4005 = vsel %vm4004, %v4000, inf
        %4006 = vmin.xlane.f32.xlu0 %v4005
        %v4007 = vpop.xlane.xlu0 %4006
        %v4008 = vcvt.f32.s32 %v4007
        %v4009 = vcvt.f32.s32 %v4003
        %v4010 = vshll.u32 %v4009, 16
        %v4011 = vadd.s32 %v4010, %v4008
        %v4012 = vand.u32 %v3905, 65535
        %v4013 = vshra.s32 %v3905, 16
        %v4014 = vcvt.s32.f32 %v4012
        %v4015 = vcvt.s32.f32 %v4013
        %4016 = vmin.xlane.f32.xlu0 %v4015
        %v4017 = vpop.xlane.xlu0 %4016
        %vm4018 = vcmp.eq.f32.partialorder %v4015, %v4017
        %v4019 = vsel %vm4018, %v4014, inf
        %4020 = vmin.xlane.f32.xlu0 %v4019
        %v4021 = vpop.xlane.xlu0 %4020
        %v4022 = vcvt.f32.s32 %v4021
        %v4023 = vcvt.f32.s32 %v4017
        %v4024 = vshll.u32 %v4023, 16
        %v4025 = vadd.s32 %v4024, %v4022
        %v4026 = vand.u32 %v3906, 65535
        %v4027 = vshra.s32 %v3906, 16
        %v4028 = vcvt.s32.f32 %v4026
        %v4029 = vcvt.s32.f32 %v4027
        %4030 = vmin.xlane.f32.xlu0 %v4029
        %v4031 = vpop.xlane.xlu0 %4030
        %vm4032 = vcmp.eq.f32.partialorder %v4029, %v4031
        %v4033 = vsel %vm4032, %v4028, inf
        %4034 = vmin.xlane.f32.xlu0 %v4033
        %v4035 = vpop.xlane.xlu0 %4034
        %v4036 = vcvt.f32.s32 %v4035
        %v4037 = vcvt.f32.s32 %v4031
        %v4038 = vshll.u32 %v4037, 16
        %v4039 = vadd.s32 %v4038, %v4036
        %v4040 = vand.u32 %v3907, 65535
        %v4041 = vshra.s32 %v3907, 16
        %v4042 = vcvt.s32.f32 %v4040
        %v4043 = vcvt.s32.f32 %v4041
        %4044 = vmin.xlane.f32.xlu0 %v4043
        %v4045 = vpop.xlane.xlu0 %4044
        %vm4046 = vcmp.eq.f32.partialorder %v4043, %v4045
        %v4047 = vsel %vm4046, %v4042, inf
        %4048 = vmin.xlane.f32.xlu0 %v4047
        %v4049 = vpop.xlane.xlu0 %4048
        %v4050 = vcvt.f32.s32 %v4049
        %v4051 = vcvt.f32.s32 %v4045
        %v4052 = vshll.u32 %v4051, 16
        %v4053 = vadd.s32 %v4052, %v4050
        %v4054 = vand.u32 %v3908, 65535
        %v4055 = vshra.s32 %v3908, 16
        %v4056 = vcvt.s32.f32 %v4054
        %v4057 = vcvt.s32.f32 %v4055
        %4058 = vmin.xlane.f32.xlu0 %v4057
        %v4059 = vpop.xlane.xlu0 %4058
        %vm4060 = vcmp.eq.f32.partialorder %v4057, %v4059
        %v4061 = vsel %vm4060, %v4056, inf
        %4062 = vmin.xlane.f32.xlu0 %v4061
        %v4063 = vpop.xlane.xlu0 %4062
        %v4064 = vcvt.f32.s32 %v4063
        %v4065 = vcvt.f32.s32 %v4059
        %v4066 = vshll.u32 %v4065, 16
        %v4067 = vadd.s32 %v4066, %v4064
        %v4068 = vand.u32 %v3909, 65535
        %v4069 = vshra.s32 %v3909, 16
        %v4070 = vcvt.s32.f32 %v4068
        %v4071 = vcvt.s32.f32 %v4069
        %4072 = vmin.xlane.f32.xlu0 %v4071
        %v4073 = vpop.xlane.xlu0 %4072
        %vm4074 = vcmp.eq.f32.partialorder %v4071, %v4073
        %v4075 = vsel %vm4074, %v4070, inf
        %4076 = vmin.xlane.f32.xlu0 %v4075
        %v4077 = vpop.xlane.xlu0 %4076
        %v4078 = vcvt.f32.s32 %v4077
        %v4079 = vcvt.f32.s32 %v4073
        %v4080 = vshll.u32 %v4079, 16
        %v4081 = vadd.s32 %v4080, %v4078
        %v4082 = vand.u32 %v3910, 65535
        %v4083 = vshra.s32 %v3910, 16
        %v4084 = vcvt.s32.f32 %v4082
        %v4085 = vcvt.s32.f32 %v4083
        %4086 = vmin.xlane.f32.xlu0 %v4085
        %v4087 = vpop.xlane.xlu0 %4086
        %vm4088 = vcmp.eq.f32.partialorder %v4085, %v4087
        %v4089 = vsel %vm4088, %v4084, inf
        %4090 = vmin.xlane.f32.xlu0 %v4089
        %v4091 = vpop.xlane.xlu0 %4090
        %v4092 = vcvt.f32.s32 %v4091
        %v4093 = vcvt.f32.s32 %v4087
        %v4094 = vshll.u32 %v4093, 16
        %v4095 = vadd.s32 %v4094, %v4092
        %v4096 = vand.u32 %v3911, 65535
        %v4097 = vshra.s32 %v3911, 16
        %v4098 = vcvt.s32.f32 %v4096
        %v4099 = vcvt.s32.f32 %v4097
        %4100 = vmin.xlane.f32.xlu0 %v4099
        %v4101 = vpop.xlane.xlu0 %4100
        %vm4102 = vcmp.eq.f32.partialorder %v4099, %v4101
        %v4103 = vsel %vm4102, %v4098, inf
        %4104 = vmin.xlane.f32.xlu0 %v4103
        %v4105 = vpop.xlane.xlu0 %4104
        %v4106 = vcvt.f32.s32 %v4105
        %v4107 = vcvt.f32.s32 %v4101
        %v4108 = vshll.u32 %v4107, 16
        %v4109 = vadd.s32 %v4108, %v4106
        %v4110 = vand.u32 %v3912, 65535
        %v4111 = vshra.s32 %v3912, 16
        %v4112 = vcvt.s32.f32 %v4110
        %v4113 = vcvt.s32.f32 %v4111
        %4114 = vmin.xlane.f32.xlu0 %v4113
        %v4115 = vpop.xlane.xlu0 %4114
        %vm4116 = vcmp.eq.f32.partialorder %v4113, %v4115
        %v4117 = vsel %vm4116, %v4112, inf
        %4118 = vmin.xlane.f32.xlu0 %v4117
        %v4119 = vpop.xlane.xlu0 %4118
        %v4120 = vcvt.f32.s32 %v4119
        %v4121 = vcvt.f32.s32 %v4115
        %v4122 = vshll.u32 %v4121, 16
        %v4123 = vadd.s32 %v4122, %v4120
        %v4124 = vand.u32 %v3913, 65535
        %v4125 = vshra.s32 %v3913, 16
        %v4126 = vcvt.s32.f32 %v4124
        %v4127 = vcvt.s32.f32 %v4125
        %4128 = vmin.xlane.f32.xlu0 %v4127
        %v4129 = vpop.xlane.xlu0 %4128
        %vm4130 = vcmp.eq.f32.partialorder %v4127, %v4129
        %v4131 = vsel %vm4130, %v4126, inf
        %4132 = vmin.xlane.f32.xlu0 %v4131
        %v4133 = vpop.xlane.xlu0 %4132
        %v4134 = vcvt.f32.s32 %v4133
        %v4135 = vcvt.f32.s32 %v4129
        %v4136 = vshll.u32 %v4135, 16
        %v4137 = vadd.s32 %v4136, %v4134
        %vm4138 = vcmp.eq.s32.totalorder %v533, %v3927
        %vm4139 = vcmp.eq.s32.totalorder %v533, %v3941
        %vm4140 = vcmp.eq.s32.totalorder %v533, %v3955
        %vm4141 = vcmp.eq.s32.totalorder %v533, %v3969
        %vm4142 = vcmp.eq.s32.totalorder %v533, %v3983
        %vm4143 = vcmp.eq.s32.totalorder %v533, %v3997
        %vm4144 = vcmp.eq.s32.totalorder %v533, %v4011
        %vm4145 = vcmp.eq.s32.totalorder %v533, %v4025
        %vm4146 = vcmp.eq.s32.totalorder %v533, %v4039
        %vm4147 = vcmp.eq.s32.totalorder %v533, %v4053
        %vm4148 = vcmp.eq.s32.totalorder %v533, %v4067
        %vm4149 = vcmp.eq.s32.totalorder %v533, %v4081
        %vm4150 = vcmp.eq.s32.totalorder %v533, %v4095
        %vm4151 = vcmp.eq.s32.totalorder %v533, %v4109
        %vm4152 = vcmp.eq.s32.totalorder %v533, %v4123
        %vm4153 = vcmp.eq.s32.totalorder %v533, %v4137
        %v4154 = vsel %vm4138, 1, 0
        %v4155 = vsel %vm4139, 1, 0
        %v4156 = vsel %vm4140, 1, 0
        %v4157 = vsel %vm4141, 1, 0
        %v4158 = vsel %vm4142, 1, 0
        %v4159 = vsel %vm4143, 1, 0
        %v4160 = vsel %vm4144, 1, 0
        %v4161 = vsel %vm4145, 1, 0
        %v4162 = vsel %vm4146, 1, 0
        %v4163 = vsel %vm4147, 1, 0
        %v4164 = vsel %vm4148, 1, 0
        %v4165 = vsel %vm4149, 1, 0
        %v4166 = vsel %vm4150, 1, 0
        %v4167 = vsel %vm4151, 1, 0
        %v4168 = vsel %vm4152, 1, 0
        %v4169 = vsel %vm4153, 1, 0
        %v4170 = vcvt.s32.f32 %v4154
        %v4171 = vcvt.s32.f32 %v4155
        %v4172 = vcvt.s32.f32 %v4156
        %v4173 = vcvt.s32.f32 %v4157
        %v4174 = vcvt.s32.f32 %v4158
        %v4175 = vcvt.s32.f32 %v4159
        %v4176 = vcvt.s32.f32 %v4160
        %v4177 = vcvt.s32.f32 %v4161
        %v4178 = vcvt.s32.f32 %v4162
        %v4179 = vcvt.s32.f32 %v4163
        %v4180 = vcvt.s32.f32 %v4164
        %v4181 = vcvt.s32.f32 %v4165
        %v4182 = vcvt.s32.f32 %v4166
        %v4183 = vcvt.s32.f32 %v4167
        %v4184 = vcvt.s32.f32 %v4168
        %v4185 = vcvt.s32.f32 %v4169
        %4186 = vst [vmem:[#allocation2 + $0x100] sm:$0xff] %v4170
        %4187 = vst [vmem:[#allocation2 + $0x108] sm:$0xff] %v4171
        %4188 = vst [vmem:[#allocation2 + $0x110] sm:$0xff] %v4172
        %4189 = vst [vmem:[#allocation2 + $0x118] sm:$0xff] %v4173
        %4190 = vst [vmem:[#allocation2 + $0x120] sm:$0xff] %v4174
        %4191 = vst [vmem:[#allocation2 + $0x128] sm:$0xff] %v4175
        %4192 = vst [vmem:[#allocation2 + $0x130] sm:$0xff] %v4176
        %4193 = vst [vmem:[#allocation2 + $0x138] sm:$0xff] %v4177
        %4194 = vst [vmem:[#allocation2 + $0x140] sm:$0xff] %v4178
        %4195 = vst [vmem:[#allocation2 + $0x148] sm:$0xff] %v4179
        %4196 = vst [vmem:[#allocation2 + $0x150] sm:$0xff] %v4180
        %4197 = vst [vmem:[#allocation2 + $0x158] sm:$0xff] %v4181
        %4198 = vst [vmem:[#allocation2 + $0x160] sm:$0xff] %v4182
        %4199 = vst [vmem:[#allocation2 + $0x168] sm:$0xff] %v4183
        %4200 = vst [vmem:[#allocation2 + $0x170] sm:$0xff] %v4184
        %4201 = vst [vmem:[#allocation2 + $0x178] sm:$0xff] %v4185
        %v4202 = vsel %vm4138, 1e+30, %v3834
        %v4203 = vsel %vm4139, 1e+30, %v3835
        %v4204 = vsel %vm4140, 1e+30, %v3836
        %v4205 = vsel %vm4141, 1e+30, %v3837
        %v4206 = vsel %vm4142, 1e+30, %v3838
        %v4207 = vsel %vm4143, 1e+30, %v3839
        %v4208 = vsel %vm4144, 1e+30, %v3840
        %v4209 = vsel %vm4145, 1e+30, %v3841
        %v4210 = vsel %vm4146, 1e+30, %v3842
        %v4211 = vsel %vm4147, 1e+30, %v3843
        %v4212 = vsel %vm4148, 1e+30, %v3844
        %v4213 = vsel %vm4149, 1e+30, %v3845
        %v4214 = vsel %vm4150, 1e+30, %v3846
        %v4215 = vsel %vm4151, 1e+30, %v3847
        %v4216 = vsel %vm4152, 1e+30, %v3848
        %v4217 = vsel %vm4153, 1e+30, %v3849
        %4218 = vmin.xlane.f32.xlu0 %v4202
        %v4219 = vpop.xlane.xlu0 %4218
        %4220 = vmin.xlane.f32.xlu0 %v4203
        %v4221 = vpop.xlane.xlu0 %4220
        %4222 = vmin.xlane.f32.xlu0 %v4204
        %v4223 = vpop.xlane.xlu0 %4222
        %4224 = vmin.xlane.f32.xlu0 %v4205
        %v4225 = vpop.xlane.xlu0 %4224
        %4226 = vmin.xlane.f32.xlu0 %v4206
        %v4227 = vpop.xlane.xlu0 %4226
        %4228 = vmin.xlane.f32.xlu0 %v4207
        %v4229 = vpop.xlane.xlu0 %4228
        %4230 = vmin.xlane.f32.xlu0 %v4208
        %v4231 = vpop.xlane.xlu0 %4230
        %4232 = vmin.xlane.f32.xlu0 %v4209
        %v4233 = vpop.xlane.xlu0 %4232
        %4234 = vmin.xlane.f32.xlu0 %v4210
        %v4235 = vpop.xlane.xlu0 %4234
        %4236 = vmin.xlane.f32.xlu0 %v4211
        %v4237 = vpop.xlane.xlu0 %4236
        %4238 = vmin.xlane.f32.xlu0 %v4212
        %v4239 = vpop.xlane.xlu0 %4238
        %4240 = vmin.xlane.f32.xlu0 %v4213
        %v4241 = vpop.xlane.xlu0 %4240
        %4242 = vmin.xlane.f32.xlu0 %v4214
        %v4243 = vpop.xlane.xlu0 %4242
        %4244 = vmin.xlane.f32.xlu0 %v4215
        %v4245 = vpop.xlane.xlu0 %4244
        %4246 = vmin.xlane.f32.xlu0 %v4216
        %v4247 = vpop.xlane.xlu0 %4246
        %4248 = vmin.xlane.f32.xlu0 %v4217
        %v4249 = vpop.xlane.xlu0 %4248
        %vm4250 = vcmp.le.f32.partialorder %v4202, %v4219
        %vm4251 = vcmp.le.f32.partialorder %v4203, %v4221
        %vm4252 = vcmp.le.f32.partialorder %v4204, %v4223
        %vm4253 = vcmp.le.f32.partialorder %v4205, %v4225
        %vm4254 = vcmp.le.f32.partialorder %v4206, %v4227
        %vm4255 = vcmp.le.f32.partialorder %v4207, %v4229
        %vm4256 = vcmp.le.f32.partialorder %v4208, %v4231
        %vm4257 = vcmp.le.f32.partialorder %v4209, %v4233
        %vm4258 = vcmp.le.f32.partialorder %v4210, %v4235
        %vm4259 = vcmp.le.f32.partialorder %v4211, %v4237
        %vm4260 = vcmp.le.f32.partialorder %v4212, %v4239
        %vm4261 = vcmp.le.f32.partialorder %v4213, %v4241
        %vm4262 = vcmp.le.f32.partialorder %v4214, %v4243
        %vm4263 = vcmp.le.f32.partialorder %v4215, %v4245
        %vm4264 = vcmp.le.f32.partialorder %v4216, %v4247
        %vm4265 = vcmp.le.f32.partialorder %v4217, %v4249
        %v4266 = vsel %vm4250, %v533, 128
        %v4267 = vsel %vm4251, %v533, 128
        %v4268 = vsel %vm4252, %v533, 128
        %v4269 = vsel %vm4253, %v533, 128
        %v4270 = vsel %vm4254, %v533, 128
        %v4271 = vsel %vm4255, %v533, 128
        %v4272 = vsel %vm4256, %v533, 128
        %v4273 = vsel %vm4257, %v533, 128
        %v4274 = vsel %vm4258, %v533, 128
        %v4275 = vsel %vm4259, %v533, 128
        %v4276 = vsel %vm4260, %v533, 128
        %v4277 = vsel %vm4261, %v533, 128
        %v4278 = vsel %vm4262, %v533, 128
        %v4279 = vsel %vm4263, %v533, 128
        %v4280 = vsel %vm4264, %v533, 128
        %v4281 = vsel %vm4265, %v533, 128
        %v4282 = vand.u32 %v4266, 65535
        %v4283 = vshra.s32 %v4266, 16
        %v4284 = vcvt.s32.f32 %v4282
        %v4285 = vcvt.s32.f32 %v4283
        %4286 = vmin.xlane.f32.xlu0 %v4285
        %v4287 = vpop.xlane.xlu0 %4286
        %vm4288 = vcmp.eq.f32.partialorder %v4285, %v4287
        %v4289 = vsel %vm4288, %v4284, inf
        %4290 = vmin.xlane.f32.xlu0 %v4289
        %v4291 = vpop.xlane.xlu0 %4290
        %v4292 = vcvt.f32.s32 %v4291
        %v4293 = vcvt.f32.s32 %v4287
        %v4294 = vshll.u32 %v4293, 16
        %v4295 = vadd.s32 %v4294, %v4292
        %v4296 = vand.u32 %v4267, 65535
        %v4297 = vshra.s32 %v4267, 16
        %v4298 = vcvt.s32.f32 %v4296
        %v4299 = vcvt.s32.f32 %v4297
        %4300 = vmin.xlane.f32.xlu0 %v4299
        %v4301 = vpop.xlane.xlu0 %4300
        %vm4302 = vcmp.eq.f32.partialorder %v4299, %v4301
        %v4303 = vsel %vm4302, %v4298, inf
        %4304 = vmin.xlane.f32.xlu0 %v4303
        %v4305 = vpop.xlane.xlu0 %4304
        %v4306 = vcvt.f32.s32 %v4305
        %v4307 = vcvt.f32.s32 %v4301
        %v4308 = vshll.u32 %v4307, 16
        %v4309 = vadd.s32 %v4308, %v4306
        %v4310 = vand.u32 %v4268, 65535
        %v4311 = vshra.s32 %v4268, 16
        %v4312 = vcvt.s32.f32 %v4310
        %v4313 = vcvt.s32.f32 %v4311
        %4314 = vmin.xlane.f32.xlu0 %v4313
        %v4315 = vpop.xlane.xlu0 %4314
        %vm4316 = vcmp.eq.f32.partialorder %v4313, %v4315
        %v4317 = vsel %vm4316, %v4312, inf
        %4318 = vmin.xlane.f32.xlu0 %v4317
        %v4319 = vpop.xlane.xlu0 %4318
        %v4320 = vcvt.f32.s32 %v4319
        %v4321 = vcvt.f32.s32 %v4315
        %v4322 = vshll.u32 %v4321, 16
        %v4323 = vadd.s32 %v4322, %v4320
        %v4324 = vand.u32 %v4269, 65535
        %v4325 = vshra.s32 %v4269, 16
        %v4326 = vcvt.s32.f32 %v4324
        %v4327 = vcvt.s32.f32 %v4325
        %4328 = vmin.xlane.f32.xlu0 %v4327
        %v4329 = vpop.xlane.xlu0 %4328
        %vm4330 = vcmp.eq.f32.partialorder %v4327, %v4329
        %v4331 = vsel %vm4330, %v4326, inf
        %4332 = vmin.xlane.f32.xlu0 %v4331
        %v4333 = vpop.xlane.xlu0 %4332
        %v4334 = vcvt.f32.s32 %v4333
        %v4335 = vcvt.f32.s32 %v4329
        %v4336 = vshll.u32 %v4335, 16
        %v4337 = vadd.s32 %v4336, %v4334
        %v4338 = vand.u32 %v4270, 65535
        %v4339 = vshra.s32 %v4270, 16
        %v4340 = vcvt.s32.f32 %v4338
        %v4341 = vcvt.s32.f32 %v4339
        %4342 = vmin.xlane.f32.xlu0 %v4341
        %v4343 = vpop.xlane.xlu0 %4342
        %vm4344 = vcmp.eq.f32.partialorder %v4341, %v4343
        %v4345 = vsel %vm4344, %v4340, inf
        %4346 = vmin.xlane.f32.xlu0 %v4345
        %v4347 = vpop.xlane.xlu0 %4346
        %v4348 = vcvt.f32.s32 %v4347
        %v4349 = vcvt.f32.s32 %v4343
        %v4350 = vshll.u32 %v4349, 16
        %v4351 = vadd.s32 %v4350, %v4348
        %v4352 = vand.u32 %v4271, 65535
        %v4353 = vshra.s32 %v4271, 16
        %v4354 = vcvt.s32.f32 %v4352
        %v4355 = vcvt.s32.f32 %v4353
        %4356 = vmin.xlane.f32.xlu0 %v4355
        %v4357 = vpop.xlane.xlu0 %4356
        %vm4358 = vcmp.eq.f32.partialorder %v4355, %v4357
        %v4359 = vsel %vm4358, %v4354, inf
        %4360 = vmin.xlane.f32.xlu0 %v4359
        %v4361 = vpop.xlane.xlu0 %4360
        %v4362 = vcvt.f32.s32 %v4361
        %v4363 = vcvt.f32.s32 %v4357
        %v4364 = vshll.u32 %v4363, 16
        %v4365 = vadd.s32 %v4364, %v4362
        %v4366 = vand.u32 %v4272, 65535
        %v4367 = vshra.s32 %v4272, 16
        %v4368 = vcvt.s32.f32 %v4366
        %v4369 = vcvt.s32.f32 %v4367
        %4370 = vmin.xlane.f32.xlu0 %v4369
        %v4371 = vpop.xlane.xlu0 %4370
        %vm4372 = vcmp.eq.f32.partialorder %v4369, %v4371
        %v4373 = vsel %vm4372, %v4368, inf
        %4374 = vmin.xlane.f32.xlu0 %v4373
        %v4375 = vpop.xlane.xlu0 %4374
        %v4376 = vcvt.f32.s32 %v4375
        %v4377 = vcvt.f32.s32 %v4371
        %v4378 = vshll.u32 %v4377, 16
        %v4379 = vadd.s32 %v4378, %v4376
        %v4380 = vand.u32 %v4273, 65535
        %v4381 = vshra.s32 %v4273, 16
        %v4382 = vcvt.s32.f32 %v4380
        %v4383 = vcvt.s32.f32 %v4381
        %4384 = vmin.xlane.f32.xlu0 %v4383
        %v4385 = vpop.xlane.xlu0 %4384
        %vm4386 = vcmp.eq.f32.partialorder %v4383, %v4385
        %v4387 = vsel %vm4386, %v4382, inf
        %4388 = vmin.xlane.f32.xlu0 %v4387
        %v4389 = vpop.xlane.xlu0 %4388
        %v4390 = vcvt.f32.s32 %v4389
        %v4391 = vcvt.f32.s32 %v4385
        %v4392 = vshll.u32 %v4391, 16
        %v4393 = vadd.s32 %v4392, %v4390
        %v4394 = vand.u32 %v4274, 65535
        %v4395 = vshra.s32 %v4274, 16
        %v4396 = vcvt.s32.f32 %v4394
        %v4397 = vcvt.s32.f32 %v4395
        %4398 = vmin.xlane.f32.xlu0 %v4397
        %v4399 = vpop.xlane.xlu0 %4398
        %vm4400 = vcmp.eq.f32.partialorder %v4397, %v4399
        %v4401 = vsel %vm4400, %v4396, inf
        %4402 = vmin.xlane.f32.xlu0 %v4401
        %v4403 = vpop.xlane.xlu0 %4402
        %v4404 = vcvt.f32.s32 %v4403
        %v4405 = vcvt.f32.s32 %v4399
        %v4406 = vshll.u32 %v4405, 16
        %v4407 = vadd.s32 %v4406, %v4404
        %v4408 = vand.u32 %v4275, 65535
        %v4409 = vshra.s32 %v4275, 16
        %v4410 = vcvt.s32.f32 %v4408
        %v4411 = vcvt.s32.f32 %v4409
        %4412 = vmin.xlane.f32.xlu0 %v4411
        %v4413 = vpop.xlane.xlu0 %4412
        %vm4414 = vcmp.eq.f32.partialorder %v4411, %v4413
        %v4415 = vsel %vm4414, %v4410, inf
        %4416 = vmin.xlane.f32.xlu0 %v4415
        %v4417 = vpop.xlane.xlu0 %4416
        %v4418 = vcvt.f32.s32 %v4417
        %v4419 = vcvt.f32.s32 %v4413
        %v4420 = vshll.u32 %v4419, 16
        %v4421 = vadd.s32 %v4420, %v4418
        %v4422 = vand.u32 %v4276, 65535
        %v4423 = vshra.s32 %v4276, 16
        %v4424 = vcvt.s32.f32 %v4422
        %v4425 = vcvt.s32.f32 %v4423
        %4426 = vmin.xlane.f32.xlu0 %v4425
        %v4427 = vpop.xlane.xlu0 %4426
        %vm4428 = vcmp.eq.f32.partialorder %v4425, %v4427
        %v4429 = vsel %vm4428, %v4424, inf
        %4430 = vmin.xlane.f32.xlu0 %v4429
        %v4431 = vpop.xlane.xlu0 %4430
        %v4432 = vcvt.f32.s32 %v4431
        %v4433 = vcvt.f32.s32 %v4427
        %v4434 = vshll.u32 %v4433, 16
        %v4435 = vadd.s32 %v4434, %v4432
        %v4436 = vand.u32 %v4277, 65535
        %v4437 = vshra.s32 %v4277, 16
        %v4438 = vcvt.s32.f32 %v4436
        %v4439 = vcvt.s32.f32 %v4437
        %4440 = vmin.xlane.f32.xlu0 %v4439
        %v4441 = vpop.xlane.xlu0 %4440
        %vm4442 = vcmp.eq.f32.partialorder %v4439, %v4441
        %v4443 = vsel %vm4442, %v4438, inf
        %4444 = vmin.xlane.f32.xlu0 %v4443
        %v4445 = vpop.xlane.xlu0 %4444
        %v4446 = vcvt.f32.s32 %v4445
        %v4447 = vcvt.f32.s32 %v4441
        %v4448 = vshll.u32 %v4447, 16
        %v4449 = vadd.s32 %v4448, %v4446
        %v4450 = vand.u32 %v4278, 65535
        %v4451 = vshra.s32 %v4278, 16
        %v4452 = vcvt.s32.f32 %v4450
        %v4453 = vcvt.s32.f32 %v4451
        %4454 = vmin.xlane.f32.xlu0 %v4453
        %v4455 = vpop.xlane.xlu0 %4454
        %vm4456 = vcmp.eq.f32.partialorder %v4453, %v4455
        %v4457 = vsel %vm4456, %v4452, inf
        %4458 = vmin.xlane.f32.xlu0 %v4457
        %v4459 = vpop.xlane.xlu0 %4458
        %v4460 = vcvt.f32.s32 %v4459
        %v4461 = vcvt.f32.s32 %v4455
        %v4462 = vshll.u32 %v4461, 16
        %v4463 = vadd.s32 %v4462, %v4460
        %v4464 = vand.u32 %v4279, 65535
        %v4465 = vshra.s32 %v4279, 16
        %v4466 = vcvt.s32.f32 %v4464
        %v4467 = vcvt.s32.f32 %v4465
        %4468 = vmin.xlane.f32.xlu0 %v4467
        %v4469 = vpop.xlane.xlu0 %4468
        %vm4470 = vcmp.eq.f32.partialorder %v4467, %v4469
        %v4471 = vsel %vm4470, %v4466, inf
        %4472 = vmin.xlane.f32.xlu0 %v4471
        %v4473 = vpop.xlane.xlu0 %4472
        %v4474 = vcvt.f32.s32 %v4473
        %v4475 = vcvt.f32.s32 %v4469
        %v4476 = vshll.u32 %v4475, 16
        %v4477 = vadd.s32 %v4476, %v4474
        %v4478 = vand.u32 %v4280, 65535
        %v4479 = vshra.s32 %v4280, 16
        %v4480 = vcvt.s32.f32 %v4478
        %v4481 = vcvt.s32.f32 %v4479
        %4482 = vmin.xlane.f32.xlu0 %v4481
        %v4483 = vpop.xlane.xlu0 %4482
        %vm4484 = vcmp.eq.f32.partialorder %v4481, %v4483
        %v4485 = vsel %vm4484, %v4480, inf
        %4486 = vmin.xlane.f32.xlu0 %v4485
        %v4487 = vpop.xlane.xlu0 %4486
        %v4488 = vcvt.f32.s32 %v4487
        %v4489 = vcvt.f32.s32 %v4483
        %v4490 = vshll.u32 %v4489, 16
        %v4491 = vadd.s32 %v4490, %v4488
        %v4492 = vand.u32 %v4281, 65535
        %v4493 = vshra.s32 %v4281, 16
        %v4494 = vcvt.s32.f32 %v4492
        %v4495 = vcvt.s32.f32 %v4493
        %4496 = vmin.xlane.f32.xlu0 %v4495
        %v4497 = vpop.xlane.xlu0 %4496
        %vm4498 = vcmp.eq.f32.partialorder %v4495, %v4497
        %v4499 = vsel %vm4498, %v4494, inf
        %4500 = vmin.xlane.f32.xlu0 %v4499
        %v4501 = vpop.xlane.xlu0 %4500
        %v4502 = vcvt.f32.s32 %v4501
        %v4503 = vcvt.f32.s32 %v4497
        %v4504 = vshll.u32 %v4503, 16
        %v4505 = vadd.s32 %v4504, %v4502
        %vm4506 = vcmp.eq.s32.totalorder %v533, %v4295
        %vm4507 = vcmp.eq.s32.totalorder %v533, %v4309
        %vm4508 = vcmp.eq.s32.totalorder %v533, %v4323
        %vm4509 = vcmp.eq.s32.totalorder %v533, %v4337
        %vm4510 = vcmp.eq.s32.totalorder %v533, %v4351
        %vm4511 = vcmp.eq.s32.totalorder %v533, %v4365
        %vm4512 = vcmp.eq.s32.totalorder %v533, %v4379
        %vm4513 = vcmp.eq.s32.totalorder %v533, %v4393
        %vm4514 = vcmp.eq.s32.totalorder %v533, %v4407
        %vm4515 = vcmp.eq.s32.totalorder %v533, %v4421
        %vm4516 = vcmp.eq.s32.totalorder %v533, %v4435
        %vm4517 = vcmp.eq.s32.totalorder %v533, %v4449
        %vm4518 = vcmp.eq.s32.totalorder %v533, %v4463
        %vm4519 = vcmp.eq.s32.totalorder %v533, %v4477
        %vm4520 = vcmp.eq.s32.totalorder %v533, %v4491
        %vm4521 = vcmp.eq.s32.totalorder %v533, %v4505
        %v4522 = vsel %vm4506, 1, 0
        %v4523 = vsel %vm4507, 1, 0
        %v4524 = vsel %vm4508, 1, 0
        %v4525 = vsel %vm4509, 1, 0
        %v4526 = vsel %vm4510, 1, 0
        %v4527 = vsel %vm4511, 1, 0
        %v4528 = vsel %vm4512, 1, 0
        %v4529 = vsel %vm4513, 1, 0
        %v4530 = vsel %vm4514, 1, 0
        %v4531 = vsel %vm4515, 1, 0
        %v4532 = vsel %vm4516, 1, 0
        %v4533 = vsel %vm4517, 1, 0
        %v4534 = vsel %vm4518, 1, 0
        %v4535 = vsel %vm4519, 1, 0
        %v4536 = vsel %vm4520, 1, 0
        %v4537 = vsel %vm4521, 1, 0
        %v4538 = vcvt.s32.f32 %v4522
        %v4539 = vcvt.s32.f32 %v4523
        %v4540 = vcvt.s32.f32 %v4524
        %v4541 = vcvt.s32.f32 %v4525
        %v4542 = vcvt.s32.f32 %v4526
        %v4543 = vcvt.s32.f32 %v4527
        %v4544 = vcvt.s32.f32 %v4528
        %v4545 = vcvt.s32.f32 %v4529
        %v4546 = vcvt.s32.f32 %v4530
        %v4547 = vcvt.s32.f32 %v4531
        %v4548 = vcvt.s32.f32 %v4532
        %v4549 = vcvt.s32.f32 %v4533
        %v4550 = vcvt.s32.f32 %v4534
        %v4551 = vcvt.s32.f32 %v4535
        %v4552 = vcvt.s32.f32 %v4536
        %v4553 = vcvt.s32.f32 %v4537
        %4554 = vst [vmem:[#allocation2 + $0x180] sm:$0xff] %v4538
        %4555 = vst [vmem:[#allocation2 + $0x188] sm:$0xff] %v4539
        %4556 = vst [vmem:[#allocation2 + $0x190] sm:$0xff] %v4540
        %4557 = vst [vmem:[#allocation2 + $0x198] sm:$0xff] %v4541
        %4558 = vst [vmem:[#allocation2 + $0x1a0] sm:$0xff] %v4542
        %4559 = vst [vmem:[#allocation2 + $0x1a8] sm:$0xff] %v4543
        %4560 = vst [vmem:[#allocation2 + $0x1b0] sm:$0xff] %v4544
        %4561 = vst [vmem:[#allocation2 + $0x1b8] sm:$0xff] %v4545
        %4562 = vst [vmem:[#allocation2 + $0x1c0] sm:$0xff] %v4546
        %4563 = vst [vmem:[#allocation2 + $0x1c8] sm:$0xff] %v4547
        %4564 = vst [vmem:[#allocation2 + $0x1d0] sm:$0xff] %v4548
        %4565 = vst [vmem:[#allocation2 + $0x1d8] sm:$0xff] %v4549
        %4566 = vst [vmem:[#allocation2 + $0x1e0] sm:$0xff] %v4550
        %4567 = vst [vmem:[#allocation2 + $0x1e8] sm:$0xff] %v4551
        %4568 = vst [vmem:[#allocation2 + $0x1f0] sm:$0xff] %v4552
        %4569 = vst [vmem:[#allocation2 + $0x1f8] sm:$0xff] %v4553
        %v4570 = vld [vmem:[#allocation2] sm:$0xff]
        %v4571 = vld [vmem:[#allocation2 + $0x8] sm:$0xff]
        %v4572 = vld [vmem:[#allocation2 + $0x10] sm:$0xff]
        %v4573 = vld [vmem:[#allocation2 + $0x18] sm:$0xff]
        %v4574 = vld [vmem:[#allocation2 + $0x20] sm:$0xff]
        %v4575 = vld [vmem:[#allocation2 + $0x28] sm:$0xff]
        %v4576 = vld [vmem:[#allocation2 + $0x30] sm:$0xff]
        %v4577 = vld [vmem:[#allocation2 + $0x38] sm:$0xff]
        %v4578 = vld [vmem:[#allocation2 + $0x40] sm:$0xff]
        %v4579 = vld [vmem:[#allocation2 + $0x48] sm:$0xff]
        %v4580 = vld [vmem:[#allocation2 + $0x50] sm:$0xff]
        %v4581 = vld [vmem:[#allocation2 + $0x58] sm:$0xff]
        %v4582 = vld [vmem:[#allocation2 + $0x60] sm:$0xff]
        %v4583 = vld [vmem:[#allocation2 + $0x68] sm:$0xff]
        %v4584 = vld [vmem:[#allocation2 + $0x70] sm:$0xff]
        %v4585 = vld [vmem:[#allocation2 + $0x78] sm:$0xff]
        %v4586 = vld [vmem:[#allocation2 + $0x80] sm:$0xff]
        %v4587 = vld [vmem:[#allocation2 + $0x88] sm:$0xff]
        %v4588 = vld [vmem:[#allocation2 + $0x90] sm:$0xff]
        %v4589 = vld [vmem:[#allocation2 + $0x98] sm:$0xff]
        %v4590 = vld [vmem:[#allocation2 + $0xa0] sm:$0xff]
        %v4591 = vld [vmem:[#allocation2 + $0xa8] sm:$0xff]
        %v4592 = vld [vmem:[#allocation2 + $0xb0] sm:$0xff]
        %v4593 = vld [vmem:[#allocation2 + $0xb8] sm:$0xff]
        %v4594 = vld [vmem:[#allocation2 + $0xc0] sm:$0xff]
        %v4595 = vld [vmem:[#allocation2 + $0xc8] sm:$0xff]
        %v4596 = vld [vmem:[#allocation2 + $0xd0] sm:$0xff]
        %v4597 = vld [vmem:[#allocation2 + $0xd8] sm:$0xff]
        %v4598 = vld [vmem:[#allocation2 + $0xe0] sm:$0xff]
        %v4599 = vld [vmem:[#allocation2 + $0xe8] sm:$0xff]
        %v4600 = vld [vmem:[#allocation2 + $0xf0] sm:$0xff]
        %v4601 = vld [vmem:[#allocation2 + $0xf8] sm:$0xff]
        %v4602 = vld [vmem:[#allocation2 + $0x100] sm:$0xff]
        %v4603 = vld [vmem:[#allocation2 + $0x108] sm:$0xff]
        %v4604 = vld [vmem:[#allocation2 + $0x110] sm:$0xff]
        %v4605 = vld [vmem:[#allocation2 + $0x118] sm:$0xff]
        %v4606 = vld [vmem:[#allocation2 + $0x120] sm:$0xff]
        %v4607 = vld [vmem:[#allocation2 + $0x128] sm:$0xff]
        %v4608 = vld [vmem:[#allocation2 + $0x130] sm:$0xff]
        %v4609 = vld [vmem:[#allocation2 + $0x138] sm:$0xff]
        %v4610 = vld [vmem:[#allocation2 + $0x140] sm:$0xff]
        %v4611 = vld [vmem:[#allocation2 + $0x148] sm:$0xff]
        %v4612 = vld [vmem:[#allocation2 + $0x150] sm:$0xff]
        %v4613 = vld [vmem:[#allocation2 + $0x158] sm:$0xff]
        %v4614 = vld [vmem:[#allocation2 + $0x160] sm:$0xff]
        %v4615 = vld [vmem:[#allocation2 + $0x168] sm:$0xff]
        %v4616 = vld [vmem:[#allocation2 + $0x170] sm:$0xff]
        %v4617 = vld [vmem:[#allocation2 + $0x178] sm:$0xff]
        %v4618 = vld [vmem:[#allocation2 + $0x180] sm:$0xff]
        %v4619 = vld [vmem:[#allocation2 + $0x188] sm:$0xff]
        %v4620 = vld [vmem:[#allocation2 + $0x190] sm:$0xff]
        %v4621 = vld [vmem:[#allocation2 + $0x198] sm:$0xff]
        %v4622 = vld [vmem:[#allocation2 + $0x1a0] sm:$0xff]
        %v4623 = vld [vmem:[#allocation2 + $0x1a8] sm:$0xff]
        %v4624 = vld [vmem:[#allocation2 + $0x1b0] sm:$0xff]
        %v4625 = vld [vmem:[#allocation2 + $0x1b8] sm:$0xff]
        %v4626 = vld [vmem:[#allocation2 + $0x1c0] sm:$0xff]
        %v4627 = vld [vmem:[#allocation2 + $0x1c8] sm:$0xff]
        %v4628 = vld [vmem:[#allocation2 + $0x1d0] sm:$0xff]
        %v4629 = vld [vmem:[#allocation2 + $0x1d8] sm:$0xff]
        %v4630 = vld [vmem:[#allocation2 + $0x1e0] sm:$0xff]
        %v4631 = vld [vmem:[#allocation2 + $0x1e8] sm:$0xff]
        %v4632 = vld [vmem:[#allocation2 + $0x1f0] sm:$0xff]
        %v4633 = vld [vmem:[#allocation2 + $0x1f8] sm:$0xff]
        %4634 = vmatpush.msra.mxu0 %v3047
        %4635 = vmatpush.msra.mxu0 %v3044
        %4636 = vmatpush.msra.mxu0 %v3041
        %4637 = vmatpush.msra.mxu0 %v3038
        %4638 = vmatpush.msra.mxu0 %v3035
        %4639 = vmatpush.msra.mxu0 %v3032
        %4640 = vmatpush.msra.mxu0 %v3029
        %4641 = vmatpush.msra.mxu0 %v3026
        %4642 = vmatpush.msra.mxu0 %v3023
        %4643 = vmatpush.msra.mxu0 %v3020
        %4644 = vmatpush.msra.mxu0 %v3017
        %4645 = vmatpush.msra.mxu0 %v3014
        %4646 = vmatpush.msra.mxu0 %v3011
        %4647 = vmatpush.msra.mxu0 %v3008
        %4648 = vmatpush.msra.mxu0 %v3005
        %4649 = vmatpush.msra.mxu0 %v3002
        %4650 = vmatmul.f32.gmra.mxu0 %v4570
        %v4651 = vpop.f32.mrf.mxu0
        %v4652 = vadd.f32 0.0, %v4651
        %4653 = vmatmul.f32.gmra.mxu0 %v4571
        %v4654 = vpop.f32.mrf.mxu0
        %v4655 = vadd.f32 0.0, %v4654
        %4656 = vmatmul.f32.gmra.mxu0 %v4572
        %v4657 = vpop.f32.mrf.mxu0
        %v4658 = vadd.f32 0.0, %v4657
        %4659 = vmatmul.f32.gmra.mxu0 %v4573
        %v4660 = vpop.f32.mrf.mxu0
        %v4661 = vadd.f32 0.0, %v4660
        %4662 = vmatmul.f32.gmra.mxu0 %v4574
        %v4663 = vpop.f32.mrf.mxu0
        %v4664 = vadd.f32 0.0, %v4663
        %4665 = vmatmul.f32.gmra.mxu0 %v4575
        %v4666 = vpop.f32.mrf.mxu0
        %v4667 = vadd.f32 0.0, %v4666
        %4668 = vmatmul.f32.gmra.mxu0 %v4576
        %v4669 = vpop.f32.mrf.mxu0
        %v4670 = vadd.f32 0.0, %v4669
        %4671 = vmatmul.f32.gmra.mxu0 %v4577
        %v4672 = vpop.f32.mrf.mxu0
        %v4673 = vadd.f32 0.0, %v4672
        %4674 = vmatmul.f32.gmra.mxu0 %v4578
        %v4675 = vpop.f32.mrf.mxu0
        %v4676 = vadd.f32 0.0, %v4675
        %4677 = vmatmul.f32.gmra.mxu0 %v4579
        %v4678 = vpop.f32.mrf.mxu0
        %v4679 = vadd.f32 0.0, %v4678
        %4680 = vmatmul.f32.gmra.mxu0 %v4580
        %v4681 = vpop.f32.mrf.mxu0
        %v4682 = vadd.f32 0.0, %v4681
        %4683 = vmatmul.f32.gmra.mxu0 %v4581
        %v4684 = vpop.f32.mrf.mxu0
        %v4685 = vadd.f32 0.0, %v4684
        %4686 = vmatmul.f32.gmra.mxu0 %v4582
        %v4687 = vpop.f32.mrf.mxu0
        %v4688 = vadd.f32 0.0, %v4687
        %4689 = vmatmul.f32.gmra.mxu0 %v4583
        %v4690 = vpop.f32.mrf.mxu0
        %v4691 = vadd.f32 0.0, %v4690
        %4692 = vmatmul.f32.gmra.mxu0 %v4584
        %v4693 = vpop.f32.mrf.mxu0
        %v4694 = vadd.f32 0.0, %v4693
        %4695 = vmatmul.f32.gmra.mxu0 %v4585
        %v4696 = vpop.f32.mrf.mxu0
        %v4697 = vadd.f32 0.0, %v4696
        %4698 = vmatmul.f32.gmra.mxu0 %v4586
        %v4699 = vpop.f32.mrf.mxu0
        %v4700 = vadd.f32 0.0, %v4699
        %4701 = vmatmul.f32.gmra.mxu0 %v4587
        %v4702 = vpop.f32.mrf.mxu0
        %v4703 = vadd.f32 0.0, %v4702
        %4704 = vmatmul.f32.gmra.mxu0 %v4588
        %v4705 = vpop.f32.mrf.mxu0
        %v4706 = vadd.f32 0.0, %v4705
        %4707 = vmatmul.f32.gmra.mxu0 %v4589
        %v4708 = vpop.f32.mrf.mxu0
        %v4709 = vadd.f32 0.0, %v4708
        %4710 = vmatmul.f32.gmra.mxu0 %v4590
        %v4711 = vpop.f32.mrf.mxu0
        %v4712 = vadd.f32 0.0, %v4711
        %4713 = vmatmul.f32.gmra.mxu0 %v4591
        %v4714 = vpop.f32.mrf.mxu0
        %v4715 = vadd.f32 0.0, %v4714
        %4716 = vmatmul.f32.gmra.mxu0 %v4592
        %v4717 = vpop.f32.mrf.mxu0
        %v4718 = vadd.f32 0.0, %v4717
        %4719 = vmatmul.f32.gmra.mxu0 %v4593
        %v4720 = vpop.f32.mrf.mxu0
        %v4721 = vadd.f32 0.0, %v4720
        %4722 = vmatmul.f32.gmra.mxu0 %v4594
        %v4723 = vpop.f32.mrf.mxu0
        %v4724 = vadd.f32 0.0, %v4723
        %4725 = vmatmul.f32.gmra.mxu0 %v4595
        %v4726 = vpop.f32.mrf.mxu0
        %v4727 = vadd.f32 0.0, %v4726
        %4728 = vmatmul.f32.gmra.mxu0 %v4596
        %v4729 = vpop.f32.mrf.mxu0
        %v4730 = vadd.f32 0.0, %v4729
        %4731 = vmatmul.f32.gmra.mxu0 %v4597
        %v4732 = vpop.f32.mrf.mxu0
        %v4733 = vadd.f32 0.0, %v4732
        %4734 = vmatmul.f32.gmra.mxu0 %v4598
        %v4735 = vpop.f32.mrf.mxu0
        %v4736 = vadd.f32 0.0, %v4735
        %4737 = vmatmul.f32.gmra.mxu0 %v4599
        %v4738 = vpop.f32.mrf.mxu0
        %v4739 = vadd.f32 0.0, %v4738
        %4740 = vmatmul.f32.gmra.mxu0 %v4600
        %v4741 = vpop.f32.mrf.mxu0
        %v4742 = vadd.f32 0.0, %v4741
        %4743 = vmatmul.f32.gmra.mxu0 %v4601
        %v4744 = vpop.f32.mrf.mxu0
        %v4745 = vadd.f32 0.0, %v4744
        %4746 = vmatmul.f32.gmra.mxu0 %v4602
        %v4747 = vpop.f32.mrf.mxu0
        %v4748 = vadd.f32 0.0, %v4747
        %4749 = vmatmul.f32.gmra.mxu0 %v4603
        %v4750 = vpop.f32.mrf.mxu0
        %v4751 = vadd.f32 0.0, %v4750
        %4752 = vmatmul.f32.gmra.mxu0 %v4604
        %v4753 = vpop.f32.mrf.mxu0
        %v4754 = vadd.f32 0.0, %v4753
        %4755 = vmatmul.f32.gmra.mxu0 %v4605
        %v4756 = vpop.f32.mrf.mxu0
        %v4757 = vadd.f32 0.0, %v4756
        %4758 = vmatmul.f32.gmra.mxu0 %v4606
        %v4759 = vpop.f32.mrf.mxu0
        %v4760 = vadd.f32 0.0, %v4759
        %4761 = vmatmul.f32.gmra.mxu0 %v4607
        %v4762 = vpop.f32.mrf.mxu0
        %v4763 = vadd.f32 0.0, %v4762
        %4764 = vmatmul.f32.gmra.mxu0 %v4608
        %v4765 = vpop.f32.mrf.mxu0
        %v4766 = vadd.f32 0.0, %v4765
        %4767 = vmatmul.f32.gmra.mxu0 %v4609
        %v4768 = vpop.f32.mrf.mxu0
        %v4769 = vadd.f32 0.0, %v4768
        %4770 = vmatmul.f32.gmra.mxu0 %v4610
        %v4771 = vpop.f32.mrf.mxu0
        %v4772 = vadd.f32 0.0, %v4771
        %4773 = vmatmul.f32.gmra.mxu0 %v4611
        %v4774 = vpop.f32.mrf.mxu0
        %v4775 = vadd.f32 0.0, %v4774
        %4776 = vmatmul.f32.gmra.mxu0 %v4612
        %v4777 = vpop.f32.mrf.mxu0
        %v4778 = vadd.f32 0.0, %v4777
        %4779 = vmatmul.f32.gmra.mxu0 %v4613
        %v4780 = vpop.f32.mrf.mxu0
        %v4781 = vadd.f32 0.0, %v4780
        %4782 = vmatmul.f32.gmra.mxu0 %v4614
        %v4783 = vpop.f32.mrf.mxu0
        %v4784 = vadd.f32 0.0, %v4783
        %4785 = vmatmul.f32.gmra.mxu0 %v4615
        %v4786 = vpop.f32.mrf.mxu0
        %v4787 = vadd.f32 0.0, %v4786
        %4788 = vmatmul.f32.gmra.mxu0 %v4616
        %v4789 = vpop.f32.mrf.mxu0
        %v4790 = vadd.f32 0.0, %v4789
        %4791 = vmatmul.f32.gmra.mxu0 %v4617
        %v4792 = vpop.f32.mrf.mxu0
        %v4793 = vadd.f32 0.0, %v4792
        %4794 = vmatmul.f32.gmra.mxu0 %v4618
        %v4795 = vpop.f32.mrf.mxu0
        %v4796 = vadd.f32 0.0, %v4795
        %4797 = vmatmul.f32.gmra.mxu0 %v4619
        %v4798 = vpop.f32.mrf.mxu0
        %v4799 = vadd.f32 0.0, %v4798
        %4800 = vmatmul.f32.gmra.mxu0 %v4620
        %v4801 = vpop.f32.mrf.mxu0
        %v4802 = vadd.f32 0.0, %v4801
        %4803 = vmatmul.f32.gmra.mxu0 %v4621
        %v4804 = vpop.f32.mrf.mxu0
        %v4805 = vadd.f32 0.0, %v4804
        %4806 = vmatmul.f32.gmra.mxu0 %v4622
        %v4807 = vpop.f32.mrf.mxu0
        %v4808 = vadd.f32 0.0, %v4807
        %4809 = vmatmul.f32.gmra.mxu0 %v4623
        %v4810 = vpop.f32.mrf.mxu0
        %v4811 = vadd.f32 0.0, %v4810
        %4812 = vmatmul.f32.gmra.mxu0 %v4624
        %v4813 = vpop.f32.mrf.mxu0
        %v4814 = vadd.f32 0.0, %v4813
        %4815 = vmatmul.f32.gmra.mxu0 %v4625
        %v4816 = vpop.f32.mrf.mxu0
        %v4817 = vadd.f32 0.0, %v4816
        %4818 = vmatmul.f32.gmra.mxu0 %v4626
        %v4819 = vpop.f32.mrf.mxu0
        %v4820 = vadd.f32 0.0, %v4819
        %4821 = vmatmul.f32.gmra.mxu0 %v4627
        %v4822 = vpop.f32.mrf.mxu0
        %v4823 = vadd.f32 0.0, %v4822
        %4824 = vmatmul.f32.gmra.mxu0 %v4628
        %v4825 = vpop.f32.mrf.mxu0
        %v4826 = vadd.f32 0.0, %v4825
        %4827 = vmatmul.f32.gmra.mxu0 %v4629
        %v4828 = vpop.f32.mrf.mxu0
        %v4829 = vadd.f32 0.0, %v4828
        %4830 = vmatmul.f32.gmra.mxu0 %v4630
        %v4831 = vpop.f32.mrf.mxu0
        %v4832 = vadd.f32 0.0, %v4831
        %4833 = vmatmul.f32.gmra.mxu0 %v4631
        %v4834 = vpop.f32.mrf.mxu0
        %v4835 = vadd.f32 0.0, %v4834
        %4836 = vmatmul.f32.gmra.mxu0 %v4632
        %v4837 = vpop.f32.mrf.mxu0
        %v4838 = vadd.f32 0.0, %v4837
        %4839 = vmatmul.f32.gmra.mxu0 %v4633
        %v4840 = vpop.f32.mrf.mxu0
        %v4841 = vadd.f32 0.0, %v4840
        %4842 = vdwg.mxu0
        %v4843 = vmax.f32 %v4652, %v4700
        %v4844 = vmax.f32 %v4655, %v4703
        %v4845 = vmax.f32 %v4658, %v4706
        %v4846 = vmax.f32 %v4661, %v4709
        %v4847 = vmax.f32 %v4664, %v4712
        %v4848 = vmax.f32 %v4667, %v4715
        %v4849 = vmax.f32 %v4670, %v4718
        %v4850 = vmax.f32 %v4673, %v4721
        %v4851 = vmax.f32 %v4676, %v4724
        %v4852 = vmax.f32 %v4679, %v4727
        %v4853 = vmax.f32 %v4682, %v4730
        %v4854 = vmax.f32 %v4685, %v4733
        %v4855 = vmax.f32 %v4688, %v4736
        %v4856 = vmax.f32 %v4691, %v4739
        %v4857 = vmax.f32 %v4694, %v4742
        %v4858 = vmax.f32 %v4697, %v4745
        %v4859 = vmax.f32 %v4843, %v4748
        %v4860 = vmax.f32 %v4844, %v4751
        %v4861 = vmax.f32 %v4845, %v4754
        %v4862 = vmax.f32 %v4846, %v4757
        %v4863 = vmax.f32 %v4847, %v4760
        %v4864 = vmax.f32 %v4848, %v4763
        %v4865 = vmax.f32 %v4849, %v4766
        %v4866 = vmax.f32 %v4850, %v4769
        %v4867 = vmax.f32 %v4851, %v4772
        %v4868 = vmax.f32 %v4852, %v4775
        %v4869 = vmax.f32 %v4853, %v4778
        %v4870 = vmax.f32 %v4854, %v4781
        %v4871 = vmax.f32 %v4855, %v4784
        %v4872 = vmax.f32 %v4856, %v4787
        %v4873 = vmax.f32 %v4857, %v4790
        %v4874 = vmax.f32 %v4858, %v4793
        %v4875 = vmax.f32 %v4859, %v4796
        %v4876 = vmax.f32 %v4860, %v4799
        %v4877 = vmax.f32 %v4861, %v4802
        %v4878 = vmax.f32 %v4862, %v4805
        %v4879 = vmax.f32 %v4863, %v4808
        %v4880 = vmax.f32 %v4864, %v4811
        %v4881 = vmax.f32 %v4865, %v4814
        %v4882 = vmax.f32 %v4866, %v4817
        %v4883 = vmax.f32 %v4867, %v4820
        %v4884 = vmax.f32 %v4868, %v4823
        %v4885 = vmax.f32 %v4869, %v4826
        %v4886 = vmax.f32 %v4870, %v4829
        %v4887 = vmax.f32 %v4871, %v4832
        %v4888 = vmax.f32 %v4872, %v4835
        %v4889 = vmax.f32 %v4873, %v4838
        %v4890 = vmax.f32 %v4874, %v4841
        %v4891 = vadd.f32 %v4875, %v3067
        %v4892 = vadd.f32 %v4876, %v3070
        %v4893 = vadd.f32 %v4877, %v3073
        %v4894 = vadd.f32 %v4878, %v3076
        %v4895 = vadd.f32 %v4879, %v3079
        %v4896 = vadd.f32 %v4880, %v3082
        %v4897 = vadd.f32 %v4881, %v3085
        %v4898 = vadd.f32 %v4882, %v3088
        %v4899 = vadd.f32 %v4883, %v3091
        %v4900 = vadd.f32 %v4884, %v3094
        %v4901 = vadd.f32 %v4885, %v3097
        %v4902 = vadd.f32 %v4886, %v3100
        %v4903 = vadd.f32 %v4887, %v3103
        %v4904 = vadd.f32 %v4888, %v3106
        %v4905 = vadd.f32 %v4889, %v3109
        %v4906 = vadd.f32 %v4890, %v3112
        %v4907 = vsel %vm2706, %v4891, -inf
        %v4908 = vsel %vm2706, %v4892, -inf
        %v4909 = vsel %vm2706, %v4893, -inf
        %v4910 = vsel %vm2706, %v4894, -inf
        %v4911 = vsel %vm2706, %v4895, -inf
        %v4912 = vmax.f32 %v4907, %v4911
        %v4913 = vsel %vm2706, %v4896, -inf
        %v4914 = vmax.f32 %v4908, %v4913
        %v4915 = vsel %vm2706, %v4897, -inf
        %v4916 = vmax.f32 %v4909, %v4915
        %v4917 = vsel %vm2706, %v4898, -inf
        %v4918 = vmax.f32 %v4910, %v4917
        %v4919 = vsel %vm2706, %v4899, -inf
        %v4920 = vmax.f32 %v4912, %v4919
        %v4921 = vsel %vm2706, %v4900, -inf
        %v4922 = vmax.f32 %v4914, %v4921
        %v4923 = vsel %vm2706, %v4901, -inf
        %v4924 = vmax.f32 %v4916, %v4923
        %v4925 = vsel %vm2706, %v4902, -inf
        %v4926 = vmax.f32 %v4918, %v4925
        %v4927 = vsel %vm2706, %v4903, -inf
        %v4928 = vmax.f32 %v4920, %v4927
        %v4929 = vsel %vm2706, %v4904, -inf
        %v4930 = vmax.f32 %v4922, %v4929
        %v4931 = vsel %vm2706, %v4905, -inf
        %v4932 = vmax.f32 %v4924, %v4931
        %v4933 = vsel %vm2706, %v4906, -inf
        %v4934 = vmax.f32 %v4926, %v4933
        %v4935 = vmax.f32 %v4928, %v4930
        %v4936 = vmax.f32 %v4932, %v4934
        %v4937 = vmax.f32 %v4935, %v4936
        %v4938 = vrot.slane %v4937, 4
        %v4939 = vmax.f32 %v4937, %v4938
        %v4940 = vrot.slane %v4939, 2
        %v4941 = vmax.f32 %v4939, %v4940
        %v4942 = vrot.slane %v4941, 1
        %v4943 = vmax.f32 %v4941, %v4942
        %v4944 = vmax.f32 %v4943, 0.0
        %s4945 = scalar_lea.vmem %s523, 384
        %v4946 = vld [vmem:[%s4945] sm:$0xff]
        %v4947 = vld [vmem:[%s4945 + $0x8] sm:$0xff]
        %v4948 = vld [vmem:[%s4945 + $0x10] sm:$0xff]
        %v4949 = vld [vmem:[%s4945 + $0x18] sm:$0xff]
        %v4950 = vld [vmem:[%s4945 + $0x20] sm:$0xff]
        %v4951 = vld [vmem:[%s4945 + $0x28] sm:$0xff]
        %v4952 = vld [vmem:[%s4945 + $0x30] sm:$0xff]
        %v4953 = vld [vmem:[%s4945 + $0x38] sm:$0xff]
        %v4954 = vld [vmem:[%s4945 + $0x40] sm:$0xff]
        %v4955 = vld [vmem:[%s4945 + $0x48] sm:$0xff]
        %v4956 = vld [vmem:[%s4945 + $0x50] sm:$0xff]
        %v4957 = vld [vmem:[%s4945 + $0x58] sm:$0xff]
        %v4958 = vld [vmem:[%s4945 + $0x60] sm:$0xff]
        %v4959 = vld [vmem:[%s4945 + $0x68] sm:$0xff]
        %v4960 = vld [vmem:[%s4945 + $0x70] sm:$0xff]
        %v4961 = vld [vmem:[%s4945 + $0x78] sm:$0xff]
        %v4962 = vld [vmem:[%s2745] sm:$0xff]
        %v4963 = vld [vmem:[%s2745 + $0x8] sm:$0xff]
        %v4964 = vld [vmem:[%s2745 + $0x10] sm:$0xff]
        %v4965 = vld [vmem:[%s2745 + $0x18] sm:$0xff]
        %v4966 = vld [vmem:[%s2745 + $0x20] sm:$0xff]
        %v4967 = vld [vmem:[%s2745 + $0x28] sm:$0xff]
        %v4968 = vld [vmem:[%s2745 + $0x30] sm:$0xff]
        %v4969 = vld [vmem:[%s2745 + $0x38] sm:$0xff]
        %v4970 = vld [vmem:[%s2745 + $0x40] sm:$0xff]
        %v4971 = vld [vmem:[%s2745 + $0x48] sm:$0xff]
        %v4972 = vld [vmem:[%s2745 + $0x50] sm:$0xff]
        %v4973 = vld [vmem:[%s2745 + $0x58] sm:$0xff]
        %v4974 = vld [vmem:[%s2745 + $0x60] sm:$0xff]
        %v4975 = vld [vmem:[%s2745 + $0x68] sm:$0xff]
        %v4976 = vld [vmem:[%s2745 + $0x70] sm:$0xff]
        %v4977 = vld [vmem:[%s2745 + $0x78] sm:$0xff]
        %s4978 = scalar_lea.vmem %s528, 8
        %v4979 = vld [vmem:[%s4978] sm:$0x7]
        %v4981 = vsel %vm568, %v4946, 0
        %v4984 = vsel %vm568, %v4947, 0
        %v4987 = vsel %vm568, %v4948, 0
        %v4990 = vsel %vm568, %v4949, 0
        %v4993 = vsel %vm568, %v4950, 0
        %v4996 = vsel %vm568, %v4951, 0
        %v4999 = vsel %vm568, %v4952, 0
        %v5002 = vsel %vm568, %v4953, 0
        %v5005 = vsel %vm568, %v4954, 0
        %v5008 = vsel %vm568, %v4955, 0
        %v5011 = vsel %vm568, %v4956, 0
        %v5014 = vsel %vm568, %v4957, 0
        %v5017 = vsel %vm568, %v4958, 0
        %v5020 = vsel %vm568, %v4959, 0
        %v5023 = vsel %vm568, %v4960, 0
        %v5026 = vsel %vm568, %v4961, 0
        %v5029 = vsel %vm617, %v4979, 0
        %5031 = vmatpush.msra.mxu0 0.0
        %5032 = vmatpush.msra.mxu0 0.0
        %5033 = vmatpush.msra.mxu0 0.0
        %5034 = vmatpush.msra.mxu0 0.0
        %5035 = vmatpush.msra.mxu0 0.0
        %5036 = vmatpush.msra.mxu0 0.0
        %5037 = vmatpush.msra.mxu0 0.0
        %5038 = vmatpush.msra.mxu0 0.0
        %5039 = vmatpush.msra.mxu0 0.0
        %5040 = vmatpush.msra.mxu0 0.0
        %5041 = vmatpush.msra.mxu0 0.0
        %5042 = vmatpush.msra.mxu0 0.0
        %5043 = vmatpush.msra.mxu0 0.0
        %5044 = vmatpush.msra.mxu0 0.0
        %5045 = vmatpush.msra.mxu0 0.0
        %5046 = vmatpush.msra.mxu0 %v5029
        %5047 = vmatmul.f32.gmra.mxu0 %v4981
        %v5048 = vpop.f32.mrf.mxu0
        %v5049 = vadd.f32 0.0, %v5048
        %5050 = vmatmul.f32.gmra.mxu0 %v4984
        %v5051 = vpop.f32.mrf.mxu0
        %v5052 = vadd.f32 0.0, %v5051
        %5053 = vmatmul.f32.gmra.mxu0 %v4987
        %v5054 = vpop.f32.mrf.mxu0
        %v5055 = vadd.f32 0.0, %v5054
        %5056 = vmatmul.f32.gmra.mxu0 %v4990
        %v5057 = vpop.f32.mrf.mxu0
        %v5058 = vadd.f32 0.0, %v5057
        %5059 = vmatmul.f32.gmra.mxu0 %v4993
        %v5060 = vpop.f32.mrf.mxu0
        %v5061 = vadd.f32 0.0, %v5060
        %5062 = vmatmul.f32.gmra.mxu0 %v4996
        %v5063 = vpop.f32.mrf.mxu0
        %v5064 = vadd.f32 0.0, %v5063
        %5065 = vmatmul.f32.gmra.mxu0 %v4999
        %v5066 = vpop.f32.mrf.mxu0
        %v5067 = vadd.f32 0.0, %v5066
        %5068 = vmatmul.f32.gmra.mxu0 %v5002
        %v5069 = vpop.f32.mrf.mxu0
        %v5070 = vadd.f32 0.0, %v5069
        %5071 = vmatmul.f32.gmra.mxu0 %v5005
        %v5072 = vpop.f32.mrf.mxu0
        %v5073 = vadd.f32 0.0, %v5072
        %5074 = vmatmul.f32.gmra.mxu0 %v5008
        %v5075 = vpop.f32.mrf.mxu0
        %v5076 = vadd.f32 0.0, %v5075
        %5077 = vmatmul.f32.gmra.mxu0 %v5011
        %v5078 = vpop.f32.mrf.mxu0
        %v5079 = vadd.f32 0.0, %v5078
        %5080 = vmatmul.f32.gmra.mxu0 %v5014
        %v5081 = vpop.f32.mrf.mxu0
        %v5082 = vadd.f32 0.0, %v5081
        %5083 = vmatmul.f32.gmra.mxu0 %v5017
        %v5084 = vpop.f32.mrf.mxu0
        %v5085 = vadd.f32 0.0, %v5084
        %5086 = vmatmul.f32.gmra.mxu0 %v5020
        %v5087 = vpop.f32.mrf.mxu0
        %v5088 = vadd.f32 0.0, %v5087
        %5089 = vmatmul.f32.gmra.mxu0 %v5023
        %v5090 = vpop.f32.mrf.mxu0
        %v5091 = vadd.f32 0.0, %v5090
        %5092 = vmatmul.f32.gmra.mxu0 %v5026
        %v5093 = vpop.f32.mrf.mxu0
        %v5094 = vadd.f32 0.0, %v5093
        %5095 = vdwg.mxu0
        %v5096 = vmul.f32 %v4979, %v4979
        %v5097 = vsel %vm617, %v5096, 0.0
        %v5098 = vrot.slane %v5097, 4
        %v5099 = vadd.f32 %v5097, %v5098
        %v5100 = vrot.slane %v5099, 2
        %v5101 = vadd.f32 %v5099, %v5100
        %v5102 = vrot.slane %v5101, 1
        %v5103 = vadd.f32 %v5101, %v5102
        %v5104 = vmul.f32 %v5049, 2.0
        %v5105 = vmul.f32 %v5052, 2.0
        %v5106 = vmul.f32 %v5055, 2.0
        %v5107 = vmul.f32 %v5058, 2.0
        %v5108 = vmul.f32 %v5061, 2.0
        %v5109 = vmul.f32 %v5064, 2.0
        %v5110 = vmul.f32 %v5067, 2.0
        %v5111 = vmul.f32 %v5070, 2.0
        %v5112 = vmul.f32 %v5073, 2.0
        %v5113 = vmul.f32 %v5076, 2.0
        %v5114 = vmul.f32 %v5079, 2.0
        %v5115 = vmul.f32 %v5082, 2.0
        %v5116 = vmul.f32 %v5085, 2.0
        %v5117 = vmul.f32 %v5088, 2.0
        %v5118 = vmul.f32 %v5091, 2.0
        %v5119 = vmul.f32 %v5094, 2.0
        %v5120 = vsub.f32 %v5103, %v5104
        %v5121 = vsub.f32 %v5103, %v5105
        %v5122 = vsub.f32 %v5103, %v5106
        %v5123 = vsub.f32 %v5103, %v5107
        %v5124 = vsub.f32 %v5103, %v5108
        %v5125 = vsub.f32 %v5103, %v5109
        %v5126 = vsub.f32 %v5103, %v5110
        %v5127 = vsub.f32 %v5103, %v5111
        %v5128 = vsub.f32 %v5103, %v5112
        %v5129 = vsub.f32 %v5103, %v5113
        %v5130 = vsub.f32 %v5103, %v5114
        %v5131 = vsub.f32 %v5103, %v5115
        %v5132 = vsub.f32 %v5103, %v5116
        %v5133 = vsub.f32 %v5103, %v5117
        %v5134 = vsub.f32 %v5103, %v5118
        %v5135 = vsub.f32 %v5103, %v5119
        %v5137 = vsel %vm568, %v4962, 0
        %v5140 = vsel %vm568, %v4963, 0
        %v5143 = vsel %vm568, %v4964, 0
        %v5146 = vsel %vm568, %v4965, 0
        %v5149 = vsel %vm568, %v4966, 0
        %v5152 = vsel %vm568, %v4967, 0
        %v5155 = vsel %vm568, %v4968, 0
        %v5158 = vsel %vm568, %v4969, 0
        %v5161 = vsel %vm568, %v4970, 0
        %v5164 = vsel %vm568, %v4971, 0
        %v5167 = vsel %vm568, %v4972, 0
        %v5170 = vsel %vm568, %v4973, 0
        %v5173 = vsel %vm568, %v4974, 0
        %v5176 = vsel %vm568, %v4975, 0
        %v5179 = vsel %vm568, %v4976, 0
        %v5182 = vsel %vm568, %v4977, 0
        %5184 = vmatpush.msra.mxu0 0.0
        %5185 = vmatpush.msra.mxu0 0.0
        %5186 = vmatpush.msra.mxu0 0.0
        %5187 = vmatpush.msra.mxu0 0.0
        %5188 = vmatpush.msra.mxu0 0.0
        %5189 = vmatpush.msra.mxu0 0.0
        %5190 = vmatpush.msra.mxu0 0.0
        %5191 = vmatpush.msra.mxu0 0.0
        %5192 = vmatpush.msra.mxu0 0.0
        %5193 = vmatpush.msra.mxu0 0.0
        %5194 = vmatpush.msra.mxu0 0.0
        %5195 = vmatpush.msra.mxu0 0.0
        %5196 = vmatpush.msra.mxu0 0.0
        %5197 = vmatpush.msra.mxu0 0.0
        %5198 = vmatpush.msra.mxu0 0.0
        %5199 = vmatpush.msra.mxu0 %v775
        %5200 = vmatmul.f32.gmra.mxu0 %v5137
        %v5201 = vpop.f32.mrf.mxu0
        %v5202 = vadd.f32 0.0, %v5201
        %5203 = vmatmul.f32.gmra.mxu0 %v5140
        %v5204 = vpop.f32.mrf.mxu0
        %v5205 = vadd.f32 0.0, %v5204
        %5206 = vmatmul.f32.gmra.mxu0 %v5143
        %v5207 = vpop.f32.mrf.mxu0
        %v5208 = vadd.f32 0.0, %v5207
        %5209 = vmatmul.f32.gmra.mxu0 %v5146
        %v5210 = vpop.f32.mrf.mxu0
        %v5211 = vadd.f32 0.0, %v5210
        %5212 = vmatmul.f32.gmra.mxu0 %v5149
        %v5213 = vpop.f32.mrf.mxu0
        %v5214 = vadd.f32 0.0, %v5213
        %5215 = vmatmul.f32.gmra.mxu0 %v5152
        %v5216 = vpop.f32.mrf.mxu0
        %v5217 = vadd.f32 0.0, %v5216
        %5218 = vmatmul.f32.gmra.mxu0 %v5155
        %v5219 = vpop.f32.mrf.mxu0
        %v5220 = vadd.f32 0.0, %v5219
        %5221 = vmatmul.f32.gmra.mxu0 %v5158
        %v5222 = vpop.f32.mrf.mxu0
        %v5223 = vadd.f32 0.0, %v5222
        %5224 = vmatmul.f32.gmra.mxu0 %v5161
        %v5225 = vpop.f32.mrf.mxu0
        %v5226 = vadd.f32 0.0, %v5225
        %5227 = vmatmul.f32.gmra.mxu0 %v5164
        %v5228 = vpop.f32.mrf.mxu0
        %v5229 = vadd.f32 0.0, %v5228
        %5230 = vmatmul.f32.gmra.mxu0 %v5167
        %v5231 = vpop.f32.mrf.mxu0
        %v5232 = vadd.f32 0.0, %v5231
        %5233 = vmatmul.f32.gmra.mxu0 %v5170
        %v5234 = vpop.f32.mrf.mxu0
        %v5235 = vadd.f32 0.0, %v5234
        %5236 = vmatmul.f32.gmra.mxu0 %v5173
        %v5237 = vpop.f32.mrf.mxu0
        %v5238 = vadd.f32 0.0, %v5237
        %5239 = vmatmul.f32.gmra.mxu0 %v5176
        %v5240 = vpop.f32.mrf.mxu0
        %v5241 = vadd.f32 0.0, %v5240
        %5242 = vmatmul.f32.gmra.mxu0 %v5179
        %v5243 = vpop.f32.mrf.mxu0
        %v5244 = vadd.f32 0.0, %v5243
        %5245 = vmatmul.f32.gmra.mxu0 %v5182
        %v5246 = vpop.f32.mrf.mxu0
        %v5247 = vadd.f32 0.0, %v5246
        %5248 = vdwg.mxu0
        %5249 = vmatpush.msra.mxu0 0.0
        %5250 = vmatpush.msra.mxu0 0.0
        %5251 = vmatpush.msra.mxu0 0.0
        %5252 = vmatpush.msra.mxu0 0.0
        %5253 = vmatpush.msra.mxu0 0.0
        %5254 = vmatpush.msra.mxu0 0.0
        %5255 = vmatpush.msra.mxu0 0.0
        %5256 = vmatpush.msra.mxu0 0.0
        %5257 = vmatpush.msra.mxu0 0.0
        %5258 = vmatpush.msra.mxu0 0.0
        %5259 = vmatpush.msra.mxu0 0.0
        %5260 = vmatpush.msra.mxu0 0.0
        %5261 = vmatpush.msra.mxu0 0.0
        %5262 = vmatpush.msra.mxu0 0.0
        %5263 = vmatpush.msra.mxu0 0.0
        %5264 = vmatpush.msra.mxu0 %v846
        %5265 = vmatmul.f32.gmra.mxu0 %v4981
        %v5266 = vpop.f32.mrf.mxu0
        %v5267 = vadd.f32 %v843, %v5266
        %5268 = vmatmul.f32.gmra.mxu0 %v4984
        %v5269 = vpop.f32.mrf.mxu0
        %v5270 = vadd.f32 %v843, %v5269
        %5271 = vmatmul.f32.gmra.mxu0 %v4987
        %v5272 = vpop.f32.mrf.mxu0
        %v5273 = vadd.f32 %v843, %v5272
        %5274 = vmatmul.f32.gmra.mxu0 %v4990
        %v5275 = vpop.f32.mrf.mxu0
        %v5276 = vadd.f32 %v843, %v5275
        %5277 = vmatmul.f32.gmra.mxu0 %v4993
        %v5278 = vpop.f32.mrf.mxu0
        %v5279 = vadd.f32 %v843, %v5278
        %5280 = vmatmul.f32.gmra.mxu0 %v4996
        %v5281 = vpop.f32.mrf.mxu0
        %v5282 = vadd.f32 %v843, %v5281
        %5283 = vmatmul.f32.gmra.mxu0 %v4999
        %v5284 = vpop.f32.mrf.mxu0
        %v5285 = vadd.f32 %v843, %v5284
        %5286 = vmatmul.f32.gmra.mxu0 %v5002
        %v5287 = vpop.f32.mrf.mxu0
        %v5288 = vadd.f32 %v843, %v5287
        %5289 = vmatmul.f32.gmra.mxu0 %v5005
        %v5290 = vpop.f32.mrf.mxu0
        %v5291 = vadd.f32 %v843, %v5290
        %5292 = vmatmul.f32.gmra.mxu0 %v5008
        %v5293 = vpop.f32.mrf.mxu0
        %v5294 = vadd.f32 %v843, %v5293
        %5295 = vmatmul.f32.gmra.mxu0 %v5011
        %v5296 = vpop.f32.mrf.mxu0
        %v5297 = vadd.f32 %v843, %v5296
        %5298 = vmatmul.f32.gmra.mxu0 %v5014
        %v5299 = vpop.f32.mrf.mxu0
        %v5300 = vadd.f32 %v843, %v5299
        %5301 = vmatmul.f32.gmra.mxu0 %v5017
        %v5302 = vpop.f32.mrf.mxu0
        %v5303 = vadd.f32 %v843, %v5302
        %5304 = vmatmul.f32.gmra.mxu0 %v5020
        %v5305 = vpop.f32.mrf.mxu0
        %v5306 = vadd.f32 %v843, %v5305
        %5307 = vmatmul.f32.gmra.mxu0 %v5023
        %v5308 = vpop.f32.mrf.mxu0
        %v5309 = vadd.f32 %v843, %v5308
        %5310 = vmatmul.f32.gmra.mxu0 %v5026
        %v5311 = vpop.f32.mrf.mxu0
        %v5312 = vadd.f32 %v843, %v5311
        %5313 = vdwg.mxu0
        %5314 = vmin.xlane.f32.xlu0 %v5120
        %v5315 = vpop.xlane.xlu0 %5314
        %5316 = vmin.xlane.f32.xlu0 %v5121
        %v5317 = vpop.xlane.xlu0 %5316
        %5318 = vmin.xlane.f32.xlu0 %v5122
        %v5319 = vpop.xlane.xlu0 %5318
        %5320 = vmin.xlane.f32.xlu0 %v5123
        %v5321 = vpop.xlane.xlu0 %5320
        %5322 = vmin.xlane.f32.xlu0 %v5124
        %v5323 = vpop.xlane.xlu0 %5322
        %5324 = vmin.xlane.f32.xlu0 %v5125
        %v5325 = vpop.xlane.xlu0 %5324
        %5326 = vmin.xlane.f32.xlu0 %v5126
        %v5327 = vpop.xlane.xlu0 %5326
        %5328 = vmin.xlane.f32.xlu0 %v5127
        %v5329 = vpop.xlane.xlu0 %5328
        %5330 = vmin.xlane.f32.xlu0 %v5128
        %v5331 = vpop.xlane.xlu0 %5330
        %5332 = vmin.xlane.f32.xlu0 %v5129
        %v5333 = vpop.xlane.xlu0 %5332
        %5334 = vmin.xlane.f32.xlu0 %v5130
        %v5335 = vpop.xlane.xlu0 %5334
        %5336 = vmin.xlane.f32.xlu0 %v5131
        %v5337 = vpop.xlane.xlu0 %5336
        %5338 = vmin.xlane.f32.xlu0 %v5132
        %v5339 = vpop.xlane.xlu0 %5338
        %5340 = vmin.xlane.f32.xlu0 %v5133
        %v5341 = vpop.xlane.xlu0 %5340
        %5342 = vmin.xlane.f32.xlu0 %v5134
        %v5343 = vpop.xlane.xlu0 %5342
        %5344 = vmin.xlane.f32.xlu0 %v5135
        %v5345 = vpop.xlane.xlu0 %5344
        %vm5346 = vcmp.le.f32.partialorder %v5120, %v5315
        %vm5347 = vcmp.le.f32.partialorder %v5121, %v5317
        %vm5348 = vcmp.le.f32.partialorder %v5122, %v5319
        %vm5349 = vcmp.le.f32.partialorder %v5123, %v5321
        %vm5350 = vcmp.le.f32.partialorder %v5124, %v5323
        %vm5351 = vcmp.le.f32.partialorder %v5125, %v5325
        %vm5352 = vcmp.le.f32.partialorder %v5126, %v5327
        %vm5353 = vcmp.le.f32.partialorder %v5127, %v5329
        %vm5354 = vcmp.le.f32.partialorder %v5128, %v5331
        %vm5355 = vcmp.le.f32.partialorder %v5129, %v5333
        %vm5356 = vcmp.le.f32.partialorder %v5130, %v5335
        %vm5357 = vcmp.le.f32.partialorder %v5131, %v5337
        %vm5358 = vcmp.le.f32.partialorder %v5132, %v5339
        %vm5359 = vcmp.le.f32.partialorder %v5133, %v5341
        %vm5360 = vcmp.le.f32.partialorder %v5134, %v5343
        %vm5361 = vcmp.le.f32.partialorder %v5135, %v5345
        %v5362 = vsel %vm5346, %v533, 128
        %v5363 = vsel %vm5347, %v533, 128
        %v5364 = vsel %vm5348, %v533, 128
        %v5365 = vsel %vm5349, %v533, 128
        %v5366 = vsel %vm5350, %v533, 128
        %v5367 = vsel %vm5351, %v533, 128
        %v5368 = vsel %vm5352, %v533, 128
        %v5369 = vsel %vm5353, %v533, 128
        %v5370 = vsel %vm5354, %v533, 128
        %v5371 = vsel %vm5355, %v533, 128
        %v5372 = vsel %vm5356, %v533, 128
        %v5373 = vsel %vm5357, %v533, 128
        %v5374 = vsel %vm5358, %v533, 128
        %v5375 = vsel %vm5359, %v533, 128
        %v5376 = vsel %vm5360, %v533, 128
        %v5377 = vsel %vm5361, %v533, 128
        %v5378 = vand.u32 %v5362, 65535
        %v5379 = vshra.s32 %v5362, 16
        %v5380 = vcvt.s32.f32 %v5378
        %v5381 = vcvt.s32.f32 %v5379
        %5382 = vmin.xlane.f32.xlu0 %v5381
        %v5383 = vpop.xlane.xlu0 %5382
        %vm5384 = vcmp.eq.f32.partialorder %v5381, %v5383
        %v5385 = vsel %vm5384, %v5380, inf
        %5386 = vmin.xlane.f32.xlu0 %v5385
        %v5387 = vpop.xlane.xlu0 %5386
        %v5388 = vcvt.f32.s32 %v5387
        %v5389 = vcvt.f32.s32 %v5383
        %v5390 = vshll.u32 %v5389, 16
        %v5391 = vadd.s32 %v5390, %v5388
        %v5392 = vand.u32 %v5363, 65535
        %v5393 = vshra.s32 %v5363, 16
        %v5394 = vcvt.s32.f32 %v5392
        %v5395 = vcvt.s32.f32 %v5393
        %5396 = vmin.xlane.f32.xlu0 %v5395
        %v5397 = vpop.xlane.xlu0 %5396
        %vm5398 = vcmp.eq.f32.partialorder %v5395, %v5397
        %v5399 = vsel %vm5398, %v5394, inf
        %5400 = vmin.xlane.f32.xlu0 %v5399
        %v5401 = vpop.xlane.xlu0 %5400
        %v5402 = vcvt.f32.s32 %v5401
        %v5403 = vcvt.f32.s32 %v5397
        %v5404 = vshll.u32 %v5403, 16
        %v5405 = vadd.s32 %v5404, %v5402
        %v5406 = vand.u32 %v5364, 65535
        %v5407 = vshra.s32 %v5364, 16
        %v5408 = vcvt.s32.f32 %v5406
        %v5409 = vcvt.s32.f32 %v5407
        %5410 = vmin.xlane.f32.xlu0 %v5409
        %v5411 = vpop.xlane.xlu0 %5410
        %vm5412 = vcmp.eq.f32.partialorder %v5409, %v5411
        %v5413 = vsel %vm5412, %v5408, inf
        %5414 = vmin.xlane.f32.xlu0 %v5413
        %v5415 = vpop.xlane.xlu0 %5414
        %v5416 = vcvt.f32.s32 %v5415
        %v5417 = vcvt.f32.s32 %v5411
        %v5418 = vshll.u32 %v5417, 16
        %v5419 = vadd.s32 %v5418, %v5416
        %v5420 = vand.u32 %v5365, 65535
        %v5421 = vshra.s32 %v5365, 16
        %v5422 = vcvt.s32.f32 %v5420
        %v5423 = vcvt.s32.f32 %v5421
        %5424 = vmin.xlane.f32.xlu0 %v5423
        %v5425 = vpop.xlane.xlu0 %5424
        %vm5426 = vcmp.eq.f32.partialorder %v5423, %v5425
        %v5427 = vsel %vm5426, %v5422, inf
        %5428 = vmin.xlane.f32.xlu0 %v5427
        %v5429 = vpop.xlane.xlu0 %5428
        %v5430 = vcvt.f32.s32 %v5429
        %v5431 = vcvt.f32.s32 %v5425
        %v5432 = vshll.u32 %v5431, 16
        %v5433 = vadd.s32 %v5432, %v5430
        %v5434 = vand.u32 %v5366, 65535
        %v5435 = vshra.s32 %v5366, 16
        %v5436 = vcvt.s32.f32 %v5434
        %v5437 = vcvt.s32.f32 %v5435
        %5438 = vmin.xlane.f32.xlu0 %v5437
        %v5439 = vpop.xlane.xlu0 %5438
        %vm5440 = vcmp.eq.f32.partialorder %v5437, %v5439
        %v5441 = vsel %vm5440, %v5436, inf
        %5442 = vmin.xlane.f32.xlu0 %v5441
        %v5443 = vpop.xlane.xlu0 %5442
        %v5444 = vcvt.f32.s32 %v5443
        %v5445 = vcvt.f32.s32 %v5439
        %v5446 = vshll.u32 %v5445, 16
        %v5447 = vadd.s32 %v5446, %v5444
        %v5448 = vand.u32 %v5367, 65535
        %v5449 = vshra.s32 %v5367, 16
        %v5450 = vcvt.s32.f32 %v5448
        %v5451 = vcvt.s32.f32 %v5449
        %5452 = vmin.xlane.f32.xlu0 %v5451
        %v5453 = vpop.xlane.xlu0 %5452
        %vm5454 = vcmp.eq.f32.partialorder %v5451, %v5453
        %v5455 = vsel %vm5454, %v5450, inf
        %5456 = vmin.xlane.f32.xlu0 %v5455
        %v5457 = vpop.xlane.xlu0 %5456
        %v5458 = vcvt.f32.s32 %v5457
        %v5459 = vcvt.f32.s32 %v5453
        %v5460 = vshll.u32 %v5459, 16
        %v5461 = vadd.s32 %v5460, %v5458
        %v5462 = vand.u32 %v5368, 65535
        %v5463 = vshra.s32 %v5368, 16
        %v5464 = vcvt.s32.f32 %v5462
        %v5465 = vcvt.s32.f32 %v5463
        %5466 = vmin.xlane.f32.xlu0 %v5465
        %v5467 = vpop.xlane.xlu0 %5466
        %vm5468 = vcmp.eq.f32.partialorder %v5465, %v5467
        %v5469 = vsel %vm5468, %v5464, inf
        %5470 = vmin.xlane.f32.xlu0 %v5469
        %v5471 = vpop.xlane.xlu0 %5470
        %v5472 = vcvt.f32.s32 %v5471
        %v5473 = vcvt.f32.s32 %v5467
        %v5474 = vshll.u32 %v5473, 16
        %v5475 = vadd.s32 %v5474, %v5472
        %v5476 = vand.u32 %v5369, 65535
        %v5477 = vshra.s32 %v5369, 16
        %v5478 = vcvt.s32.f32 %v5476
        %v5479 = vcvt.s32.f32 %v5477
        %5480 = vmin.xlane.f32.xlu0 %v5479
        %v5481 = vpop.xlane.xlu0 %5480
        %vm5482 = vcmp.eq.f32.partialorder %v5479, %v5481
        %v5483 = vsel %vm5482, %v5478, inf
        %5484 = vmin.xlane.f32.xlu0 %v5483
        %v5485 = vpop.xlane.xlu0 %5484
        %v5486 = vcvt.f32.s32 %v5485
        %v5487 = vcvt.f32.s32 %v5481
        %v5488 = vshll.u32 %v5487, 16
        %v5489 = vadd.s32 %v5488, %v5486
        %v5490 = vand.u32 %v5370, 65535
        %v5491 = vshra.s32 %v5370, 16
        %v5492 = vcvt.s32.f32 %v5490
        %v5493 = vcvt.s32.f32 %v5491
        %5494 = vmin.xlane.f32.xlu0 %v5493
        %v5495 = vpop.xlane.xlu0 %5494
        %vm5496 = vcmp.eq.f32.partialorder %v5493, %v5495
        %v5497 = vsel %vm5496, %v5492, inf
        %5498 = vmin.xlane.f32.xlu0 %v5497
        %v5499 = vpop.xlane.xlu0 %5498
        %v5500 = vcvt.f32.s32 %v5499
        %v5501 = vcvt.f32.s32 %v5495
        %v5502 = vshll.u32 %v5501, 16
        %v5503 = vadd.s32 %v5502, %v5500
        %v5504 = vand.u32 %v5371, 65535
        %v5505 = vshra.s32 %v5371, 16
        %v5506 = vcvt.s32.f32 %v5504
        %v5507 = vcvt.s32.f32 %v5505
        %5508 = vmin.xlane.f32.xlu0 %v5507
        %v5509 = vpop.xlane.xlu0 %5508
        %vm5510 = vcmp.eq.f32.partialorder %v5507, %v5509
        %v5511 = vsel %vm5510, %v5506, inf
        %5512 = vmin.xlane.f32.xlu0 %v5511
        %v5513 = vpop.xlane.xlu0 %5512
        %v5514 = vcvt.f32.s32 %v5513
        %v5515 = vcvt.f32.s32 %v5509
        %v5516 = vshll.u32 %v5515, 16
        %v5517 = vadd.s32 %v5516, %v5514
        %v5518 = vand.u32 %v5372, 65535
        %v5519 = vshra.s32 %v5372, 16
        %v5520 = vcvt.s32.f32 %v5518
        %v5521 = vcvt.s32.f32 %v5519
        %5522 = vmin.xlane.f32.xlu0 %v5521
        %v5523 = vpop.xlane.xlu0 %5522
        %vm5524 = vcmp.eq.f32.partialorder %v5521, %v5523
        %v5525 = vsel %vm5524, %v5520, inf
        %5526 = vmin.xlane.f32.xlu0 %v5525
        %v5527 = vpop.xlane.xlu0 %5526
        %v5528 = vcvt.f32.s32 %v5527
        %v5529 = vcvt.f32.s32 %v5523
        %v5530 = vshll.u32 %v5529, 16
        %v5531 = vadd.s32 %v5530, %v5528
        %v5532 = vand.u32 %v5373, 65535
        %v5533 = vshra.s32 %v5373, 16
        %v5534 = vcvt.s32.f32 %v5532
        %v5535 = vcvt.s32.f32 %v5533
        %5536 = vmin.xlane.f32.xlu0 %v5535
        %v5537 = vpop.xlane.xlu0 %5536
        %vm5538 = vcmp.eq.f32.partialorder %v5535, %v5537
        %v5539 = vsel %vm5538, %v5534, inf
        %5540 = vmin.xlane.f32.xlu0 %v5539
        %v5541 = vpop.xlane.xlu0 %5540
        %v5542 = vcvt.f32.s32 %v5541
        %v5543 = vcvt.f32.s32 %v5537
        %v5544 = vshll.u32 %v5543, 16
        %v5545 = vadd.s32 %v5544, %v5542
        %v5546 = vand.u32 %v5374, 65535
        %v5547 = vshra.s32 %v5374, 16
        %v5548 = vcvt.s32.f32 %v5546
        %v5549 = vcvt.s32.f32 %v5547
        %5550 = vmin.xlane.f32.xlu0 %v5549
        %v5551 = vpop.xlane.xlu0 %5550
        %vm5552 = vcmp.eq.f32.partialorder %v5549, %v5551
        %v5553 = vsel %vm5552, %v5548, inf
        %5554 = vmin.xlane.f32.xlu0 %v5553
        %v5555 = vpop.xlane.xlu0 %5554
        %v5556 = vcvt.f32.s32 %v5555
        %v5557 = vcvt.f32.s32 %v5551
        %v5558 = vshll.u32 %v5557, 16
        %v5559 = vadd.s32 %v5558, %v5556
        %v5560 = vand.u32 %v5375, 65535
        %v5561 = vshra.s32 %v5375, 16
        %v5562 = vcvt.s32.f32 %v5560
        %v5563 = vcvt.s32.f32 %v5561
        %5564 = vmin.xlane.f32.xlu0 %v5563
        %v5565 = vpop.xlane.xlu0 %5564
        %vm5566 = vcmp.eq.f32.partialorder %v5563, %v5565
        %v5567 = vsel %vm5566, %v5562, inf
        %5568 = vmin.xlane.f32.xlu0 %v5567
        %v5569 = vpop.xlane.xlu0 %5568
        %v5570 = vcvt.f32.s32 %v5569
        %v5571 = vcvt.f32.s32 %v5565
        %v5572 = vshll.u32 %v5571, 16
        %v5573 = vadd.s32 %v5572, %v5570
        %v5574 = vand.u32 %v5376, 65535
        %v5575 = vshra.s32 %v5376, 16
        %v5576 = vcvt.s32.f32 %v5574
        %v5577 = vcvt.s32.f32 %v5575
        %5578 = vmin.xlane.f32.xlu0 %v5577
        %v5579 = vpop.xlane.xlu0 %5578
        %vm5580 = vcmp.eq.f32.partialorder %v5577, %v5579
        %v5581 = vsel %vm5580, %v5576, inf
        %5582 = vmin.xlane.f32.xlu0 %v5581
        %v5583 = vpop.xlane.xlu0 %5582
        %v5584 = vcvt.f32.s32 %v5583
        %v5585 = vcvt.f32.s32 %v5579
        %v5586 = vshll.u32 %v5585, 16
        %v5587 = vadd.s32 %v5586, %v5584
        %v5588 = vand.u32 %v5377, 65535
        %v5589 = vshra.s32 %v5377, 16
        %v5590 = vcvt.s32.f32 %v5588
        %v5591 = vcvt.s32.f32 %v5589
        %5592 = vmin.xlane.f32.xlu0 %v5591
        %v5593 = vpop.xlane.xlu0 %5592
        %vm5594 = vcmp.eq.f32.partialorder %v5591, %v5593
        %v5595 = vsel %vm5594, %v5590, inf
        %5596 = vmin.xlane.f32.xlu0 %v5595
        %v5597 = vpop.xlane.xlu0 %5596
        %v5598 = vcvt.f32.s32 %v5597
        %v5599 = vcvt.f32.s32 %v5593
        %v5600 = vshll.u32 %v5599, 16
        %v5601 = vadd.s32 %v5600, %v5598
        %vm5602 = vcmp.eq.s32.totalorder %v533, %v5391
        %vm5603 = vcmp.eq.s32.totalorder %v533, %v5405
        %vm5604 = vcmp.eq.s32.totalorder %v533, %v5419
        %vm5605 = vcmp.eq.s32.totalorder %v533, %v5433
        %vm5606 = vcmp.eq.s32.totalorder %v533, %v5447
        %vm5607 = vcmp.eq.s32.totalorder %v533, %v5461
        %vm5608 = vcmp.eq.s32.totalorder %v533, %v5475
        %vm5609 = vcmp.eq.s32.totalorder %v533, %v5489
        %vm5610 = vcmp.eq.s32.totalorder %v533, %v5503
        %vm5611 = vcmp.eq.s32.totalorder %v533, %v5517
        %vm5612 = vcmp.eq.s32.totalorder %v533, %v5531
        %vm5613 = vcmp.eq.s32.totalorder %v533, %v5545
        %vm5614 = vcmp.eq.s32.totalorder %v533, %v5559
        %vm5615 = vcmp.eq.s32.totalorder %v533, %v5573
        %vm5616 = vcmp.eq.s32.totalorder %v533, %v5587
        %vm5617 = vcmp.eq.s32.totalorder %v533, %v5601
        %v5618 = vsel %vm5602, 1, 0
        %v5619 = vsel %vm5603, 1, 0
        %v5620 = vsel %vm5604, 1, 0
        %v5621 = vsel %vm5605, 1, 0
        %v5622 = vsel %vm5606, 1, 0
        %v5623 = vsel %vm5607, 1, 0
        %v5624 = vsel %vm5608, 1, 0
        %v5625 = vsel %vm5609, 1, 0
        %v5626 = vsel %vm5610, 1, 0
        %v5627 = vsel %vm5611, 1, 0
        %v5628 = vsel %vm5612, 1, 0
        %v5629 = vsel %vm5613, 1, 0
        %v5630 = vsel %vm5614, 1, 0
        %v5631 = vsel %vm5615, 1, 0
        %v5632 = vsel %vm5616, 1, 0
        %v5633 = vsel %vm5617, 1, 0
        %v5634 = vcvt.s32.f32 %v5618
        %v5635 = vcvt.s32.f32 %v5619
        %v5636 = vcvt.s32.f32 %v5620
        %v5637 = vcvt.s32.f32 %v5621
        %v5638 = vcvt.s32.f32 %v5622
        %v5639 = vcvt.s32.f32 %v5623
        %v5640 = vcvt.s32.f32 %v5624
        %v5641 = vcvt.s32.f32 %v5625
        %v5642 = vcvt.s32.f32 %v5626
        %v5643 = vcvt.s32.f32 %v5627
        %v5644 = vcvt.s32.f32 %v5628
        %v5645 = vcvt.s32.f32 %v5629
        %v5646 = vcvt.s32.f32 %v5630
        %v5647 = vcvt.s32.f32 %v5631
        %v5648 = vcvt.s32.f32 %v5632
        %v5649 = vcvt.s32.f32 %v5633
        %5650 = vst [vmem:[#allocation2] sm:$0xff] %v5634
        %5651 = vst [vmem:[#allocation2 + $0x8] sm:$0xff] %v5635
        %5652 = vst [vmem:[#allocation2 + $0x10] sm:$0xff] %v5636
        %5653 = vst [vmem:[#allocation2 + $0x18] sm:$0xff] %v5637
        %5654 = vst [vmem:[#allocation2 + $0x20] sm:$0xff] %v5638
        %5655 = vst [vmem:[#allocation2 + $0x28] sm:$0xff] %v5639
        %5656 = vst [vmem:[#allocation2 + $0x30] sm:$0xff] %v5640
        %5657 = vst [vmem:[#allocation2 + $0x38] sm:$0xff] %v5641
        %5658 = vst [vmem:[#allocation2 + $0x40] sm:$0xff] %v5642
        %5659 = vst [vmem:[#allocation2 + $0x48] sm:$0xff] %v5643
        %5660 = vst [vmem:[#allocation2 + $0x50] sm:$0xff] %v5644
        %5661 = vst [vmem:[#allocation2 + $0x58] sm:$0xff] %v5645
        %5662 = vst [vmem:[#allocation2 + $0x60] sm:$0xff] %v5646
        %5663 = vst [vmem:[#allocation2 + $0x68] sm:$0xff] %v5647
        %5664 = vst [vmem:[#allocation2 + $0x70] sm:$0xff] %v5648
        %5665 = vst [vmem:[#allocation2 + $0x78] sm:$0xff] %v5649
        %v5666 = vsel %vm5602, 1e+30, %v5120
        %v5667 = vsel %vm5603, 1e+30, %v5121
        %v5668 = vsel %vm5604, 1e+30, %v5122
        %v5669 = vsel %vm5605, 1e+30, %v5123
        %v5670 = vsel %vm5606, 1e+30, %v5124
        %v5671 = vsel %vm5607, 1e+30, %v5125
        %v5672 = vsel %vm5608, 1e+30, %v5126
        %v5673 = vsel %vm5609, 1e+30, %v5127
        %v5674 = vsel %vm5610, 1e+30, %v5128
        %v5675 = vsel %vm5611, 1e+30, %v5129
        %v5676 = vsel %vm5612, 1e+30, %v5130
        %v5677 = vsel %vm5613, 1e+30, %v5131
        %v5678 = vsel %vm5614, 1e+30, %v5132
        %v5679 = vsel %vm5615, 1e+30, %v5133
        %v5680 = vsel %vm5616, 1e+30, %v5134
        %v5681 = vsel %vm5617, 1e+30, %v5135
        %5682 = vmin.xlane.f32.xlu0 %v5666
        %v5683 = vpop.xlane.xlu0 %5682
        %5684 = vmin.xlane.f32.xlu0 %v5667
        %v5685 = vpop.xlane.xlu0 %5684
        %5686 = vmin.xlane.f32.xlu0 %v5668
        %v5687 = vpop.xlane.xlu0 %5686
        %5688 = vmin.xlane.f32.xlu0 %v5669
        %v5689 = vpop.xlane.xlu0 %5688
        %5690 = vmin.xlane.f32.xlu0 %v5670
        %v5691 = vpop.xlane.xlu0 %5690
        %5692 = vmin.xlane.f32.xlu0 %v5671
        %v5693 = vpop.xlane.xlu0 %5692
        %5694 = vmin.xlane.f32.xlu0 %v5672
        %v5695 = vpop.xlane.xlu0 %5694
        %5696 = vmin.xlane.f32.xlu0 %v5673
        %v5697 = vpop.xlane.xlu0 %5696
        %5698 = vmin.xlane.f32.xlu0 %v5674
        %v5699 = vpop.xlane.xlu0 %5698
        %5700 = vmin.xlane.f32.xlu0 %v5675
        %v5701 = vpop.xlane.xlu0 %5700
        %5702 = vmin.xlane.f32.xlu0 %v5676
        %v5703 = vpop.xlane.xlu0 %5702
        %5704 = vmin.xlane.f32.xlu0 %v5677
        %v5705 = vpop.xlane.xlu0 %5704
        %5706 = vmin.xlane.f32.xlu0 %v5678
        %v5707 = vpop.xlane.xlu0 %5706
        %5708 = vmin.xlane.f32.xlu0 %v5679
        %v5709 = vpop.xlane.xlu0 %5708
        %5710 = vmin.xlane.f32.xlu0 %v5680
        %v5711 = vpop.xlane.xlu0 %5710
        %5712 = vmin.xlane.f32.xlu0 %v5681
        %v5713 = vpop.xlane.xlu0 %5712
        %vm5714 = vcmp.le.f32.partialorder %v5666, %v5683
        %vm5715 = vcmp.le.f32.partialorder %v5667, %v5685
        %vm5716 = vcmp.le.f32.partialorder %v5668, %v5687
        %vm5717 = vcmp.le.f32.partialorder %v5669, %v5689
        %vm5718 = vcmp.le.f32.partialorder %v5670, %v5691
        %vm5719 = vcmp.le.f32.partialorder %v5671, %v5693
        %vm5720 = vcmp.le.f32.partialorder %v5672, %v5695
        %vm5721 = vcmp.le.f32.partialorder %v5673, %v5697
        %vm5722 = vcmp.le.f32.partialorder %v5674, %v5699
        %vm5723 = vcmp.le.f32.partialorder %v5675, %v5701
        %vm5724 = vcmp.le.f32.partialorder %v5676, %v5703
        %vm5725 = vcmp.le.f32.partialorder %v5677, %v5705
        %vm5726 = vcmp.le.f32.partialorder %v5678, %v5707
        %vm5727 = vcmp.le.f32.partialorder %v5679, %v5709
        %vm5728 = vcmp.le.f32.partialorder %v5680, %v5711
        %vm5729 = vcmp.le.f32.partialorder %v5681, %v5713
        %v5730 = vsel %vm5714, %v533, 128
        %v5731 = vsel %vm5715, %v533, 128
        %v5732 = vsel %vm5716, %v533, 128
        %v5733 = vsel %vm5717, %v533, 128
        %v5734 = vsel %vm5718, %v533, 128
        %v5735 = vsel %vm5719, %v533, 128
        %v5736 = vsel %vm5720, %v533, 128
        %v5737 = vsel %vm5721, %v533, 128
        %v5738 = vsel %vm5722, %v533, 128
        %v5739 = vsel %vm5723, %v533, 128
        %v5740 = vsel %vm5724, %v533, 128
        %v5741 = vsel %vm5725, %v533, 128
        %v5742 = vsel %vm5726, %v533, 128
        %v5743 = vsel %vm5727, %v533, 128
        %v5744 = vsel %vm5728, %v533, 128
        %v5745 = vsel %vm5729, %v533, 128
        %v5746 = vand.u32 %v5730, 65535
        %v5747 = vshra.s32 %v5730, 16
        %v5748 = vcvt.s32.f32 %v5746
        %v5749 = vcvt.s32.f32 %v5747
        %5750 = vmin.xlane.f32.xlu0 %v5749
        %v5751 = vpop.xlane.xlu0 %5750
        %vm5752 = vcmp.eq.f32.partialorder %v5749, %v5751
        %v5753 = vsel %vm5752, %v5748, inf
        %5754 = vmin.xlane.f32.xlu0 %v5753
        %v5755 = vpop.xlane.xlu0 %5754
        %v5756 = vcvt.f32.s32 %v5755
        %v5757 = vcvt.f32.s32 %v5751
        %v5758 = vshll.u32 %v5757, 16
        %v5759 = vadd.s32 %v5758, %v5756
        %v5760 = vand.u32 %v5731, 65535
        %v5761 = vshra.s32 %v5731, 16
        %v5762 = vcvt.s32.f32 %v5760
        %v5763 = vcvt.s32.f32 %v5761
        %5764 = vmin.xlane.f32.xlu0 %v5763
        %v5765 = vpop.xlane.xlu0 %5764
        %vm5766 = vcmp.eq.f32.partialorder %v5763, %v5765
        %v5767 = vsel %vm5766, %v5762, inf
        %5768 = vmin.xlane.f32.xlu0 %v5767
        %v5769 = vpop.xlane.xlu0 %5768
        %v5770 = vcvt.f32.s32 %v5769
        %v5771 = vcvt.f32.s32 %v5765
        %v5772 = vshll.u32 %v5771, 16
        %v5773 = vadd.s32 %v5772, %v5770
        %v5774 = vand.u32 %v5732, 65535
        %v5775 = vshra.s32 %v5732, 16
        %v5776 = vcvt.s32.f32 %v5774
        %v5777 = vcvt.s32.f32 %v5775
        %5778 = vmin.xlane.f32.xlu0 %v5777
        %v5779 = vpop.xlane.xlu0 %5778
        %vm5780 = vcmp.eq.f32.partialorder %v5777, %v5779
        %v5781 = vsel %vm5780, %v5776, inf
        %5782 = vmin.xlane.f32.xlu0 %v5781
        %v5783 = vpop.xlane.xlu0 %5782
        %v5784 = vcvt.f32.s32 %v5783
        %v5785 = vcvt.f32.s32 %v5779
        %v5786 = vshll.u32 %v5785, 16
        %v5787 = vadd.s32 %v5786, %v5784
        %v5788 = vand.u32 %v5733, 65535
        %v5789 = vshra.s32 %v5733, 16
        %v5790 = vcvt.s32.f32 %v5788
        %v5791 = vcvt.s32.f32 %v5789
        %5792 = vmin.xlane.f32.xlu0 %v5791
        %v5793 = vpop.xlane.xlu0 %5792
        %vm5794 = vcmp.eq.f32.partialorder %v5791, %v5793
        %v5795 = vsel %vm5794, %v5790, inf
        %5796 = vmin.xlane.f32.xlu0 %v5795
        %v5797 = vpop.xlane.xlu0 %5796
        %v5798 = vcvt.f32.s32 %v5797
        %v5799 = vcvt.f32.s32 %v5793
        %v5800 = vshll.u32 %v5799, 16
        %v5801 = vadd.s32 %v5800, %v5798
        %v5802 = vand.u32 %v5734, 65535
        %v5803 = vshra.s32 %v5734, 16
        %v5804 = vcvt.s32.f32 %v5802
        %v5805 = vcvt.s32.f32 %v5803
        %5806 = vmin.xlane.f32.xlu0 %v5805
        %v5807 = vpop.xlane.xlu0 %5806
        %vm5808 = vcmp.eq.f32.partialorder %v5805, %v5807
        %v5809 = vsel %vm5808, %v5804, inf
        %5810 = vmin.xlane.f32.xlu0 %v5809
        %v5811 = vpop.xlane.xlu0 %5810
        %v5812 = vcvt.f32.s32 %v5811
        %v5813 = vcvt.f32.s32 %v5807
        %v5814 = vshll.u32 %v5813, 16
        %v5815 = vadd.s32 %v5814, %v5812
        %v5816 = vand.u32 %v5735, 65535
        %v5817 = vshra.s32 %v5735, 16
        %v5818 = vcvt.s32.f32 %v5816
        %v5819 = vcvt.s32.f32 %v5817
        %5820 = vmin.xlane.f32.xlu0 %v5819
        %v5821 = vpop.xlane.xlu0 %5820
        %vm5822 = vcmp.eq.f32.partialorder %v5819, %v5821
        %v5823 = vsel %vm5822, %v5818, inf
        %5824 = vmin.xlane.f32.xlu0 %v5823
        %v5825 = vpop.xlane.xlu0 %5824
        %v5826 = vcvt.f32.s32 %v5825
        %v5827 = vcvt.f32.s32 %v5821
        %v5828 = vshll.u32 %v5827, 16
        %v5829 = vadd.s32 %v5828, %v5826
        %v5830 = vand.u32 %v5736, 65535
        %v5831 = vshra.s32 %v5736, 16
        %v5832 = vcvt.s32.f32 %v5830
        %v5833 = vcvt.s32.f32 %v5831
        %5834 = vmin.xlane.f32.xlu0 %v5833
        %v5835 = vpop.xlane.xlu0 %5834
        %vm5836 = vcmp.eq.f32.partialorder %v5833, %v5835
        %v5837 = vsel %vm5836, %v5832, inf
        %5838 = vmin.xlane.f32.xlu0 %v5837
        %v5839 = vpop.xlane.xlu0 %5838
        %v5840 = vcvt.f32.s32 %v5839
        %v5841 = vcvt.f32.s32 %v5835
        %v5842 = vshll.u32 %v5841, 16
        %v5843 = vadd.s32 %v5842, %v5840
        %v5844 = vand.u32 %v5737, 65535
        %v5845 = vshra.s32 %v5737, 16
        %v5846 = vcvt.s32.f32 %v5844
        %v5847 = vcvt.s32.f32 %v5845
        %5848 = vmin.xlane.f32.xlu0 %v5847
        %v5849 = vpop.xlane.xlu0 %5848
        %vm5850 = vcmp.eq.f32.partialorder %v5847, %v5849
        %v5851 = vsel %vm5850, %v5846, inf
        %5852 = vmin.xlane.f32.xlu0 %v5851
        %v5853 = vpop.xlane.xlu0 %5852
        %v5854 = vcvt.f32.s32 %v5853
        %v5855 = vcvt.f32.s32 %v5849
        %v5856 = vshll.u32 %v5855, 16
        %v5857 = vadd.s32 %v5856, %v5854
        %v5858 = vand.u32 %v5738, 65535
        %v5859 = vshra.s32 %v5738, 16
        %v5860 = vcvt.s32.f32 %v5858
        %v5861 = vcvt.s32.f32 %v5859
        %5862 = vmin.xlane.f32.xlu0 %v5861
        %v5863 = vpop.xlane.xlu0 %5862
        %vm5864 = vcmp.eq.f32.partialorder %v5861, %v5863
        %v5865 = vsel %vm5864, %v5860, inf
        %5866 = vmin.xlane.f32.xlu0 %v5865
        %v5867 = vpop.xlane.xlu0 %5866
        %v5868 = vcvt.f32.s32 %v5867
        %v5869 = vcvt.f32.s32 %v5863
        %v5870 = vshll.u32 %v5869, 16
        %v5871 = vadd.s32 %v5870, %v5868
        %v5872 = vand.u32 %v5739, 65535
        %v5873 = vshra.s32 %v5739, 16
        %v5874 = vcvt.s32.f32 %v5872
        %v5875 = vcvt.s32.f32 %v5873
        %5876 = vmin.xlane.f32.xlu0 %v5875
        %v5877 = vpop.xlane.xlu0 %5876
        %vm5878 = vcmp.eq.f32.partialorder %v5875, %v5877
        %v5879 = vsel %vm5878, %v5874, inf
        %5880 = vmin.xlane.f32.xlu0 %v5879
        %v5881 = vpop.xlane.xlu0 %5880
        %v5882 = vcvt.f32.s32 %v5881
        %v5883 = vcvt.f32.s32 %v5877
        %v5884 = vshll.u32 %v5883, 16
        %v5885 = vadd.s32 %v5884, %v5882
        %v5886 = vand.u32 %v5740, 65535
        %v5887 = vshra.s32 %v5740, 16
        %v5888 = vcvt.s32.f32 %v5886
        %v5889 = vcvt.s32.f32 %v5887
        %5890 = vmin.xlane.f32.xlu0 %v5889
        %v5891 = vpop.xlane.xlu0 %5890
        %vm5892 = vcmp.eq.f32.partialorder %v5889, %v5891
        %v5893 = vsel %vm5892, %v5888, inf
        %5894 = vmin.xlane.f32.xlu0 %v5893
        %v5895 = vpop.xlane.xlu0 %5894
        %v5896 = vcvt.f32.s32 %v5895
        %v5897 = vcvt.f32.s32 %v5891
        %v5898 = vshll.u32 %v5897, 16
        %v5899 = vadd.s32 %v5898, %v5896
        %v5900 = vand.u32 %v5741, 65535
        %v5901 = vshra.s32 %v5741, 16
        %v5902 = vcvt.s32.f32 %v5900
        %v5903 = vcvt.s32.f32 %v5901
        %5904 = vmin.xlane.f32.xlu0 %v5903
        %v5905 = vpop.xlane.xlu0 %5904
        %vm5906 = vcmp.eq.f32.partialorder %v5903, %v5905
        %v5907 = vsel %vm5906, %v5902, inf
        %5908 = vmin.xlane.f32.xlu0 %v5907
        %v5909 = vpop.xlane.xlu0 %5908
        %v5910 = vcvt.f32.s32 %v5909
        %v5911 = vcvt.f32.s32 %v5905
        %v5912 = vshll.u32 %v5911, 16
        %v5913 = vadd.s32 %v5912, %v5910
        %v5914 = vand.u32 %v5742, 65535
        %v5915 = vshra.s32 %v5742, 16
        %v5916 = vcvt.s32.f32 %v5914
        %v5917 = vcvt.s32.f32 %v5915
        %5918 = vmin.xlane.f32.xlu0 %v5917
        %v5919 = vpop.xlane.xlu0 %5918
        %vm5920 = vcmp.eq.f32.partialorder %v5917, %v5919
        %v5921 = vsel %vm5920, %v5916, inf
        %5922 = vmin.xlane.f32.xlu0 %v5921
        %v5923 = vpop.xlane.xlu0 %5922
        %v5924 = vcvt.f32.s32 %v5923
        %v5925 = vcvt.f32.s32 %v5919
        %v5926 = vshll.u32 %v5925, 16
        %v5927 = vadd.s32 %v5926, %v5924
        %v5928 = vand.u32 %v5743, 65535
        %v5929 = vshra.s32 %v5743, 16
        %v5930 = vcvt.s32.f32 %v5928
        %v5931 = vcvt.s32.f32 %v5929
        %5932 = vmin.xlane.f32.xlu0 %v5931
        %v5933 = vpop.xlane.xlu0 %5932
        %vm5934 = vcmp.eq.f32.partialorder %v5931, %v5933
        %v5935 = vsel %vm5934, %v5930, inf
        %5936 = vmin.xlane.f32.xlu0 %v5935
        %v5937 = vpop.xlane.xlu0 %5936
        %v5938 = vcvt.f32.s32 %v5937
        %v5939 = vcvt.f32.s32 %v5933
        %v5940 = vshll.u32 %v5939, 16
        %v5941 = vadd.s32 %v5940, %v5938
        %v5942 = vand.u32 %v5744, 65535
        %v5943 = vshra.s32 %v5744, 16
        %v5944 = vcvt.s32.f32 %v5942
        %v5945 = vcvt.s32.f32 %v5943
        %5946 = vmin.xlane.f32.xlu0 %v5945
        %v5947 = vpop.xlane.xlu0 %5946
        %vm5948 = vcmp.eq.f32.partialorder %v5945, %v5947
        %v5949 = vsel %vm5948, %v5944, inf
        %5950 = vmin.xlane.f32.xlu0 %v5949
        %v5951 = vpop.xlane.xlu0 %5950
        %v5952 = vcvt.f32.s32 %v5951
        %v5953 = vcvt.f32.s32 %v5947
        %v5954 = vshll.u32 %v5953, 16
        %v5955 = vadd.s32 %v5954, %v5952
        %v5956 = vand.u32 %v5745, 65535
        %v5957 = vshra.s32 %v5745, 16
        %v5958 = vcvt.s32.f32 %v5956
        %v5959 = vcvt.s32.f32 %v5957
        %5960 = vmin.xlane.f32.xlu0 %v5959
        %v5961 = vpop.xlane.xlu0 %5960
        %vm5962 = vcmp.eq.f32.partialorder %v5959, %v5961
        %v5963 = vsel %vm5962, %v5958, inf
        %5964 = vmin.xlane.f32.xlu0 %v5963
        %v5965 = vpop.xlane.xlu0 %5964
        %v5966 = vcvt.f32.s32 %v5965
        %v5967 = vcvt.f32.s32 %v5961
        %v5968 = vshll.u32 %v5967, 16
        %v5969 = vadd.s32 %v5968, %v5966
        %vm5970 = vcmp.eq.s32.totalorder %v533, %v5759
        %vm5971 = vcmp.eq.s32.totalorder %v533, %v5773
        %vm5972 = vcmp.eq.s32.totalorder %v533, %v5787
        %vm5973 = vcmp.eq.s32.totalorder %v533, %v5801
        %vm5974 = vcmp.eq.s32.totalorder %v533, %v5815
        %vm5975 = vcmp.eq.s32.totalorder %v533, %v5829
        %vm5976 = vcmp.eq.s32.totalorder %v533, %v5843
        %vm5977 = vcmp.eq.s32.totalorder %v533, %v5857
        %vm5978 = vcmp.eq.s32.totalorder %v533, %v5871
        %vm5979 = vcmp.eq.s32.totalorder %v533, %v5885
        %vm5980 = vcmp.eq.s32.totalorder %v533, %v5899
        %vm5981 = vcmp.eq.s32.totalorder %v533, %v5913
        %vm5982 = vcmp.eq.s32.totalorder %v533, %v5927
        %vm5983 = vcmp.eq.s32.totalorder %v533, %v5941
        %vm5984 = vcmp.eq.s32.totalorder %v533, %v5955
        %vm5985 = vcmp.eq.s32.totalorder %v533, %v5969
        %v5986 = vsel %vm5970, 1, 0
        %v5987 = vsel %vm5971, 1, 0
        %v5988 = vsel %vm5972, 1, 0
        %v5989 = vsel %vm5973, 1, 0
        %v5990 = vsel %vm5974, 1, 0
        %v5991 = vsel %vm5975, 1, 0
        %v5992 = vsel %vm5976, 1, 0
        %v5993 = vsel %vm5977, 1, 0
        %v5994 = vsel %vm5978, 1, 0
        %v5995 = vsel %vm5979, 1, 0
        %v5996 = vsel %vm5980, 1, 0
        %v5997 = vsel %vm5981, 1, 0
        %v5998 = vsel %vm5982, 1, 0
        %v5999 = vsel %vm5983, 1, 0
        %v6000 = vsel %vm5984, 1, 0
        %v6001 = vsel %vm5985, 1, 0
        %v6002 = vcvt.s32.f32 %v5986
        %v6003 = vcvt.s32.f32 %v5987
        %v6004 = vcvt.s32.f32 %v5988
        %v6005 = vcvt.s32.f32 %v5989
        %v6006 = vcvt.s32.f32 %v5990
        %v6007 = vcvt.s32.f32 %v5991
        %v6008 = vcvt.s32.f32 %v5992
        %v6009 = vcvt.s32.f32 %v5993
        %v6010 = vcvt.s32.f32 %v5994
        %v6011 = vcvt.s32.f32 %v5995
        %v6012 = vcvt.s32.f32 %v5996
        %v6013 = vcvt.s32.f32 %v5997
        %v6014 = vcvt.s32.f32 %v5998
        %v6015 = vcvt.s32.f32 %v5999
        %v6016 = vcvt.s32.f32 %v6000
        %v6017 = vcvt.s32.f32 %v6001
        %6018 = vst [vmem:[#allocation2 + $0x80] sm:$0xff] %v6002
        %6019 = vst [vmem:[#allocation2 + $0x88] sm:$0xff] %v6003
        %6020 = vst [vmem:[#allocation2 + $0x90] sm:$0xff] %v6004
        %6021 = vst [vmem:[#allocation2 + $0x98] sm:$0xff] %v6005
        %6022 = vst [vmem:[#allocation2 + $0xa0] sm:$0xff] %v6006
        %6023 = vst [vmem:[#allocation2 + $0xa8] sm:$0xff] %v6007
        %6024 = vst [vmem:[#allocation2 + $0xb0] sm:$0xff] %v6008
        %6025 = vst [vmem:[#allocation2 + $0xb8] sm:$0xff] %v6009
        %6026 = vst [vmem:[#allocation2 + $0xc0] sm:$0xff] %v6010
        %6027 = vst [vmem:[#allocation2 + $0xc8] sm:$0xff] %v6011
        %6028 = vst [vmem:[#allocation2 + $0xd0] sm:$0xff] %v6012
        %6029 = vst [vmem:[#allocation2 + $0xd8] sm:$0xff] %v6013
        %6030 = vst [vmem:[#allocation2 + $0xe0] sm:$0xff] %v6014
        %6031 = vst [vmem:[#allocation2 + $0xe8] sm:$0xff] %v6015
        %6032 = vst [vmem:[#allocation2 + $0xf0] sm:$0xff] %v6016
        %6033 = vst [vmem:[#allocation2 + $0xf8] sm:$0xff] %v6017
        %v6034 = vsel %vm5970, 1e+30, %v5666
        %v6035 = vsel %vm5971, 1e+30, %v5667
        %v6036 = vsel %vm5972, 1e+30, %v5668
        %v6037 = vsel %vm5973, 1e+30, %v5669
        %v6038 = vsel %vm5974, 1e+30, %v5670
        %v6039 = vsel %vm5975, 1e+30, %v5671
        %v6040 = vsel %vm5976, 1e+30, %v5672
        %v6041 = vsel %vm5977, 1e+30, %v5673
        %v6042 = vsel %vm5978, 1e+30, %v5674
        %v6043 = vsel %vm5979, 1e+30, %v5675
        %v6044 = vsel %vm5980, 1e+30, %v5676
        %v6045 = vsel %vm5981, 1e+30, %v5677
        %v6046 = vsel %vm5982, 1e+30, %v5678
        %v6047 = vsel %vm5983, 1e+30, %v5679
        %v6048 = vsel %vm5984, 1e+30, %v5680
        %v6049 = vsel %vm5985, 1e+30, %v5681
        %6050 = vmin.xlane.f32.xlu0 %v6034
        %v6051 = vpop.xlane.xlu0 %6050
        %6052 = vmin.xlane.f32.xlu0 %v6035
        %v6053 = vpop.xlane.xlu0 %6052
        %6054 = vmin.xlane.f32.xlu0 %v6036
        %v6055 = vpop.xlane.xlu0 %6054
        %6056 = vmin.xlane.f32.xlu0 %v6037
        %v6057 = vpop.xlane.xlu0 %6056
        %6058 = vmin.xlane.f32.xlu0 %v6038
        %v6059 = vpop.xlane.xlu0 %6058
        %6060 = vmin.xlane.f32.xlu0 %v6039
        %v6061 = vpop.xlane.xlu0 %6060
        %6062 = vmin.xlane.f32.xlu0 %v6040
        %v6063 = vpop.xlane.xlu0 %6062
        %6064 = vmin.xlane.f32.xlu0 %v6041
        %v6065 = vpop.xlane.xlu0 %6064
        %6066 = vmin.xlane.f32.xlu0 %v6042
        %v6067 = vpop.xlane.xlu0 %6066
        %6068 = vmin.xlane.f32.xlu0 %v6043
        %v6069 = vpop.xlane.xlu0 %6068
        %6070 = vmin.xlane.f32.xlu0 %v6044
        %v6071 = vpop.xlane.xlu0 %6070
        %6072 = vmin.xlane.f32.xlu0 %v6045
        %v6073 = vpop.xlane.xlu0 %6072
        %6074 = vmin.xlane.f32.xlu0 %v6046
        %v6075 = vpop.xlane.xlu0 %6074
        %6076 = vmin.xlane.f32.xlu0 %v6047
        %v6077 = vpop.xlane.xlu0 %6076
        %6078 = vmin.xlane.f32.xlu0 %v6048
        %v6079 = vpop.xlane.xlu0 %6078
        %6080 = vmin.xlane.f32.xlu0 %v6049
        %v6081 = vpop.xlane.xlu0 %6080
        %vm6082 = vcmp.le.f32.partialorder %v6034, %v6051
        %vm6083 = vcmp.le.f32.partialorder %v6035, %v6053
        %vm6084 = vcmp.le.f32.partialorder %v6036, %v6055
        %vm6085 = vcmp.le.f32.partialorder %v6037, %v6057
        %vm6086 = vcmp.le.f32.partialorder %v6038, %v6059
        %vm6087 = vcmp.le.f32.partialorder %v6039, %v6061
        %vm6088 = vcmp.le.f32.partialorder %v6040, %v6063
        %vm6089 = vcmp.le.f32.partialorder %v6041, %v6065
        %vm6090 = vcmp.le.f32.partialorder %v6042, %v6067
        %vm6091 = vcmp.le.f32.partialorder %v6043, %v6069
        %vm6092 = vcmp.le.f32.partialorder %v6044, %v6071
        %vm6093 = vcmp.le.f32.partialorder %v6045, %v6073
        %vm6094 = vcmp.le.f32.partialorder %v6046, %v6075
        %vm6095 = vcmp.le.f32.partialorder %v6047, %v6077
        %vm6096 = vcmp.le.f32.partialorder %v6048, %v6079
        %vm6097 = vcmp.le.f32.partialorder %v6049, %v6081
        %v6098 = vsel %vm6082, %v533, 128
        %v6099 = vsel %vm6083, %v533, 128
        %v6100 = vsel %vm6084, %v533, 128
        %v6101 = vsel %vm6085, %v533, 128
        %v6102 = vsel %vm6086, %v533, 128
        %v6103 = vsel %vm6087, %v533, 128
        %v6104 = vsel %vm6088, %v533, 128
        %v6105 = vsel %vm6089, %v533, 128
        %v6106 = vsel %vm6090, %v533, 128
        %v6107 = vsel %vm6091, %v533, 128
        %v6108 = vsel %vm6092, %v533, 128
        %v6109 = vsel %vm6093, %v533, 128
        %v6110 = vsel %vm6094, %v533, 128
        %v6111 = vsel %vm6095, %v533, 128
        %v6112 = vsel %vm6096, %v533, 128
        %v6113 = vsel %vm6097, %v533, 128
        %v6114 = vand.u32 %v6098, 65535
        %v6115 = vshra.s32 %v6098, 16
        %v6116 = vcvt.s32.f32 %v6114
        %v6117 = vcvt.s32.f32 %v6115
        %6118 = vmin.xlane.f32.xlu0 %v6117
        %v6119 = vpop.xlane.xlu0 %6118
        %vm6120 = vcmp.eq.f32.partialorder %v6117, %v6119
        %v6121 = vsel %vm6120, %v6116, inf
        %6122 = vmin.xlane.f32.xlu0 %v6121
        %v6123 = vpop.xlane.xlu0 %6122
        %v6124 = vcvt.f32.s32 %v6123
        %v6125 = vcvt.f32.s32 %v6119
        %v6126 = vshll.u32 %v6125, 16
        %v6127 = vadd.s32 %v6126, %v6124
        %v6128 = vand.u32 %v6099, 65535
        %v6129 = vshra.s32 %v6099, 16
        %v6130 = vcvt.s32.f32 %v6128
        %v6131 = vcvt.s32.f32 %v6129
        %6132 = vmin.xlane.f32.xlu0 %v6131
        %v6133 = vpop.xlane.xlu0 %6132
        %vm6134 = vcmp.eq.f32.partialorder %v6131, %v6133
        %v6135 = vsel %vm6134, %v6130, inf
        %6136 = vmin.xlane.f32.xlu0 %v6135
        %v6137 = vpop.xlane.xlu0 %6136
        %v6138 = vcvt.f32.s32 %v6137
        %v6139 = vcvt.f32.s32 %v6133
        %v6140 = vshll.u32 %v6139, 16
        %v6141 = vadd.s32 %v6140, %v6138
        %v6142 = vand.u32 %v6100, 65535
        %v6143 = vshra.s32 %v6100, 16
        %v6144 = vcvt.s32.f32 %v6142
        %v6145 = vcvt.s32.f32 %v6143
        %6146 = vmin.xlane.f32.xlu0 %v6145
        %v6147 = vpop.xlane.xlu0 %6146
        %vm6148 = vcmp.eq.f32.partialorder %v6145, %v6147
        %v6149 = vsel %vm6148, %v6144, inf
        %6150 = vmin.xlane.f32.xlu0 %v6149
        %v6151 = vpop.xlane.xlu0 %6150
        %v6152 = vcvt.f32.s32 %v6151
        %v6153 = vcvt.f32.s32 %v6147
        %v6154 = vshll.u32 %v6153, 16
        %v6155 = vadd.s32 %v6154, %v6152
        %v6156 = vand.u32 %v6101, 65535
        %v6157 = vshra.s32 %v6101, 16
        %v6158 = vcvt.s32.f32 %v6156
        %v6159 = vcvt.s32.f32 %v6157
        %6160 = vmin.xlane.f32.xlu0 %v6159
        %v6161 = vpop.xlane.xlu0 %6160
        %vm6162 = vcmp.eq.f32.partialorder %v6159, %v6161
        %v6163 = vsel %vm6162, %v6158, inf
        %6164 = vmin.xlane.f32.xlu0 %v6163
        %v6165 = vpop.xlane.xlu0 %6164
        %v6166 = vcvt.f32.s32 %v6165
        %v6167 = vcvt.f32.s32 %v6161
        %v6168 = vshll.u32 %v6167, 16
        %v6169 = vadd.s32 %v6168, %v6166
        %v6170 = vand.u32 %v6102, 65535
        %v6171 = vshra.s32 %v6102, 16
        %v6172 = vcvt.s32.f32 %v6170
        %v6173 = vcvt.s32.f32 %v6171
        %6174 = vmin.xlane.f32.xlu0 %v6173
        %v6175 = vpop.xlane.xlu0 %6174
        %vm6176 = vcmp.eq.f32.partialorder %v6173, %v6175
        %v6177 = vsel %vm6176, %v6172, inf
        %6178 = vmin.xlane.f32.xlu0 %v6177
        %v6179 = vpop.xlane.xlu0 %6178
        %v6180 = vcvt.f32.s32 %v6179
        %v6181 = vcvt.f32.s32 %v6175
        %v6182 = vshll.u32 %v6181, 16
        %v6183 = vadd.s32 %v6182, %v6180
        %v6184 = vand.u32 %v6103, 65535
        %v6185 = vshra.s32 %v6103, 16
        %v6186 = vcvt.s32.f32 %v6184
        %v6187 = vcvt.s32.f32 %v6185
        %6188 = vmin.xlane.f32.xlu0 %v6187
        %v6189 = vpop.xlane.xlu0 %6188
        %vm6190 = vcmp.eq.f32.partialorder %v6187, %v6189
        %v6191 = vsel %vm6190, %v6186, inf
        %6192 = vmin.xlane.f32.xlu0 %v6191
        %v6193 = vpop.xlane.xlu0 %6192
        %v6194 = vcvt.f32.s32 %v6193
        %v6195 = vcvt.f32.s32 %v6189
        %v6196 = vshll.u32 %v6195, 16
        %v6197 = vadd.s32 %v6196, %v6194
        %v6198 = vand.u32 %v6104, 65535
        %v6199 = vshra.s32 %v6104, 16
        %v6200 = vcvt.s32.f32 %v6198
        %v6201 = vcvt.s32.f32 %v6199
        %6202 = vmin.xlane.f32.xlu0 %v6201
        %v6203 = vpop.xlane.xlu0 %6202
        %vm6204 = vcmp.eq.f32.partialorder %v6201, %v6203
        %v6205 = vsel %vm6204, %v6200, inf
        %6206 = vmin.xlane.f32.xlu0 %v6205
        %v6207 = vpop.xlane.xlu0 %6206
        %v6208 = vcvt.f32.s32 %v6207
        %v6209 = vcvt.f32.s32 %v6203
        %v6210 = vshll.u32 %v6209, 16
        %v6211 = vadd.s32 %v6210, %v6208
        %v6212 = vand.u32 %v6105, 65535
        %v6213 = vshra.s32 %v6105, 16
        %v6214 = vcvt.s32.f32 %v6212
        %v6215 = vcvt.s32.f32 %v6213
        %6216 = vmin.xlane.f32.xlu0 %v6215
        %v6217 = vpop.xlane.xlu0 %6216
        %vm6218 = vcmp.eq.f32.partialorder %v6215, %v6217
        %v6219 = vsel %vm6218, %v6214, inf
        %6220 = vmin.xlane.f32.xlu0 %v6219
        %v6221 = vpop.xlane.xlu0 %6220
        %v6222 = vcvt.f32.s32 %v6221
        %v6223 = vcvt.f32.s32 %v6217
        %v6224 = vshll.u32 %v6223, 16
        %v6225 = vadd.s32 %v6224, %v6222
        %v6226 = vand.u32 %v6106, 65535
        %v6227 = vshra.s32 %v6106, 16
        %v6228 = vcvt.s32.f32 %v6226
        %v6229 = vcvt.s32.f32 %v6227
        %6230 = vmin.xlane.f32.xlu0 %v6229
        %v6231 = vpop.xlane.xlu0 %6230
        %vm6232 = vcmp.eq.f32.partialorder %v6229, %v6231
        %v6233 = vsel %vm6232, %v6228, inf
        %6234 = vmin.xlane.f32.xlu0 %v6233
        %v6235 = vpop.xlane.xlu0 %6234
        %v6236 = vcvt.f32.s32 %v6235
        %v6237 = vcvt.f32.s32 %v6231
        %v6238 = vshll.u32 %v6237, 16
        %v6239 = vadd.s32 %v6238, %v6236
        %v6240 = vand.u32 %v6107, 65535
        %v6241 = vshra.s32 %v6107, 16
        %v6242 = vcvt.s32.f32 %v6240
        %v6243 = vcvt.s32.f32 %v6241
        %6244 = vmin.xlane.f32.xlu0 %v6243
        %v6245 = vpop.xlane.xlu0 %6244
        %vm6246 = vcmp.eq.f32.partialorder %v6243, %v6245
        %v6247 = vsel %vm6246, %v6242, inf
        %6248 = vmin.xlane.f32.xlu0 %v6247
        %v6249 = vpop.xlane.xlu0 %6248
        %v6250 = vcvt.f32.s32 %v6249
        %v6251 = vcvt.f32.s32 %v6245
        %v6252 = vshll.u32 %v6251, 16
        %v6253 = vadd.s32 %v6252, %v6250
        %v6254 = vand.u32 %v6108, 65535
        %v6255 = vshra.s32 %v6108, 16
        %v6256 = vcvt.s32.f32 %v6254
        %v6257 = vcvt.s32.f32 %v6255
        %6258 = vmin.xlane.f32.xlu0 %v6257
        %v6259 = vpop.xlane.xlu0 %6258
        %vm6260 = vcmp.eq.f32.partialorder %v6257, %v6259
        %v6261 = vsel %vm6260, %v6256, inf
        %6262 = vmin.xlane.f32.xlu0 %v6261
        %v6263 = vpop.xlane.xlu0 %6262
        %v6264 = vcvt.f32.s32 %v6263
        %v6265 = vcvt.f32.s32 %v6259
        %v6266 = vshll.u32 %v6265, 16
        %v6267 = vadd.s32 %v6266, %v6264
        %v6268 = vand.u32 %v6109, 65535
        %v6269 = vshra.s32 %v6109, 16
        %v6270 = vcvt.s32.f32 %v6268
        %v6271 = vcvt.s32.f32 %v6269
        %6272 = vmin.xlane.f32.xlu0 %v6271
        %v6273 = vpop.xlane.xlu0 %6272
        %vm6274 = vcmp.eq.f32.partialorder %v6271, %v6273
        %v6275 = vsel %vm6274, %v6270, inf
        %6276 = vmin.xlane.f32.xlu0 %v6275
        %v6277 = vpop.xlane.xlu0 %6276
        %v6278 = vcvt.f32.s32 %v6277
        %v6279 = vcvt.f32.s32 %v6273
        %v6280 = vshll.u32 %v6279, 16
        %v6281 = vadd.s32 %v6280, %v6278
        %v6282 = vand.u32 %v6110, 65535
        %v6283 = vshra.s32 %v6110, 16
        %v6284 = vcvt.s32.f32 %v6282
        %v6285 = vcvt.s32.f32 %v6283
        %6286 = vmin.xlane.f32.xlu0 %v6285
        %v6287 = vpop.xlane.xlu0 %6286
        %vm6288 = vcmp.eq.f32.partialorder %v6285, %v6287
        %v6289 = vsel %vm6288, %v6284, inf
        %6290 = vmin.xlane.f32.xlu0 %v6289
        %v6291 = vpop.xlane.xlu0 %6290
        %v6292 = vcvt.f32.s32 %v6291
        %v6293 = vcvt.f32.s32 %v6287
        %v6294 = vshll.u32 %v6293, 16
        %v6295 = vadd.s32 %v6294, %v6292
        %v6296 = vand.u32 %v6111, 65535
        %v6297 = vshra.s32 %v6111, 16
        %v6298 = vcvt.s32.f32 %v6296
        %v6299 = vcvt.s32.f32 %v6297
        %6300 = vmin.xlane.f32.xlu0 %v6299
        %v6301 = vpop.xlane.xlu0 %6300
        %vm6302 = vcmp.eq.f32.partialorder %v6299, %v6301
        %v6303 = vsel %vm6302, %v6298, inf
        %6304 = vmin.xlane.f32.xlu0 %v6303
        %v6305 = vpop.xlane.xlu0 %6304
        %v6306 = vcvt.f32.s32 %v6305
        %v6307 = vcvt.f32.s32 %v6301
        %v6308 = vshll.u32 %v6307, 16
        %v6309 = vadd.s32 %v6308, %v6306
        %v6310 = vand.u32 %v6112, 65535
        %v6311 = vshra.s32 %v6112, 16
        %v6312 = vcvt.s32.f32 %v6310
        %v6313 = vcvt.s32.f32 %v6311
        %6314 = vmin.xlane.f32.xlu0 %v6313
        %v6315 = vpop.xlane.xlu0 %6314
        %vm6316 = vcmp.eq.f32.partialorder %v6313, %v6315
        %v6317 = vsel %vm6316, %v6312, inf
        %6318 = vmin.xlane.f32.xlu0 %v6317
        %v6319 = vpop.xlane.xlu0 %6318
        %v6320 = vcvt.f32.s32 %v6319
        %v6321 = vcvt.f32.s32 %v6315
        %v6322 = vshll.u32 %v6321, 16
        %v6323 = vadd.s32 %v6322, %v6320
        %v6324 = vand.u32 %v6113, 65535
        %v6325 = vshra.s32 %v6113, 16
        %v6326 = vcvt.s32.f32 %v6324
        %v6327 = vcvt.s32.f32 %v6325
        %6328 = vmin.xlane.f32.xlu0 %v6327
        %v6329 = vpop.xlane.xlu0 %6328
        %vm6330 = vcmp.eq.f32.partialorder %v6327, %v6329
        %v6331 = vsel %vm6330, %v6326, inf
        %6332 = vmin.xlane.f32.xlu0 %v6331
        %v6333 = vpop.xlane.xlu0 %6332
        %v6334 = vcvt.f32.s32 %v6333
        %v6335 = vcvt.f32.s32 %v6329
        %v6336 = vshll.u32 %v6335, 16
        %v6337 = vadd.s32 %v6336, %v6334
        %vm6338 = vcmp.eq.s32.totalorder %v533, %v6127
        %vm6339 = vcmp.eq.s32.totalorder %v533, %v6141
        %vm6340 = vcmp.eq.s32.totalorder %v533, %v6155
        %vm6341 = vcmp.eq.s32.totalorder %v533, %v6169
        %vm6342 = vcmp.eq.s32.totalorder %v533, %v6183
        %vm6343 = vcmp.eq.s32.totalorder %v533, %v6197
        %vm6344 = vcmp.eq.s32.totalorder %v533, %v6211
        %vm6345 = vcmp.eq.s32.totalorder %v533, %v6225
        %vm6346 = vcmp.eq.s32.totalorder %v533, %v6239
        %vm6347 = vcmp.eq.s32.totalorder %v533, %v6253
        %vm6348 = vcmp.eq.s32.totalorder %v533, %v6267
        %vm6349 = vcmp.eq.s32.totalorder %v533, %v6281
        %vm6350 = vcmp.eq.s32.totalorder %v533, %v6295
        %vm6351 = vcmp.eq.s32.totalorder %v533, %v6309
        %vm6352 = vcmp.eq.s32.totalorder %v533, %v6323
        %vm6353 = vcmp.eq.s32.totalorder %v533, %v6337
        %v6354 = vsel %vm6338, 1, 0
        %v6355 = vsel %vm6339, 1, 0
        %v6356 = vsel %vm6340, 1, 0
        %v6357 = vsel %vm6341, 1, 0
        %v6358 = vsel %vm6342, 1, 0
        %v6359 = vsel %vm6343, 1, 0
        %v6360 = vsel %vm6344, 1, 0
        %v6361 = vsel %vm6345, 1, 0
        %v6362 = vsel %vm6346, 1, 0
        %v6363 = vsel %vm6347, 1, 0
        %v6364 = vsel %vm6348, 1, 0
        %v6365 = vsel %vm6349, 1, 0
        %v6366 = vsel %vm6350, 1, 0
        %v6367 = vsel %vm6351, 1, 0
        %v6368 = vsel %vm6352, 1, 0
        %v6369 = vsel %vm6353, 1, 0
        %v6370 = vcvt.s32.f32 %v6354
        %v6371 = vcvt.s32.f32 %v6355
        %v6372 = vcvt.s32.f32 %v6356
        %v6373 = vcvt.s32.f32 %v6357
        %v6374 = vcvt.s32.f32 %v6358
        %v6375 = vcvt.s32.f32 %v6359
        %v6376 = vcvt.s32.f32 %v6360
        %v6377 = vcvt.s32.f32 %v6361
        %v6378 = vcvt.s32.f32 %v6362
        %v6379 = vcvt.s32.f32 %v6363
        %v6380 = vcvt.s32.f32 %v6364
        %v6381 = vcvt.s32.f32 %v6365
        %v6382 = vcvt.s32.f32 %v6366
        %v6383 = vcvt.s32.f32 %v6367
        %v6384 = vcvt.s32.f32 %v6368
        %v6385 = vcvt.s32.f32 %v6369
        %6386 = vst [vmem:[#allocation2 + $0x100] sm:$0xff] %v6370
        %6387 = vst [vmem:[#allocation2 + $0x108] sm:$0xff] %v6371
        %6388 = vst [vmem:[#allocation2 + $0x110] sm:$0xff] %v6372
        %6389 = vst [vmem:[#allocation2 + $0x118] sm:$0xff] %v6373
        %6390 = vst [vmem:[#allocation2 + $0x120] sm:$0xff] %v6374
        %6391 = vst [vmem:[#allocation2 + $0x128] sm:$0xff] %v6375
        %6392 = vst [vmem:[#allocation2 + $0x130] sm:$0xff] %v6376
        %6393 = vst [vmem:[#allocation2 + $0x138] sm:$0xff] %v6377
        %6394 = vst [vmem:[#allocation2 + $0x140] sm:$0xff] %v6378
        %6395 = vst [vmem:[#allocation2 + $0x148] sm:$0xff] %v6379
        %6396 = vst [vmem:[#allocation2 + $0x150] sm:$0xff] %v6380
        %6397 = vst [vmem:[#allocation2 + $0x158] sm:$0xff] %v6381
        %6398 = vst [vmem:[#allocation2 + $0x160] sm:$0xff] %v6382
        %6399 = vst [vmem:[#allocation2 + $0x168] sm:$0xff] %v6383
        %6400 = vst [vmem:[#allocation2 + $0x170] sm:$0xff] %v6384
        %6401 = vst [vmem:[#allocation2 + $0x178] sm:$0xff] %v6385
        %v6402 = vsel %vm6338, 1e+30, %v6034
        %v6403 = vsel %vm6339, 1e+30, %v6035
        %v6404 = vsel %vm6340, 1e+30, %v6036
        %v6405 = vsel %vm6341, 1e+30, %v6037
        %v6406 = vsel %vm6342, 1e+30, %v6038
        %v6407 = vsel %vm6343, 1e+30, %v6039
        %v6408 = vsel %vm6344, 1e+30, %v6040
        %v6409 = vsel %vm6345, 1e+30, %v6041
        %v6410 = vsel %vm6346, 1e+30, %v6042
        %v6411 = vsel %vm6347, 1e+30, %v6043
        %v6412 = vsel %vm6348, 1e+30, %v6044
        %v6413 = vsel %vm6349, 1e+30, %v6045
        %v6414 = vsel %vm6350, 1e+30, %v6046
        %v6415 = vsel %vm6351, 1e+30, %v6047
        %v6416 = vsel %vm6352, 1e+30, %v6048
        %v6417 = vsel %vm6353, 1e+30, %v6049
        %6418 = vmin.xlane.f32.xlu0 %v6402
        %v6419 = vpop.xlane.xlu0 %6418
        %6420 = vmin.xlane.f32.xlu0 %v6403
        %v6421 = vpop.xlane.xlu0 %6420
        %6422 = vmin.xlane.f32.xlu0 %v6404
        %v6423 = vpop.xlane.xlu0 %6422
        %6424 = vmin.xlane.f32.xlu0 %v6405
        %v6425 = vpop.xlane.xlu0 %6424
        %6426 = vmin.xlane.f32.xlu0 %v6406
        %v6427 = vpop.xlane.xlu0 %6426
        %6428 = vmin.xlane.f32.xlu0 %v6407
        %v6429 = vpop.xlane.xlu0 %6428
        %6430 = vmin.xlane.f32.xlu0 %v6408
        %v6431 = vpop.xlane.xlu0 %6430
        %6432 = vmin.xlane.f32.xlu0 %v6409
        %v6433 = vpop.xlane.xlu0 %6432
        %6434 = vmin.xlane.f32.xlu0 %v6410
        %v6435 = vpop.xlane.xlu0 %6434
        %6436 = vmin.xlane.f32.xlu0 %v6411
        %v6437 = vpop.xlane.xlu0 %6436
        %6438 = vmin.xlane.f32.xlu0 %v6412
        %v6439 = vpop.xlane.xlu0 %6438
        %6440 = vmin.xlane.f32.xlu0 %v6413
        %v6441 = vpop.xlane.xlu0 %6440
        %6442 = vmin.xlane.f32.xlu0 %v6414
        %v6443 = vpop.xlane.xlu0 %6442
        %6444 = vmin.xlane.f32.xlu0 %v6415
        %v6445 = vpop.xlane.xlu0 %6444
        %6446 = vmin.xlane.f32.xlu0 %v6416
        %v6447 = vpop.xlane.xlu0 %6446
        %6448 = vmin.xlane.f32.xlu0 %v6417
        %v6449 = vpop.xlane.xlu0 %6448
        %vm6450 = vcmp.le.f32.partialorder %v6402, %v6419
        %vm6451 = vcmp.le.f32.partialorder %v6403, %v6421
        %vm6452 = vcmp.le.f32.partialorder %v6404, %v6423
        %vm6453 = vcmp.le.f32.partialorder %v6405, %v6425
        %vm6454 = vcmp.le.f32.partialorder %v6406, %v6427
        %vm6455 = vcmp.le.f32.partialorder %v6407, %v6429
        %vm6456 = vcmp.le.f32.partialorder %v6408, %v6431
        %vm6457 = vcmp.le.f32.partialorder %v6409, %v6433
        %vm6458 = vcmp.le.f32.partialorder %v6410, %v6435
        %vm6459 = vcmp.le.f32.partialorder %v6411, %v6437
        %vm6460 = vcmp.le.f32.partialorder %v6412, %v6439
        %vm6461 = vcmp.le.f32.partialorder %v6413, %v6441
        %vm6462 = vcmp.le.f32.partialorder %v6414, %v6443
        %vm6463 = vcmp.le.f32.partialorder %v6415, %v6445
        %vm6464 = vcmp.le.f32.partialorder %v6416, %v6447
        %vm6465 = vcmp.le.f32.partialorder %v6417, %v6449
        %v6466 = vsel %vm6450, %v533, 128
        %v6467 = vsel %vm6451, %v533, 128
        %v6468 = vsel %vm6452, %v533, 128
        %v6469 = vsel %vm6453, %v533, 128
        %v6470 = vsel %vm6454, %v533, 128
        %v6471 = vsel %vm6455, %v533, 128
        %v6472 = vsel %vm6456, %v533, 128
        %v6473 = vsel %vm6457, %v533, 128
        %v6474 = vsel %vm6458, %v533, 128
        %v6475 = vsel %vm6459, %v533, 128
        %v6476 = vsel %vm6460, %v533, 128
        %v6477 = vsel %vm6461, %v533, 128
        %v6478 = vsel %vm6462, %v533, 128
        %v6479 = vsel %vm6463, %v533, 128
        %v6480 = vsel %vm6464, %v533, 128
        %v6481 = vsel %vm6465, %v533, 128
        %v6482 = vand.u32 %v6466, 65535
        %v6483 = vshra.s32 %v6466, 16
        %v6484 = vcvt.s32.f32 %v6482
        %v6485 = vcvt.s32.f32 %v6483
        %6486 = vmin.xlane.f32.xlu0 %v6485
        %v6487 = vpop.xlane.xlu0 %6486
        %vm6488 = vcmp.eq.f32.partialorder %v6485, %v6487
        %v6489 = vsel %vm6488, %v6484, inf
        %6490 = vmin.xlane.f32.xlu0 %v6489
        %v6491 = vpop.xlane.xlu0 %6490
        %v6492 = vcvt.f32.s32 %v6491
        %v6493 = vcvt.f32.s32 %v6487
        %v6494 = vshll.u32 %v6493, 16
        %v6495 = vadd.s32 %v6494, %v6492
        %v6496 = vand.u32 %v6467, 65535
        %v6497 = vshra.s32 %v6467, 16
        %v6498 = vcvt.s32.f32 %v6496
        %v6499 = vcvt.s32.f32 %v6497
        %6500 = vmin.xlane.f32.xlu0 %v6499
        %v6501 = vpop.xlane.xlu0 %6500
        %vm6502 = vcmp.eq.f32.partialorder %v6499, %v6501
        %v6503 = vsel %vm6502, %v6498, inf
        %6504 = vmin.xlane.f32.xlu0 %v6503
        %v6505 = vpop.xlane.xlu0 %6504
        %v6506 = vcvt.f32.s32 %v6505
        %v6507 = vcvt.f32.s32 %v6501
        %v6508 = vshll.u32 %v6507, 16
        %v6509 = vadd.s32 %v6508, %v6506
        %v6510 = vand.u32 %v6468, 65535
        %v6511 = vshra.s32 %v6468, 16
        %v6512 = vcvt.s32.f32 %v6510
        %v6513 = vcvt.s32.f32 %v6511
        %6514 = vmin.xlane.f32.xlu0 %v6513
        %v6515 = vpop.xlane.xlu0 %6514
        %vm6516 = vcmp.eq.f32.partialorder %v6513, %v6515
        %v6517 = vsel %vm6516, %v6512, inf
        %6518 = vmin.xlane.f32.xlu0 %v6517
        %v6519 = vpop.xlane.xlu0 %6518
        %v6520 = vcvt.f32.s32 %v6519
        %v6521 = vcvt.f32.s32 %v6515
        %v6522 = vshll.u32 %v6521, 16
        %v6523 = vadd.s32 %v6522, %v6520
        %v6524 = vand.u32 %v6469, 65535
        %v6525 = vshra.s32 %v6469, 16
        %v6526 = vcvt.s32.f32 %v6524
        %v6527 = vcvt.s32.f32 %v6525
        %6528 = vmin.xlane.f32.xlu0 %v6527
        %v6529 = vpop.xlane.xlu0 %6528
        %vm6530 = vcmp.eq.f32.partialorder %v6527, %v6529
        %v6531 = vsel %vm6530, %v6526, inf
        %6532 = vmin.xlane.f32.xlu0 %v6531
        %v6533 = vpop.xlane.xlu0 %6532
        %v6534 = vcvt.f32.s32 %v6533
        %v6535 = vcvt.f32.s32 %v6529
        %v6536 = vshll.u32 %v6535, 16
        %v6537 = vadd.s32 %v6536, %v6534
        %v6538 = vand.u32 %v6470, 65535
        %v6539 = vshra.s32 %v6470, 16
        %v6540 = vcvt.s32.f32 %v6538
        %v6541 = vcvt.s32.f32 %v6539
        %6542 = vmin.xlane.f32.xlu0 %v6541
        %v6543 = vpop.xlane.xlu0 %6542
        %vm6544 = vcmp.eq.f32.partialorder %v6541, %v6543
        %v6545 = vsel %vm6544, %v6540, inf
        %6546 = vmin.xlane.f32.xlu0 %v6545
        %v6547 = vpop.xlane.xlu0 %6546
        %v6548 = vcvt.f32.s32 %v6547
        %v6549 = vcvt.f32.s32 %v6543
        %v6550 = vshll.u32 %v6549, 16
        %v6551 = vadd.s32 %v6550, %v6548
        %v6552 = vand.u32 %v6471, 65535
        %v6553 = vshra.s32 %v6471, 16
        %v6554 = vcvt.s32.f32 %v6552
        %v6555 = vcvt.s32.f32 %v6553
        %6556 = vmin.xlane.f32.xlu0 %v6555
        %v6557 = vpop.xlane.xlu0 %6556
        %vm6558 = vcmp.eq.f32.partialorder %v6555, %v6557
        %v6559 = vsel %vm6558, %v6554, inf
        %6560 = vmin.xlane.f32.xlu0 %v6559
        %v6561 = vpop.xlane.xlu0 %6560
        %v6562 = vcvt.f32.s32 %v6561
        %v6563 = vcvt.f32.s32 %v6557
        %v6564 = vshll.u32 %v6563, 16
        %v6565 = vadd.s32 %v6564, %v6562
        %v6566 = vand.u32 %v6472, 65535
        %v6567 = vshra.s32 %v6472, 16
        %v6568 = vcvt.s32.f32 %v6566
        %v6569 = vcvt.s32.f32 %v6567
        %6570 = vmin.xlane.f32.xlu0 %v6569
        %v6571 = vpop.xlane.xlu0 %6570
        %vm6572 = vcmp.eq.f32.partialorder %v6569, %v6571
        %v6573 = vsel %vm6572, %v6568, inf
        %6574 = vmin.xlane.f32.xlu0 %v6573
        %v6575 = vpop.xlane.xlu0 %6574
        %v6576 = vcvt.f32.s32 %v6575
        %v6577 = vcvt.f32.s32 %v6571
        %v6578 = vshll.u32 %v6577, 16
        %v6579 = vadd.s32 %v6578, %v6576
        %v6580 = vand.u32 %v6473, 65535
        %v6581 = vshra.s32 %v6473, 16
        %v6582 = vcvt.s32.f32 %v6580
        %v6583 = vcvt.s32.f32 %v6581
        %6584 = vmin.xlane.f32.xlu0 %v6583
        %v6585 = vpop.xlane.xlu0 %6584
        %vm6586 = vcmp.eq.f32.partialorder %v6583, %v6585
        %v6587 = vsel %vm6586, %v6582, inf
        %6588 = vmin.xlane.f32.xlu0 %v6587
        %v6589 = vpop.xlane.xlu0 %6588
        %v6590 = vcvt.f32.s32 %v6589
        %v6591 = vcvt.f32.s32 %v6585
        %v6592 = vshll.u32 %v6591, 16
        %v6593 = vadd.s32 %v6592, %v6590
        %v6594 = vand.u32 %v6474, 65535
        %v6595 = vshra.s32 %v6474, 16
        %v6596 = vcvt.s32.f32 %v6594
        %v6597 = vcvt.s32.f32 %v6595
        %6598 = vmin.xlane.f32.xlu0 %v6597
        %v6599 = vpop.xlane.xlu0 %6598
        %vm6600 = vcmp.eq.f32.partialorder %v6597, %v6599
        %v6601 = vsel %vm6600, %v6596, inf
        %6602 = vmin.xlane.f32.xlu0 %v6601
        %v6603 = vpop.xlane.xlu0 %6602
        %v6604 = vcvt.f32.s32 %v6603
        %v6605 = vcvt.f32.s32 %v6599
        %v6606 = vshll.u32 %v6605, 16
        %v6607 = vadd.s32 %v6606, %v6604
        %v6608 = vand.u32 %v6475, 65535
        %v6609 = vshra.s32 %v6475, 16
        %v6610 = vcvt.s32.f32 %v6608
        %v6611 = vcvt.s32.f32 %v6609
        %6612 = vmin.xlane.f32.xlu0 %v6611
        %v6613 = vpop.xlane.xlu0 %6612
        %vm6614 = vcmp.eq.f32.partialorder %v6611, %v6613
        %v6615 = vsel %vm6614, %v6610, inf
        %6616 = vmin.xlane.f32.xlu0 %v6615
        %v6617 = vpop.xlane.xlu0 %6616
        %v6618 = vcvt.f32.s32 %v6617
        %v6619 = vcvt.f32.s32 %v6613
        %v6620 = vshll.u32 %v6619, 16
        %v6621 = vadd.s32 %v6620, %v6618
        %v6622 = vand.u32 %v6476, 65535
        %v6623 = vshra.s32 %v6476, 16
        %v6624 = vcvt.s32.f32 %v6622
        %v6625 = vcvt.s32.f32 %v6623
        %6626 = vmin.xlane.f32.xlu0 %v6625
        %v6627 = vpop.xlane.xlu0 %6626
        %vm6628 = vcmp.eq.f32.partialorder %v6625, %v6627
        %v6629 = vsel %vm6628, %v6624, inf
        %6630 = vmin.xlane.f32.xlu0 %v6629
        %v6631 = vpop.xlane.xlu0 %6630
        %v6632 = vcvt.f32.s32 %v6631
        %v6633 = vcvt.f32.s32 %v6627
        %v6634 = vshll.u32 %v6633, 16
        %v6635 = vadd.s32 %v6634, %v6632
        %v6636 = vand.u32 %v6477, 65535
        %v6637 = vshra.s32 %v6477, 16
        %v6638 = vcvt.s32.f32 %v6636
        %v6639 = vcvt.s32.f32 %v6637
        %6640 = vmin.xlane.f32.xlu0 %v6639
        %v6641 = vpop.xlane.xlu0 %6640
        %vm6642 = vcmp.eq.f32.partialorder %v6639, %v6641
        %v6643 = vsel %vm6642, %v6638, inf
        %6644 = vmin.xlane.f32.xlu0 %v6643
        %v6645 = vpop.xlane.xlu0 %6644
        %v6646 = vcvt.f32.s32 %v6645
        %v6647 = vcvt.f32.s32 %v6641
        %v6648 = vshll.u32 %v6647, 16
        %v6649 = vadd.s32 %v6648, %v6646
        %v6650 = vand.u32 %v6478, 65535
        %v6651 = vshra.s32 %v6478, 16
        %v6652 = vcvt.s32.f32 %v6650
        %v6653 = vcvt.s32.f32 %v6651
        %6654 = vmin.xlane.f32.xlu0 %v6653
        %v6655 = vpop.xlane.xlu0 %6654
        %vm6656 = vcmp.eq.f32.partialorder %v6653, %v6655
        %v6657 = vsel %vm6656, %v6652, inf
        %6658 = vmin.xlane.f32.xlu0 %v6657
        %v6659 = vpop.xlane.xlu0 %6658
        %v6660 = vcvt.f32.s32 %v6659
        %v6661 = vcvt.f32.s32 %v6655
        %v6662 = vshll.u32 %v6661, 16
        %v6663 = vadd.s32 %v6662, %v6660
        %v6664 = vand.u32 %v6479, 65535
        %v6665 = vshra.s32 %v6479, 16
        %v6666 = vcvt.s32.f32 %v6664
        %v6667 = vcvt.s32.f32 %v6665
        %6668 = vmin.xlane.f32.xlu0 %v6667
        %v6669 = vpop.xlane.xlu0 %6668
        %vm6670 = vcmp.eq.f32.partialorder %v6667, %v6669
        %v6671 = vsel %vm6670, %v6666, inf
        %6672 = vmin.xlane.f32.xlu0 %v6671
        %v6673 = vpop.xlane.xlu0 %6672
        %v6674 = vcvt.f32.s32 %v6673
        %v6675 = vcvt.f32.s32 %v6669
        %v6676 = vshll.u32 %v6675, 16
        %v6677 = vadd.s32 %v6676, %v6674
        %v6678 = vand.u32 %v6480, 65535
        %v6679 = vshra.s32 %v6480, 16
        %v6680 = vcvt.s32.f32 %v6678
        %v6681 = vcvt.s32.f32 %v6679
        %6682 = vmin.xlane.f32.xlu0 %v6681
        %v6683 = vpop.xlane.xlu0 %6682
        %vm6684 = vcmp.eq.f32.partialorder %v6681, %v6683
        %v6685 = vsel %vm6684, %v6680, inf
        %6686 = vmin.xlane.f32.xlu0 %v6685
        %v6687 = vpop.xlane.xlu0 %6686
        %v6688 = vcvt.f32.s32 %v6687
        %v6689 = vcvt.f32.s32 %v6683
        %v6690 = vshll.u32 %v6689, 16
        %v6691 = vadd.s32 %v6690, %v6688
        %v6692 = vand.u32 %v6481, 65535
        %v6693 = vshra.s32 %v6481, 16
        %v6694 = vcvt.s32.f32 %v6692
        %v6695 = vcvt.s32.f32 %v6693
        %6696 = vmin.xlane.f32.xlu0 %v6695
        %v6697 = vpop.xlane.xlu0 %6696
        %vm6698 = vcmp.eq.f32.partialorder %v6695, %v6697
        %v6699 = vsel %vm6698, %v6694, inf
        %6700 = vmin.xlane.f32.xlu0 %v6699
        %v6701 = vpop.xlane.xlu0 %6700
        %v6702 = vcvt.f32.s32 %v6701
        %v6703 = vcvt.f32.s32 %v6697
        %v6704 = vshll.u32 %v6703, 16
        %v6705 = vadd.s32 %v6704, %v6702
        %vm6706 = vcmp.eq.s32.totalorder %v533, %v6495
        %vm6707 = vcmp.eq.s32.totalorder %v533, %v6509
        %vm6708 = vcmp.eq.s32.totalorder %v533, %v6523
        %vm6709 = vcmp.eq.s32.totalorder %v533, %v6537
        %vm6710 = vcmp.eq.s32.totalorder %v533, %v6551
        %vm6711 = vcmp.eq.s32.totalorder %v533, %v6565
        %vm6712 = vcmp.eq.s32.totalorder %v533, %v6579
        %vm6713 = vcmp.eq.s32.totalorder %v533, %v6593
        %vm6714 = vcmp.eq.s32.totalorder %v533, %v6607
        %vm6715 = vcmp.eq.s32.totalorder %v533, %v6621
        %vm6716 = vcmp.eq.s32.totalorder %v533, %v6635
        %vm6717 = vcmp.eq.s32.totalorder %v533, %v6649
        %vm6718 = vcmp.eq.s32.totalorder %v533, %v6663
        %vm6719 = vcmp.eq.s32.totalorder %v533, %v6677
        %vm6720 = vcmp.eq.s32.totalorder %v533, %v6691
        %vm6721 = vcmp.eq.s32.totalorder %v533, %v6705
        %v6722 = vsel %vm6706, 1, 0
        %v6723 = vsel %vm6707, 1, 0
        %v6724 = vsel %vm6708, 1, 0
        %v6725 = vsel %vm6709, 1, 0
        %v6726 = vsel %vm6710, 1, 0
        %v6727 = vsel %vm6711, 1, 0
        %v6728 = vsel %vm6712, 1, 0
        %v6729 = vsel %vm6713, 1, 0
        %v6730 = vsel %vm6714, 1, 0
        %v6731 = vsel %vm6715, 1, 0
        %v6732 = vsel %vm6716, 1, 0
        %v6733 = vsel %vm6717, 1, 0
        %v6734 = vsel %vm6718, 1, 0
        %v6735 = vsel %vm6719, 1, 0
        %v6736 = vsel %vm6720, 1, 0
        %v6737 = vsel %vm6721, 1, 0
        %v6738 = vcvt.s32.f32 %v6722
        %v6739 = vcvt.s32.f32 %v6723
        %v6740 = vcvt.s32.f32 %v6724
        %v6741 = vcvt.s32.f32 %v6725
        %v6742 = vcvt.s32.f32 %v6726
        %v6743 = vcvt.s32.f32 %v6727
        %v6744 = vcvt.s32.f32 %v6728
        %v6745 = vcvt.s32.f32 %v6729
        %v6746 = vcvt.s32.f32 %v6730
        %v6747 = vcvt.s32.f32 %v6731
        %v6748 = vcvt.s32.f32 %v6732
        %v6749 = vcvt.s32.f32 %v6733
        %v6750 = vcvt.s32.f32 %v6734
        %v6751 = vcvt.s32.f32 %v6735
        %v6752 = vcvt.s32.f32 %v6736
        %v6753 = vcvt.s32.f32 %v6737
        %6754 = vst [vmem:[#allocation2 + $0x180] sm:$0xff] %v6738
        %6755 = vst [vmem:[#allocation2 + $0x188] sm:$0xff] %v6739
        %6756 = vst [vmem:[#allocation2 + $0x190] sm:$0xff] %v6740
        %6757 = vst [vmem:[#allocation2 + $0x198] sm:$0xff] %v6741
        %6758 = vst [vmem:[#allocation2 + $0x1a0] sm:$0xff] %v6742
        %6759 = vst [vmem:[#allocation2 + $0x1a8] sm:$0xff] %v6743
        %6760 = vst [vmem:[#allocation2 + $0x1b0] sm:$0xff] %v6744
        %6761 = vst [vmem:[#allocation2 + $0x1b8] sm:$0xff] %v6745
        %6762 = vst [vmem:[#allocation2 + $0x1c0] sm:$0xff] %v6746
        %6763 = vst [vmem:[#allocation2 + $0x1c8] sm:$0xff] %v6747
        %6764 = vst [vmem:[#allocation2 + $0x1d0] sm:$0xff] %v6748
        %6765 = vst [vmem:[#allocation2 + $0x1d8] sm:$0xff] %v6749
        %6766 = vst [vmem:[#allocation2 + $0x1e0] sm:$0xff] %v6750
        %6767 = vst [vmem:[#allocation2 + $0x1e8] sm:$0xff] %v6751
        %6768 = vst [vmem:[#allocation2 + $0x1f0] sm:$0xff] %v6752
        %6769 = vst [vmem:[#allocation2 + $0x1f8] sm:$0xff] %v6753
        %v6770 = vld [vmem:[#allocation2] sm:$0xff]
        %v6771 = vld [vmem:[#allocation2 + $0x8] sm:$0xff]
        %v6772 = vld [vmem:[#allocation2 + $0x10] sm:$0xff]
        %v6773 = vld [vmem:[#allocation2 + $0x18] sm:$0xff]
        %v6774 = vld [vmem:[#allocation2 + $0x20] sm:$0xff]
        %v6775 = vld [vmem:[#allocation2 + $0x28] sm:$0xff]
        %v6776 = vld [vmem:[#allocation2 + $0x30] sm:$0xff]
        %v6777 = vld [vmem:[#allocation2 + $0x38] sm:$0xff]
        %v6778 = vld [vmem:[#allocation2 + $0x40] sm:$0xff]
        %v6779 = vld [vmem:[#allocation2 + $0x48] sm:$0xff]
        %v6780 = vld [vmem:[#allocation2 + $0x50] sm:$0xff]
        %v6781 = vld [vmem:[#allocation2 + $0x58] sm:$0xff]
        %v6782 = vld [vmem:[#allocation2 + $0x60] sm:$0xff]
        %v6783 = vld [vmem:[#allocation2 + $0x68] sm:$0xff]
        %v6784 = vld [vmem:[#allocation2 + $0x70] sm:$0xff]
        %v6785 = vld [vmem:[#allocation2 + $0x78] sm:$0xff]
        %v6786 = vld [vmem:[#allocation2 + $0x80] sm:$0xff]
        %v6787 = vld [vmem:[#allocation2 + $0x88] sm:$0xff]
        %v6788 = vld [vmem:[#allocation2 + $0x90] sm:$0xff]
        %v6789 = vld [vmem:[#allocation2 + $0x98] sm:$0xff]
        %v6790 = vld [vmem:[#allocation2 + $0xa0] sm:$0xff]
        %v6791 = vld [vmem:[#allocation2 + $0xa8] sm:$0xff]
        %v6792 = vld [vmem:[#allocation2 + $0xb0] sm:$0xff]
        %v6793 = vld [vmem:[#allocation2 + $0xb8] sm:$0xff]
        %v6794 = vld [vmem:[#allocation2 + $0xc0] sm:$0xff]
        %v6795 = vld [vmem:[#allocation2 + $0xc8] sm:$0xff]
        %v6796 = vld [vmem:[#allocation2 + $0xd0] sm:$0xff]
        %v6797 = vld [vmem:[#allocation2 + $0xd8] sm:$0xff]
        %v6798 = vld [vmem:[#allocation2 + $0xe0] sm:$0xff]
        %v6799 = vld [vmem:[#allocation2 + $0xe8] sm:$0xff]
        %v6800 = vld [vmem:[#allocation2 + $0xf0] sm:$0xff]
        %v6801 = vld [vmem:[#allocation2 + $0xf8] sm:$0xff]
        %v6802 = vld [vmem:[#allocation2 + $0x100] sm:$0xff]
        %v6803 = vld [vmem:[#allocation2 + $0x108] sm:$0xff]
        %v6804 = vld [vmem:[#allocation2 + $0x110] sm:$0xff]
        %v6805 = vld [vmem:[#allocation2 + $0x118] sm:$0xff]
        %v6806 = vld [vmem:[#allocation2 + $0x120] sm:$0xff]
        %v6807 = vld [vmem:[#allocation2 + $0x128] sm:$0xff]
        %v6808 = vld [vmem:[#allocation2 + $0x130] sm:$0xff]
        %v6809 = vld [vmem:[#allocation2 + $0x138] sm:$0xff]
        %v6810 = vld [vmem:[#allocation2 + $0x140] sm:$0xff]
        %v6811 = vld [vmem:[#allocation2 + $0x148] sm:$0xff]
        %v6812 = vld [vmem:[#allocation2 + $0x150] sm:$0xff]
        %v6813 = vld [vmem:[#allocation2 + $0x158] sm:$0xff]
        %v6814 = vld [vmem:[#allocation2 + $0x160] sm:$0xff]
        %v6815 = vld [vmem:[#allocation2 + $0x168] sm:$0xff]
        %v6816 = vld [vmem:[#allocation2 + $0x170] sm:$0xff]
        %v6817 = vld [vmem:[#allocation2 + $0x178] sm:$0xff]
        %v6818 = vld [vmem:[#allocation2 + $0x180] sm:$0xff]
        %v6819 = vld [vmem:[#allocation2 + $0x188] sm:$0xff]
        %v6820 = vld [vmem:[#allocation2 + $0x190] sm:$0xff]
        %v6821 = vld [vmem:[#allocation2 + $0x198] sm:$0xff]
        %v6822 = vld [vmem:[#allocation2 + $0x1a0] sm:$0xff]
        %v6823 = vld [vmem:[#allocation2 + $0x1a8] sm:$0xff]
        %v6824 = vld [vmem:[#allocation2 + $0x1b0] sm:$0xff]
        %v6825 = vld [vmem:[#allocation2 + $0x1b8] sm:$0xff]
        %v6826 = vld [vmem:[#allocation2 + $0x1c0] sm:$0xff]
        %v6827 = vld [vmem:[#allocation2 + $0x1c8] sm:$0xff]
        %v6828 = vld [vmem:[#allocation2 + $0x1d0] sm:$0xff]
        %v6829 = vld [vmem:[#allocation2 + $0x1d8] sm:$0xff]
        %v6830 = vld [vmem:[#allocation2 + $0x1e0] sm:$0xff]
        %v6831 = vld [vmem:[#allocation2 + $0x1e8] sm:$0xff]
        %v6832 = vld [vmem:[#allocation2 + $0x1f0] sm:$0xff]
        %v6833 = vld [vmem:[#allocation2 + $0x1f8] sm:$0xff]
        %6834 = vmatpush.msra.mxu0 %v5247
        %6835 = vmatpush.msra.mxu0 %v5244
        %6836 = vmatpush.msra.mxu0 %v5241
        %6837 = vmatpush.msra.mxu0 %v5238
        %6838 = vmatpush.msra.mxu0 %v5235
        %6839 = vmatpush.msra.mxu0 %v5232
        %6840 = vmatpush.msra.mxu0 %v5229
        %6841 = vmatpush.msra.mxu0 %v5226
        %6842 = vmatpush.msra.mxu0 %v5223
        %6843 = vmatpush.msra.mxu0 %v5220
        %6844 = vmatpush.msra.mxu0 %v5217
        %6845 = vmatpush.msra.mxu0 %v5214
        %6846 = vmatpush.msra.mxu0 %v5211
        %6847 = vmatpush.msra.mxu0 %v5208
        %6848 = vmatpush.msra.mxu0 %v5205
        %6849 = vmatpush.msra.mxu0 %v5202
        %6850 = vmatmul.f32.gmra.mxu0 %v6770
        %v6851 = vpop.f32.mrf.mxu0
        %v6852 = vadd.f32 0.0, %v6851
        %6853 = vmatmul.f32.gmra.mxu0 %v6771
        %v6854 = vpop.f32.mrf.mxu0
        %v6855 = vadd.f32 0.0, %v6854
        %6856 = vmatmul.f32.gmra.mxu0 %v6772
        %v6857 = vpop.f32.mrf.mxu0
        %v6858 = vadd.f32 0.0, %v6857
        %6859 = vmatmul.f32.gmra.mxu0 %v6773
        %v6860 = vpop.f32.mrf.mxu0
        %v6861 = vadd.f32 0.0, %v6860
        %6862 = vmatmul.f32.gmra.mxu0 %v6774
        %v6863 = vpop.f32.mrf.mxu0
        %v6864 = vadd.f32 0.0, %v6863
        %6865 = vmatmul.f32.gmra.mxu0 %v6775
        %v6866 = vpop.f32.mrf.mxu0
        %v6867 = vadd.f32 0.0, %v6866
        %6868 = vmatmul.f32.gmra.mxu0 %v6776
        %v6869 = vpop.f32.mrf.mxu0
        %v6870 = vadd.f32 0.0, %v6869
        %6871 = vmatmul.f32.gmra.mxu0 %v6777
        %v6872 = vpop.f32.mrf.mxu0
        %v6873 = vadd.f32 0.0, %v6872
        %6874 = vmatmul.f32.gmra.mxu0 %v6778
        %v6875 = vpop.f32.mrf.mxu0
        %v6876 = vadd.f32 0.0, %v6875
        %6877 = vmatmul.f32.gmra.mxu0 %v6779
        %v6878 = vpop.f32.mrf.mxu0
        %v6879 = vadd.f32 0.0, %v6878
        %6880 = vmatmul.f32.gmra.mxu0 %v6780
        %v6881 = vpop.f32.mrf.mxu0
        %v6882 = vadd.f32 0.0, %v6881
        %6883 = vmatmul.f32.gmra.mxu0 %v6781
        %v6884 = vpop.f32.mrf.mxu0
        %v6885 = vadd.f32 0.0, %v6884
        %6886 = vmatmul.f32.gmra.mxu0 %v6782
        %v6887 = vpop.f32.mrf.mxu0
        %v6888 = vadd.f32 0.0, %v6887
        %6889 = vmatmul.f32.gmra.mxu0 %v6783
        %v6890 = vpop.f32.mrf.mxu0
        %v6891 = vadd.f32 0.0, %v6890
        %6892 = vmatmul.f32.gmra.mxu0 %v6784
        %v6893 = vpop.f32.mrf.mxu0
        %v6894 = vadd.f32 0.0, %v6893
        %6895 = vmatmul.f32.gmra.mxu0 %v6785
        %v6896 = vpop.f32.mrf.mxu0
        %v6897 = vadd.f32 0.0, %v6896
        %6898 = vmatmul.f32.gmra.mxu0 %v6786
        %v6899 = vpop.f32.mrf.mxu0
        %v6900 = vadd.f32 0.0, %v6899
        %6901 = vmatmul.f32.gmra.mxu0 %v6787
        %v6902 = vpop.f32.mrf.mxu0
        %v6903 = vadd.f32 0.0, %v6902
        %6904 = vmatmul.f32.gmra.mxu0 %v6788
        %v6905 = vpop.f32.mrf.mxu0
        %v6906 = vadd.f32 0.0, %v6905
        %6907 = vmatmul.f32.gmra.mxu0 %v6789
        %v6908 = vpop.f32.mrf.mxu0
        %v6909 = vadd.f32 0.0, %v6908
        %6910 = vmatmul.f32.gmra.mxu0 %v6790
        %v6911 = vpop.f32.mrf.mxu0
        %v6912 = vadd.f32 0.0, %v6911
        %6913 = vmatmul.f32.gmra.mxu0 %v6791
        %v6914 = vpop.f32.mrf.mxu0
        %v6915 = vadd.f32 0.0, %v6914
        %6916 = vmatmul.f32.gmra.mxu0 %v6792
        %v6917 = vpop.f32.mrf.mxu0
        %v6918 = vadd.f32 0.0, %v6917
        %6919 = vmatmul.f32.gmra.mxu0 %v6793
        %v6920 = vpop.f32.mrf.mxu0
        %v6921 = vadd.f32 0.0, %v6920
        %6922 = vmatmul.f32.gmra.mxu0 %v6794
        %v6923 = vpop.f32.mrf.mxu0
        %v6924 = vadd.f32 0.0, %v6923
        %6925 = vmatmul.f32.gmra.mxu0 %v6795
        %v6926 = vpop.f32.mrf.mxu0
        %v6927 = vadd.f32 0.0, %v6926
        %6928 = vmatmul.f32.gmra.mxu0 %v6796
        %v6929 = vpop.f32.mrf.mxu0
        %v6930 = vadd.f32 0.0, %v6929
        %6931 = vmatmul.f32.gmra.mxu0 %v6797
        %v6932 = vpop.f32.mrf.mxu0
        %v6933 = vadd.f32 0.0, %v6932
        %6934 = vmatmul.f32.gmra.mxu0 %v6798
        %v6935 = vpop.f32.mrf.mxu0
        %v6936 = vadd.f32 0.0, %v6935
        %6937 = vmatmul.f32.gmra.mxu0 %v6799
        %v6938 = vpop.f32.mrf.mxu0
        %v6939 = vadd.f32 0.0, %v6938
        %6940 = vmatmul.f32.gmra.mxu0 %v6800
        %v6941 = vpop.f32.mrf.mxu0
        %v6942 = vadd.f32 0.0, %v6941
        %6943 = vmatmul.f32.gmra.mxu0 %v6801
        %v6944 = vpop.f32.mrf.mxu0
        %v6945 = vadd.f32 0.0, %v6944
        %6946 = vmatmul.f32.gmra.mxu0 %v6802
        %v6947 = vpop.f32.mrf.mxu0
        %v6948 = vadd.f32 0.0, %v6947
        %6949 = vmatmul.f32.gmra.mxu0 %v6803
        %v6950 = vpop.f32.mrf.mxu0
        %v6951 = vadd.f32 0.0, %v6950
        %6952 = vmatmul.f32.gmra.mxu0 %v6804
        %v6953 = vpop.f32.mrf.mxu0
        %v6954 = vadd.f32 0.0, %v6953
        %6955 = vmatmul.f32.gmra.mxu0 %v6805
        %v6956 = vpop.f32.mrf.mxu0
        %v6957 = vadd.f32 0.0, %v6956
        %6958 = vmatmul.f32.gmra.mxu0 %v6806
        %v6959 = vpop.f32.mrf.mxu0
        %v6960 = vadd.f32 0.0, %v6959
        %6961 = vmatmul.f32.gmra.mxu0 %v6807
        %v6962 = vpop.f32.mrf.mxu0
        %v6963 = vadd.f32 0.0, %v6962
        %6964 = vmatmul.f32.gmra.mxu0 %v6808
        %v6965 = vpop.f32.mrf.mxu0
        %v6966 = vadd.f32 0.0, %v6965
        %6967 = vmatmul.f32.gmra.mxu0 %v6809
        %v6968 = vpop.f32.mrf.mxu0
        %v6969 = vadd.f32 0.0, %v6968
        %6970 = vmatmul.f32.gmra.mxu0 %v6810
        %v6971 = vpop.f32.mrf.mxu0
        %v6972 = vadd.f32 0.0, %v6971
        %6973 = vmatmul.f32.gmra.mxu0 %v6811
        %v6974 = vpop.f32.mrf.mxu0
        %v6975 = vadd.f32 0.0, %v6974
        %6976 = vmatmul.f32.gmra.mxu0 %v6812
        %v6977 = vpop.f32.mrf.mxu0
        %v6978 = vadd.f32 0.0, %v6977
        %6979 = vmatmul.f32.gmra.mxu0 %v6813
        %v6980 = vpop.f32.mrf.mxu0
        %v6981 = vadd.f32 0.0, %v6980
        %6982 = vmatmul.f32.gmra.mxu0 %v6814
        %v6983 = vpop.f32.mrf.mxu0
        %v6984 = vadd.f32 0.0, %v6983
        %6985 = vmatmul.f32.gmra.mxu0 %v6815
        %v6986 = vpop.f32.mrf.mxu0
        %v6987 = vadd.f32 0.0, %v6986
        %6988 = vmatmul.f32.gmra.mxu0 %v6816
        %v6989 = vpop.f32.mrf.mxu0
        %v6990 = vadd.f32 0.0, %v6989
        %6991 = vmatmul.f32.gmra.mxu0 %v6817
        %v6992 = vpop.f32.mrf.mxu0
        %v6993 = vadd.f32 0.0, %v6992
        %6994 = vmatmul.f32.gmra.mxu0 %v6818
        %v6995 = vpop.f32.mrf.mxu0
        %v6996 = vadd.f32 0.0, %v6995
        %6997 = vmatmul.f32.gmra.mxu0 %v6819
        %v6998 = vpop.f32.mrf.mxu0
        %v6999 = vadd.f32 0.0, %v6998
        %7000 = vmatmul.f32.gmra.mxu0 %v6820
        %v7001 = vpop.f32.mrf.mxu0
        %v7002 = vadd.f32 0.0, %v7001
        %7003 = vmatmul.f32.gmra.mxu0 %v6821
        %v7004 = vpop.f32.mrf.mxu0
        %v7005 = vadd.f32 0.0, %v7004
        %7006 = vmatmul.f32.gmra.mxu0 %v6822
        %v7007 = vpop.f32.mrf.mxu0
        %v7008 = vadd.f32 0.0, %v7007
        %7009 = vmatmul.f32.gmra.mxu0 %v6823
        %v7010 = vpop.f32.mrf.mxu0
        %v7011 = vadd.f32 0.0, %v7010
        %7012 = vmatmul.f32.gmra.mxu0 %v6824
        %v7013 = vpop.f32.mrf.mxu0
        %v7014 = vadd.f32 0.0, %v7013
        %7015 = vmatmul.f32.gmra.mxu0 %v6825
        %v7016 = vpop.f32.mrf.mxu0
        %v7017 = vadd.f32 0.0, %v7016
        %7018 = vmatmul.f32.gmra.mxu0 %v6826
        %v7019 = vpop.f32.mrf.mxu0
        %v7020 = vadd.f32 0.0, %v7019
        %7021 = vmatmul.f32.gmra.mxu0 %v6827
        %v7022 = vpop.f32.mrf.mxu0
        %v7023 = vadd.f32 0.0, %v7022
        %7024 = vmatmul.f32.gmra.mxu0 %v6828
        %v7025 = vpop.f32.mrf.mxu0
        %v7026 = vadd.f32 0.0, %v7025
        %7027 = vmatmul.f32.gmra.mxu0 %v6829
        %v7028 = vpop.f32.mrf.mxu0
        %v7029 = vadd.f32 0.0, %v7028
        %7030 = vmatmul.f32.gmra.mxu0 %v6830
        %v7031 = vpop.f32.mrf.mxu0
        %v7032 = vadd.f32 0.0, %v7031
        %7033 = vmatmul.f32.gmra.mxu0 %v6831
        %v7034 = vpop.f32.mrf.mxu0
        %v7035 = vadd.f32 0.0, %v7034
        %7036 = vmatmul.f32.gmra.mxu0 %v6832
        %v7037 = vpop.f32.mrf.mxu0
        %v7038 = vadd.f32 0.0, %v7037
        %7039 = vmatmul.f32.gmra.mxu0 %v6833
        %v7040 = vpop.f32.mrf.mxu0
        %v7041 = vadd.f32 0.0, %v7040
        %7042 = vdwg.mxu0
        %v7043 = vmax.f32 %v6852, %v6900
        %v7044 = vmax.f32 %v6855, %v6903
        %v7045 = vmax.f32 %v6858, %v6906
        %v7046 = vmax.f32 %v6861, %v6909
        %v7047 = vmax.f32 %v6864, %v6912
        %v7048 = vmax.f32 %v6867, %v6915
        %v7049 = vmax.f32 %v6870, %v6918
        %v7050 = vmax.f32 %v6873, %v6921
        %v7051 = vmax.f32 %v6876, %v6924
        %v7052 = vmax.f32 %v6879, %v6927
        %v7053 = vmax.f32 %v6882, %v6930
        %v7054 = vmax.f32 %v6885, %v6933
        %v7055 = vmax.f32 %v6888, %v6936
        %v7056 = vmax.f32 %v6891, %v6939
        %v7057 = vmax.f32 %v6894, %v6942
        %v7058 = vmax.f32 %v6897, %v6945
        %v7059 = vmax.f32 %v7043, %v6948
        %v7060 = vmax.f32 %v7044, %v6951
        %v7061 = vmax.f32 %v7045, %v6954
        %v7062 = vmax.f32 %v7046, %v6957
        %v7063 = vmax.f32 %v7047, %v6960
        %v7064 = vmax.f32 %v7048, %v6963
        %v7065 = vmax.f32 %v7049, %v6966
        %v7066 = vmax.f32 %v7050, %v6969
        %v7067 = vmax.f32 %v7051, %v6972
        %v7068 = vmax.f32 %v7052, %v6975
        %v7069 = vmax.f32 %v7053, %v6978
        %v7070 = vmax.f32 %v7054, %v6981
        %v7071 = vmax.f32 %v7055, %v6984
        %v7072 = vmax.f32 %v7056, %v6987
        %v7073 = vmax.f32 %v7057, %v6990
        %v7074 = vmax.f32 %v7058, %v6993
        %v7075 = vmax.f32 %v7059, %v6996
        %v7076 = vmax.f32 %v7060, %v6999
        %v7077 = vmax.f32 %v7061, %v7002
        %v7078 = vmax.f32 %v7062, %v7005
        %v7079 = vmax.f32 %v7063, %v7008
        %v7080 = vmax.f32 %v7064, %v7011
        %v7081 = vmax.f32 %v7065, %v7014
        %v7082 = vmax.f32 %v7066, %v7017
        %v7083 = vmax.f32 %v7067, %v7020
        %v7084 = vmax.f32 %v7068, %v7023
        %v7085 = vmax.f32 %v7069, %v7026
        %v7086 = vmax.f32 %v7070, %v7029
        %v7087 = vmax.f32 %v7071, %v7032
        %v7088 = vmax.f32 %v7072, %v7035
        %v7089 = vmax.f32 %v7073, %v7038
        %v7090 = vmax.f32 %v7074, %v7041
        %v7091 = vadd.f32 %v7075, %v5267
        %v7092 = vadd.f32 %v7076, %v5270
        %v7093 = vadd.f32 %v7077, %v5273
        %v7094 = vadd.f32 %v7078, %v5276
        %v7095 = vadd.f32 %v7079, %v5279
        %v7096 = vadd.f32 %v7080, %v5282
        %v7097 = vadd.f32 %v7081, %v5285
        %v7098 = vadd.f32 %v7082, %v5288
        %v7099 = vadd.f32 %v7083, %v5291
        %v7100 = vadd.f32 %v7084, %v5294
        %v7101 = vadd.f32 %v7085, %v5297
        %v7102 = vadd.f32 %v7086, %v5300
        %v7103 = vadd.f32 %v7087, %v5303
        %v7104 = vadd.f32 %v7088, %v5306
        %v7105 = vadd.f32 %v7089, %v5309
        %v7106 = vadd.f32 %v7090, %v5312
        %v7107 = vsel %vm2706, %v7091, -inf
        %v7108 = vsel %vm2706, %v7092, -inf
        %v7109 = vsel %vm2706, %v7093, -inf
        %v7110 = vsel %vm2706, %v7094, -inf
        %v7111 = vsel %vm2706, %v7095, -inf
        %v7112 = vmax.f32 %v7107, %v7111
        %v7113 = vsel %vm2706, %v7096, -inf
        %v7114 = vmax.f32 %v7108, %v7113
        %v7115 = vsel %vm2706, %v7097, -inf
        %v7116 = vmax.f32 %v7109, %v7115
        %v7117 = vsel %vm2706, %v7098, -inf
        %v7118 = vmax.f32 %v7110, %v7117
        %v7119 = vsel %vm2706, %v7099, -inf
        %v7120 = vmax.f32 %v7112, %v7119
        %v7121 = vsel %vm2706, %v7100, -inf
        %v7122 = vmax.f32 %v7114, %v7121
        %v7123 = vsel %vm2706, %v7101, -inf
        %v7124 = vmax.f32 %v7116, %v7123
        %v7125 = vsel %vm2706, %v7102, -inf
        %v7126 = vmax.f32 %v7118, %v7125
        %v7127 = vsel %vm2706, %v7103, -inf
        %v7128 = vmax.f32 %v7120, %v7127
        %v7129 = vsel %vm2706, %v7104, -inf
        %v7130 = vmax.f32 %v7122, %v7129
        %v7131 = vsel %vm2706, %v7105, -inf
        %v7132 = vmax.f32 %v7124, %v7131
        %v7133 = vsel %vm2706, %v7106, -inf
        %v7134 = vmax.f32 %v7126, %v7133
        %v7135 = vmax.f32 %v7128, %v7130
        %v7136 = vmax.f32 %v7132, %v7134
        %v7137 = vmax.f32 %v7135, %v7136
        %v7138 = vrot.slane %v7137, 4
        %v7139 = vmax.f32 %v7137, %v7138
        %v7140 = vrot.slane %v7139, 2
        %v7141 = vmax.f32 %v7139, %v7140
        %v7142 = vrot.slane %v7141, 1
        %v7143 = vmax.f32 %v7141, %v7142
        %v7144 = vmax.f32 %v7143, 0.0
        %v7145 = vld [vmem:[%s6] sm:$0xf]
        %v7146 = vld [vmem:[#allocation3] sm:$0xff]
        %v7147 = vld [vmem:[#allocation3 + $0x8] sm:$0xff]
        %v7148 = vld [vmem:[#allocation3 + $0x10] sm:$0xff]
        %v7149 = vld [vmem:[#allocation3 + $0x18] sm:$0xff]
        %v7150 = vld [vmem:[#allocation3 + $0x20] sm:$0xff]
        %v7151 = vld [vmem:[#allocation3 + $0x28] sm:$0xff]
        %v7152 = vld [vmem:[#allocation3 + $0x30] sm:$0xff]
        %v7153 = vld [vmem:[#allocation3 + $0x38] sm:$0xff]
        %v7154 = vld [vmem:[#allocation3 + $0x40] sm:$0xff]
        %v7155 = vld [vmem:[#allocation3 + $0x48] sm:$0xff]
        %v7156 = vld [vmem:[#allocation3 + $0x50] sm:$0xff]
        %v7157 = vld [vmem:[#allocation3 + $0x58] sm:$0xff]
        %v7158 = vld [vmem:[#allocation3 + $0x60] sm:$0xff]
        %v7159 = vld [vmem:[#allocation3 + $0x68] sm:$0xff]
        %v7160 = vld [vmem:[#allocation3 + $0x70] sm:$0xff]
        %v7161 = vld [vmem:[#allocation3 + $0x78] sm:$0xff]
        %v7163 = vsel %vm2706, %v2744, 0
        %7165 = vmatpush.msra.mxu0 0.0
        %7166 = vmatpush.msra.mxu0 0.0
        %7167 = vmatpush.msra.mxu0 0.0
        %7168 = vmatpush.msra.mxu0 0.0
        %7169 = vmatpush.msra.mxu0 0.0
        %7170 = vmatpush.msra.mxu0 0.0
        %7171 = vmatpush.msra.mxu0 0.0
        %7172 = vmatpush.msra.mxu0 0.0
        %7173 = vmatpush.msra.mxu0 0.0
        %7174 = vmatpush.msra.mxu0 0.0
        %7175 = vmatpush.msra.mxu0 0.0
        %7176 = vmatpush.msra.mxu0 0.0
        %7177 = vmatpush.msra.mxu0 %v7158
        %7178 = vmatpush.msra.mxu0 %v7154
        %7179 = vmatpush.msra.mxu0 %v7150
        %7180 = vmatpush.msra.mxu0 %v7146
        %7181 = vmatmul.f32.gmra.mxu0 %v7163
        %v7182 = vpop.f32.mrf.mxu0
        %v7183 = vadd.f32 0.0, %v7182
        %7184 = vdwg.mxu0
        %7185 = vmatpush.msra.mxu0 0.0
        %7186 = vmatpush.msra.mxu0 0.0
        %7187 = vmatpush.msra.mxu0 0.0
        %7188 = vmatpush.msra.mxu0 0.0
        %7189 = vmatpush.msra.mxu0 0.0
        %7190 = vmatpush.msra.mxu0 0.0
        %7191 = vmatpush.msra.mxu0 0.0
        %7192 = vmatpush.msra.mxu0 0.0
        %7193 = vmatpush.msra.mxu0 0.0
        %7194 = vmatpush.msra.mxu0 0.0
        %7195 = vmatpush.msra.mxu0 0.0
        %7196 = vmatpush.msra.mxu0 0.0
        %7197 = vmatpush.msra.mxu0 %v7159
        %7198 = vmatpush.msra.mxu0 %v7155
        %7199 = vmatpush.msra.mxu0 %v7151
        %7200 = vmatpush.msra.mxu0 %v7147
        %7201 = vmatmul.f32.gmra.mxu0 %v7163
        %v7202 = vpop.f32.mrf.mxu0
        %v7203 = vadd.f32 0.0, %v7202
        %7204 = vdwg.mxu0
        %7205 = vmatpush.msra.mxu0 0.0
        %7206 = vmatpush.msra.mxu0 0.0
        %7207 = vmatpush.msra.mxu0 0.0
        %7208 = vmatpush.msra.mxu0 0.0
        %7209 = vmatpush.msra.mxu0 0.0
        %7210 = vmatpush.msra.mxu0 0.0
        %7211 = vmatpush.msra.mxu0 0.0
        %7212 = vmatpush.msra.mxu0 0.0
        %7213 = vmatpush.msra.mxu0 0.0
        %7214 = vmatpush.msra.mxu0 0.0
        %7215 = vmatpush.msra.mxu0 0.0
        %7216 = vmatpush.msra.mxu0 0.0
        %7217 = vmatpush.msra.mxu0 %v7160
        %7218 = vmatpush.msra.mxu0 %v7156
        %7219 = vmatpush.msra.mxu0 %v7152
        %7220 = vmatpush.msra.mxu0 %v7148
        %7221 = vmatmul.f32.gmra.mxu0 %v7163
        %v7222 = vpop.f32.mrf.mxu0
        %v7223 = vadd.f32 0.0, %v7222
        %7224 = vdwg.mxu0
        %7225 = vmatpush.msra.mxu0 0.0
        %7226 = vmatpush.msra.mxu0 0.0
        %7227 = vmatpush.msra.mxu0 0.0
        %7228 = vmatpush.msra.mxu0 0.0
        %7229 = vmatpush.msra.mxu0 0.0
        %7230 = vmatpush.msra.mxu0 0.0
        %7231 = vmatpush.msra.mxu0 0.0
        %7232 = vmatpush.msra.mxu0 0.0
        %7233 = vmatpush.msra.mxu0 0.0
        %7234 = vmatpush.msra.mxu0 0.0
        %7235 = vmatpush.msra.mxu0 0.0
        %7236 = vmatpush.msra.mxu0 0.0
        %7237 = vmatpush.msra.mxu0 %v7161
        %7238 = vmatpush.msra.mxu0 %v7157
        %7239 = vmatpush.msra.mxu0 %v7153
        %7240 = vmatpush.msra.mxu0 %v7149
        %7241 = vmatmul.f32.gmra.mxu0 %v7163
        %v7242 = vpop.f32.mrf.mxu0
        %v7243 = vadd.f32 0.0, %v7242
        %7244 = vdwg.mxu0
        %v7249 = vrot.slane %v7203, 7
        %v7250 = vrot.slane %v7223, 6
        %v7251 = vrot.slane %v7243, 5
        %vm7252 = vcmask 1040384
        %v7253 = vsel %vm7252, %v7183, %v7249
        %vm7254 = vcmask 1042434
        %v7255 = vsel %vm7254, %v7250, %v7251
        %vm7256 = vcmask 1041408
        %v7257 = vsel %vm7256, %v7253, %v7255
        %v7259 = vadd.f32 %v7145, %v7257
        %v7260 = vld [vmem:[#allocation3 + $0x80] sm:$0xff]
        %v7261 = vld [vmem:[#allocation3 + $0x88] sm:$0xff]
        %v7262 = vld [vmem:[#allocation3 + $0x90] sm:$0xff]
        %v7263 = vld [vmem:[#allocation3 + $0x98] sm:$0xff]
        %v7264 = vld [vmem:[#allocation3 + $0xa0] sm:$0xff]
        %v7265 = vld [vmem:[#allocation3 + $0xa8] sm:$0xff]
        %v7266 = vld [vmem:[#allocation3 + $0xb0] sm:$0xff]
        %v7267 = vld [vmem:[#allocation3 + $0xb8] sm:$0xff]
        %v7268 = vld [vmem:[#allocation3 + $0xc0] sm:$0xff]
        %v7269 = vld [vmem:[#allocation3 + $0xc8] sm:$0xff]
        %v7270 = vld [vmem:[#allocation3 + $0xd0] sm:$0xff]
        %v7271 = vld [vmem:[#allocation3 + $0xd8] sm:$0xff]
        %v7272 = vld [vmem:[#allocation3 + $0xe0] sm:$0xff]
        %v7273 = vld [vmem:[#allocation3 + $0xe8] sm:$0xff]
        %v7274 = vld [vmem:[#allocation3 + $0xf0] sm:$0xff]
        %v7275 = vld [vmem:[#allocation3 + $0xf8] sm:$0xff]
        %v7277 = vsel %vm2706, %v4944, 0
        %7279 = vmatpush.msra.mxu0 0.0
        %7280 = vmatpush.msra.mxu0 0.0
        %7281 = vmatpush.msra.mxu0 0.0
        %7282 = vmatpush.msra.mxu0 0.0
        %7283 = vmatpush.msra.mxu0 0.0
        %7284 = vmatpush.msra.mxu0 0.0
        %7285 = vmatpush.msra.mxu0 0.0
        %7286 = vmatpush.msra.mxu0 0.0
        %7287 = vmatpush.msra.mxu0 0.0
        %7288 = vmatpush.msra.mxu0 0.0
        %7289 = vmatpush.msra.mxu0 0.0
        %7290 = vmatpush.msra.mxu0 0.0
        %7291 = vmatpush.msra.mxu0 %v7272
        %7292 = vmatpush.msra.mxu0 %v7268
        %7293 = vmatpush.msra.mxu0 %v7264
        %7294 = vmatpush.msra.mxu0 %v7260
        %7295 = vmatmul.f32.gmra.mxu0 %v7277
        %v7296 = vpop.f32.mrf.mxu0
        %v7297 = vadd.f32 0.0, %v7296
        %7298 = vdwg.mxu0
        %7299 = vmatpush.msra.mxu0 0.0
        %7300 = vmatpush.msra.mxu0 0.0
        %7301 = vmatpush.msra.mxu0 0.0
        %7302 = vmatpush.msra.mxu0 0.0
        %7303 = vmatpush.msra.mxu0 0.0
        %7304 = vmatpush.msra.mxu0 0.0
        %7305 = vmatpush.msra.mxu0 0.0
        %7306 = vmatpush.msra.mxu0 0.0
        %7307 = vmatpush.msra.mxu0 0.0
        %7308 = vmatpush.msra.mxu0 0.0
        %7309 = vmatpush.msra.mxu0 0.0
        %7310 = vmatpush.msra.mxu0 0.0
        %7311 = vmatpush.msra.mxu0 %v7273
        %7312 = vmatpush.msra.mxu0 %v7269
        %7313 = vmatpush.msra.mxu0 %v7265
        %7314 = vmatpush.msra.mxu0 %v7261
        %7315 = vmatmul.f32.gmra.mxu0 %v7277
        %v7316 = vpop.f32.mrf.mxu0
        %v7317 = vadd.f32 0.0, %v7316
        %7318 = vdwg.mxu0
        %7319 = vmatpush.msra.mxu0 0.0
        %7320 = vmatpush.msra.mxu0 0.0
        %7321 = vmatpush.msra.mxu0 0.0
        %7322 = vmatpush.msra.mxu0 0.0
        %7323 = vmatpush.msra.mxu0 0.0
        %7324 = vmatpush.msra.mxu0 0.0
        %7325 = vmatpush.msra.mxu0 0.0
        %7326 = vmatpush.msra.mxu0 0.0
        %7327 = vmatpush.msra.mxu0 0.0
        %7328 = vmatpush.msra.mxu0 0.0
        %7329 = vmatpush.msra.mxu0 0.0
        %7330 = vmatpush.msra.mxu0 0.0
        %7331 = vmatpush.msra.mxu0 %v7274
        %7332 = vmatpush.msra.mxu0 %v7270
        %7333 = vmatpush.msra.mxu0 %v7266
        %7334 = vmatpush.msra.mxu0 %v7262
        %7335 = vmatmul.f32.gmra.mxu0 %v7277
        %v7336 = vpop.f32.mrf.mxu0
        %v7337 = vadd.f32 0.0, %v7336
        %7338 = vdwg.mxu0
        %7339 = vmatpush.msra.mxu0 0.0
        %7340 = vmatpush.msra.mxu0 0.0
        %7341 = vmatpush.msra.mxu0 0.0
        %7342 = vmatpush.msra.mxu0 0.0
        %7343 = vmatpush.msra.mxu0 0.0
        %7344 = vmatpush.msra.mxu0 0.0
        %7345 = vmatpush.msra.mxu0 0.0
        %7346 = vmatpush.msra.mxu0 0.0
        %7347 = vmatpush.msra.mxu0 0.0
        %7348 = vmatpush.msra.mxu0 0.0
        %7349 = vmatpush.msra.mxu0 0.0
        %7350 = vmatpush.msra.mxu0 0.0
        %7351 = vmatpush.msra.mxu0 %v7275
        %7352 = vmatpush.msra.mxu0 %v7271
        %7353 = vmatpush.msra.mxu0 %v7267
        %7354 = vmatpush.msra.mxu0 %v7263
        %7355 = vmatmul.f32.gmra.mxu0 %v7277
        %v7356 = vpop.f32.mrf.mxu0
        %v7357 = vadd.f32 0.0, %v7356
        %7358 = vdwg.mxu0
        %v7363 = vrot.slane %v7317, 7
        %v7364 = vrot.slane %v7337, 6
        %v7365 = vrot.slane %v7357, 5
        %v7366 = vsel %vm7252, %v7297, %v7363
        %v7367 = vsel %vm7254, %v7364, %v7365
        %v7368 = vsel %vm7256, %v7366, %v7367
        %v7370 = vadd.f32 %v7259, %v7368
        %v7371 = vld [vmem:[#allocation3 + $0x100] sm:$0xff]
        %v7372 = vld [vmem:[#allocation3 + $0x108] sm:$0xff]
        %v7373 = vld [vmem:[#allocation3 + $0x110] sm:$0xff]
        %v7374 = vld [vmem:[#allocation3 + $0x118] sm:$0xff]
        %v7375 = vld [vmem:[#allocation3 + $0x120] sm:$0xff]
        %v7376 = vld [vmem:[#allocation3 + $0x128] sm:$0xff]
        %v7377 = vld [vmem:[#allocation3 + $0x130] sm:$0xff]
        %v7378 = vld [vmem:[#allocation3 + $0x138] sm:$0xff]
        %v7379 = vld [vmem:[#allocation3 + $0x140] sm:$0xff]
        %v7380 = vld [vmem:[#allocation3 + $0x148] sm:$0xff]
        %v7381 = vld [vmem:[#allocation3 + $0x150] sm:$0xff]
        %v7382 = vld [vmem:[#allocation3 + $0x158] sm:$0xff]
        %v7383 = vld [vmem:[#allocation3 + $0x160] sm:$0xff]
        %v7384 = vld [vmem:[#allocation3 + $0x168] sm:$0xff]
        %v7385 = vld [vmem:[#allocation3 + $0x170] sm:$0xff]
        %v7386 = vld [vmem:[#allocation3 + $0x178] sm:$0xff]
        %v7388 = vsel %vm2706, %v7144, 0
        %7390 = vmatpush.msra.mxu0 0.0
        %7391 = vmatpush.msra.mxu0 0.0
        %7392 = vmatpush.msra.mxu0 0.0
        %7393 = vmatpush.msra.mxu0 0.0
        %7394 = vmatpush.msra.mxu0 0.0
        %7395 = vmatpush.msra.mxu0 0.0
        %7396 = vmatpush.msra.mxu0 0.0
        %7397 = vmatpush.msra.mxu0 0.0
        %7398 = vmatpush.msra.mxu0 0.0
        %7399 = vmatpush.msra.mxu0 0.0
        %7400 = vmatpush.msra.mxu0 0.0
        %7401 = vmatpush.msra.mxu0 0.0
        %7402 = vmatpush.msra.mxu0 %v7383
        %7403 = vmatpush.msra.mxu0 %v7379
        %7404 = vmatpush.msra.mxu0 %v7375
        %7405 = vmatpush.msra.mxu0 %v7371
        %7406 = vmatmul.f32.gmra.mxu0 %v7388
        %v7407 = vpop.f32.mrf.mxu0
        %v7408 = vadd.f32 0.0, %v7407
        %7409 = vdwg.mxu0
        %7410 = vmatpush.msra.mxu0 0.0
        %7411 = vmatpush.msra.mxu0 0.0
        %7412 = vmatpush.msra.mxu0 0.0
        %7413 = vmatpush.msra.mxu0 0.0
        %7414 = vmatpush.msra.mxu0 0.0
        %7415 = vmatpush.msra.mxu0 0.0
        %7416 = vmatpush.msra.mxu0 0.0
        %7417 = vmatpush.msra.mxu0 0.0
        %7418 = vmatpush.msra.mxu0 0.0
        %7419 = vmatpush.msra.mxu0 0.0
        %7420 = vmatpush.msra.mxu0 0.0
        %7421 = vmatpush.msra.mxu0 0.0
        %7422 = vmatpush.msra.mxu0 %v7384
        %7423 = vmatpush.msra.mxu0 %v7380
        %7424 = vmatpush.msra.mxu0 %v7376
        %7425 = vmatpush.msra.mxu0 %v7372
        %7426 = vmatmul.f32.gmra.mxu0 %v7388
        %v7427 = vpop.f32.mrf.mxu0
        %v7428 = vadd.f32 0.0, %v7427
        %7429 = vdwg.mxu0
        %7430 = vmatpush.msra.mxu0 0.0
        %7431 = vmatpush.msra.mxu0 0.0
        %7432 = vmatpush.msra.mxu0 0.0
        %7433 = vmatpush.msra.mxu0 0.0
        %7434 = vmatpush.msra.mxu0 0.0
        %7435 = vmatpush.msra.mxu0 0.0
        %7436 = vmatpush.msra.mxu0 0.0
        %7437 = vmatpush.msra.mxu0 0.0
        %7438 = vmatpush.msra.mxu0 0.0
        %7439 = vmatpush.msra.mxu0 0.0
        %7440 = vmatpush.msra.mxu0 0.0
        %7441 = vmatpush.msra.mxu0 0.0
        %7442 = vmatpush.msra.mxu0 %v7385
        %7443 = vmatpush.msra.mxu0 %v7381
        %7444 = vmatpush.msra.mxu0 %v7377
        %7445 = vmatpush.msra.mxu0 %v7373
        %7446 = vmatmul.f32.gmra.mxu0 %v7388
        %v7447 = vpop.f32.mrf.mxu0
        %v7448 = vadd.f32 0.0, %v7447
        %7449 = vdwg.mxu0
        %7450 = vmatpush.msra.mxu0 0.0
        %7451 = vmatpush.msra.mxu0 0.0
        %7452 = vmatpush.msra.mxu0 0.0
        %7453 = vmatpush.msra.mxu0 0.0
        %7454 = vmatpush.msra.mxu0 0.0
        %7455 = vmatpush.msra.mxu0 0.0
        %7456 = vmatpush.msra.mxu0 0.0
        %7457 = vmatpush.msra.mxu0 0.0
        %7458 = vmatpush.msra.mxu0 0.0
        %7459 = vmatpush.msra.mxu0 0.0
        %7460 = vmatpush.msra.mxu0 0.0
        %7461 = vmatpush.msra.mxu0 0.0
        %7462 = vmatpush.msra.mxu0 %v7386
        %7463 = vmatpush.msra.mxu0 %v7382
        %7464 = vmatpush.msra.mxu0 %v7378
        %7465 = vmatpush.msra.mxu0 %v7374
        %7466 = vmatmul.f32.gmra.mxu0 %v7388
        %v7467 = vpop.f32.mrf.mxu0
        %v7468 = vadd.f32 0.0, %v7467
        %7469 = vdwg.mxu0
        %v7474 = vrot.slane %v7428, 7
        %v7475 = vrot.slane %v7448, 6
        %v7476 = vrot.slane %v7468, 5
        %v7477 = vsel %vm7252, %v7408, %v7474
        %v7478 = vsel %vm7254, %v7475, %v7476
        %v7479 = vsel %vm7256, %v7477, %v7478
        %v7481 = vadd.f32 %v7370, %v7479
        %v7482 = vmax.f32 %v7481, 0.0
        %v7483 = vld [vmem:[%s7] sm:$0xf]
        %v7484 = vmul.f32 %v7482, %v7483
        %v7485 = vld [vmem:[%s8] sm:$0xf]
        %v7486 = vadd.f32 %v7484, %v7485
        %v7487 = vld [vmem:[%s9] sm:$0xff]
        %v7488 = vld [vmem:[%s9 + $0x8] sm:$0xff]
        %v7489 = vld [vmem:[%s9 + $0x10] sm:$0xff]
        %v7490 = vld [vmem:[%s9 + $0x18] sm:$0xff]
        %v7491 = vld [vmem:[%s9 + $0x20] sm:$0xff]
        %v7492 = vld [vmem:[%s9 + $0x28] sm:$0xff]
        %v7493 = vld [vmem:[%s9 + $0x30] sm:$0xff]
        %v7494 = vld [vmem:[%s9 + $0x38] sm:$0xff]
        %v7495 = vld [vmem:[%s9 + $0x40] sm:$0xff]
        %v7496 = vld [vmem:[%s9 + $0x48] sm:$0xff]
        %v7497 = vld [vmem:[%s9 + $0x50] sm:$0xff]
        %v7498 = vld [vmem:[%s9 + $0x58] sm:$0xff]
        %v7499 = vld [vmem:[%s9 + $0x60] sm:$0xff]
        %v7500 = vld [vmem:[%s9 + $0x68] sm:$0xff]
        %v7501 = vld [vmem:[%s9 + $0x70] sm:$0xff]
        %v7502 = vld [vmem:[%s9 + $0x78] sm:$0xff]
        %v7503 = vld [vmem:[%s9 + $0x80] sm:$0xff]
        %v7504 = vld [vmem:[%s9 + $0x88] sm:$0xff]
        %v7505 = vld [vmem:[%s9 + $0x90] sm:$0xff]
        %v7506 = vld [vmem:[%s9 + $0x98] sm:$0xff]
        %v7507 = vld [vmem:[%s9 + $0xa0] sm:$0xff]
        %v7508 = vld [vmem:[%s9 + $0xa8] sm:$0xff]
        %v7509 = vld [vmem:[%s9 + $0xb0] sm:$0xff]
        %v7510 = vld [vmem:[%s9 + $0xb8] sm:$0xff]
        %v7511 = vld [vmem:[%s9 + $0xc0] sm:$0xff]
        %v7512 = vld [vmem:[%s9 + $0xc8] sm:$0xff]
        %v7513 = vld [vmem:[%s9 + $0xd0] sm:$0xff]
        %v7514 = vld [vmem:[%s9 + $0xd8] sm:$0xff]
        %v7515 = vld [vmem:[%s9 + $0xe0] sm:$0xff]
        %v7516 = vld [vmem:[%s9 + $0xe8] sm:$0xff]
        %v7517 = vld [vmem:[%s9 + $0xf0] sm:$0xff]
        %v7518 = vld [vmem:[%s9 + $0xf8] sm:$0xff]
        %v7519 = vld [vmem:[%s9 + $0x100] sm:$0xff]
        %v7520 = vld [vmem:[%s9 + $0x108] sm:$0xff]
        %v7521 = vld [vmem:[%s9 + $0x110] sm:$0xff]
        %v7522 = vld [vmem:[%s9 + $0x118] sm:$0xff]
        %v7523 = vld [vmem:[%s9 + $0x120] sm:$0xff]
        %v7524 = vld [vmem:[%s9 + $0x128] sm:$0xff]
        %v7525 = vld [vmem:[%s9 + $0x130] sm:$0xff]
        %v7526 = vld [vmem:[%s9 + $0x138] sm:$0xff]
        %v7527 = vld [vmem:[%s9 + $0x140] sm:$0xff]
        %v7528 = vld [vmem:[%s9 + $0x148] sm:$0xff]
        %v7529 = vld [vmem:[%s9 + $0x150] sm:$0xff]
        %v7530 = vld [vmem:[%s9 + $0x158] sm:$0xff]
        %v7531 = vld [vmem:[%s9 + $0x160] sm:$0xff]
        %v7532 = vld [vmem:[%s9 + $0x168] sm:$0xff]
        %v7533 = vld [vmem:[%s9 + $0x170] sm:$0xff]
        %v7534 = vld [vmem:[%s9 + $0x178] sm:$0xff]
        %v7535 = vld [vmem:[%s9 + $0x180] sm:$0xff]
        %v7536 = vld [vmem:[%s9 + $0x188] sm:$0xff]
        %v7537 = vld [vmem:[%s9 + $0x190] sm:$0xff]
        %v7538 = vld [vmem:[%s9 + $0x198] sm:$0xff]
        %v7539 = vld [vmem:[%s9 + $0x1a0] sm:$0xff]
        %v7540 = vld [vmem:[%s9 + $0x1a8] sm:$0xff]
        %v7541 = vld [vmem:[%s9 + $0x1b0] sm:$0xff]
        %v7542 = vld [vmem:[%s9 + $0x1b8] sm:$0xff]
        %v7543 = vld [vmem:[%s9 + $0x1c0] sm:$0xff]
        %v7544 = vld [vmem:[%s9 + $0x1c8] sm:$0xff]
        %v7545 = vld [vmem:[%s9 + $0x1d0] sm:$0xff]
        %v7546 = vld [vmem:[%s9 + $0x1d8] sm:$0xff]
        %v7547 = vld [vmem:[%s9 + $0x1e0] sm:$0xff]
        %v7548 = vld [vmem:[%s9 + $0x1e8] sm:$0xff]
        %v7549 = vld [vmem:[%s9 + $0x1f0] sm:$0xff]
        %v7550 = vld [vmem:[%s9 + $0x1f8] sm:$0xff]
        %v7551 = vld [vmem:[%s9 + $0x200] sm:$0xff]
        %v7552 = vld [vmem:[%s9 + $0x208] sm:$0xff]
        %v7553 = vld [vmem:[%s9 + $0x210] sm:$0xff]
        %v7554 = vld [vmem:[%s9 + $0x218] sm:$0xff]
        %v7555 = vld [vmem:[%s9 + $0x220] sm:$0xff]
        %v7556 = vld [vmem:[%s9 + $0x228] sm:$0xff]
        %v7557 = vld [vmem:[%s9 + $0x230] sm:$0xff]
        %v7558 = vld [vmem:[%s9 + $0x238] sm:$0xff]
        %v7559 = vld [vmem:[%s9 + $0x240] sm:$0xff]
        %v7560 = vld [vmem:[%s9 + $0x248] sm:$0xff]
        %v7561 = vld [vmem:[%s9 + $0x250] sm:$0xff]
        %v7562 = vld [vmem:[%s9 + $0x258] sm:$0xff]
        %v7563 = vld [vmem:[%s9 + $0x260] sm:$0xff]
        %v7564 = vld [vmem:[%s9 + $0x268] sm:$0xff]
        %v7565 = vld [vmem:[%s9 + $0x270] sm:$0xff]
        %v7566 = vld [vmem:[%s9 + $0x278] sm:$0xff]
        %v7567 = vld [vmem:[%s9 + $0x280] sm:$0xff]
        %v7568 = vld [vmem:[%s9 + $0x288] sm:$0xff]
        %v7569 = vld [vmem:[%s9 + $0x290] sm:$0xff]
        %v7570 = vld [vmem:[%s9 + $0x298] sm:$0xff]
        %v7571 = vld [vmem:[%s9 + $0x2a0] sm:$0xff]
        %v7572 = vld [vmem:[%s9 + $0x2a8] sm:$0xff]
        %v7573 = vld [vmem:[%s9 + $0x2b0] sm:$0xff]
        %v7574 = vld [vmem:[%s9 + $0x2b8] sm:$0xff]
        %v7575 = vld [vmem:[%s9 + $0x2c0] sm:$0xff]
        %v7576 = vld [vmem:[%s9 + $0x2c8] sm:$0xff]
        %v7577 = vld [vmem:[%s9 + $0x2d0] sm:$0xff]
        %v7578 = vld [vmem:[%s9 + $0x2d8] sm:$0xff]
        %v7579 = vld [vmem:[%s9 + $0x2e0] sm:$0xff]
        %v7580 = vld [vmem:[%s9 + $0x2e8] sm:$0xff]
        %v7581 = vld [vmem:[%s9 + $0x2f0] sm:$0xff]
        %v7582 = vld [vmem:[%s9 + $0x2f8] sm:$0xff]
        %v7583 = vld [vmem:[%s9 + $0x300] sm:$0xff]
        %v7584 = vld [vmem:[%s9 + $0x308] sm:$0xff]
        %v7585 = vld [vmem:[%s9 + $0x310] sm:$0xff]
        %v7586 = vld [vmem:[%s9 + $0x318] sm:$0xff]
        %v7587 = vld [vmem:[%s9 + $0x320] sm:$0xff]
        %v7588 = vld [vmem:[%s9 + $0x328] sm:$0xff]
        %v7589 = vld [vmem:[%s9 + $0x330] sm:$0xff]
        %v7590 = vld [vmem:[%s9 + $0x338] sm:$0xff]
        %v7591 = vld [vmem:[%s9 + $0x340] sm:$0xff]
        %v7592 = vld [vmem:[%s9 + $0x348] sm:$0xff]
        %v7593 = vld [vmem:[%s9 + $0x350] sm:$0xff]
        %v7594 = vld [vmem:[%s9 + $0x358] sm:$0xff]
        %v7595 = vld [vmem:[%s9 + $0x360] sm:$0xff]
        %v7596 = vld [vmem:[%s9 + $0x368] sm:$0xff]
        %v7597 = vld [vmem:[%s9 + $0x370] sm:$0xff]
        %v7598 = vld [vmem:[%s9 + $0x378] sm:$0xff]
        %v7599 = vld [vmem:[%s9 + $0x380] sm:$0xff]
        %v7600 = vld [vmem:[%s9 + $0x388] sm:$0xff]
        %v7601 = vld [vmem:[%s9 + $0x390] sm:$0xff]
        %v7602 = vld [vmem:[%s9 + $0x398] sm:$0xff]
        %v7603 = vld [vmem:[%s9 + $0x3a0] sm:$0xff]
        %v7604 = vld [vmem:[%s9 + $0x3a8] sm:$0xff]
        %v7605 = vld [vmem:[%s9 + $0x3b0] sm:$0xff]
        %v7606 = vld [vmem:[%s9 + $0x3b8] sm:$0xff]
        %v7607 = vld [vmem:[%s9 + $0x3c0] sm:$0xff]
        %v7608 = vld [vmem:[%s9 + $0x3c8] sm:$0xff]
        %v7609 = vld [vmem:[%s9 + $0x3d0] sm:$0xff]
        %v7610 = vld [vmem:[%s9 + $0x3d8] sm:$0xff]
        %v7611 = vld [vmem:[%s9 + $0x3e0] sm:$0xff]
        %v7612 = vld [vmem:[%s9 + $0x3e8] sm:$0xff]
        %v7613 = vld [vmem:[%s9 + $0x3f0] sm:$0xff]
        %v7614 = vld [vmem:[%s9 + $0x3f8] sm:$0xff]
        %v7615 = vld [vmem:[%s10] sm:$0x3]
        %v7617 = vperm.slane %v7486, 0
        %v7618 = vperm.slane %v7486, 1
        %v7619 = vperm.slane %v7486, 2
        %v7620 = vperm.slane %v7486, 3
        %v7626 = vperm.slane %v7615, 0
        %v7627 = vperm.slane %v7615, 1
        %7630 = vmatpush.msra.mxu0 %v7517
        %7631 = vmatpush.msra.mxu0 %v7515
        %7632 = vmatpush.msra.mxu0 %v7513
        %7633 = vmatpush.msra.mxu0 %v7511
        %7634 = vmatpush.msra.mxu0 %v7509
        %7635 = vmatpush.msra.mxu0 %v7507
        %7636 = vmatpush.msra.mxu0 %v7505
        %7637 = vmatpush.msra.mxu0 %v7503
        %7638 = vmatpush.msra.mxu0 %v7501
        %7639 = vmatpush.msra.mxu0 %v7499
        %7640 = vmatpush.msra.mxu0 %v7497
        %7641 = vmatpush.msra.mxu0 %v7495
        %7642 = vmatpush.msra.mxu0 %v7493
        %7643 = vmatpush.msra.mxu0 %v7491
        %7644 = vmatpush.msra.mxu0 %v7489
        %7645 = vmatpush.msra.mxu0 %v7487
        %7646 = vmatmul.f32.gmra.mxu0 %v7617
        %v7647 = vpop.f32.mrf.mxu0
        %v7648 = vadd.f32 %v7626, %v7647
        %7649 = vdwg.mxu0
        %7650 = vmatpush.msra.mxu0 %v7549
        %7651 = vmatpush.msra.mxu0 %v7547
        %7652 = vmatpush.msra.mxu0 %v7545
        %7653 = vmatpush.msra.mxu0 %v7543
        %7654 = vmatpush.msra.mxu0 %v7541
        %7655 = vmatpush.msra.mxu0 %v7539
        %7656 = vmatpush.msra.mxu0 %v7537
        %7657 = vmatpush.msra.mxu0 %v7535
        %7658 = vmatpush.msra.mxu0 %v7533
        %7659 = vmatpush.msra.mxu0 %v7531
        %7660 = vmatpush.msra.mxu0 %v7529
        %7661 = vmatpush.msra.mxu0 %v7527
        %7662 = vmatpush.msra.mxu0 %v7525
        %7663 = vmatpush.msra.mxu0 %v7523
        %7664 = vmatpush.msra.mxu0 %v7521
        %7665 = vmatpush.msra.mxu0 %v7519
        %7666 = vmatmul.f32.gmra.mxu0 %v7618
        %v7667 = vpop.f32.mrf.mxu0
        %v7668 = vadd.f32 %v7648, %v7667
        %7669 = vdwg.mxu0
        %7670 = vmatpush.msra.mxu0 %v7581
        %7671 = vmatpush.msra.mxu0 %v7579
        %7672 = vmatpush.msra.mxu0 %v7577
        %7673 = vmatpush.msra.mxu0 %v7575
        %7674 = vmatpush.msra.mxu0 %v7573
        %7675 = vmatpush.msra.mxu0 %v7571
        %7676 = vmatpush.msra.mxu0 %v7569
        %7677 = vmatpush.msra.mxu0 %v7567
        %7678 = vmatpush.msra.mxu0 %v7565
        %7679 = vmatpush.msra.mxu0 %v7563
        %7680 = vmatpush.msra.mxu0 %v7561
        %7681 = vmatpush.msra.mxu0 %v7559
        %7682 = vmatpush.msra.mxu0 %v7557
        %7683 = vmatpush.msra.mxu0 %v7555
        %7684 = vmatpush.msra.mxu0 %v7553
        %7685 = vmatpush.msra.mxu0 %v7551
        %7686 = vmatmul.f32.gmra.mxu0 %v7619
        %v7687 = vpop.f32.mrf.mxu0
        %v7688 = vadd.f32 %v7668, %v7687
        %7689 = vdwg.mxu0
        %7690 = vmatpush.msra.mxu0 %v7613
        %7691 = vmatpush.msra.mxu0 %v7611
        %7692 = vmatpush.msra.mxu0 %v7609
        %7693 = vmatpush.msra.mxu0 %v7607
        %7694 = vmatpush.msra.mxu0 %v7605
        %7695 = vmatpush.msra.mxu0 %v7603
        %7696 = vmatpush.msra.mxu0 %v7601
        %7697 = vmatpush.msra.mxu0 %v7599
        %7698 = vmatpush.msra.mxu0 %v7597
        %7699 = vmatpush.msra.mxu0 %v7595
        %7700 = vmatpush.msra.mxu0 %v7593
        %7701 = vmatpush.msra.mxu0 %v7591
        %7702 = vmatpush.msra.mxu0 %v7589
        %7703 = vmatpush.msra.mxu0 %v7587
        %7704 = vmatpush.msra.mxu0 %v7585
        %7705 = vmatpush.msra.mxu0 %v7583
        %7706 = vmatmul.f32.gmra.mxu0 %v7620
        %v7707 = vpop.f32.mrf.mxu0
        %v7708 = vadd.f32 %v7688, %v7707
        %7709 = vdwg.mxu0
        %7710 = vmatpush.msra.mxu0 %v7518
        %7711 = vmatpush.msra.mxu0 %v7516
        %7712 = vmatpush.msra.mxu0 %v7514
        %7713 = vmatpush.msra.mxu0 %v7512
        %7714 = vmatpush.msra.mxu0 %v7510
        %7715 = vmatpush.msra.mxu0 %v7508
        %7716 = vmatpush.msra.mxu0 %v7506
        %7717 = vmatpush.msra.mxu0 %v7504
        %7718 = vmatpush.msra.mxu0 %v7502
        %7719 = vmatpush.msra.mxu0 %v7500
        %7720 = vmatpush.msra.mxu0 %v7498
        %7721 = vmatpush.msra.mxu0 %v7496
        %7722 = vmatpush.msra.mxu0 %v7494
        %7723 = vmatpush.msra.mxu0 %v7492
        %7724 = vmatpush.msra.mxu0 %v7490
        %7725 = vmatpush.msra.mxu0 %v7488
        %7726 = vmatmul.f32.gmra.mxu0 %v7617
        %v7727 = vpop.f32.mrf.mxu0
        %v7728 = vadd.f32 %v7627, %v7727
        %7729 = vdwg.mxu0
        %7730 = vmatpush.msra.mxu0 %v7550
        %7731 = vmatpush.msra.mxu0 %v7548
        %7732 = vmatpush.msra.mxu0 %v7546
        %7733 = vmatpush.msra.mxu0 %v7544
        %7734 = vmatpush.msra.mxu0 %v7542
        %7735 = vmatpush.msra.mxu0 %v7540
        %7736 = vmatpush.msra.mxu0 %v7538
        %7737 = vmatpush.msra.mxu0 %v7536
        %7738 = vmatpush.msra.mxu0 %v7534
        %7739 = vmatpush.msra.mxu0 %v7532
        %7740 = vmatpush.msra.mxu0 %v7530
        %7741 = vmatpush.msra.mxu0 %v7528
        %7742 = vmatpush.msra.mxu0 %v7526
        %7743 = vmatpush.msra.mxu0 %v7524
        %7744 = vmatpush.msra.mxu0 %v7522
        %7745 = vmatpush.msra.mxu0 %v7520
        %7746 = vmatmul.f32.gmra.mxu0 %v7618
        %v7747 = vpop.f32.mrf.mxu0
        %v7748 = vadd.f32 %v7728, %v7747
        %7749 = vdwg.mxu0
        %7750 = vmatpush.msra.mxu0 %v7582
        %7751 = vmatpush.msra.mxu0 %v7580
        %7752 = vmatpush.msra.mxu0 %v7578
        %7753 = vmatpush.msra.mxu0 %v7576
        %7754 = vmatpush.msra.mxu0 %v7574
        %7755 = vmatpush.msra.mxu0 %v7572
        %7756 = vmatpush.msra.mxu0 %v7570
        %7757 = vmatpush.msra.mxu0 %v7568
        %7758 = vmatpush.msra.mxu0 %v7566
        %7759 = vmatpush.msra.mxu0 %v7564
        %7760 = vmatpush.msra.mxu0 %v7562
        %7761 = vmatpush.msra.mxu0 %v7560
        %7762 = vmatpush.msra.mxu0 %v7558
        %7763 = vmatpush.msra.mxu0 %v7556
        %7764 = vmatpush.msra.mxu0 %v7554
        %7765 = vmatpush.msra.mxu0 %v7552
        %7766 = vmatmul.f32.gmra.mxu0 %v7619
        %v7767 = vpop.f32.mrf.mxu0
        %v7768 = vadd.f32 %v7748, %v7767
        %7769 = vdwg.mxu0
        %7770 = vmatpush.msra.mxu0 %v7614
        %7771 = vmatpush.msra.mxu0 %v7612
        %7772 = vmatpush.msra.mxu0 %v7610
        %7773 = vmatpush.msra.mxu0 %v7608
        %7774 = vmatpush.msra.mxu0 %v7606
        %7775 = vmatpush.msra.mxu0 %v7604
        %7776 = vmatpush.msra.mxu0 %v7602
        %7777 = vmatpush.msra.mxu0 %v7600
        %7778 = vmatpush.msra.mxu0 %v7598
        %7779 = vmatpush.msra.mxu0 %v7596
        %7780 = vmatpush.msra.mxu0 %v7594
        %7781 = vmatpush.msra.mxu0 %v7592
        %7782 = vmatpush.msra.mxu0 %v7590
        %7783 = vmatpush.msra.mxu0 %v7588
        %7784 = vmatpush.msra.mxu0 %v7586
        %7785 = vmatpush.msra.mxu0 %v7584
        %7786 = vmatmul.f32.gmra.mxu0 %v7620
        %v7787 = vpop.f32.mrf.mxu0
        %v7788 = vadd.f32 %v7768, %v7787
        %7789 = vdwg.mxu0
        %v7790 = vmax.f32 %v7708, 0.0
        %v7791 = vmax.f32 %v7788, 0.0
        %v7792 = vld [vmem:[%s11] sm:$0x3]
        %v7794 = vperm.slane %v7792, 0
        %v7795 = vperm.slane %v7792, 1
        %v7798 = vmul.f32 %v7790, %v7794
        %v7799 = vmul.f32 %v7791, %v7795
        %v7800 = vld [vmem:[%s12] sm:$0x3]
        %v7802 = vperm.slane %v7800, 0
        %v7803 = vperm.slane %v7800, 1
        %v7806 = vadd.f32 %v7798, %v7802
        %v7807 = vadd.f32 %v7799, %v7803
        %v7808 = vld [vmem:[%s13] sm:$0xff]
        %v7809 = vld [vmem:[%s13 + $0x8] sm:$0xff]
        %v7810 = vld [vmem:[%s13 + $0x10] sm:$0xff]
        %v7811 = vld [vmem:[%s13 + $0x18] sm:$0xff]
        %v7812 = vld [vmem:[%s13 + $0x20] sm:$0xff]
        %v7813 = vld [vmem:[%s13 + $0x28] sm:$0xff]
        %v7814 = vld [vmem:[%s13 + $0x30] sm:$0xff]
        %v7815 = vld [vmem:[%s13 + $0x38] sm:$0xff]
        %v7816 = vld [vmem:[%s13 + $0x40] sm:$0xff]
        %v7817 = vld [vmem:[%s13 + $0x48] sm:$0xff]
        %v7818 = vld [vmem:[%s13 + $0x50] sm:$0xff]
        %v7819 = vld [vmem:[%s13 + $0x58] sm:$0xff]
        %v7820 = vld [vmem:[%s13 + $0x60] sm:$0xff]
        %v7821 = vld [vmem:[%s13 + $0x68] sm:$0xff]
        %v7822 = vld [vmem:[%s13 + $0x70] sm:$0xff]
        %v7823 = vld [vmem:[%s13 + $0x78] sm:$0xff]
        %v7824 = vld [vmem:[%s13 + $0x80] sm:$0xff]
        %v7825 = vld [vmem:[%s13 + $0x88] sm:$0xff]
        %v7826 = vld [vmem:[%s13 + $0x90] sm:$0xff]
        %v7827 = vld [vmem:[%s13 + $0x98] sm:$0xff]
        %v7828 = vld [vmem:[%s13 + $0xa0] sm:$0xff]
        %v7829 = vld [vmem:[%s13 + $0xa8] sm:$0xff]
        %v7830 = vld [vmem:[%s13 + $0xb0] sm:$0xff]
        %v7831 = vld [vmem:[%s13 + $0xb8] sm:$0xff]
        %v7832 = vld [vmem:[%s13 + $0xc0] sm:$0xff]
        %v7833 = vld [vmem:[%s13 + $0xc8] sm:$0xff]
        %v7834 = vld [vmem:[%s13 + $0xd0] sm:$0xff]
        %v7835 = vld [vmem:[%s13 + $0xd8] sm:$0xff]
        %v7836 = vld [vmem:[%s13 + $0xe0] sm:$0xff]
        %v7837 = vld [vmem:[%s13 + $0xe8] sm:$0xff]
        %v7838 = vld [vmem:[%s13 + $0xf0] sm:$0xff]
        %v7839 = vld [vmem:[%s13 + $0xf8] sm:$0xff]
        %v7840 = vld [vmem:[%s14] sm:$0x1]
        %7841 = vmatpush.msra.mxu0 %v7823
        %7842 = vmatpush.msra.mxu0 %v7822
        %7843 = vmatpush.msra.mxu0 %v7821
        %7844 = vmatpush.msra.mxu0 %v7820
        %7845 = vmatpush.msra.mxu0 %v7819
        %7846 = vmatpush.msra.mxu0 %v7818
        %7847 = vmatpush.msra.mxu0 %v7817
        %7848 = vmatpush.msra.mxu0 %v7816
        %7849 = vmatpush.msra.mxu0 %v7815
        %7850 = vmatpush.msra.mxu0 %v7814
        %7851 = vmatpush.msra.mxu0 %v7813
        %7852 = vmatpush.msra.mxu0 %v7812
        %7853 = vmatpush.msra.mxu0 %v7811
        %7854 = vmatpush.msra.mxu0 %v7810
        %7855 = vmatpush.msra.mxu0 %v7809
        %7856 = vmatpush.msra.mxu0 %v7808
        %7857 = vmatmul.f32.gmra.mxu0 %v7806
        %v7858 = vpop.f32.mrf.mxu0
        %v7859 = vadd.f32 %v7840, %v7858
        %7860 = vdwg.mxu0
        %7861 = vmatpush.msra.mxu0 %v7839
        %7862 = vmatpush.msra.mxu0 %v7838
        %7863 = vmatpush.msra.mxu0 %v7837
        %7864 = vmatpush.msra.mxu0 %v7836
        %7865 = vmatpush.msra.mxu0 %v7835
        %7866 = vmatpush.msra.mxu0 %v7834
        %7867 = vmatpush.msra.mxu0 %v7833
        %7868 = vmatpush.msra.mxu0 %v7832
        %7869 = vmatpush.msra.mxu0 %v7831
        %7870 = vmatpush.msra.mxu0 %v7830
        %7871 = vmatpush.msra.mxu0 %v7829
        %7872 = vmatpush.msra.mxu0 %v7828
        %7873 = vmatpush.msra.mxu0 %v7827
        %7874 = vmatpush.msra.mxu0 %v7826
        %7875 = vmatpush.msra.mxu0 %v7825
        %7876 = vmatpush.msra.mxu0 %v7824
        %7877 = vmatmul.f32.gmra.mxu0 %v7807
        %v7878 = vpop.f32.mrf.mxu0
        %v7879 = vadd.f32 %v7859, %v7878
        %7880 = vdwg.mxu0
        %vm7881 = vcmask 73728
        %v7882 = vsel %vm7881, %v7879, -inf
        %7883 = vmax.xlane.f32.xlu0 %v7882
        %v7884 = vpop.xlane.xlu0 %7883
        %v7885 = vsub.f32 %v7879, %v7884
        %v7886 = vmul.f32 %v7885, 1.442695
        %v7887 = vpow.pop %v7886
        %v7888 = vsel %vm7881, %v7887, 0.0
        %7889 = vadd.xlane.f32.xlu0 %v7888
        %v7890 = vpop.xlane.xlu0 %7889
        %v7891 = vlog2.pop %v7890
        %v7892 = vmul.f32 %v7891, 0.6931472
        %v7893 = vsub.f32 %v7885, %v7892
        %7894 = vst.msk [vmem:[%s518] sm:$0x1] %vm7881, %v7893
        %s7895 = sand.u32 %s363, 1
        %s7896 = scalar_lea.sflag [#allocation5], %s7895
        %s7897 = sand.u32 %s363, 1
        %s7898 = scalar_lea.vmem [#allocation6], %s7897
        // Predicated region
        $region85: #{tpu_custom_call.1} parent=79 // pred_check
          %p7899 = pneg %p373
        $region86: #{tpu_custom_call.1} parent=79 // pred_check_branch
          %7901 = sbr.rel (%p7899) target = $region88
        $region87: #{tpu_custom_call.1} parent=79 // pred_region
          %7903 = vsyncadd %s7896, 0
          %s7904 = scalar_lea.hbm %s15, %s30
          %s7906 = sshll.u32 %s7898, 4
          %s7907 = int_to_ptr.vmem [resolvable:$true] %s7906
          %s7908 = sshll.u32 %s7904, 4
          %s7909 = int_to_ptr.hbm [resolvable:$true] %s7908
          %7911 = dma.vmem_to_hbm [thread:$0]  %s7907, 16, %s7909, %s7896
        $region88: #{tpu_custom_call.1} parent=79 // pred_fallthru
          _
      $region80: #{tpu_custom_call.1} parent=5 // pred_fallthru
        _
      %p7912 = scmp.le.s32.totalorder 2, %s25
      // Predicated region
      $region89: #{tpu_custom_call.1} parent=5 // pred_check
        %p7913 = pneg %p7912
      $region90: #{tpu_custom_call.1} parent=5 // pred_check_branch
        %7915 = sbr.rel (%p7913) target = $region92
      $region91: #{tpu_custom_call.1} parent=5 // pred_region
        %s7916 = ssub.s32 %s25, 2
        // Predicated region
        $region93: #{tpu_custom_call.1} parent=91 // pred_check
          %p7917 = pneg %p379
        $region94: #{tpu_custom_call.1} parent=91 // pred_check_branch
          %7919 = sbr.rel (%p7917) target = $region96
        $region95: #{tpu_custom_call.1} parent=91 // pred_region
          %s7920 = sand.u32 %s364, 1
          %s7921 = scalar_lea.sflag [#allocation5], %s7920
          %s7922 = sand.u32 %s364, 1
          %s7923 = scalar_lea.vmem [#allocation6], %s7922
          %7925 = dma.done %s7921, 16
        $region96: #{tpu_custom_call.1} parent=91 // pred_fallthru
          _
      $region92: #{tpu_custom_call.1} parent=5 // pred_fallthru
        _
    $region6: #{tpu_custom_call.1} parent=1 // loop_footer
      %s29 = sadd.s32 1, %s25
    $region7: #{tpu_custom_call.1} parent=1 // loop_footer_branch
      %24 = sbr.rel target = $region3
    $region8: #{tpu_custom_call.1} parent=1 // loop_exit
      _
    %7926 = vsyncpa [#allocation4], 1
    %s7927 = scalar_lea.sflag [#allocation4], 1
    %7928 = vsyncpa %s7927, 1
    %7929 = vsyncpa [#allocation5], 1
    %s7930 = scalar_lea.sflag [#allocation5], 1
    %7931 = vsyncpa %s7930, 1

</llo_original>
